<compile_context>
chip_gen: v5e
topology: v5e:2x2
jax: 0.10.0
libtpu: 0.0.40
codegen_flags: <defaults>
</compile_context>

<pallas_src>
import jax
import jax.numpy as jnp
from jax.experimental import pallas as pl
from jax.experimental.pallas import tpu as pltpu


# ----------------------------------------------------------------------------
# Fused kernel (one grid step == one batch sample)
# ----------------------------------------------------------------------------
def _eegnet_kernel(x_ref, w1_ref, aux1_ref, w2_s, aux2_s, sel_ref,
                   w3m_ref, aux3_ref, wfm_ref, bfc_s, o_ref,
                   ppad_ref, pm_ref, p3pad_ref):
    f32 = jnp.float32

    def elu(v):
        # exp only on the clamped negative side -> no inf on the untaken branch
        return jnp.where(v > 0.0, v, jnp.exp(jnp.minimum(v, 0.0)) - 1.0)

    # ---- conv1 (1x64 over EEG channels): one MXU matmul, time on lanes ------
    pre1 = jnp.dot(w1_ref[...], x_ref[...],
                   preferred_element_type=f32)            # (16, 120)
    b1 = aux1_ref[:, 0:1]
    s1 = aux1_ref[:, 1:2]
    sh1 = aux1_ref[:, 2:3]
    h1 = elu(pre1 + b1) * s1 + sh1                        # (16, 120)

    # ---- permute(0,3,1,2) + ZeroPad2d((16,17,0,1)) into VMEM scratch --------
    ppad_ref[...] = jnp.zeros((17, 153), f32)
    ppad_ref[0:16, 16:136] = h1

    # ---- conv2 (2x32), 4 out channels: direct VPU conv, SMEM scalar weights -
    accs = [jnp.full((16, 122), aux2_s[c], dtype=f32) for c in range(4)]  # bias
    for dh in range(2):
        for dw in range(32):
            sl = ppad_ref[dh:dh + 16, dw:dw + 122]        # (16, 122)
            for c in range(4):
                accs[c] = accs[c] + w2_s[c * 64 + dh * 32 + dw] * sl

    # ---- ELU + BN2 + MaxPool2d(2, stride=4): window maxes, rows = c*4+i -----
    for c in range(4):
        a2c = elu(accs[c]) * aux2_s[4 + c] + aux2_s[8 + c]          # (16, 122)
        for i in range(4):
            rm = jnp.maximum(a2c[4 * i:4 * i + 1, :],
                             a2c[4 * i + 1:4 * i + 2, :])           # (1, 122)
            pm_ref[c * 4 + i:c * 4 + i + 1, :] = jnp.maximum(rm[:, 0:121],
                                                             rm[:, 1:122])

    # stride-4 column selection as a 0/1 matmul: (16,121)@(121,31) -> (16,31)
    pooled2 = jnp.dot(pm_ref[...], sel_ref[...], preferred_element_type=f32)

    # ---- ZeroPad2d((2,1,4,3)) width part (height pad folded into w3m) -------
    p3pad_ref[...] = jnp.zeros((16, 34), f32)
    p3pad_ref[:, 2:33] = pooled2

    # ---- conv3 (8x4, 4->4 ch): 16 tiny MXU matmuls + ELU + BN3 --------------
    b3 = aux3_ref[:, 0:1]
    s3 = aux3_ref[:, 1:2]
    sh3 = aux3_ref[:, 2:3]
    a3 = []
    for h in range(4):
        acc3 = jnp.zeros((4, 31), f32)
        for kw in range(4):
            acc3 = acc3 + jnp.dot(w3m_ref[h * 4 + kw],
                                  p3pad_ref[:, kw:kw + 31],
                                  preferred_element_type=f32)       # (4, 31)
        a3.append(elu(acc3 + b3) * s3 + sh3)

    # ---- MaxPool2d((2,4)) + Linear(56,1) + sigmoid, fully inside VMEM -------
    total = bfc_s[0]
    for i in range(2):
        rm = jnp.maximum(a3[2 * i], a3[2 * i + 1])                  # (4, 31)
        m4 = jnp.maximum(jnp.maximum(rm[:, 0:28], rm[:, 1:29]),
                         jnp.maximum(rm[:, 2:30], rm[:, 3:31]))     # (4, 28)
        total = total + jnp.sum(wfm_ref[i] * m4)
    prob = 1.0 / (1.0 + jnp.exp(-total))

    # lane-dense, unmasked (8,128) output block (wrapper extracts [0,0])
    o_ref[...] = jnp.full((8, 128), prob, dtype=f32)


# ----------------------------------------------------------------------------
# Wrapper: one pallas_call for the whole network
# ----------------------------------------------------------------------------
def eegnet_forward(x, params):
    B = x.shape[0]
    assert x.shape[1:] == (1, 120, 64), "EEGNet_git expects (B, 1, 120, 64)"

    # (B,1,120,64) -> (B,64,120): EEG channels become the matmul contraction
    xT = jnp.transpose(x[:, 0, :, :], (0, 2, 1))

    smem = pl.BlockSpec(memory_space=pltpu.MemorySpace.SMEM)
    out = pl.pallas_call(
        _eegnet_kernel,
        out_shape=jax.ShapeDtypeStruct((B * 8, 128), jnp.float32),
        grid=(B,),
        in_specs=[
            pl.BlockSpec((None, 64, 120), lambda b: (b, 0, 0)),   # x (per sample)
            pl.BlockSpec((16, 64), lambda b: (0, 0)),             # conv1 weight
            pl.BlockSpec((16, 3), lambda b: (0, 0)),              # b1 | bn1 scale/shift
            smem,                                                 # conv2 weight (flat)
            smem,                                                 # b2 | bn2 scale/shift
            pl.BlockSpec((121, 31), lambda b: (0, 0)),            # stride-4 selector
            pl.BlockSpec((16, 4, 16), lambda b: (0, 0, 0)),       # conv3 weight (reorg)
            pl.BlockSpec((4, 3), lambda b: (0, 0)),               # b3 | bn3 scale/shift
            pl.BlockSpec((2, 4, 28), lambda b: (0, 0, 0)),        # fc weight (reorg)
            smem,                                                 # fc bias
        ],
        out_specs=pl.BlockSpec((8, 128), lambda b: (b, 0)),
        scratch_shapes=[
            pltpu.VMEM((17, 153), jnp.float32),   # padded permuted conv1 output
            pltpu.VMEM((16, 121), jnp.float32),   # 2x2 window maxes (pool2)
            pltpu.VMEM((16, 34), jnp.float32),    # width-padded pooled2
        ],
        compiler_params=pltpu.CompilerParams(
            dimension_semantics=("parallel",)),
    )(xT, params["w1T"], params["aux1"], params["w2_flat"], params["aux2_flat"],
      params["sel"], params["w3m"], params["aux3"], params["wfm"], params["bfc"])

    return out.reshape(B, 8, 128)[:, 0, 0:1]                      # (B, 1)


# ----------------------------------------------------------------------------
# Parameter init (PyTorch layouts) + kernel-ready re-layouts
# ----------------------------------------------------------------------------
def init_params(key):
    ks = jax.random.split(key, 20)

    def u(k, shape, fan_in):
        bd = 1.0 / float(fan_in) ** 0.5
        return jax.random.uniform(k, shape, jnp.float32, -bd, bd)

    w1 = u(ks[0], (16, 1, 1, 64), 64)     # conv1 (out, in, kh, kw)
    b1 = u(ks[1], (16,), 64)
    w2 = u(ks[2], (4, 1, 2, 32), 64)      # conv2
    b2 = u(ks[3], (4,), 64)
    w3 = u(ks[4], (4, 4, 8, 4), 128)      # conv3
    b3 = u(ks[5], (4,), 128)
    wf = u(ks[6], (1, 56), 56)            # fc1
    bf = u(ks[7], (1,), 56)

    def bn_fold(kg, kb, km, kv, n):
        # BatchNorm2d(n, False): second positional arg is eps -> eps = 0.0
        gamma = 1.0 + 0.1 * jax.random.normal(kg, (n,), jnp.float32)
        beta = 0.1 * jax.random.normal(kb, (n,), jnp.float32)
        mean = 0.1 * jax.random.normal(km, (n,), jnp.float32)
        var = 0.5 + jax.random.uniform(kv, (n,), jnp.float32)
        scale = gamma / jnp.sqrt(var + 0.0)
        shift = beta - mean * scale
        return scale, shift

    s1, sh1 = bn_fold(ks[8], ks[9], ks[10], ks[11], 16)
    s2, sh2 = bn_fold(ks[12], ks[13], ks[14], ks[15], 4)
    s3, sh3 = bn_fold(ks[16], ks[17], ks[18], ks[19], 4)

    # conv3 weights with ZeroPad2d((2,1,4,3)) height geometry folded in:
    # w3m[h*4+kw, c_out, c_in*4+i] = w3[c_out, c_in, 4-h+i, kw]
    w3m = jnp.zeros((16, 4, 16), jnp.float32)
    for h in range(4):
        for kw in range(4):
            w3m = w3m.at[h * 4 + kw].set(w3[:, :, 4 - h:8 - h, kw].reshape(4, 16))

    # fc weights scattered onto the (4,28) shifted-max map (stride-4 columns)
    wf3 = wf.reshape(4, 2, 7)                                   # [c, i, j]
    wfm = jnp.zeros((2, 4, 28), jnp.float32)
    wfm = wfm.at[:, :, 0::4].set(jnp.transpose(wf3, (1, 0, 2)))

    # 0/1 stride-4 column selector for MaxPool2d(2, stride=4)
    sel = (jnp.arange(121)[:, None] == (4 * jnp.arange(31))[None, :]
           ).astype(jnp.float32)

    params = dict(
        w1T=w1.reshape(16, 64),                     # (c_out, eeg_channel)
        aux1=jnp.stack([b1, s1, sh1], axis=1),      # (16, 3)
        w2_flat=w2.reshape(-1),                     # (256,) idx = c*64+kh*32+kw
        aux2_flat=jnp.concatenate([b2, s2, sh2]),   # (12,)
        sel=sel,                                    # (121, 31)
        w3m=w3m,                                    # (16, 4, 16)
        aux3=jnp.stack([b3, s3, sh3], axis=1),      # (4, 3)
        wfm=wfm,                                    # (2, 4, 28)
        bfc=bf,                                     # (1,)
    )
    raw = dict(w1=w1, b1=b1, w2=w2, b2=b2, w3=w3, b3=b3, wf=wf, bf=bf,
               s1=s1, sh1=sh1, s2=s2, sh2=sh2, s3=s3, sh3=sh3)
    return params, raw


# ----------------------------------------------------------------------------
# Plain-JAX reference (mirrors EEGNet_git.forward, inference mode)
# ----------------------------------------------------------------------------
def eegnet_reference(x, raw):
    hi = jax.lax.Precision.HIGHEST

    def conv(v, w, b):
        y = jax.lax.conv_general_dilated(
            v, w, window_strides=(1, 1), padding="VALID",
            dimension_numbers=("NCHW", "OIHW", "NCHW"), precision=hi)
        return y + b[None, :, None, None]

    def elu(v):
        return jnp.where(v > 0, v, jnp.exp(jnp.minimum(v, 0.0)) - 1.0)

    def bn(v, s, sh):
        return v * s[None, :, None, None] + sh[None, :, None, None]

    h = bn(elu(conv(x, raw["w1"], raw["b1"])), raw["s1"], raw["sh1"])
    h = jnp.transpose(h, (0, 3, 1, 2))
    h = jnp.pad(h, ((0, 0), (0, 0), (0, 1), (16, 17)))
    h = bn(elu(conv(h, raw["w2"], raw["b2"])), raw["s2"], raw["sh2"])
    h = jax.lax.reduce_window(h, -jnp.inf, jax.lax.max,
                              (1, 1, 2, 2), (1, 1, 4, 4), "VALID")
    h = jnp.pad(h, ((0, 0), (0, 0), (4, 3), (2, 1)))
    h = bn(elu(conv(h, raw["w3"], raw["b3"])), raw["s3"], raw["sh3"])
    h = jax.lax.reduce_window(h, -jnp.inf, jax.lax.max,
                              (1, 1, 2, 4), (1, 1, 2, 4), "VALID")
    flat = h.reshape(x.shape[0], 56)
    return jax.nn.sigmoid(jnp.dot(flat, raw["wf"].T, precision=hi) + raw["bf"])


if __name__ == "__main__":
    key = jax.random.PRNGKey(0)
    pkey, xkey = jax.random.split(key)
    params, raw = init_params(pkey)
    # fc1 = Linear(4*2*7, 1) pins the spatial shape to (120, 64); batch is free.
    x = jax.random.normal(xkey, (2, 1, 120, 64), jnp.float32)

    out = jax.jit(eegnet_forward)(x, params)
    jax.block_until_ready(out)
    assert out.shape == (2, 1)
    assert bool(jnp.all(jnp.isfinite(out)))

    ref = eegnet_reference(x, raw)
    assert bool(jnp.allclose(out, ref, atol=1e-3, rtol=1e-3)), (out, ref)
    print("KERNEL_OK")
</pallas_src>

<mosaic_0001>
module attributes {stable_mosaic.version = 11 : i64} {
  func.func @_eegnet_kernel(%arg0: i32, %arg1: memref<1x64x120xf32, #tpu.memory_space<vmem>>, %arg2: memref<16x64xf32, #tpu.memory_space<vmem>>, %arg3: memref<16x3xf32, #tpu.memory_space<vmem>>, %arg4: memref<256xf32, #tpu.memory_space<smem>>, %arg5: memref<12xf32, #tpu.memory_space<smem>>, %arg6: memref<121x31xf32, #tpu.memory_space<vmem>>, %arg7: memref<16x4x16xf32, #tpu.memory_space<vmem>>, %arg8: memref<4x3xf32, #tpu.memory_space<vmem>>, %arg9: memref<2x4x28xf32, #tpu.memory_space<vmem>>, %arg10: memref<1xf32, #tpu.memory_space<smem>>, %arg11: memref<8x128xf32, #tpu.memory_space<vmem>>, %arg12: memref<17x153xf32, #tpu.memory_space<vmem>>, %arg13: memref<16x121xf32, #tpu.memory_space<vmem>>, %arg14: memref<16x34xf32, #tpu.memory_space<vmem>>) attributes {dimension_semantics = [#tpu.dimension_semantics<parallel>], iteration_bounds = array<i64: 2>, scalar_prefetch = 0 : i64, scratch_operands = 3 : i64, tpu.core_type = #tpu.core_type<tc>, window_params = [{transform_indices = @transform_0, window_bounds = array<i64: 1, 64, 120>}, {pipeline_mode = #tpu.pipeline_mode<synchronous>, transform_indices = @transform_1, window_bounds = array<i64: 16, 64>}, {pipeline_mode = #tpu.pipeline_mode<synchronous>, transform_indices = @transform_2, window_bounds = array<i64: 16, 3>}, {transform_indices = @transform_3, window_bounds = array<i64: 256>}, {transform_indices = @transform_4, window_bounds = array<i64: 12>}, {pipeline_mode = #tpu.pipeline_mode<synchronous>, transform_indices = @transform_5, window_bounds = array<i64: 121, 31>}, {pipeline_mode = #tpu.pipeline_mode<synchronous>, transform_indices = @transform_6, window_bounds = array<i64: 16, 4, 16>}, {pipeline_mode = #tpu.pipeline_mode<synchronous>, transform_indices = @transform_7, window_bounds = array<i64: 4, 3>}, {pipeline_mode = #tpu.pipeline_mode<synchronous>, transform_indices = @transform_8, window_bounds = array<i64: 2, 4, 28>}, {transform_indices = @transform_9, window_bounds = array<i64: 1>}, {transform_indices = @transform_10, window_bounds = array<i64: 8, 128>}]} {
    %c0 = arith.constant 0 : index
    %c0_0 = arith.constant 0 : index
    %0 = vector.load %arg2[%c0, %c0_0] : memref<16x64xf32, #tpu.memory_space<vmem>>, vector<16x64xf32>
    %c0_1 = arith.constant 0 : index
    %c0_2 = arith.constant 0 : index
    %c0_3 = arith.constant 0 : index
    %1 = vector.load %arg1[%c0_1, %c0_2, %c0_3] : memref<1x64x120xf32, #tpu.memory_space<vmem>>, vector<1x64x120xf32>
    %2 = vector.shape_cast %1 : vector<1x64x120xf32> to vector<64x120xf32>
    %cst = arith.constant dense<0.000000e+00> : vector<16x120xf32>
    %3 = tpu.matmul %0, %2, %cst {dimension_numbers = #tpu.dot_dimension_numbers<[1], [0], [0], [1], [0, 0, 1, 1], [], []>} : vector<16x64xf32>, vector<64x120xf32>, vector<16x120xf32> -> vector<16x120xf32>
    %c0_4 = arith.constant 0 : index
    %c0_5 = arith.constant 0 : index
    %4 = vector.load %arg3[%c0_4, %c0_5] : memref<16x3xf32, #tpu.memory_space<vmem>>, vector<16x1xf32>
    %c0_6 = arith.constant 0 : index
    %c1 = arith.constant 1 : index
    %5 = vector.load %arg3[%c0_6, %c1] : memref<16x3xf32, #tpu.memory_space<vmem>>, vector<16x1xf32>
    %c0_7 = arith.constant 0 : index
    %c2 = arith.constant 2 : index
    %6 = vector.load %arg3[%c0_7, %c2] : memref<16x3xf32, #tpu.memory_space<vmem>>, vector<16x1xf32>
    %7 = vector.broadcast %4 : vector<16x1xf32> to vector<16x120xf32>
    %8 = arith.addf %3, %7 : vector<16x120xf32>
    %cst_8 = arith.constant 0.000000e+00 : f32
    %9 = vector.broadcast %cst_8 : f32 to vector<16x120xf32>
    %10 = arith.cmpf ogt, %8, %9 : vector<16x120xf32>
    %cst_9 = arith.constant 0.000000e+00 : f32
    %11 = vector.broadcast %cst_9 : f32 to vector<16x120xf32>
    %12 = arith.minimumf %8, %11 : vector<16x120xf32>
    %13 = math.exp %12 : vector<16x120xf32>
    %cst_10 = arith.constant 1.000000e+00 : f32
    %14 = vector.broadcast %cst_10 : f32 to vector<16x120xf32>
    %15 = arith.subf %13, %14 : vector<16x120xf32>
    %16 = arith.select %10, %8, %15 : vector<16x120xi1>, vector<16x120xf32>
    %17 = vector.broadcast %5 : vector<16x1xf32> to vector<16x120xf32>
    %18 = arith.mulf %16, %17 : vector<16x120xf32>
    %19 = vector.broadcast %6 : vector<16x1xf32> to vector<16x120xf32>
    %20 = arith.addf %18, %19 : vector<16x120xf32>
    %cst_11 = arith.constant 0.000000e+00 : f32
    %21 = vector.broadcast %cst_11 : f32 to vector<17x153xf32>
    %c0_12 = arith.constant 0 : index
    %c0_13 = arith.constant 0 : index
    %22 = vector.load %arg12[%c0_12, %c0_13] : memref<17x153xf32, #tpu.memory_space<vmem>>, vector<17x153xf32>
    tpu.vector_store %arg12[%c0_12, %c0_13], %21 {strides = array<i32>} : memref<17x153xf32, #tpu.memory_space<vmem>>, vector<17x153xf32>,
    %c0_14 = arith.constant 0 : index
    %c16 = arith.constant 16 : index
    %23 = vector.load %arg12[%c0_14, %c16] : memref<17x153xf32, #tpu.memory_space<vmem>>, vector<16x120xf32>
    tpu.vector_store %arg12[%c0_14, %c16], %20 {strides = array<i32>} : memref<17x153xf32, #tpu.memory_space<vmem>>, vector<16x120xf32>,
    %c0_15 = arith.constant 0 : index
    %24 = memref.load %arg5[%c0_15] : memref<12xf32, #tpu.memory_space<smem>>
    %25 = vector.broadcast %24 : f32 to vector<16x122xf32>
    %c1_16 = arith.constant 1 : index
    %26 = memref.load %arg5[%c1_16] : memref<12xf32, #tpu.memory_space<smem>>
    %27 = vector.broadcast %26 : f32 to vector<16x122xf32>
    %c2_17 = arith.constant 2 : index
    %28 = memref.load %arg5[%c2_17] : memref<12xf32, #tpu.memory_space<smem>>
    %29 = vector.broadcast %28 : f32 to vector<16x122xf32>
    %c3 = arith.constant 3 : index
    %30 = memref.load %arg5[%c3] : memref<12xf32, #tpu.memory_space<smem>>
    %31 = vector.broadcast %30 : f32 to vector<16x122xf32>
    %c0_18 = arith.constant 0 : index
    %c0_19 = arith.constant 0 : index
    %32 = vector.load %arg12[%c0_18, %c0_19] : memref<17x153xf32, #tpu.memory_space<vmem>>, vector<16x122xf32>
    %c0_20 = arith.constant 0 : index
    %33 = memref.load %arg4[%c0_20] : memref<256xf32, #tpu.memory_space<smem>>
    %34 = vector.broadcast %33 : f32 to vector<16x122xf32>
    %35 = arith.mulf %34, %32 : vector<16x122xf32>
    %36 = arith.addf %25, %35 : vector<16x122xf32>
    %c64 = arith.constant 64 : index
    %37 = memref.load %arg4[%c64] : memref<256xf32, #tpu.memory_space<smem>>
    %38 = vector.broadcast %37 : f32 to vector<16x122xf32>
    %39 = arith.mulf %38, %32 : vector<16x122xf32>
    %40 = arith.addf %27, %39 : vector<16x122xf32>
    %c128 = arith.constant 128 : index
    %41 = memref.load %arg4[%c128] : memref<256xf32, #tpu.memory_space<smem>>
    %42 = vector.broadcast %41 : f32 to vector<16x122xf32>
    %43 = arith.mulf %42, %32 : vector<16x122xf32>
    %44 = arith.addf %29, %43 : vector<16x122xf32>
    %c192 = arith.constant 192 : index
    %45 = memref.load %arg4[%c192] : memref<256xf32, #tpu.memory_space<smem>>
    %46 = vector.broadcast %45 : f32 to vector<16x122xf32>
    %47 = arith.mulf %46, %32 : vector<16x122xf32>
    %48 = arith.addf %31, %47 : vector<16x122xf32>
    %c0_21 = arith.constant 0 : index
    %c1_22 = arith.constant 1 : index
    %49 = vector.load %arg12[%c0_21, %c1_22] : memref<17x153xf32, #tpu.memory_space<vmem>>, vector<16x122xf32>
    %c1_23 = arith.constant 1 : index
    %50 = memref.load %arg4[%c1_23] : memref<256xf32, #tpu.memory_space<smem>>
    %51 = vector.broadcast %50 : f32 to vector<16x122xf32>
    %52 = arith.mulf %51, %49 : vector<16x122xf32>
    %53 = arith.addf %36, %52 : vector<16x122xf32>
    %c65 = arith.constant 65 : index
    %54 = memref.load %arg4[%c65] : memref<256xf32, #tpu.memory_space<smem>>
    %55 = vector.broadcast %54 : f32 to vector<16x122xf32>
    %56 = arith.mulf %55, %49 : vector<16x122xf32>
    %57 = arith.addf %40, %56 : vector<16x122xf32>
    %c129 = arith.constant 129 : index
    %58 = memref.load %arg4[%c129] : memref<256xf32, #tpu.memory_space<smem>>
    %59 = vector.broadcast %58 : f32 to vector<16x122xf32>
    %60 = arith.mulf %59, %49 : vector<16x122xf32>
    %61 = arith.addf %44, %60 : vector<16x122xf32>
    %c193 = arith.constant 193 : index
    %62 = memref.load %arg4[%c193] : memref<256xf32, #tpu.memory_space<smem>>
    %63 = vector.broadcast %62 : f32 to vector<16x122xf32>
    %64 = arith.mulf %63, %49 : vector<16x122xf32>
    %65 = arith.addf %48, %64 : vector<16x122xf32>
    %c0_24 = arith.constant 0 : index
    %c2_25 = arith.constant 2 : index
    %66 = vector.load %arg12[%c0_24, %c2_25] : memref<17x153xf32, #tpu.memory_space<vmem>>, vector<16x122xf32>
    %c2_26 = arith.constant 2 : index
    %67 = memref.load %arg4[%c2_26] : memref<256xf32, #tpu.memory_space<smem>>
    %68 = vector.broadcast %67 : f32 to vector<16x122xf32>
    %69 = arith.mulf %68, %66 : vector<16x122xf32>
    %70 = arith.addf %53, %69 : vector<16x122xf32>
    %c66 = arith.constant 66 : index
    %71 = memref.load %arg4[%c66] : memref<256xf32, #tpu.memory_space<smem>>
    %72 = vector.broadcast %71 : f32 to vector<16x122xf32>
    %73 = arith.mulf %72, %66 : vector<16x122xf32>
    %74 = arith.addf %57, %73 : vector<16x122xf32>
    %c130 = arith.constant 130 : index
    %75 = memref.load %arg4[%c130] : memref<256xf32, #tpu.memory_space<smem>>
    %76 = vector.broadcast %75 : f32 to vector<16x122xf32>
    %77 = arith.mulf %76, %66 : vector<16x122xf32>
    %78 = arith.addf %61, %77 : vector<16x122xf32>
    %c194 = arith.constant 194 : index
    %79 = memref.load %arg4[%c194] : memref<256xf32, #tpu.memory_space<smem>>
    %80 = vector.broadcast %79 : f32 to vector<16x122xf32>
    %81 = arith.mulf %80, %66 : vector<16x122xf32>
    %82 = arith.addf %65, %81 : vector<16x122xf32>
    %c0_27 = arith.constant 0 : index
    %c3_28 = arith.constant 3 : index
    %83 = vector.load %arg12[%c0_27, %c3_28] : memref<17x153xf32, #tpu.memory_space<vmem>>, vector<16x122xf32>
    %c3_29 = arith.constant 3 : index
    %84 = memref.load %arg4[%c3_29] : memref<256xf32, #tpu.memory_space<smem>>
    %85 = vector.broadcast %84 : f32 to vector<16x122xf32>
    %86 = arith.mulf %85, %83 : vector<16x122xf32>
    %87 = arith.addf %70, %86 : vector<16x122xf32>
    %c67 = arith.constant 67 : index
    %88 = memref.load %arg4[%c67] : memref<256xf32, #tpu.memory_space<smem>>
    %89 = vector.broadcast %88 : f32 to vector<16x122xf32>
    %90 = arith.mulf %89, %83 : vector<16x122xf32>
    %91 = arith.addf %74, %90 : vector<16x122xf32>
    %c131 = arith.constant 131 : index
    %92 = memref.load %arg4[%c131] : memref<256xf32, #tpu.memory_space<smem>>
    %93 = vector.broadcast %92 : f32 to vector<16x122xf32>
    %94 = arith.mulf %93, %83 : vector<16x122xf32>
    %95 = arith.addf %78, %94 : vector<16x122xf32>
    %c195 = arith.constant 195 : index
    %96 = memref.load %arg4[%c195] : memref<256xf32, #tpu.memory_space<smem>>
    %97 = vector.broadcast %96 : f32 to vector<16x122xf32>
    %98 = arith.mulf %97, %83 : vector<16x122xf32>
    %99 = arith.addf %82, %98 : vector<16x122xf32>
    %c0_30 = arith.constant 0 : index
    %c4 = arith.constant 4 : index
    %100 = vector.load %arg12[%c0_30, %c4] : memref<17x153xf32, #tpu.memory_space<vmem>>, vector<16x122xf32>
    %c4_31 = arith.constant 4 : index
    %101 = memref.load %arg4[%c4_31] : memref<256xf32, #tpu.memory_space<smem>>
    %102 = vector.broadcast %101 : f32 to vector<16x122xf32>
    %103 = arith.mulf %102, %100 : vector<16x122xf32>
    %104 = arith.addf %87, %103 : vector<16x122xf32>
    %c68 = arith.constant 68 : index
    %105 = memref.load %arg4[%c68] : memref<256xf32, #tpu.memory_space<smem>>
    %106 = vector.broadcast %105 : f32 to vector<16x122xf32>
    %107 = arith.mulf %106, %100 : vector<16x122xf32>
    %108 = arith.addf %91, %107 : vector<16x122xf32>
    %c132 = arith.constant 132 : index
    %109 = memref.load %arg4[%c132] : memref<256xf32, #tpu.memory_space<smem>>
    %110 = vector.broadcast %109 : f32 to vector<16x122xf32>
    %111 = arith.mulf %110, %100 : vector<16x122xf32>
    %112 = arith.addf %95, %111 : vector<16x122xf32>
    %c196 = arith.constant 196 : index
    %113 = memref.load %arg4[%c196] : memref<256xf32, #tpu.memory_space<smem>>
    %114 = vector.broadcast %113 : f32 to vector<16x122xf32>
    %115 = arith.mulf %114, %100 : vector<16x122xf32>
    %116 = arith.addf %99, %115 : vector<16x122xf32>
    %c0_32 = arith.constant 0 : index
    %c5 = arith.constant 5 : index
    %117 = vector.load %arg12[%c0_32, %c5] : memref<17x153xf32, #tpu.memory_space<vmem>>, vector<16x122xf32>
    %c5_33 = arith.constant 5 : index
    %118 = memref.load %arg4[%c5_33] : memref<256xf32, #tpu.memory_space<smem>>
    %119 = vector.broadcast %118 : f32 to vector<16x122xf32>
    %120 = arith.mulf %119, %117 : vector<16x122xf32>
    %121 = arith.addf %104, %120 : vector<16x122xf32>
    %c69 = arith.constant 69 : index
    %122 = memref.load %arg4[%c69] : memref<256xf32, #tpu.memory_space<smem>>
    %123 = vector.broadcast %122 : f32 to vector<16x122xf32>
    %124 = arith.mulf %123, %117 : vector<16x122xf32>
    %125 = arith.addf %108, %124 : vector<16x122xf32>
    %c133 = arith.constant 133 : index
    %126 = memref.load %arg4[%c133] : memref<256xf32, #tpu.memory_space<smem>>
    %127 = vector.broadcast %126 : f32 to vector<16x122xf32>
    %128 = arith.mulf %127, %117 : vector<16x122xf32>
    %129 = arith.addf %112, %128 : vector<16x122xf32>
    %c197 = arith.constant 197 : index
    %130 = memref.load %arg4[%c197] : memref<256xf32, #tpu.memory_space<smem>>
    %131 = vector.broadcast %130 : f32 to vector<16x122xf32>
    %132 = arith.mulf %131, %117 : vector<16x122xf32>
    %133 = arith.addf %116, %132 : vector<16x122xf32>
    %c0_34 = arith.constant 0 : index
    %c6 = arith.constant 6 : index
    %134 = vector.load %arg12[%c0_34, %c6] : memref<17x153xf32, #tpu.memory_space<vmem>>, vector<16x122xf32>
    %c6_35 = arith.constant 6 : index
    %135 = memref.load %arg4[%c6_35] : memref<256xf32, #tpu.memory_space<smem>>
    %136 = vector.broadcast %135 : f32 to vector<16x122xf32>
    %137 = arith.mulf %136, %134 : vector<16x122xf32>
    %138 = arith.addf %121, %137 : vector<16x122xf32>
    %c70 = arith.constant 70 : index
    %139 = memref.load %arg4[%c70] : memref<256xf32, #tpu.memory_space<smem>>
    %140 = vector.broadcast %139 : f32 to vector<16x122xf32>
    %141 = arith.mulf %140, %134 : vector<16x122xf32>
    %142 = arith.addf %125, %141 : vector<16x122xf32>
    %c134 = arith.constant 134 : index
    %143 = memref.load %arg4[%c134] : memref<256xf32, #tpu.memory_space<smem>>
    %144 = vector.broadcast %143 : f32 to vector<16x122xf32>
    %145 = arith.mulf %144, %134 : vector<16x122xf32>
    %146 = arith.addf %129, %145 : vector<16x122xf32>
    %c198 = arith.constant 198 : index
    %147 = memref.load %arg4[%c198] : memref<256xf32, #tpu.memory_space<smem>>
    %148 = vector.broadcast %147 : f32 to vector<16x122xf32>
    %149 = arith.mulf %148, %134 : vector<16x122xf32>
    %150 = arith.addf %133, %149 : vector<16x122xf32>
    %c0_36 = arith.constant 0 : index
    %c7 = arith.constant 7 : index
    %151 = vector.load %arg12[%c0_36, %c7] : memref<17x153xf32, #tpu.memory_space<vmem>>, vector<16x122xf32>
    %c7_37 = arith.constant 7 : index
    %152 = memref.load %arg4[%c7_37] : memref<256xf32, #tpu.memory_space<smem>>
    %153 = vector.broadcast %152 : f32 to vector<16x122xf32>
    %154 = arith.mulf %153, %151 : vector<16x122xf32>
    %155 = arith.addf %138, %154 : vector<16x122xf32>
    %c71 = arith.constant 71 : index
    %156 = memref.load %arg4[%c71] : memref<256xf32, #tpu.memory_space<smem>>
    %157 = vector.broadcast %156 : f32 to vector<16x122xf32>
    %158 = arith.mulf %157, %151 : vector<16x122xf32>
    %159 = arith.addf %142, %158 : vector<16x122xf32>
    %c135 = arith.constant 135 : index
    %160 = memref.load %arg4[%c135] : memref<256xf32, #tpu.memory_space<smem>>
    %161 = vector.broadcast %160 : f32 to vector<16x122xf32>
    %162 = arith.mulf %161, %151 : vector<16x122xf32>
    %163 = arith.addf %146, %162 : vector<16x122xf32>
    %c199 = arith.constant 199 : index
    %164 = memref.load %arg4[%c199] : memref<256xf32, #tpu.memory_space<smem>>
    %165 = vector.broadcast %164 : f32 to vector<16x122xf32>
    %166 = arith.mulf %165, %151 : vector<16x122xf32>
    %167 = arith.addf %150, %166 : vector<16x122xf32>
    %c0_38 = arith.constant 0 : index
    %c8 = arith.constant 8 : index
    %168 = vector.load %arg12[%c0_38, %c8] : memref<17x153xf32, #tpu.memory_space<vmem>>, vector<16x122xf32>
    %c8_39 = arith.constant 8 : index
    %169 = memref.load %arg4[%c8_39] : memref<256xf32, #tpu.memory_space<smem>>
    %170 = vector.broadcast %169 : f32 to vector<16x122xf32>
    %171 = arith.mulf %170, %168 : vector<16x122xf32>
    %172 = arith.addf %155, %171 : vector<16x122xf32>
    %c72 = arith.constant 72 : index
    %173 = memref.load %arg4[%c72] : memref<256xf32, #tpu.memory_space<smem>>
    %174 = vector.broadcast %173 : f32 to vector<16x122xf32>
    %175 = arith.mulf %174, %168 : vector<16x122xf32>
    %176 = arith.addf %159, %175 : vector<16x122xf32>
    %c136 = arith.constant 136 : index
    %177 = memref.load %arg4[%c136] : memref<256xf32, #tpu.memory_space<smem>>
    %178 = vector.broadcast %177 : f32 to vector<16x122xf32>
    %179 = arith.mulf %178, %168 : vector<16x122xf32>
    %180 = arith.addf %163, %179 : vector<16x122xf32>
    %c200 = arith.constant 200 : index
    %181 = memref.load %arg4[%c200] : memref<256xf32, #tpu.memory_space<smem>>
    %182 = vector.broadcast %181 : f32 to vector<16x122xf32>
    %183 = arith.mulf %182, %168 : vector<16x122xf32>
    %184 = arith.addf %167, %183 : vector<16x122xf32>
    %c0_40 = arith.constant 0 : index
    %c9 = arith.constant 9 : index
    %185 = vector.load %arg12[%c0_40, %c9] : memref<17x153xf32, #tpu.memory_space<vmem>>, vector<16x122xf32>
    %c9_41 = arith.constant 9 : index
    %186 = memref.load %arg4[%c9_41] : memref<256xf32, #tpu.memory_space<smem>>
    %187 = vector.broadcast %186 : f32 to vector<16x122xf32>
    %188 = arith.mulf %187, %185 : vector<16x122xf32>
    %189 = arith.addf %172, %188 : vector<16x122xf32>
    %c73 = arith.constant 73 : index
    %190 = memref.load %arg4[%c73] : memref<256xf32, #tpu.memory_space<smem>>
    %191 = vector.broadcast %190 : f32 to vector<16x122xf32>
    %192 = arith.mulf %191, %185 : vector<16x122xf32>
    %193 = arith.addf %176, %192 : vector<16x122xf32>
    %c137 = arith.constant 137 : index
    %194 = memref.load %arg4[%c137] : memref<256xf32, #tpu.memory_space<smem>>
    %195 = vector.broadcast %194 : f32 to vector<16x122xf32>
    %196 = arith.mulf %195, %185 : vector<16x122xf32>
    %197 = arith.addf %180, %196 : vector<16x122xf32>
    %c201 = arith.constant 201 : index
    %198 = memref.load %arg4[%c201] : memref<256xf32, #tpu.memory_space<smem>>
    %199 = vector.broadcast %198 : f32 to vector<16x122xf32>
    %200 = arith.mulf %199, %185 : vector<16x122xf32>
    %201 = arith.addf %184, %200 : vector<16x122xf32>
    %c0_42 = arith.constant 0 : index
    %c10 = arith.constant 10 : index
    %202 = vector.load %arg12[%c0_42, %c10] : memref<17x153xf32, #tpu.memory_space<vmem>>, vector<16x122xf32>
    %c10_43 = arith.constant 10 : index
    %203 = memref.load %arg4[%c10_43] : memref<256xf32, #tpu.memory_space<smem>>
    %204 = vector.broadcast %203 : f32 to vector<16x122xf32>
    %205 = arith.mulf %204, %202 : vector<16x122xf32>
    %206 = arith.addf %189, %205 : vector<16x122xf32>
    %c74 = arith.constant 74 : index
    %207 = memref.load %arg4[%c74] : memref<256xf32, #tpu.memory_space<smem>>
    %208 = vector.broadcast %207 : f32 to vector<16x122xf32>
    %209 = arith.mulf %208, %202 : vector<16x122xf32>
    %210 = arith.addf %193, %209 : vector<16x122xf32>
    %c138 = arith.constant 138 : index
    %211 = memref.load %arg4[%c138] : memref<256xf32, #tpu.memory_space<smem>>
    %212 = vector.broadcast %211 : f32 to vector<16x122xf32>
    %213 = arith.mulf %212, %202 : vector<16x122xf32>
    %214 = arith.addf %197, %213 : vector<16x122xf32>
    %c202 = arith.constant 202 : index
    %215 = memref.load %arg4[%c202] : memref<256xf32, #tpu.memory_space<smem>>
    %216 = vector.broadcast %215 : f32 to vector<16x122xf32>
    %217 = arith.mulf %216, %202 : vector<16x122xf32>
    %218 = arith.addf %201, %217 : vector<16x122xf32>
    %c0_44 = arith.constant 0 : index
    %c11 = arith.constant 11 : index
    %219 = vector.load %arg12[%c0_44, %c11] : memref<17x153xf32, #tpu.memory_space<vmem>>, vector<16x122xf32>
    %c11_45 = arith.constant 11 : index
    %220 = memref.load %arg4[%c11_45] : memref<256xf32, #tpu.memory_space<smem>>
    %221 = vector.broadcast %220 : f32 to vector<16x122xf32>
    %222 = arith.mulf %221, %219 : vector<16x122xf32>
    %223 = arith.addf %206, %222 : vector<16x122xf32>
    %c75 = arith.constant 75 : index
    %224 = memref.load %arg4[%c75] : memref<256xf32, #tpu.memory_space<smem>>
    %225 = vector.broadcast %224 : f32 to vector<16x122xf32>
    %226 = arith.mulf %225, %219 : vector<16x122xf32>
    %227 = arith.addf %210, %226 : vector<16x122xf32>
    %c139 = arith.constant 139 : index
    %228 = memref.load %arg4[%c139] : memref<256xf32, #tpu.memory_space<smem>>
    %229 = vector.broadcast %228 : f32 to vector<16x122xf32>
    %230 = arith.mulf %229, %219 : vector<16x122xf32>
    %231 = arith.addf %214, %230 : vector<16x122xf32>
    %c203 = arith.constant 203 : index
    %232 = memref.load %arg4[%c203] : memref<256xf32, #tpu.memory_space<smem>>
    %233 = vector.broadcast %232 : f32 to vector<16x122xf32>
    %234 = arith.mulf %233, %219 : vector<16x122xf32>
    %235 = arith.addf %218, %234 : vector<16x122xf32>
    %c0_46 = arith.constant 0 : index
    %c12 = arith.constant 12 : index
    %236 = vector.load %arg12[%c0_46, %c12] : memref<17x153xf32, #tpu.memory_space<vmem>>, vector<16x122xf32>
    %c12_47 = arith.constant 12 : index
    %237 = memref.load %arg4[%c12_47] : memref<256xf32, #tpu.memory_space<smem>>
    %238 = vector.broadcast %237 : f32 to vector<16x122xf32>
    %239 = arith.mulf %238, %236 : vector<16x122xf32>
    %240 = arith.addf %223, %239 : vector<16x122xf32>
    %c76 = arith.constant 76 : index
    %241 = memref.load %arg4[%c76] : memref<256xf32, #tpu.memory_space<smem>>
    %242 = vector.broadcast %241 : f32 to vector<16x122xf32>
    %243 = arith.mulf %242, %236 : vector<16x122xf32>
    %244 = arith.addf %227, %243 : vector<16x122xf32>
    %c140 = arith.constant 140 : index
    %245 = memref.load %arg4[%c140] : memref<256xf32, #tpu.memory_space<smem>>
    %246 = vector.broadcast %245 : f32 to vector<16x122xf32>
    %247 = arith.mulf %246, %236 : vector<16x122xf32>
    %248 = arith.addf %231, %247 : vector<16x122xf32>
    %c204 = arith.constant 204 : index
    %249 = memref.load %arg4[%c204] : memref<256xf32, #tpu.memory_space<smem>>
    %250 = vector.broadcast %249 : f32 to vector<16x122xf32>
    %251 = arith.mulf %250, %236 : vector<16x122xf32>
    %252 = arith.addf %235, %251 : vector<16x122xf32>
    %c0_48 = arith.constant 0 : index
    %c13 = arith.constant 13 : index
    %253 = vector.load %arg12[%c0_48, %c13] : memref<17x153xf32, #tpu.memory_space<vmem>>, vector<16x122xf32>
    %c13_49 = arith.constant 13 : index
    %254 = memref.load %arg4[%c13_49] : memref<256xf32, #tpu.memory_space<smem>>
    %255 = vector.broadcast %254 : f32 to vector<16x122xf32>
    %256 = arith.mulf %255, %253 : vector<16x122xf32>
    %257 = arith.addf %240, %256 : vector<16x122xf32>
    %c77 = arith.constant 77 : index
    %258 = memref.load %arg4[%c77] : memref<256xf32, #tpu.memory_space<smem>>
    %259 = vector.broadcast %258 : f32 to vector<16x122xf32>
    %260 = arith.mulf %259, %253 : vector<16x122xf32>
    %261 = arith.addf %244, %260 : vector<16x122xf32>
    %c141 = arith.constant 141 : index
    %262 = memref.load %arg4[%c141] : memref<256xf32, #tpu.memory_space<smem>>
    %263 = vector.broadcast %262 : f32 to vector<16x122xf32>
    %264 = arith.mulf %263, %253 : vector<16x122xf32>
    %265 = arith.addf %248, %264 : vector<16x122xf32>
    %c205 = arith.constant 205 : index
    %266 = memref.load %arg4[%c205] : memref<256xf32, #tpu.memory_space<smem>>
    %267 = vector.broadcast %266 : f32 to vector<16x122xf32>
    %268 = arith.mulf %267, %253 : vector<16x122xf32>
    %269 = arith.addf %252, %268 : vector<16x122xf32>
    %c0_50 = arith.constant 0 : index
    %c14 = arith.constant 14 : index
    %270 = vector.load %arg12[%c0_50, %c14] : memref<17x153xf32, #tpu.memory_space<vmem>>, vector<16x122xf32>
    %c14_51 = arith.constant 14 : index
    %271 = memref.load %arg4[%c14_51] : memref<256xf32, #tpu.memory_space<smem>>
    %272 = vector.broadcast %271 : f32 to vector<16x122xf32>
    %273 = arith.mulf %272, %270 : vector<16x122xf32>
    %274 = arith.addf %257, %273 : vector<16x122xf32>
    %c78 = arith.constant 78 : index
    %275 = memref.load %arg4[%c78] : memref<256xf32, #tpu.memory_space<smem>>
    %276 = vector.broadcast %275 : f32 to vector<16x122xf32>
    %277 = arith.mulf %276, %270 : vector<16x122xf32>
    %278 = arith.addf %261, %277 : vector<16x122xf32>
    %c142 = arith.constant 142 : index
    %279 = memref.load %arg4[%c142] : memref<256xf32, #tpu.memory_space<smem>>
    %280 = vector.broadcast %279 : f32 to vector<16x122xf32>
    %281 = arith.mulf %280, %270 : vector<16x122xf32>
    %282 = arith.addf %265, %281 : vector<16x122xf32>
    %c206 = arith.constant 206 : index
    %283 = memref.load %arg4[%c206] : memref<256xf32, #tpu.memory_space<smem>>
    %284 = vector.broadcast %283 : f32 to vector<16x122xf32>
    %285 = arith.mulf %284, %270 : vector<16x122xf32>
    %286 = arith.addf %269, %285 : vector<16x122xf32>
    %c0_52 = arith.constant 0 : index
    %c15 = arith.constant 15 : index
    %287 = vector.load %arg12[%c0_52, %c15] : memref<17x153xf32, #tpu.memory_space<vmem>>, vector<16x122xf32>
    %c15_53 = arith.constant 15 : index
    %288 = memref.load %arg4[%c15_53] : memref<256xf32, #tpu.memory_space<smem>>
    %289 = vector.broadcast %288 : f32 to vector<16x122xf32>
    %290 = arith.mulf %289, %287 : vector<16x122xf32>
    %291 = arith.addf %274, %290 : vector<16x122xf32>
    %c79 = arith.constant 79 : index
    %292 = memref.load %arg4[%c79] : memref<256xf32, #tpu.memory_space<smem>>
    %293 = vector.broadcast %292 : f32 to vector<16x122xf32>
    %294 = arith.mulf %293, %287 : vector<16x122xf32>
    %295 = arith.addf %278, %294 : vector<16x122xf32>
    %c143 = arith.constant 143 : index
    %296 = memref.load %arg4[%c143] : memref<256xf32, #tpu.memory_space<smem>>
    %297 = vector.broadcast %296 : f32 to vector<16x122xf32>
    %298 = arith.mulf %297, %287 : vector<16x122xf32>
    %299 = arith.addf %282, %298 : vector<16x122xf32>
    %c207 = arith.constant 207 : index
    %300 = memref.load %arg4[%c207] : memref<256xf32, #tpu.memory_space<smem>>
    %301 = vector.broadcast %300 : f32 to vector<16x122xf32>
    %302 = arith.mulf %301, %287 : vector<16x122xf32>
    %303 = arith.addf %286, %302 : vector<16x122xf32>
    %c0_54 = arith.constant 0 : index
    %c16_55 = arith.constant 16 : index
    %304 = vector.load %arg12[%c0_54, %c16_55] : memref<17x153xf32, #tpu.memory_space<vmem>>, vector<16x122xf32>
    %c16_56 = arith.constant 16 : index
    %305 = memref.load %arg4[%c16_56] : memref<256xf32, #tpu.memory_space<smem>>
    %306 = vector.broadcast %305 : f32 to vector<16x122xf32>
    %307 = arith.mulf %306, %304 : vector<16x122xf32>
    %308 = arith.addf %291, %307 : vector<16x122xf32>
    %c80 = arith.constant 80 : index
    %309 = memref.load %arg4[%c80] : memref<256xf32, #tpu.memory_space<smem>>
    %310 = vector.broadcast %309 : f32 to vector<16x122xf32>
    %311 = arith.mulf %310, %304 : vector<16x122xf32>
    %312 = arith.addf %295, %311 : vector<16x122xf32>
    %c144 = arith.constant 144 : index
    %313 = memref.load %arg4[%c144] : memref<256xf32, #tpu.memory_space<smem>>
    %314 = vector.broadcast %313 : f32 to vector<16x122xf32>
    %315 = arith.mulf %314, %304 : vector<16x122xf32>
    %316 = arith.addf %299, %315 : vector<16x122xf32>
    %c208 = arith.constant 208 : index
    %317 = memref.load %arg4[%c208] : memref<256xf32, #tpu.memory_space<smem>>
    %318 = vector.broadcast %317 : f32 to vector<16x122xf32>
    %319 = arith.mulf %318, %304 : vector<16x122xf32>
    %320 = arith.addf %303, %319 : vector<16x122xf32>
    %c0_57 = arith.constant 0 : index
    %c17 = arith.constant 17 : index
    %321 = vector.load %arg12[%c0_57, %c17] : memref<17x153xf32, #tpu.memory_space<vmem>>, vector<16x122xf32>
    %c17_58 = arith.constant 17 : index
    %322 = memref.load %arg4[%c17_58] : memref<256xf32, #tpu.memory_space<smem>>
    %323 = vector.broadcast %322 : f32 to vector<16x122xf32>
    %324 = arith.mulf %323, %321 : vector<16x122xf32>
    %325 = arith.addf %308, %324 : vector<16x122xf32>
    %c81 = arith.constant 81 : index
    %326 = memref.load %arg4[%c81] : memref<256xf32, #tpu.memory_space<smem>>
    %327 = vector.broadcast %326 : f32 to vector<16x122xf32>
    %328 = arith.mulf %327, %321 : vector<16x122xf32>
    %329 = arith.addf %312, %328 : vector<16x122xf32>
    %c145 = arith.constant 145 : index
    %330 = memref.load %arg4[%c145] : memref<256xf32, #tpu.memory_space<smem>>
    %331 = vector.broadcast %330 : f32 to vector<16x122xf32>
    %332 = arith.mulf %331, %321 : vector<16x122xf32>
    %333 = arith.addf %316, %332 : vector<16x122xf32>
    %c209 = arith.constant 209 : index
    %334 = memref.load %arg4[%c209] : memref<256xf32, #tpu.memory_space<smem>>
    %335 = vector.broadcast %334 : f32 to vector<16x122xf32>
    %336 = arith.mulf %335, %321 : vector<16x122xf32>
    %337 = arith.addf %320, %336 : vector<16x122xf32>
    %c0_59 = arith.constant 0 : index
    %c18 = arith.constant 18 : index
    %338 = vector.load %arg12[%c0_59, %c18] : memref<17x153xf32, #tpu.memory_space<vmem>>, vector<16x122xf32>
    %c18_60 = arith.constant 18 : index
    %339 = memref.load %arg4[%c18_60] : memref<256xf32, #tpu.memory_space<smem>>
    %340 = vector.broadcast %339 : f32 to vector<16x122xf32>
    %341 = arith.mulf %340, %338 : vector<16x122xf32>
    %342 = arith.addf %325, %341 : vector<16x122xf32>
    %c82 = arith.constant 82 : index
    %343 = memref.load %arg4[%c82] : memref<256xf32, #tpu.memory_space<smem>>
    %344 = vector.broadcast %343 : f32 to vector<16x122xf32>
    %345 = arith.mulf %344, %338 : vector<16x122xf32>
    %346 = arith.addf %329, %345 : vector<16x122xf32>
    %c146 = arith.constant 146 : index
    %347 = memref.load %arg4[%c146] : memref<256xf32, #tpu.memory_space<smem>>
    %348 = vector.broadcast %347 : f32 to vector<16x122xf32>
    %349 = arith.mulf %348, %338 : vector<16x122xf32>
    %350 = arith.addf %333, %349 : vector<16x122xf32>
    %c210 = arith.constant 210 : index
    %351 = memref.load %arg4[%c210] : memref<256xf32, #tpu.memory_space<smem>>
    %352 = vector.broadcast %351 : f32 to vector<16x122xf32>
    %353 = arith.mulf %352, %338 : vector<16x122xf32>
    %354 = arith.addf %337, %353 : vector<16x122xf32>
    %c0_61 = arith.constant 0 : index
    %c19 = arith.constant 19 : index
    %355 = vector.load %arg12[%c0_61, %c19] : memref<17x153xf32, #tpu.memory_space<vmem>>, vector<16x122xf32>
    %c19_62 = arith.constant 19 : index
    %356 = memref.load %arg4[%c19_62] : memref<256xf32, #tpu.memory_space<smem>>
    %357 = vector.broadcast %356 : f32 to vector<16x122xf32>
    %358 = arith.mulf %357, %355 : vector<16x122xf32>
    %359 = arith.addf %342, %358 : vector<16x122xf32>
    %c83 = arith.constant 83 : index
    %360 = memref.load %arg4[%c83] : memref<256xf32, #tpu.memory_space<smem>>
    %361 = vector.broadcast %360 : f32 to vector<16x122xf32>
    %362 = arith.mulf %361, %355 : vector<16x122xf32>
    %363 = arith.addf %346, %362 : vector<16x122xf32>
    %c147 = arith.constant 147 : index
    %364 = memref.load %arg4[%c147] : memref<256xf32, #tpu.memory_space<smem>>
    %365 = vector.broadcast %364 : f32 to vector<16x122xf32>
    %366 = arith.mulf %365, %355 : vector<16x122xf32>
    %367 = arith.addf %350, %366 : vector<16x122xf32>
    %c211 = arith.constant 211 : index
    %368 = memref.load %arg4[%c211] : memref<256xf32, #tpu.memory_space<smem>>
    %369 = vector.broadcast %368 : f32 to vector<16x122xf32>
    %370 = arith.mulf %369, %355 : vector<16x122xf32>
    %371 = arith.addf %354, %370 : vector<16x122xf32>
    %c0_63 = arith.constant 0 : index
    %c20 = arith.constant 20 : index
    %372 = vector.load %arg12[%c0_63, %c20] : memref<17x153xf32, #tpu.memory_space<vmem>>, vector<16x122xf32>
    %c20_64 = arith.constant 20 : index
    %373 = memref.load %arg4[%c20_64] : memref<256xf32, #tpu.memory_space<smem>>
    %374 = vector.broadcast %373 : f32 to vector<16x122xf32>
    %375 = arith.mulf %374, %372 : vector<16x122xf32>
    %376 = arith.addf %359, %375 : vector<16x122xf32>
    %c84 = arith.constant 84 : index
    %377 = memref.load %arg4[%c84] : memref<256xf32, #tpu.memory_space<smem>>
    %378 = vector.broadcast %377 : f32 to vector<16x122xf32>
    %379 = arith.mulf %378, %372 : vector<16x122xf32>
    %380 = arith.addf %363, %379 : vector<16x122xf32>
    %c148 = arith.constant 148 : index
    %381 = memref.load %arg4[%c148] : memref<256xf32, #tpu.memory_space<smem>>
    %382 = vector.broadcast %381 : f32 to vector<16x122xf32>
    %383 = arith.mulf %382, %372 : vector<16x122xf32>
    %384 = arith.addf %367, %383 : vector<16x122xf32>
    %c212 = arith.constant 212 : index
    %385 = memref.load %arg4[%c212] : memref<256xf32, #tpu.memory_space<smem>>
    %386 = vector.broadcast %385 : f32 to vector<16x122xf32>
    %387 = arith.mulf %386, %372 : vector<16x122xf32>
    %388 = arith.addf %371, %387 : vector<16x122xf32>
    %c0_65 = arith.constant 0 : index
    %c21 = arith.constant 21 : index
    %389 = vector.load %arg12[%c0_65, %c21] : memref<17x153xf32, #tpu.memory_space<vmem>>, vector<16x122xf32>
    %c21_66 = arith.constant 21 : index
    %390 = memref.load %arg4[%c21_66] : memref<256xf32, #tpu.memory_space<smem>>
    %391 = vector.broadcast %390 : f32 to vector<16x122xf32>
    %392 = arith.mulf %391, %389 : vector<16x122xf32>
    %393 = arith.addf %376, %392 : vector<16x122xf32>
    %c85 = arith.constant 85 : index
    %394 = memref.load %arg4[%c85] : memref<256xf32, #tpu.memory_space<smem>>
    %395 = vector.broadcast %394 : f32 to vector<16x122xf32>
    %396 = arith.mulf %395, %389 : vector<16x122xf32>
    %397 = arith.addf %380, %396 : vector<16x122xf32>
    %c149 = arith.constant 149 : index
    %398 = memref.load %arg4[%c149] : memref<256xf32, #tpu.memory_space<smem>>
    %399 = vector.broadcast %398 : f32 to vector<16x122xf32>
    %400 = arith.mulf %399, %389 : vector<16x122xf32>
    %401 = arith.addf %384, %400 : vector<16x122xf32>
    %c213 = arith.constant 213 : index
    %402 = memref.load %arg4[%c213] : memref<256xf32, #tpu.memory_space<smem>>
    %403 = vector.broadcast %402 : f32 to vector<16x122xf32>
    %404 = arith.mulf %403, %389 : vector<16x122xf32>
    %405 = arith.addf %388, %404 : vector<16x122xf32>
    %c0_67 = arith.constant 0 : index
    %c22 = arith.constant 22 : index
    %406 = vector.load %arg12[%c0_67, %c22] : memref<17x153xf32, #tpu.memory_space<vmem>>, vector<16x122xf32>
    %c22_68 = arith.constant 22 : index
    %407 = memref.load %arg4[%c22_68] : memref<256xf32, #tpu.memory_space<smem>>
    %408 = vector.broadcast %407 : f32 to vector<16x122xf32>
    %409 = arith.mulf %408, %406 : vector<16x122xf32>
    %410 = arith.addf %393, %409 : vector<16x122xf32>
    %c86 = arith.constant 86 : index
    %411 = memref.load %arg4[%c86] : memref<256xf32, #tpu.memory_space<smem>>
    %412 = vector.broadcast %411 : f32 to vector<16x122xf32>
    %413 = arith.mulf %412, %406 : vector<16x122xf32>
    %414 = arith.addf %397, %413 : vector<16x122xf32>
    %c150 = arith.constant 150 : index
    %415 = memref.load %arg4[%c150] : memref<256xf32, #tpu.memory_space<smem>>
    %416 = vector.broadcast %415 : f32 to vector<16x122xf32>
    %417 = arith.mulf %416, %406 : vector<16x122xf32>
    %418 = arith.addf %401, %417 : vector<16x122xf32>
    %c214 = arith.constant 214 : index
    %419 = memref.load %arg4[%c214] : memref<256xf32, #tpu.memory_space<smem>>
    %420 = vector.broadcast %419 : f32 to vector<16x122xf32>
    %421 = arith.mulf %420, %406 : vector<16x122xf32>
    %422 = arith.addf %405, %421 : vector<16x122xf32>
    %c0_69 = arith.constant 0 : index
    %c23 = arith.constant 23 : index
    %423 = vector.load %arg12[%c0_69, %c23] : memref<17x153xf32, #tpu.memory_space<vmem>>, vector<16x122xf32>
    %c23_70 = arith.constant 23 : index
    %424 = memref.load %arg4[%c23_70] : memref<256xf32, #tpu.memory_space<smem>>
    %425 = vector.broadcast %424 : f32 to vector<16x122xf32>
    %426 = arith.mulf %425, %423 : vector<16x122xf32>
    %427 = arith.addf %410, %426 : vector<16x122xf32>
    %c87 = arith.constant 87 : index
    %428 = memref.load %arg4[%c87] : memref<256xf32, #tpu.memory_space<smem>>
    %429 = vector.broadcast %428 : f32 to vector<16x122xf32>
    %430 = arith.mulf %429, %423 : vector<16x122xf32>
    %431 = arith.addf %414, %430 : vector<16x122xf32>
    %c151 = arith.constant 151 : index
    %432 = memref.load %arg4[%c151] : memref<256xf32, #tpu.memory_space<smem>>
    %433 = vector.broadcast %432 : f32 to vector<16x122xf32>
    %434 = arith.mulf %433, %423 : vector<16x122xf32>
    %435 = arith.addf %418, %434 : vector<16x122xf32>
    %c215 = arith.constant 215 : index
    %436 = memref.load %arg4[%c215] : memref<256xf32, #tpu.memory_space<smem>>
    %437 = vector.broadcast %436 : f32 to vector<16x122xf32>
    %438 = arith.mulf %437, %423 : vector<16x122xf32>
    %439 = arith.addf %422, %438 : vector<16x122xf32>
    %c0_71 = arith.constant 0 : index
    %c24 = arith.constant 24 : index
    %440 = vector.load %arg12[%c0_71, %c24] : memref<17x153xf32, #tpu.memory_space<vmem>>, vector<16x122xf32>
    %c24_72 = arith.constant 24 : index
    %441 = memref.load %arg4[%c24_72] : memref<256xf32, #tpu.memory_space<smem>>
    %442 = vector.broadcast %441 : f32 to vector<16x122xf32>
    %443 = arith.mulf %442, %440 : vector<16x122xf32>
    %444 = arith.addf %427, %443 : vector<16x122xf32>
    %c88 = arith.constant 88 : index
    %445 = memref.load %arg4[%c88] : memref<256xf32, #tpu.memory_space<smem>>
    %446 = vector.broadcast %445 : f32 to vector<16x122xf32>
    %447 = arith.mulf %446, %440 : vector<16x122xf32>
    %448 = arith.addf %431, %447 : vector<16x122xf32>
    %c152 = arith.constant 152 : index
    %449 = memref.load %arg4[%c152] : memref<256xf32, #tpu.memory_space<smem>>
    %450 = vector.broadcast %449 : f32 to vector<16x122xf32>
    %451 = arith.mulf %450, %440 : vector<16x122xf32>
    %452 = arith.addf %435, %451 : vector<16x122xf32>
    %c216 = arith.constant 216 : index
    %453 = memref.load %arg4[%c216] : memref<256xf32, #tpu.memory_space<smem>>
    %454 = vector.broadcast %453 : f32 to vector<16x122xf32>
    %455 = arith.mulf %454, %440 : vector<16x122xf32>
    %456 = arith.addf %439, %455 : vector<16x122xf32>
    %c0_73 = arith.constant 0 : index
    %c25 = arith.constant 25 : index
    %457 = vector.load %arg12[%c0_73, %c25] : memref<17x153xf32, #tpu.memory_space<vmem>>, vector<16x122xf32>
    %c25_74 = arith.constant 25 : index
    %458 = memref.load %arg4[%c25_74] : memref<256xf32, #tpu.memory_space<smem>>
    %459 = vector.broadcast %458 : f32 to vector<16x122xf32>
    %460 = arith.mulf %459, %457 : vector<16x122xf32>
    %461 = arith.addf %444, %460 : vector<16x122xf32>
    %c89 = arith.constant 89 : index
    %462 = memref.load %arg4[%c89] : memref<256xf32, #tpu.memory_space<smem>>
    %463 = vector.broadcast %462 : f32 to vector<16x122xf32>
    %464 = arith.mulf %463, %457 : vector<16x122xf32>
    %465 = arith.addf %448, %464 : vector<16x122xf32>
    %c153 = arith.constant 153 : index
    %466 = memref.load %arg4[%c153] : memref<256xf32, #tpu.memory_space<smem>>
    %467 = vector.broadcast %466 : f32 to vector<16x122xf32>
    %468 = arith.mulf %467, %457 : vector<16x122xf32>
    %469 = arith.addf %452, %468 : vector<16x122xf32>
    %c217 = arith.constant 217 : index
    %470 = memref.load %arg4[%c217] : memref<256xf32, #tpu.memory_space<smem>>
    %471 = vector.broadcast %470 : f32 to vector<16x122xf32>
    %472 = arith.mulf %471, %457 : vector<16x122xf32>
    %473 = arith.addf %456, %472 : vector<16x122xf32>
    %c0_75 = arith.constant 0 : index
    %c26 = arith.constant 26 : index
    %474 = vector.load %arg12[%c0_75, %c26] : memref<17x153xf32, #tpu.memory_space<vmem>>, vector<16x122xf32>
    %c26_76 = arith.constant 26 : index
    %475 = memref.load %arg4[%c26_76] : memref<256xf32, #tpu.memory_space<smem>>
    %476 = vector.broadcast %475 : f32 to vector<16x122xf32>
    %477 = arith.mulf %476, %474 : vector<16x122xf32>
    %478 = arith.addf %461, %477 : vector<16x122xf32>
    %c90 = arith.constant 90 : index
    %479 = memref.load %arg4[%c90] : memref<256xf32, #tpu.memory_space<smem>>
    %480 = vector.broadcast %479 : f32 to vector<16x122xf32>
    %481 = arith.mulf %480, %474 : vector<16x122xf32>
    %482 = arith.addf %465, %481 : vector<16x122xf32>
    %c154 = arith.constant 154 : index
    %483 = memref.load %arg4[%c154] : memref<256xf32, #tpu.memory_space<smem>>
    %484 = vector.broadcast %483 : f32 to vector<16x122xf32>
    %485 = arith.mulf %484, %474 : vector<16x122xf32>
    %486 = arith.addf %469, %485 : vector<16x122xf32>
    %c218 = arith.constant 218 : index
    %487 = memref.load %arg4[%c218] : memref<256xf32, #tpu.memory_space<smem>>
    %488 = vector.broadcast %487 : f32 to vector<16x122xf32>
    %489 = arith.mulf %488, %474 : vector<16x122xf32>
    %490 = arith.addf %473, %489 : vector<16x122xf32>
    %c0_77 = arith.constant 0 : index
    %c27 = arith.constant 27 : index
    %491 = vector.load %arg12[%c0_77, %c27] : memref<17x153xf32, #tpu.memory_space<vmem>>, vector<16x122xf32>
    %c27_78 = arith.constant 27 : index
    %492 = memref.load %arg4[%c27_78] : memref<256xf32, #tpu.memory_space<smem>>
    %493 = vector.broadcast %492 : f32 to vector<16x122xf32>
    %494 = arith.mulf %493, %491 : vector<16x122xf32>
    %495 = arith.addf %478, %494 : vector<16x122xf32>
    %c91 = arith.constant 91 : index
    %496 = memref.load %arg4[%c91] : memref<256xf32, #tpu.memory_space<smem>>
    %497 = vector.broadcast %496 : f32 to vector<16x122xf32>
    %498 = arith.mulf %497, %491 : vector<16x122xf32>
    %499 = arith.addf %482, %498 : vector<16x122xf32>
    %c155 = arith.constant 155 : index
    %500 = memref.load %arg4[%c155] : memref<256xf32, #tpu.memory_space<smem>>
    %501 = vector.broadcast %500 : f32 to vector<16x122xf32>
    %502 = arith.mulf %501, %491 : vector<16x122xf32>
    %503 = arith.addf %486, %502 : vector<16x122xf32>
    %c219 = arith.constant 219 : index
    %504 = memref.load %arg4[%c219] : memref<256xf32, #tpu.memory_space<smem>>
    %505 = vector.broadcast %504 : f32 to vector<16x122xf32>
    %506 = arith.mulf %505, %491 : vector<16x122xf32>
    %507 = arith.addf %490, %506 : vector<16x122xf32>
    %c0_79 = arith.constant 0 : index
    %c28 = arith.constant 28 : index
    %508 = vector.load %arg12[%c0_79, %c28] : memref<17x153xf32, #tpu.memory_space<vmem>>, vector<16x122xf32>
    %c28_80 = arith.constant 28 : index
    %509 = memref.load %arg4[%c28_80] : memref<256xf32, #tpu.memory_space<smem>>
    %510 = vector.broadcast %509 : f32 to vector<16x122xf32>
    %511 = arith.mulf %510, %508 : vector<16x122xf32>
    %512 = arith.addf %495, %511 : vector<16x122xf32>
    %c92 = arith.constant 92 : index
    %513 = memref.load %arg4[%c92] : memref<256xf32, #tpu.memory_space<smem>>
    %514 = vector.broadcast %513 : f32 to vector<16x122xf32>
    %515 = arith.mulf %514, %508 : vector<16x122xf32>
    %516 = arith.addf %499, %515 : vector<16x122xf32>
    %c156 = arith.constant 156 : index
    %517 = memref.load %arg4[%c156] : memref<256xf32, #tpu.memory_space<smem>>
    %518 = vector.broadcast %517 : f32 to vector<16x122xf32>
    %519 = arith.mulf %518, %508 : vector<16x122xf32>
    %520 = arith.addf %503, %519 : vector<16x122xf32>
    %c220 = arith.constant 220 : index
    %521 = memref.load %arg4[%c220] : memref<256xf32, #tpu.memory_space<smem>>
    %522 = vector.broadcast %521 : f32 to vector<16x122xf32>
    %523 = arith.mulf %522, %508 : vector<16x122xf32>
    %524 = arith.addf %507, %523 : vector<16x122xf32>
    %c0_81 = arith.constant 0 : index
    %c29 = arith.constant 29 : index
    %525 = vector.load %arg12[%c0_81, %c29] : memref<17x153xf32, #tpu.memory_space<vmem>>, vector<16x122xf32>
    %c29_82 = arith.constant 29 : index
    %526 = memref.load %arg4[%c29_82] : memref<256xf32, #tpu.memory_space<smem>>
    %527 = vector.broadcast %526 : f32 to vector<16x122xf32>
    %528 = arith.mulf %527, %525 : vector<16x122xf32>
    %529 = arith.addf %512, %528 : vector<16x122xf32>
    %c93 = arith.constant 93 : index
    %530 = memref.load %arg4[%c93] : memref<256xf32, #tpu.memory_space<smem>>
    %531 = vector.broadcast %530 : f32 to vector<16x122xf32>
    %532 = arith.mulf %531, %525 : vector<16x122xf32>
    %533 = arith.addf %516, %532 : vector<16x122xf32>
    %c157 = arith.constant 157 : index
    %534 = memref.load %arg4[%c157] : memref<256xf32, #tpu.memory_space<smem>>
    %535 = vector.broadcast %534 : f32 to vector<16x122xf32>
    %536 = arith.mulf %535, %525 : vector<16x122xf32>
    %537 = arith.addf %520, %536 : vector<16x122xf32>
    %c221 = arith.constant 221 : index
    %538 = memref.load %arg4[%c221] : memref<256xf32, #tpu.memory_space<smem>>
    %539 = vector.broadcast %538 : f32 to vector<16x122xf32>
    %540 = arith.mulf %539, %525 : vector<16x122xf32>
    %541 = arith.addf %524, %540 : vector<16x122xf32>
    %c0_83 = arith.constant 0 : index
    %c30 = arith.constant 30 : index
    %542 = vector.load %arg12[%c0_83, %c30] : memref<17x153xf32, #tpu.memory_space<vmem>>, vector<16x122xf32>
    %c30_84 = arith.constant 30 : index
    %543 = memref.load %arg4[%c30_84] : memref<256xf32, #tpu.memory_space<smem>>
    %544 = vector.broadcast %543 : f32 to vector<16x122xf32>
    %545 = arith.mulf %544, %542 : vector<16x122xf32>
    %546 = arith.addf %529, %545 : vector<16x122xf32>
    %c94 = arith.constant 94 : index
    %547 = memref.load %arg4[%c94] : memref<256xf32, #tpu.memory_space<smem>>
    %548 = vector.broadcast %547 : f32 to vector<16x122xf32>
    %549 = arith.mulf %548, %542 : vector<16x122xf32>
    %550 = arith.addf %533, %549 : vector<16x122xf32>
    %c158 = arith.constant 158 : index
    %551 = memref.load %arg4[%c158] : memref<256xf32, #tpu.memory_space<smem>>
    %552 = vector.broadcast %551 : f32 to vector<16x122xf32>
    %553 = arith.mulf %552, %542 : vector<16x122xf32>
    %554 = arith.addf %537, %553 : vector<16x122xf32>
    %c222 = arith.constant 222 : index
    %555 = memref.load %arg4[%c222] : memref<256xf32, #tpu.memory_space<smem>>
    %556 = vector.broadcast %555 : f32 to vector<16x122xf32>
    %557 = arith.mulf %556, %542 : vector<16x122xf32>
    %558 = arith.addf %541, %557 : vector<16x122xf32>
    %c0_85 = arith.constant 0 : index
    %c31 = arith.constant 31 : index
    %559 = vector.load %arg12[%c0_85, %c31] : memref<17x153xf32, #tpu.memory_space<vmem>>, vector<16x122xf32>
    %c31_86 = arith.constant 31 : index
    %560 = memref.load %arg4[%c31_86] : memref<256xf32, #tpu.memory_space<smem>>
    %561 = vector.broadcast %560 : f32 to vector<16x122xf32>
    %562 = arith.mulf %561, %559 : vector<16x122xf32>
    %563 = arith.addf %546, %562 : vector<16x122xf32>
    %c95 = arith.constant 95 : index
    %564 = memref.load %arg4[%c95] : memref<256xf32, #tpu.memory_space<smem>>
    %565 = vector.broadcast %564 : f32 to vector<16x122xf32>
    %566 = arith.mulf %565, %559 : vector<16x122xf32>
    %567 = arith.addf %550, %566 : vector<16x122xf32>
    %c159 = arith.constant 159 : index
    %568 = memref.load %arg4[%c159] : memref<256xf32, #tpu.memory_space<smem>>
    %569 = vector.broadcast %568 : f32 to vector<16x122xf32>
    %570 = arith.mulf %569, %559 : vector<16x122xf32>
    %571 = arith.addf %554, %570 : vector<16x122xf32>
    %c223 = arith.constant 223 : index
    %572 = memref.load %arg4[%c223] : memref<256xf32, #tpu.memory_space<smem>>
    %573 = vector.broadcast %572 : f32 to vector<16x122xf32>
    %574 = arith.mulf %573, %559 : vector<16x122xf32>
    %575 = arith.addf %558, %574 : vector<16x122xf32>
    %c1_87 = arith.constant 1 : index
    %c0_88 = arith.constant 0 : index
    %576 = vector.load %arg12[%c1_87, %c0_88] : memref<17x153xf32, #tpu.memory_space<vmem>>, vector<16x122xf32>
    %c32 = arith.constant 32 : index
    %577 = memref.load %arg4[%c32] : memref<256xf32, #tpu.memory_space<smem>>
    %578 = vector.broadcast %577 : f32 to vector<16x122xf32>
    %579 = arith.mulf %578, %576 : vector<16x122xf32>
    %580 = arith.addf %563, %579 : vector<16x122xf32>
    %c96 = arith.constant 96 : index
    %581 = memref.load %arg4[%c96] : memref<256xf32, #tpu.memory_space<smem>>
    %582 = vector.broadcast %581 : f32 to vector<16x122xf32>
    %583 = arith.mulf %582, %576 : vector<16x122xf32>
    %584 = arith.addf %567, %583 : vector<16x122xf32>
    %c160 = arith.constant 160 : index
    %585 = memref.load %arg4[%c160] : memref<256xf32, #tpu.memory_space<smem>>
    %586 = vector.broadcast %585 : f32 to vector<16x122xf32>
    %587 = arith.mulf %586, %576 : vector<16x122xf32>
    %588 = arith.addf %571, %587 : vector<16x122xf32>
    %c224 = arith.constant 224 : index
    %589 = memref.load %arg4[%c224] : memref<256xf32, #tpu.memory_space<smem>>
    %590 = vector.broadcast %589 : f32 to vector<16x122xf32>
    %591 = arith.mulf %590, %576 : vector<16x122xf32>
    %592 = arith.addf %575, %591 : vector<16x122xf32>
    %c1_89 = arith.constant 1 : index
    %c1_90 = arith.constant 1 : index
    %593 = vector.load %arg12[%c1_89, %c1_90] : memref<17x153xf32, #tpu.memory_space<vmem>>, vector<16x122xf32>
    %c33 = arith.constant 33 : index
    %594 = memref.load %arg4[%c33] : memref<256xf32, #tpu.memory_space<smem>>
    %595 = vector.broadcast %594 : f32 to vector<16x122xf32>
    %596 = arith.mulf %595, %593 : vector<16x122xf32>
    %597 = arith.addf %580, %596 : vector<16x122xf32>
    %c97 = arith.constant 97 : index
    %598 = memref.load %arg4[%c97] : memref<256xf32, #tpu.memory_space<smem>>
    %599 = vector.broadcast %598 : f32 to vector<16x122xf32>
    %600 = arith.mulf %599, %593 : vector<16x122xf32>
    %601 = arith.addf %584, %600 : vector<16x122xf32>
    %c161 = arith.constant 161 : index
    %602 = memref.load %arg4[%c161] : memref<256xf32, #tpu.memory_space<smem>>
    %603 = vector.broadcast %602 : f32 to vector<16x122xf32>
    %604 = arith.mulf %603, %593 : vector<16x122xf32>
    %605 = arith.addf %588, %604 : vector<16x122xf32>
    %c225 = arith.constant 225 : index
    %606 = memref.load %arg4[%c225] : memref<256xf32, #tpu.memory_space<smem>>
    %607 = vector.broadcast %606 : f32 to vector<16x122xf32>
    %608 = arith.mulf %607, %593 : vector<16x122xf32>
    %609 = arith.addf %592, %608 : vector<16x122xf32>
    %c1_91 = arith.constant 1 : index
    %c2_92 = arith.constant 2 : index
    %610 = vector.load %arg12[%c1_91, %c2_92] : memref<17x153xf32, #tpu.memory_space<vmem>>, vector<16x122xf32>
    %c34 = arith.constant 34 : index
    %611 = memref.load %arg4[%c34] : memref<256xf32, #tpu.memory_space<smem>>
    %612 = vector.broadcast %611 : f32 to vector<16x122xf32>
    %613 = arith.mulf %612, %610 : vector<16x122xf32>
    %614 = arith.addf %597, %613 : vector<16x122xf32>
    %c98 = arith.constant 98 : index
    %615 = memref.load %arg4[%c98] : memref<256xf32, #tpu.memory_space<smem>>
    %616 = vector.broadcast %615 : f32 to vector<16x122xf32>
    %617 = arith.mulf %616, %610 : vector<16x122xf32>
    %618 = arith.addf %601, %617 : vector<16x122xf32>
    %c162 = arith.constant 162 : index
    %619 = memref.load %arg4[%c162] : memref<256xf32, #tpu.memory_space<smem>>
    %620 = vector.broadcast %619 : f32 to vector<16x122xf32>
    %621 = arith.mulf %620, %610 : vector<16x122xf32>
    %622 = arith.addf %605, %621 : vector<16x122xf32>
    %c226 = arith.constant 226 : index
    %623 = memref.load %arg4[%c226] : memref<256xf32, #tpu.memory_space<smem>>
    %624 = vector.broadcast %623 : f32 to vector<16x122xf32>
    %625 = arith.mulf %624, %610 : vector<16x122xf32>
    %626 = arith.addf %609, %625 : vector<16x122xf32>
    %c1_93 = arith.constant 1 : index
    %c3_94 = arith.constant 3 : index
    %627 = vector.load %arg12[%c1_93, %c3_94] : memref<17x153xf32, #tpu.memory_space<vmem>>, vector<16x122xf32>
    %c35 = arith.constant 35 : index
    %628 = memref.load %arg4[%c35] : memref<256xf32, #tpu.memory_space<smem>>
    %629 = vector.broadcast %628 : f32 to vector<16x122xf32>
    %630 = arith.mulf %629, %627 : vector<16x122xf32>
    %631 = arith.addf %614, %630 : vector<16x122xf32>
    %c99 = arith.constant 99 : index
    %632 = memref.load %arg4[%c99] : memref<256xf32, #tpu.memory_space<smem>>
    %633 = vector.broadcast %632 : f32 to vector<16x122xf32>
    %634 = arith.mulf %633, %627 : vector<16x122xf32>
    %635 = arith.addf %618, %634 : vector<16x122xf32>
    %c163 = arith.constant 163 : index
    %636 = memref.load %arg4[%c163] : memref<256xf32, #tpu.memory_space<smem>>
    %637 = vector.broadcast %636 : f32 to vector<16x122xf32>
    %638 = arith.mulf %637, %627 : vector<16x122xf32>
    %639 = arith.addf %622, %638 : vector<16x122xf32>
    %c227 = arith.constant 227 : index
    %640 = memref.load %arg4[%c227] : memref<256xf32, #tpu.memory_space<smem>>
    %641 = vector.broadcast %640 : f32 to vector<16x122xf32>
    %642 = arith.mulf %641, %627 : vector<16x122xf32>
    %643 = arith.addf %626, %642 : vector<16x122xf32>
    %c1_95 = arith.constant 1 : index
    %c4_96 = arith.constant 4 : index
    %644 = vector.load %arg12[%c1_95, %c4_96] : memref<17x153xf32, #tpu.memory_space<vmem>>, vector<16x122xf32>
    %c36 = arith.constant 36 : index
    %645 = memref.load %arg4[%c36] : memref<256xf32, #tpu.memory_space<smem>>
    %646 = vector.broadcast %645 : f32 to vector<16x122xf32>
    %647 = arith.mulf %646, %644 : vector<16x122xf32>
    %648 = arith.addf %631, %647 : vector<16x122xf32>
    %c100 = arith.constant 100 : index
    %649 = memref.load %arg4[%c100] : memref<256xf32, #tpu.memory_space<smem>>
    %650 = vector.broadcast %649 : f32 to vector<16x122xf32>
    %651 = arith.mulf %650, %644 : vector<16x122xf32>
    %652 = arith.addf %635, %651 : vector<16x122xf32>
    %c164 = arith.constant 164 : index
    %653 = memref.load %arg4[%c164] : memref<256xf32, #tpu.memory_space<smem>>
    %654 = vector.broadcast %653 : f32 to vector<16x122xf32>
    %655 = arith.mulf %654, %644 : vector<16x122xf32>
    %656 = arith.addf %639, %655 : vector<16x122xf32>
    %c228 = arith.constant 228 : index
    %657 = memref.load %arg4[%c228] : memref<256xf32, #tpu.memory_space<smem>>
    %658 = vector.broadcast %657 : f32 to vector<16x122xf32>
    %659 = arith.mulf %658, %644 : vector<16x122xf32>
    %660 = arith.addf %643, %659 : vector<16x122xf32>
    %c1_97 = arith.constant 1 : index
    %c5_98 = arith.constant 5 : index
    %661 = vector.load %arg12[%c1_97, %c5_98] : memref<17x153xf32, #tpu.memory_space<vmem>>, vector<16x122xf32>
    %c37 = arith.constant 37 : index
    %662 = memref.load %arg4[%c37] : memref<256xf32, #tpu.memory_space<smem>>
    %663 = vector.broadcast %662 : f32 to vector<16x122xf32>
    %664 = arith.mulf %663, %661 : vector<16x122xf32>
    %665 = arith.addf %648, %664 : vector<16x122xf32>
    %c101 = arith.constant 101 : index
    %666 = memref.load %arg4[%c101] : memref<256xf32, #tpu.memory_space<smem>>
    %667 = vector.broadcast %666 : f32 to vector<16x122xf32>
    %668 = arith.mulf %667, %661 : vector<16x122xf32>
    %669 = arith.addf %652, %668 : vector<16x122xf32>
    %c165 = arith.constant 165 : index
    %670 = memref.load %arg4[%c165] : memref<256xf32, #tpu.memory_space<smem>>
    %671 = vector.broadcast %670 : f32 to vector<16x122xf32>
    %672 = arith.mulf %671, %661 : vector<16x122xf32>
    %673 = arith.addf %656, %672 : vector<16x122xf32>
    %c229 = arith.constant 229 : index
    %674 = memref.load %arg4[%c229] : memref<256xf32, #tpu.memory_space<smem>>
    %675 = vector.broadcast %674 : f32 to vector<16x122xf32>
    %676 = arith.mulf %675, %661 : vector<16x122xf32>
    %677 = arith.addf %660, %676 : vector<16x122xf32>
    %c1_99 = arith.constant 1 : index
    %c6_100 = arith.constant 6 : index
    %678 = vector.load %arg12[%c1_99, %c6_100] : memref<17x153xf32, #tpu.memory_space<vmem>>, vector<16x122xf32>
    %c38 = arith.constant 38 : index
    %679 = memref.load %arg4[%c38] : memref<256xf32, #tpu.memory_space<smem>>
    %680 = vector.broadcast %679 : f32 to vector<16x122xf32>
    %681 = arith.mulf %680, %678 : vector<16x122xf32>
    %682 = arith.addf %665, %681 : vector<16x122xf32>
    %c102 = arith.constant 102 : index
    %683 = memref.load %arg4[%c102] : memref<256xf32, #tpu.memory_space<smem>>
    %684 = vector.broadcast %683 : f32 to vector<16x122xf32>
    %685 = arith.mulf %684, %678 : vector<16x122xf32>
    %686 = arith.addf %669, %685 : vector<16x122xf32>
    %c166 = arith.constant 166 : index
    %687 = memref.load %arg4[%c166] : memref<256xf32, #tpu.memory_space<smem>>
    %688 = vector.broadcast %687 : f32 to vector<16x122xf32>
    %689 = arith.mulf %688, %678 : vector<16x122xf32>
    %690 = arith.addf %673, %689 : vector<16x122xf32>
    %c230 = arith.constant 230 : index
    %691 = memref.load %arg4[%c230] : memref<256xf32, #tpu.memory_space<smem>>
    %692 = vector.broadcast %691 : f32 to vector<16x122xf32>
    %693 = arith.mulf %692, %678 : vector<16x122xf32>
    %694 = arith.addf %677, %693 : vector<16x122xf32>
    %c1_101 = arith.constant 1 : index
    %c7_102 = arith.constant 7 : index
    %695 = vector.load %arg12[%c1_101, %c7_102] : memref<17x153xf32, #tpu.memory_space<vmem>>, vector<16x122xf32>
    %c39 = arith.constant 39 : index
    %696 = memref.load %arg4[%c39] : memref<256xf32, #tpu.memory_space<smem>>
    %697 = vector.broadcast %696 : f32 to vector<16x122xf32>
    %698 = arith.mulf %697, %695 : vector<16x122xf32>
    %699 = arith.addf %682, %698 : vector<16x122xf32>
    %c103 = arith.constant 103 : index
    %700 = memref.load %arg4[%c103] : memref<256xf32, #tpu.memory_space<smem>>
    %701 = vector.broadcast %700 : f32 to vector<16x122xf32>
    %702 = arith.mulf %701, %695 : vector<16x122xf32>
    %703 = arith.addf %686, %702 : vector<16x122xf32>
    %c167 = arith.constant 167 : index
    %704 = memref.load %arg4[%c167] : memref<256xf32, #tpu.memory_space<smem>>
    %705 = vector.broadcast %704 : f32 to vector<16x122xf32>
    %706 = arith.mulf %705, %695 : vector<16x122xf32>
    %707 = arith.addf %690, %706 : vector<16x122xf32>
    %c231 = arith.constant 231 : index
    %708 = memref.load %arg4[%c231] : memref<256xf32, #tpu.memory_space<smem>>
    %709 = vector.broadcast %708 : f32 to vector<16x122xf32>
    %710 = arith.mulf %709, %695 : vector<16x122xf32>
    %711 = arith.addf %694, %710 : vector<16x122xf32>
    %c1_103 = arith.constant 1 : index
    %c8_104 = arith.constant 8 : index
    %712 = vector.load %arg12[%c1_103, %c8_104] : memref<17x153xf32, #tpu.memory_space<vmem>>, vector<16x122xf32>
    %c40 = arith.constant 40 : index
    %713 = memref.load %arg4[%c40] : memref<256xf32, #tpu.memory_space<smem>>
    %714 = vector.broadcast %713 : f32 to vector<16x122xf32>
    %715 = arith.mulf %714, %712 : vector<16x122xf32>
    %716 = arith.addf %699, %715 : vector<16x122xf32>
    %c104 = arith.constant 104 : index
    %717 = memref.load %arg4[%c104] : memref<256xf32, #tpu.memory_space<smem>>
    %718 = vector.broadcast %717 : f32 to vector<16x122xf32>
    %719 = arith.mulf %718, %712 : vector<16x122xf32>
    %720 = arith.addf %703, %719 : vector<16x122xf32>
    %c168 = arith.constant 168 : index
    %721 = memref.load %arg4[%c168] : memref<256xf32, #tpu.memory_space<smem>>
    %722 = vector.broadcast %721 : f32 to vector<16x122xf32>
    %723 = arith.mulf %722, %712 : vector<16x122xf32>
    %724 = arith.addf %707, %723 : vector<16x122xf32>
    %c232 = arith.constant 232 : index
    %725 = memref.load %arg4[%c232] : memref<256xf32, #tpu.memory_space<smem>>
    %726 = vector.broadcast %725 : f32 to vector<16x122xf32>
    %727 = arith.mulf %726, %712 : vector<16x122xf32>
    %728 = arith.addf %711, %727 : vector<16x122xf32>
    %c1_105 = arith.constant 1 : index
    %c9_106 = arith.constant 9 : index
    %729 = vector.load %arg12[%c1_105, %c9_106] : memref<17x153xf32, #tpu.memory_space<vmem>>, vector<16x122xf32>
    %c41 = arith.constant 41 : index
    %730 = memref.load %arg4[%c41] : memref<256xf32, #tpu.memory_space<smem>>
    %731 = vector.broadcast %730 : f32 to vector<16x122xf32>
    %732 = arith.mulf %731, %729 : vector<16x122xf32>
    %733 = arith.addf %716, %732 : vector<16x122xf32>
    %c105 = arith.constant 105 : index
    %734 = memref.load %arg4[%c105] : memref<256xf32, #tpu.memory_space<smem>>
    %735 = vector.broadcast %734 : f32 to vector<16x122xf32>
    %736 = arith.mulf %735, %729 : vector<16x122xf32>
    %737 = arith.addf %720, %736 : vector<16x122xf32>
    %c169 = arith.constant 169 : index
    %738 = memref.load %arg4[%c169] : memref<256xf32, #tpu.memory_space<smem>>
    %739 = vector.broadcast %738 : f32 to vector<16x122xf32>
    %740 = arith.mulf %739, %729 : vector<16x122xf32>
    %741 = arith.addf %724, %740 : vector<16x122xf32>
    %c233 = arith.constant 233 : index
    %742 = memref.load %arg4[%c233] : memref<256xf32, #tpu.memory_space<smem>>
    %743 = vector.broadcast %742 : f32 to vector<16x122xf32>
    %744 = arith.mulf %743, %729 : vector<16x122xf32>
    %745 = arith.addf %728, %744 : vector<16x122xf32>
    %c1_107 = arith.constant 1 : index
    %c10_108 = arith.constant 10 : index
    %746 = vector.load %arg12[%c1_107, %c10_108] : memref<17x153xf32, #tpu.memory_space<vmem>>, vector<16x122xf32>
    %c42 = arith.constant 42 : index
    %747 = memref.load %arg4[%c42] : memref<256xf32, #tpu.memory_space<smem>>
    %748 = vector.broadcast %747 : f32 to vector<16x122xf32>
    %749 = arith.mulf %748, %746 : vector<16x122xf32>
    %750 = arith.addf %733, %749 : vector<16x122xf32>
    %c106 = arith.constant 106 : index
    %751 = memref.load %arg4[%c106] : memref<256xf32, #tpu.memory_space<smem>>
    %752 = vector.broadcast %751 : f32 to vector<16x122xf32>
    %753 = arith.mulf %752, %746 : vector<16x122xf32>
    %754 = arith.addf %737, %753 : vector<16x122xf32>
    %c170 = arith.constant 170 : index
    %755 = memref.load %arg4[%c170] : memref<256xf32, #tpu.memory_space<smem>>
    %756 = vector.broadcast %755 : f32 to vector<16x122xf32>
    %757 = arith.mulf %756, %746 : vector<16x122xf32>
    %758 = arith.addf %741, %757 : vector<16x122xf32>
    %c234 = arith.constant 234 : index
    %759 = memref.load %arg4[%c234] : memref<256xf32, #tpu.memory_space<smem>>
    %760 = vector.broadcast %759 : f32 to vector<16x122xf32>
    %761 = arith.mulf %760, %746 : vector<16x122xf32>
    %762 = arith.addf %745, %761 : vector<16x122xf32>
    %c1_109 = arith.constant 1 : index
    %c11_110 = arith.constant 11 : index
    %763 = vector.load %arg12[%c1_109, %c11_110] : memref<17x153xf32, #tpu.memory_space<vmem>>, vector<16x122xf32>
    %c43 = arith.constant 43 : index
    %764 = memref.load %arg4[%c43] : memref<256xf32, #tpu.memory_space<smem>>
    %765 = vector.broadcast %764 : f32 to vector<16x122xf32>
    %766 = arith.mulf %765, %763 : vector<16x122xf32>
    %767 = arith.addf %750, %766 : vector<16x122xf32>
    %c107 = arith.constant 107 : index
    %768 = memref.load %arg4[%c107] : memref<256xf32, #tpu.memory_space<smem>>
    %769 = vector.broadcast %768 : f32 to vector<16x122xf32>
    %770 = arith.mulf %769, %763 : vector<16x122xf32>
    %771 = arith.addf %754, %770 : vector<16x122xf32>
    %c171 = arith.constant 171 : index
    %772 = memref.load %arg4[%c171] : memref<256xf32, #tpu.memory_space<smem>>
    %773 = vector.broadcast %772 : f32 to vector<16x122xf32>
    %774 = arith.mulf %773, %763 : vector<16x122xf32>
    %775 = arith.addf %758, %774 : vector<16x122xf32>
    %c235 = arith.constant 235 : index
    %776 = memref.load %arg4[%c235] : memref<256xf32, #tpu.memory_space<smem>>
    %777 = vector.broadcast %776 : f32 to vector<16x122xf32>
    %778 = arith.mulf %777, %763 : vector<16x122xf32>
    %779 = arith.addf %762, %778 : vector<16x122xf32>
    %c1_111 = arith.constant 1 : index
    %c12_112 = arith.constant 12 : index
    %780 = vector.load %arg12[%c1_111, %c12_112] : memref<17x153xf32, #tpu.memory_space<vmem>>, vector<16x122xf32>
    %c44 = arith.constant 44 : index
    %781 = memref.load %arg4[%c44] : memref<256xf32, #tpu.memory_space<smem>>
    %782 = vector.broadcast %781 : f32 to vector<16x122xf32>
    %783 = arith.mulf %782, %780 : vector<16x122xf32>
    %784 = arith.addf %767, %783 : vector<16x122xf32>
    %c108 = arith.constant 108 : index
    %785 = memref.load %arg4[%c108] : memref<256xf32, #tpu.memory_space<smem>>
    %786 = vector.broadcast %785 : f32 to vector<16x122xf32>
    %787 = arith.mulf %786, %780 : vector<16x122xf32>
    %788 = arith.addf %771, %787 : vector<16x122xf32>
    %c172 = arith.constant 172 : index
    %789 = memref.load %arg4[%c172] : memref<256xf32, #tpu.memory_space<smem>>
    %790 = vector.broadcast %789 : f32 to vector<16x122xf32>
    %791 = arith.mulf %790, %780 : vector<16x122xf32>
    %792 = arith.addf %775, %791 : vector<16x122xf32>
    %c236 = arith.constant 236 : index
    %793 = memref.load %arg4[%c236] : memref<256xf32, #tpu.memory_space<smem>>
    %794 = vector.broadcast %793 : f32 to vector<16x122xf32>
    %795 = arith.mulf %794, %780 : vector<16x122xf32>
    %796 = arith.addf %779, %795 : vector<16x122xf32>
    %c1_113 = arith.constant 1 : index
    %c13_114 = arith.constant 13 : index
    %797 = vector.load %arg12[%c1_113, %c13_114] : memref<17x153xf32, #tpu.memory_space<vmem>>, vector<16x122xf32>
    %c45 = arith.constant 45 : index
    %798 = memref.load %arg4[%c45] : memref<256xf32, #tpu.memory_space<smem>>
    %799 = vector.broadcast %798 : f32 to vector<16x122xf32>
    %800 = arith.mulf %799, %797 : vector<16x122xf32>
    %801 = arith.addf %784, %800 : vector<16x122xf32>
    %c109 = arith.constant 109 : index
    %802 = memref.load %arg4[%c109] : memref<256xf32, #tpu.memory_space<smem>>
    %803 = vector.broadcast %802 : f32 to vector<16x122xf32>
    %804 = arith.mulf %803, %797 : vector<16x122xf32>
    %805 = arith.addf %788, %804 : vector<16x122xf32>
    %c173 = arith.constant 173 : index
    %806 = memref.load %arg4[%c173] : memref<256xf32, #tpu.memory_space<smem>>
    %807 = vector.broadcast %806 : f32 to vector<16x122xf32>
    %808 = arith.mulf %807, %797 : vector<16x122xf32>
    %809 = arith.addf %792, %808 : vector<16x122xf32>
    %c237 = arith.constant 237 : index
    %810 = memref.load %arg4[%c237] : memref<256xf32, #tpu.memory_space<smem>>
    %811 = vector.broadcast %810 : f32 to vector<16x122xf32>
    %812 = arith.mulf %811, %797 : vector<16x122xf32>
    %813 = arith.addf %796, %812 : vector<16x122xf32>
    %c1_115 = arith.constant 1 : index
    %c14_116 = arith.constant 14 : index
    %814 = vector.load %arg12[%c1_115, %c14_116] : memref<17x153xf32, #tpu.memory_space<vmem>>, vector<16x122xf32>
    %c46 = arith.constant 46 : index
    %815 = memref.load %arg4[%c46] : memref<256xf32, #tpu.memory_space<smem>>
    %816 = vector.broadcast %815 : f32 to vector<16x122xf32>
    %817 = arith.mulf %816, %814 : vector<16x122xf32>
    %818 = arith.addf %801, %817 : vector<16x122xf32>
    %c110 = arith.constant 110 : index
    %819 = memref.load %arg4[%c110] : memref<256xf32, #tpu.memory_space<smem>>
    %820 = vector.broadcast %819 : f32 to vector<16x122xf32>
    %821 = arith.mulf %820, %814 : vector<16x122xf32>
    %822 = arith.addf %805, %821 : vector<16x122xf32>
    %c174 = arith.constant 174 : index
    %823 = memref.load %arg4[%c174] : memref<256xf32, #tpu.memory_space<smem>>
    %824 = vector.broadcast %823 : f32 to vector<16x122xf32>
    %825 = arith.mulf %824, %814 : vector<16x122xf32>
    %826 = arith.addf %809, %825 : vector<16x122xf32>
    %c238 = arith.constant 238 : index
    %827 = memref.load %arg4[%c238] : memref<256xf32, #tpu.memory_space<smem>>
    %828 = vector.broadcast %827 : f32 to vector<16x122xf32>
    %829 = arith.mulf %828, %814 : vector<16x122xf32>
    %830 = arith.addf %813, %829 : vector<16x122xf32>
    %c1_117 = arith.constant 1 : index
    %c15_118 = arith.constant 15 : index
    %831 = vector.load %arg12[%c1_117, %c15_118] : memref<17x153xf32, #tpu.memory_space<vmem>>, vector<16x122xf32>
    %c47 = arith.constant 47 : index
    %832 = memref.load %arg4[%c47] : memref<256xf32, #tpu.memory_space<smem>>
    %833 = vector.broadcast %832 : f32 to vector<16x122xf32>
    %834 = arith.mulf %833, %831 : vector<16x122xf32>
    %835 = arith.addf %818, %834 : vector<16x122xf32>
    %c111 = arith.constant 111 : index
    %836 = memref.load %arg4[%c111] : memref<256xf32, #tpu.memory_space<smem>>
    %837 = vector.broadcast %836 : f32 to vector<16x122xf32>
    %838 = arith.mulf %837, %831 : vector<16x122xf32>
    %839 = arith.addf %822, %838 : vector<16x122xf32>
    %c175 = arith.constant 175 : index
    %840 = memref.load %arg4[%c175] : memref<256xf32, #tpu.memory_space<smem>>
    %841 = vector.broadcast %840 : f32 to vector<16x122xf32>
    %842 = arith.mulf %841, %831 : vector<16x122xf32>
    %843 = arith.addf %826, %842 : vector<16x122xf32>
    %c239 = arith.constant 239 : index
    %844 = memref.load %arg4[%c239] : memref<256xf32, #tpu.memory_space<smem>>
    %845 = vector.broadcast %844 : f32 to vector<16x122xf32>
    %846 = arith.mulf %845, %831 : vector<16x122xf32>
    %847 = arith.addf %830, %846 : vector<16x122xf32>
    %c1_119 = arith.constant 1 : index
    %c16_120 = arith.constant 16 : index
    %848 = vector.load %arg12[%c1_119, %c16_120] : memref<17x153xf32, #tpu.memory_space<vmem>>, vector<16x122xf32>
    %c48 = arith.constant 48 : index
    %849 = memref.load %arg4[%c48] : memref<256xf32, #tpu.memory_space<smem>>
    %850 = vector.broadcast %849 : f32 to vector<16x122xf32>
    %851 = arith.mulf %850, %848 : vector<16x122xf32>
    %852 = arith.addf %835, %851 : vector<16x122xf32>
    %c112 = arith.constant 112 : index
    %853 = memref.load %arg4[%c112] : memref<256xf32, #tpu.memory_space<smem>>
    %854 = vector.broadcast %853 : f32 to vector<16x122xf32>
    %855 = arith.mulf %854, %848 : vector<16x122xf32>
    %856 = arith.addf %839, %855 : vector<16x122xf32>
    %c176 = arith.constant 176 : index
    %857 = memref.load %arg4[%c176] : memref<256xf32, #tpu.memory_space<smem>>
    %858 = vector.broadcast %857 : f32 to vector<16x122xf32>
    %859 = arith.mulf %858, %848 : vector<16x122xf32>
    %860 = arith.addf %843, %859 : vector<16x122xf32>
    %c240 = arith.constant 240 : index
    %861 = memref.load %arg4[%c240] : memref<256xf32, #tpu.memory_space<smem>>
    %862 = vector.broadcast %861 : f32 to vector<16x122xf32>
    %863 = arith.mulf %862, %848 : vector<16x122xf32>
    %864 = arith.addf %847, %863 : vector<16x122xf32>
    %c1_121 = arith.constant 1 : index
    %c17_122 = arith.constant 17 : index
    %865 = vector.load %arg12[%c1_121, %c17_122] : memref<17x153xf32, #tpu.memory_space<vmem>>, vector<16x122xf32>
    %c49 = arith.constant 49 : index
    %866 = memref.load %arg4[%c49] : memref<256xf32, #tpu.memory_space<smem>>
    %867 = vector.broadcast %866 : f32 to vector<16x122xf32>
    %868 = arith.mulf %867, %865 : vector<16x122xf32>
    %869 = arith.addf %852, %868 : vector<16x122xf32>
    %c113 = arith.constant 113 : index
    %870 = memref.load %arg4[%c113] : memref<256xf32, #tpu.memory_space<smem>>
    %871 = vector.broadcast %870 : f32 to vector<16x122xf32>
    %872 = arith.mulf %871, %865 : vector<16x122xf32>
    %873 = arith.addf %856, %872 : vector<16x122xf32>
    %c177 = arith.constant 177 : index
    %874 = memref.load %arg4[%c177] : memref<256xf32, #tpu.memory_space<smem>>
    %875 = vector.broadcast %874 : f32 to vector<16x122xf32>
    %876 = arith.mulf %875, %865 : vector<16x122xf32>
    %877 = arith.addf %860, %876 : vector<16x122xf32>
    %c241 = arith.constant 241 : index
    %878 = memref.load %arg4[%c241] : memref<256xf32, #tpu.memory_space<smem>>
    %879 = vector.broadcast %878 : f32 to vector<16x122xf32>
    %880 = arith.mulf %879, %865 : vector<16x122xf32>
    %881 = arith.addf %864, %880 : vector<16x122xf32>
    %c1_123 = arith.constant 1 : index
    %c18_124 = arith.constant 18 : index
    %882 = vector.load %arg12[%c1_123, %c18_124] : memref<17x153xf32, #tpu.memory_space<vmem>>, vector<16x122xf32>
    %c50 = arith.constant 50 : index
    %883 = memref.load %arg4[%c50] : memref<256xf32, #tpu.memory_space<smem>>
    %884 = vector.broadcast %883 : f32 to vector<16x122xf32>
    %885 = arith.mulf %884, %882 : vector<16x122xf32>
    %886 = arith.addf %869, %885 : vector<16x122xf32>
    %c114 = arith.constant 114 : index
    %887 = memref.load %arg4[%c114] : memref<256xf32, #tpu.memory_space<smem>>
    %888 = vector.broadcast %887 : f32 to vector<16x122xf32>
    %889 = arith.mulf %888, %882 : vector<16x122xf32>
    %890 = arith.addf %873, %889 : vector<16x122xf32>
    %c178 = arith.constant 178 : index
    %891 = memref.load %arg4[%c178] : memref<256xf32, #tpu.memory_space<smem>>
    %892 = vector.broadcast %891 : f32 to vector<16x122xf32>
    %893 = arith.mulf %892, %882 : vector<16x122xf32>
    %894 = arith.addf %877, %893 : vector<16x122xf32>
    %c242 = arith.constant 242 : index
    %895 = memref.load %arg4[%c242] : memref<256xf32, #tpu.memory_space<smem>>
    %896 = vector.broadcast %895 : f32 to vector<16x122xf32>
    %897 = arith.mulf %896, %882 : vector<16x122xf32>
    %898 = arith.addf %881, %897 : vector<16x122xf32>
    %c1_125 = arith.constant 1 : index
    %c19_126 = arith.constant 19 : index
    %899 = vector.load %arg12[%c1_125, %c19_126] : memref<17x153xf32, #tpu.memory_space<vmem>>, vector<16x122xf32>
    %c51 = arith.constant 51 : index
    %900 = memref.load %arg4[%c51] : memref<256xf32, #tpu.memory_space<smem>>
    %901 = vector.broadcast %900 : f32 to vector<16x122xf32>
    %902 = arith.mulf %901, %899 : vector<16x122xf32>
    %903 = arith.addf %886, %902 : vector<16x122xf32>
    %c115 = arith.constant 115 : index
    %904 = memref.load %arg4[%c115] : memref<256xf32, #tpu.memory_space<smem>>
    %905 = vector.broadcast %904 : f32 to vector<16x122xf32>
    %906 = arith.mulf %905, %899 : vector<16x122xf32>
    %907 = arith.addf %890, %906 : vector<16x122xf32>
    %c179 = arith.constant 179 : index
    %908 = memref.load %arg4[%c179] : memref<256xf32, #tpu.memory_space<smem>>
    %909 = vector.broadcast %908 : f32 to vector<16x122xf32>
    %910 = arith.mulf %909, %899 : vector<16x122xf32>
    %911 = arith.addf %894, %910 : vector<16x122xf32>
    %c243 = arith.constant 243 : index
    %912 = memref.load %arg4[%c243] : memref<256xf32, #tpu.memory_space<smem>>
    %913 = vector.broadcast %912 : f32 to vector<16x122xf32>
    %914 = arith.mulf %913, %899 : vector<16x122xf32>
    %915 = arith.addf %898, %914 : vector<16x122xf32>
    %c1_127 = arith.constant 1 : index
    %c20_128 = arith.constant 20 : index
    %916 = vector.load %arg12[%c1_127, %c20_128] : memref<17x153xf32, #tpu.memory_space<vmem>>, vector<16x122xf32>
    %c52 = arith.constant 52 : index
    %917 = memref.load %arg4[%c52] : memref<256xf32, #tpu.memory_space<smem>>
    %918 = vector.broadcast %917 : f32 to vector<16x122xf32>
    %919 = arith.mulf %918, %916 : vector<16x122xf32>
    %920 = arith.addf %903, %919 : vector<16x122xf32>
    %c116 = arith.constant 116 : index
    %921 = memref.load %arg4[%c116] : memref<256xf32, #tpu.memory_space<smem>>
    %922 = vector.broadcast %921 : f32 to vector<16x122xf32>
    %923 = arith.mulf %922, %916 : vector<16x122xf32>
    %924 = arith.addf %907, %923 : vector<16x122xf32>
    %c180 = arith.constant 180 : index
    %925 = memref.load %arg4[%c180] : memref<256xf32, #tpu.memory_space<smem>>
    %926 = vector.broadcast %925 : f32 to vector<16x122xf32>
    %927 = arith.mulf %926, %916 : vector<16x122xf32>
    %928 = arith.addf %911, %927 : vector<16x122xf32>
    %c244 = arith.constant 244 : index
    %929 = memref.load %arg4[%c244] : memref<256xf32, #tpu.memory_space<smem>>
    %930 = vector.broadcast %929 : f32 to vector<16x122xf32>
    %931 = arith.mulf %930, %916 : vector<16x122xf32>
    %932 = arith.addf %915, %931 : vector<16x122xf32>
    %c1_129 = arith.constant 1 : index
    %c21_130 = arith.constant 21 : index
    %933 = vector.load %arg12[%c1_129, %c21_130] : memref<17x153xf32, #tpu.memory_space<vmem>>, vector<16x122xf32>
    %c53 = arith.constant 53 : index
    %934 = memref.load %arg4[%c53] : memref<256xf32, #tpu.memory_space<smem>>
    %935 = vector.broadcast %934 : f32 to vector<16x122xf32>
    %936 = arith.mulf %935, %933 : vector<16x122xf32>
    %937 = arith.addf %920, %936 : vector<16x122xf32>
    %c117 = arith.constant 117 : index
    %938 = memref.load %arg4[%c117] : memref<256xf32, #tpu.memory_space<smem>>
    %939 = vector.broadcast %938 : f32 to vector<16x122xf32>
    %940 = arith.mulf %939, %933 : vector<16x122xf32>
    %941 = arith.addf %924, %940 : vector<16x122xf32>
    %c181 = arith.constant 181 : index
    %942 = memref.load %arg4[%c181] : memref<256xf32, #tpu.memory_space<smem>>
    %943 = vector.broadcast %942 : f32 to vector<16x122xf32>
    %944 = arith.mulf %943, %933 : vector<16x122xf32>
    %945 = arith.addf %928, %944 : vector<16x122xf32>
    %c245 = arith.constant 245 : index
    %946 = memref.load %arg4[%c245] : memref<256xf32, #tpu.memory_space<smem>>
    %947 = vector.broadcast %946 : f32 to vector<16x122xf32>
    %948 = arith.mulf %947, %933 : vector<16x122xf32>
    %949 = arith.addf %932, %948 : vector<16x122xf32>
    %c1_131 = arith.constant 1 : index
    %c22_132 = arith.constant 22 : index
    %950 = vector.load %arg12[%c1_131, %c22_132] : memref<17x153xf32, #tpu.memory_space<vmem>>, vector<16x122xf32>
    %c54 = arith.constant 54 : index
    %951 = memref.load %arg4[%c54] : memref<256xf32, #tpu.memory_space<smem>>
    %952 = vector.broadcast %951 : f32 to vector<16x122xf32>
    %953 = arith.mulf %952, %950 : vector<16x122xf32>
    %954 = arith.addf %937, %953 : vector<16x122xf32>
    %c118 = arith.constant 118 : index
    %955 = memref.load %arg4[%c118] : memref<256xf32, #tpu.memory_space<smem>>
    %956 = vector.broadcast %955 : f32 to vector<16x122xf32>
    %957 = arith.mulf %956, %950 : vector<16x122xf32>
    %958 = arith.addf %941, %957 : vector<16x122xf32>
    %c182 = arith.constant 182 : index
    %959 = memref.load %arg4[%c182] : memref<256xf32, #tpu.memory_space<smem>>
    %960 = vector.broadcast %959 : f32 to vector<16x122xf32>
    %961 = arith.mulf %960, %950 : vector<16x122xf32>
    %962 = arith.addf %945, %961 : vector<16x122xf32>
    %c246 = arith.constant 246 : index
    %963 = memref.load %arg4[%c246] : memref<256xf32, #tpu.memory_space<smem>>
    %964 = vector.broadcast %963 : f32 to vector<16x122xf32>
    %965 = arith.mulf %964, %950 : vector<16x122xf32>
    %966 = arith.addf %949, %965 : vector<16x122xf32>
    %c1_133 = arith.constant 1 : index
    %c23_134 = arith.constant 23 : index
    %967 = vector.load %arg12[%c1_133, %c23_134] : memref<17x153xf32, #tpu.memory_space<vmem>>, vector<16x122xf32>
    %c55 = arith.constant 55 : index
    %968 = memref.load %arg4[%c55] : memref<256xf32, #tpu.memory_space<smem>>
    %969 = vector.broadcast %968 : f32 to vector<16x122xf32>
    %970 = arith.mulf %969, %967 : vector<16x122xf32>
    %971 = arith.addf %954, %970 : vector<16x122xf32>
    %c119 = arith.constant 119 : index
    %972 = memref.load %arg4[%c119] : memref<256xf32, #tpu.memory_space<smem>>
    %973 = vector.broadcast %972 : f32 to vector<16x122xf32>
    %974 = arith.mulf %973, %967 : vector<16x122xf32>
    %975 = arith.addf %958, %974 : vector<16x122xf32>
    %c183 = arith.constant 183 : index
    %976 = memref.load %arg4[%c183] : memref<256xf32, #tpu.memory_space<smem>>
    %977 = vector.broadcast %976 : f32 to vector<16x122xf32>
    %978 = arith.mulf %977, %967 : vector<16x122xf32>
    %979 = arith.addf %962, %978 : vector<16x122xf32>
    %c247 = arith.constant 247 : index
    %980 = memref.load %arg4[%c247] : memref<256xf32, #tpu.memory_space<smem>>
    %981 = vector.broadcast %980 : f32 to vector<16x122xf32>
    %982 = arith.mulf %981, %967 : vector<16x122xf32>
    %983 = arith.addf %966, %982 : vector<16x122xf32>
    %c1_135 = arith.constant 1 : index
    %c24_136 = arith.constant 24 : index
    %984 = vector.load %arg12[%c1_135, %c24_136] : memref<17x153xf32, #tpu.memory_space<vmem>>, vector<16x122xf32>
    %c56 = arith.constant 56 : index
    %985 = memref.load %arg4[%c56] : memref<256xf32, #tpu.memory_space<smem>>
    %986 = vector.broadcast %985 : f32 to vector<16x122xf32>
    %987 = arith.mulf %986, %984 : vector<16x122xf32>
    %988 = arith.addf %971, %987 : vector<16x122xf32>
    %c120 = arith.constant 120 : index
    %989 = memref.load %arg4[%c120] : memref<256xf32, #tpu.memory_space<smem>>
    %990 = vector.broadcast %989 : f32 to vector<16x122xf32>
    %991 = arith.mulf %990, %984 : vector<16x122xf32>
    %992 = arith.addf %975, %991 : vector<16x122xf32>
    %c184 = arith.constant 184 : index
    %993 = memref.load %arg4[%c184] : memref<256xf32, #tpu.memory_space<smem>>
    %994 = vector.broadcast %993 : f32 to vector<16x122xf32>
    %995 = arith.mulf %994, %984 : vector<16x122xf32>
    %996 = arith.addf %979, %995 : vector<16x122xf32>
    %c248 = arith.constant 248 : index
    %997 = memref.load %arg4[%c248] : memref<256xf32, #tpu.memory_space<smem>>
    %998 = vector.broadcast %997 : f32 to vector<16x122xf32>
    %999 = arith.mulf %998, %984 : vector<16x122xf32>
    %1000 = arith.addf %983, %999 : vector<16x122xf32>
    %c1_137 = arith.constant 1 : index
    %c25_138 = arith.constant 25 : index
    %1001 = vector.load %arg12[%c1_137, %c25_138] : memref<17x153xf32, #tpu.memory_space<vmem>>, vector<16x122xf32>
    %c57 = arith.constant 57 : index
    %1002 = memref.load %arg4[%c57] : memref<256xf32, #tpu.memory_space<smem>>
    %1003 = vector.broadcast %1002 : f32 to vector<16x122xf32>
    %1004 = arith.mulf %1003, %1001 : vector<16x122xf32>
    %1005 = arith.addf %988, %1004 : vector<16x122xf32>
    %c121 = arith.constant 121 : index
    %1006 = memref.load %arg4[%c121] : memref<256xf32, #tpu.memory_space<smem>>
    %1007 = vector.broadcast %1006 : f32 to vector<16x122xf32>
    %1008 = arith.mulf %1007, %1001 : vector<16x122xf32>
    %1009 = arith.addf %992, %1008 : vector<16x122xf32>
    %c185 = arith.constant 185 : index
    %1010 = memref.load %arg4[%c185] : memref<256xf32, #tpu.memory_space<smem>>
    %1011 = vector.broadcast %1010 : f32 to vector<16x122xf32>
    %1012 = arith.mulf %1011, %1001 : vector<16x122xf32>
    %1013 = arith.addf %996, %1012 : vector<16x122xf32>
    %c249 = arith.constant 249 : index
    %1014 = memref.load %arg4[%c249] : memref<256xf32, #tpu.memory_space<smem>>
    %1015 = vector.broadcast %1014 : f32 to vector<16x122xf32>
    %1016 = arith.mulf %1015, %1001 : vector<16x122xf32>
    %1017 = arith.addf %1000, %1016 : vector<16x122xf32>
    %c1_139 = arith.constant 1 : index
    %c26_140 = arith.constant 26 : index
    %1018 = vector.load %arg12[%c1_139, %c26_140] : memref<17x153xf32, #tpu.memory_space<vmem>>, vector<16x122xf32>
    %c58 = arith.constant 58 : index
    %1019 = memref.load %arg4[%c58] : memref<256xf32, #tpu.memory_space<smem>>
    %1020 = vector.broadcast %1019 : f32 to vector<16x122xf32>
    %1021 = arith.mulf %1020, %1018 : vector<16x122xf32>
    %1022 = arith.addf %1005, %1021 : vector<16x122xf32>
    %c122 = arith.constant 122 : index
    %1023 = memref.load %arg4[%c122] : memref<256xf32, #tpu.memory_space<smem>>
    %1024 = vector.broadcast %1023 : f32 to vector<16x122xf32>
    %1025 = arith.mulf %1024, %1018 : vector<16x122xf32>
    %1026 = arith.addf %1009, %1025 : vector<16x122xf32>
    %c186 = arith.constant 186 : index
    %1027 = memref.load %arg4[%c186] : memref<256xf32, #tpu.memory_space<smem>>
    %1028 = vector.broadcast %1027 : f32 to vector<16x122xf32>
    %1029 = arith.mulf %1028, %1018 : vector<16x122xf32>
    %1030 = arith.addf %1013, %1029 : vector<16x122xf32>
    %c250 = arith.constant 250 : index
    %1031 = memref.load %arg4[%c250] : memref<256xf32, #tpu.memory_space<smem>>
    %1032 = vector.broadcast %1031 : f32 to vector<16x122xf32>
    %1033 = arith.mulf %1032, %1018 : vector<16x122xf32>
    %1034 = arith.addf %1017, %1033 : vector<16x122xf32>
    %c1_141 = arith.constant 1 : index
    %c27_142 = arith.constant 27 : index
    %1035 = vector.load %arg12[%c1_141, %c27_142] : memref<17x153xf32, #tpu.memory_space<vmem>>, vector<16x122xf32>
    %c59 = arith.constant 59 : index
    %1036 = memref.load %arg4[%c59] : memref<256xf32, #tpu.memory_space<smem>>
    %1037 = vector.broadcast %1036 : f32 to vector<16x122xf32>
    %1038 = arith.mulf %1037, %1035 : vector<16x122xf32>
    %1039 = arith.addf %1022, %1038 : vector<16x122xf32>
    %c123 = arith.constant 123 : index
    %1040 = memref.load %arg4[%c123] : memref<256xf32, #tpu.memory_space<smem>>
    %1041 = vector.broadcast %1040 : f32 to vector<16x122xf32>
    %1042 = arith.mulf %1041, %1035 : vector<16x122xf32>
    %1043 = arith.addf %1026, %1042 : vector<16x122xf32>
    %c187 = arith.constant 187 : index
    %1044 = memref.load %arg4[%c187] : memref<256xf32, #tpu.memory_space<smem>>
    %1045 = vector.broadcast %1044 : f32 to vector<16x122xf32>
    %1046 = arith.mulf %1045, %1035 : vector<16x122xf32>
    %1047 = arith.addf %1030, %1046 : vector<16x122xf32>
    %c251 = arith.constant 251 : index
    %1048 = memref.load %arg4[%c251] : memref<256xf32, #tpu.memory_space<smem>>
    %1049 = vector.broadcast %1048 : f32 to vector<16x122xf32>
    %1050 = arith.mulf %1049, %1035 : vector<16x122xf32>
    %1051 = arith.addf %1034, %1050 : vector<16x122xf32>
    %c1_143 = arith.constant 1 : index
    %c28_144 = arith.constant 28 : index
    %1052 = vector.load %arg12[%c1_143, %c28_144] : memref<17x153xf32, #tpu.memory_space<vmem>>, vector<16x122xf32>
    %c60 = arith.constant 60 : index
    %1053 = memref.load %arg4[%c60] : memref<256xf32, #tpu.memory_space<smem>>
    %1054 = vector.broadcast %1053 : f32 to vector<16x122xf32>
    %1055 = arith.mulf %1054, %1052 : vector<16x122xf32>
    %1056 = arith.addf %1039, %1055 : vector<16x122xf32>
    %c124 = arith.constant 124 : index
    %1057 = memref.load %arg4[%c124] : memref<256xf32, #tpu.memory_space<smem>>
    %1058 = vector.broadcast %1057 : f32 to vector<16x122xf32>
    %1059 = arith.mulf %1058, %1052 : vector<16x122xf32>
    %1060 = arith.addf %1043, %1059 : vector<16x122xf32>
    %c188 = arith.constant 188 : index
    %1061 = memref.load %arg4[%c188] : memref<256xf32, #tpu.memory_space<smem>>
    %1062 = vector.broadcast %1061 : f32 to vector<16x122xf32>
    %1063 = arith.mulf %1062, %1052 : vector<16x122xf32>
    %1064 = arith.addf %1047, %1063 : vector<16x122xf32>
    %c252 = arith.constant 252 : index
    %1065 = memref.load %arg4[%c252] : memref<256xf32, #tpu.memory_space<smem>>
    %1066 = vector.broadcast %1065 : f32 to vector<16x122xf32>
    %1067 = arith.mulf %1066, %1052 : vector<16x122xf32>
    %1068 = arith.addf %1051, %1067 : vector<16x122xf32>
    %c1_145 = arith.constant 1 : index
    %c29_146 = arith.constant 29 : index
    %1069 = vector.load %arg12[%c1_145, %c29_146] : memref<17x153xf32, #tpu.memory_space<vmem>>, vector<16x122xf32>
    %c61 = arith.constant 61 : index
    %1070 = memref.load %arg4[%c61] : memref<256xf32, #tpu.memory_space<smem>>
    %1071 = vector.broadcast %1070 : f32 to vector<16x122xf32>
    %1072 = arith.mulf %1071, %1069 : vector<16x122xf32>
    %1073 = arith.addf %1056, %1072 : vector<16x122xf32>
    %c125 = arith.constant 125 : index
    %1074 = memref.load %arg4[%c125] : memref<256xf32, #tpu.memory_space<smem>>
    %1075 = vector.broadcast %1074 : f32 to vector<16x122xf32>
    %1076 = arith.mulf %1075, %1069 : vector<16x122xf32>
    %1077 = arith.addf %1060, %1076 : vector<16x122xf32>
    %c189 = arith.constant 189 : index
    %1078 = memref.load %arg4[%c189] : memref<256xf32, #tpu.memory_space<smem>>
    %1079 = vector.broadcast %1078 : f32 to vector<16x122xf32>
    %1080 = arith.mulf %1079, %1069 : vector<16x122xf32>
    %1081 = arith.addf %1064, %1080 : vector<16x122xf32>
    %c253 = arith.constant 253 : index
    %1082 = memref.load %arg4[%c253] : memref<256xf32, #tpu.memory_space<smem>>
    %1083 = vector.broadcast %1082 : f32 to vector<16x122xf32>
    %1084 = arith.mulf %1083, %1069 : vector<16x122xf32>
    %1085 = arith.addf %1068, %1084 : vector<16x122xf32>
    %c1_147 = arith.constant 1 : index
    %c30_148 = arith.constant 30 : index
    %1086 = vector.load %arg12[%c1_147, %c30_148] : memref<17x153xf32, #tpu.memory_space<vmem>>, vector<16x122xf32>
    %c62 = arith.constant 62 : index
    %1087 = memref.load %arg4[%c62] : memref<256xf32, #tpu.memory_space<smem>>
    %1088 = vector.broadcast %1087 : f32 to vector<16x122xf32>
    %1089 = arith.mulf %1088, %1086 : vector<16x122xf32>
    %1090 = arith.addf %1073, %1089 : vector<16x122xf32>
    %c126 = arith.constant 126 : index
    %1091 = memref.load %arg4[%c126] : memref<256xf32, #tpu.memory_space<smem>>
    %1092 = vector.broadcast %1091 : f32 to vector<16x122xf32>
    %1093 = arith.mulf %1092, %1086 : vector<16x122xf32>
    %1094 = arith.addf %1077, %1093 : vector<16x122xf32>
    %c190 = arith.constant 190 : index
    %1095 = memref.load %arg4[%c190] : memref<256xf32, #tpu.memory_space<smem>>
    %1096 = vector.broadcast %1095 : f32 to vector<16x122xf32>
    %1097 = arith.mulf %1096, %1086 : vector<16x122xf32>
    %1098 = arith.addf %1081, %1097 : vector<16x122xf32>
    %c254 = arith.constant 254 : index
    %1099 = memref.load %arg4[%c254] : memref<256xf32, #tpu.memory_space<smem>>
    %1100 = vector.broadcast %1099 : f32 to vector<16x122xf32>
    %1101 = arith.mulf %1100, %1086 : vector<16x122xf32>
    %1102 = arith.addf %1085, %1101 : vector<16x122xf32>
    %c1_149 = arith.constant 1 : index
    %c31_150 = arith.constant 31 : index
    %1103 = vector.load %arg12[%c1_149, %c31_150] : memref<17x153xf32, #tpu.memory_space<vmem>>, vector<16x122xf32>
    %c63 = arith.constant 63 : index
    %1104 = memref.load %arg4[%c63] : memref<256xf32, #tpu.memory_space<smem>>
    %1105 = vector.broadcast %1104 : f32 to vector<16x122xf32>
    %1106 = arith.mulf %1105, %1103 : vector<16x122xf32>
    %1107 = arith.addf %1090, %1106 : vector<16x122xf32>
    %c127 = arith.constant 127 : index
    %1108 = memref.load %arg4[%c127] : memref<256xf32, #tpu.memory_space<smem>>
    %1109 = vector.broadcast %1108 : f32 to vector<16x122xf32>
    %1110 = arith.mulf %1109, %1103 : vector<16x122xf32>
    %1111 = arith.addf %1094, %1110 : vector<16x122xf32>
    %c191 = arith.constant 191 : index
    %1112 = memref.load %arg4[%c191] : memref<256xf32, #tpu.memory_space<smem>>
    %1113 = vector.broadcast %1112 : f32 to vector<16x122xf32>
    %1114 = arith.mulf %1113, %1103 : vector<16x122xf32>
    %1115 = arith.addf %1098, %1114 : vector<16x122xf32>
    %c255 = arith.constant 255 : index
    %1116 = memref.load %arg4[%c255] : memref<256xf32, #tpu.memory_space<smem>>
    %1117 = vector.broadcast %1116 : f32 to vector<16x122xf32>
    %1118 = arith.mulf %1117, %1103 : vector<16x122xf32>
    %1119 = arith.addf %1102, %1118 : vector<16x122xf32>
    %cst_151 = arith.constant 0.000000e+00 : f32
    %1120 = vector.broadcast %cst_151 : f32 to vector<16x122xf32>
    %1121 = arith.cmpf ogt, %1107, %1120 : vector<16x122xf32>
    %cst_152 = arith.constant 0.000000e+00 : f32
    %1122 = vector.broadcast %cst_152 : f32 to vector<16x122xf32>
    %1123 = arith.minimumf %1107, %1122 : vector<16x122xf32>
    %1124 = math.exp %1123 : vector<16x122xf32>
    %cst_153 = arith.constant 1.000000e+00 : f32
    %1125 = vector.broadcast %cst_153 : f32 to vector<16x122xf32>
    %1126 = arith.subf %1124, %1125 : vector<16x122xf32>
    %1127 = arith.select %1121, %1107, %1126 : vector<16x122xi1>, vector<16x122xf32>
    %c4_154 = arith.constant 4 : index
    %1128 = memref.load %arg5[%c4_154] : memref<12xf32, #tpu.memory_space<smem>>
    %1129 = vector.broadcast %1128 : f32 to vector<16x122xf32>
    %1130 = arith.mulf %1127, %1129 : vector<16x122xf32>
    %c8_155 = arith.constant 8 : index
    %1131 = memref.load %arg5[%c8_155] : memref<12xf32, #tpu.memory_space<smem>>
    %1132 = vector.broadcast %1131 : f32 to vector<16x122xf32>
    %1133 = arith.addf %1130, %1132 : vector<16x122xf32>
    %1134 = vector.extract_strided_slice %1133 {offsets = [0, 0], sizes = [1, 122], strides = [1, 1]} : vector<16x122xf32> to vector<1x122xf32>
    %1135 = vector.extract_strided_slice %1133 {offsets = [1, 0], sizes = [1, 122], strides = [1, 1]} : vector<16x122xf32> to vector<1x122xf32>
    %1136 = arith.maximumf %1134, %1135 : vector<1x122xf32>
    %1137 = vector.extract_strided_slice %1136 {offsets = [0, 0], sizes = [1, 121], strides = [1, 1]} : vector<1x122xf32> to vector<1x121xf32>
    %1138 = vector.extract_strided_slice %1136 {offsets = [0, 1], sizes = [1, 121], strides = [1, 1]} : vector<1x122xf32> to vector<1x121xf32>
    %1139 = arith.maximumf %1137, %1138 : vector<1x121xf32>
    %c0_156 = arith.constant 0 : index
    %c0_157 = arith.constant 0 : index
    %1140 = vector.load %arg13[%c0_156, %c0_157] : memref<16x121xf32, #tpu.memory_space<vmem>>, vector<1x121xf32>
    tpu.vector_store %arg13[%c0_156, %c0_157], %1139 {strides = array<i32>} : memref<16x121xf32, #tpu.memory_space<vmem>>, vector<1x121xf32>,
    %1141 = vector.extract_strided_slice %1133 {offsets = [4, 0], sizes = [1, 122], strides = [1, 1]} : vector<16x122xf32> to vector<1x122xf32>
    %1142 = vector.extract_strided_slice %1133 {offsets = [5, 0], sizes = [1, 122], strides = [1, 1]} : vector<16x122xf32> to vector<1x122xf32>
    %1143 = arith.maximumf %1141, %1142 : vector<1x122xf32>
    %1144 = vector.extract_strided_slice %1143 {offsets = [0, 0], sizes = [1, 121], strides = [1, 1]} : vector<1x122xf32> to vector<1x121xf32>
    %1145 = vector.extract_strided_slice %1143 {offsets = [0, 1], sizes = [1, 121], strides = [1, 1]} : vector<1x122xf32> to vector<1x121xf32>
    %1146 = arith.maximumf %1144, %1145 : vector<1x121xf32>
    %c1_158 = arith.constant 1 : index
    %c0_159 = arith.constant 0 : index
    %1147 = vector.load %arg13[%c1_158, %c0_159] : memref<16x121xf32, #tpu.memory_space<vmem>>, vector<1x121xf32>
    tpu.vector_store %arg13[%c1_158, %c0_159], %1146 {strides = array<i32>} : memref<16x121xf32, #tpu.memory_space<vmem>>, vector<1x121xf32>,
    %1148 = vector.extract_strided_slice %1133 {offsets = [8, 0], sizes = [1, 122], strides = [1, 1]} : vector<16x122xf32> to vector<1x122xf32>
    %1149 = vector.extract_strided_slice %1133 {offsets = [9, 0], sizes = [1, 122], strides = [1, 1]} : vector<16x122xf32> to vector<1x122xf32>
    %1150 = arith.maximumf %1148, %1149 : vector<1x122xf32>
    %1151 = vector.extract_strided_slice %1150 {offsets = [0, 0], sizes = [1, 121], strides = [1, 1]} : vector<1x122xf32> to vector<1x121xf32>
    %1152 = vector.extract_strided_slice %1150 {offsets = [0, 1], sizes = [1, 121], strides = [1, 1]} : vector<1x122xf32> to vector<1x121xf32>
    %1153 = arith.maximumf %1151, %1152 : vector<1x121xf32>
    %c2_160 = arith.constant 2 : index
    %c0_161 = arith.constant 0 : index
    %1154 = vector.load %arg13[%c2_160, %c0_161] : memref<16x121xf32, #tpu.memory_space<vmem>>, vector<1x121xf32>
    tpu.vector_store %arg13[%c2_160, %c0_161], %1153 {strides = array<i32>} : memref<16x121xf32, #tpu.memory_space<vmem>>, vector<1x121xf32>,
    %1155 = vector.extract_strided_slice %1133 {offsets = [12, 0], sizes = [1, 122], strides = [1, 1]} : vector<16x122xf32> to vector<1x122xf32>
    %1156 = vector.extract_strided_slice %1133 {offsets = [13, 0], sizes = [1, 122], strides = [1, 1]} : vector<16x122xf32> to vector<1x122xf32>
    %1157 = arith.maximumf %1155, %1156 : vector<1x122xf32>
    %1158 = vector.extract_strided_slice %1157 {offsets = [0, 0], sizes = [1, 121], strides = [1, 1]} : vector<1x122xf32> to vector<1x121xf32>
    %1159 = vector.extract_strided_slice %1157 {offsets = [0, 1], sizes = [1, 121], strides = [1, 1]} : vector<1x122xf32> to vector<1x121xf32>
    %1160 = arith.maximumf %1158, %1159 : vector<1x121xf32>
    %c3_162 = arith.constant 3 : index
    %c0_163 = arith.constant 0 : index
    %1161 = vector.load %arg13[%c3_162, %c0_163] : memref<16x121xf32, #tpu.memory_space<vmem>>, vector<1x121xf32>
    tpu.vector_store %arg13[%c3_162, %c0_163], %1160 {strides = array<i32>} : memref<16x121xf32, #tpu.memory_space<vmem>>, vector<1x121xf32>,
    %cst_164 = arith.constant 0.000000e+00 : f32
    %1162 = vector.broadcast %cst_164 : f32 to vector<16x122xf32>
    %1163 = arith.cmpf ogt, %1111, %1162 : vector<16x122xf32>
    %cst_165 = arith.constant 0.000000e+00 : f32
    %1164 = vector.broadcast %cst_165 : f32 to vector<16x122xf32>
    %1165 = arith.minimumf %1111, %1164 : vector<16x122xf32>
    %1166 = math.exp %1165 : vector<16x122xf32>
    %cst_166 = arith.constant 1.000000e+00 : f32
    %1167 = vector.broadcast %cst_166 : f32 to vector<16x122xf32>
    %1168 = arith.subf %1166, %1167 : vector<16x122xf32>
    %1169 = arith.select %1163, %1111, %1168 : vector<16x122xi1>, vector<16x122xf32>
    %c5_167 = arith.constant 5 : index
    %1170 = memref.load %arg5[%c5_167] : memref<12xf32, #tpu.memory_space<smem>>
    %1171 = vector.broadcast %1170 : f32 to vector<16x122xf32>
    %1172 = arith.mulf %1169, %1171 : vector<16x122xf32>
    %c9_168 = arith.constant 9 : index
    %1173 = memref.load %arg5[%c9_168] : memref<12xf32, #tpu.memory_space<smem>>
    %1174 = vector.broadcast %1173 : f32 to vector<16x122xf32>
    %1175 = arith.addf %1172, %1174 : vector<16x122xf32>
    %1176 = vector.extract_strided_slice %1175 {offsets = [0, 0], sizes = [1, 122], strides = [1, 1]} : vector<16x122xf32> to vector<1x122xf32>
    %1177 = vector.extract_strided_slice %1175 {offsets = [1, 0], sizes = [1, 122], strides = [1, 1]} : vector<16x122xf32> to vector<1x122xf32>
    %1178 = arith.maximumf %1176, %1177 : vector<1x122xf32>
    %1179 = vector.extract_strided_slice %1178 {offsets = [0, 0], sizes = [1, 121], strides = [1, 1]} : vector<1x122xf32> to vector<1x121xf32>
    %1180 = vector.extract_strided_slice %1178 {offsets = [0, 1], sizes = [1, 121], strides = [1, 1]} : vector<1x122xf32> to vector<1x121xf32>
    %1181 = arith.maximumf %1179, %1180 : vector<1x121xf32>
    %c4_169 = arith.constant 4 : index
    %c0_170 = arith.constant 0 : index
    %1182 = vector.load %arg13[%c4_169, %c0_170] : memref<16x121xf32, #tpu.memory_space<vmem>>, vector<1x121xf32>
    tpu.vector_store %arg13[%c4_169, %c0_170], %1181 {strides = array<i32>} : memref<16x121xf32, #tpu.memory_space<vmem>>, vector<1x121xf32>,
    %1183 = vector.extract_strided_slice %1175 {offsets = [4, 0], sizes = [1, 122], strides = [1, 1]} : vector<16x122xf32> to vector<1x122xf32>
    %1184 = vector.extract_strided_slice %1175 {offsets = [5, 0], sizes = [1, 122], strides = [1, 1]} : vector<16x122xf32> to vector<1x122xf32>
    %1185 = arith.maximumf %1183, %1184 : vector<1x122xf32>
    %1186 = vector.extract_strided_slice %1185 {offsets = [0, 0], sizes = [1, 121], strides = [1, 1]} : vector<1x122xf32> to vector<1x121xf32>
    %1187 = vector.extract_strided_slice %1185 {offsets = [0, 1], sizes = [1, 121], strides = [1, 1]} : vector<1x122xf32> to vector<1x121xf32>
    %1188 = arith.maximumf %1186, %1187 : vector<1x121xf32>
    %c5_171 = arith.constant 5 : index
    %c0_172 = arith.constant 0 : index
    %1189 = vector.load %arg13[%c5_171, %c0_172] : memref<16x121xf32, #tpu.memory_space<vmem>>, vector<1x121xf32>
    tpu.vector_store %arg13[%c5_171, %c0_172], %1188 {strides = array<i32>} : memref<16x121xf32, #tpu.memory_space<vmem>>, vector<1x121xf32>,
    %1190 = vector.extract_strided_slice %1175 {offsets = [8, 0], sizes = [1, 122], strides = [1, 1]} : vector<16x122xf32> to vector<1x122xf32>
    %1191 = vector.extract_strided_slice %1175 {offsets = [9, 0], sizes = [1, 122], strides = [1, 1]} : vector<16x122xf32> to vector<1x122xf32>
    %1192 = arith.maximumf %1190, %1191 : vector<1x122xf32>
    %1193 = vector.extract_strided_slice %1192 {offsets = [0, 0], sizes = [1, 121], strides = [1, 1]} : vector<1x122xf32> to vector<1x121xf32>
    %1194 = vector.extract_strided_slice %1192 {offsets = [0, 1], sizes = [1, 121], strides = [1, 1]} : vector<1x122xf32> to vector<1x121xf32>
    %1195 = arith.maximumf %1193, %1194 : vector<1x121xf32>
    %c6_173 = arith.constant 6 : index
    %c0_174 = arith.constant 0 : index
    %1196 = vector.load %arg13[%c6_173, %c0_174] : memref<16x121xf32, #tpu.memory_space<vmem>>, vector<1x121xf32>
    tpu.vector_store %arg13[%c6_173, %c0_174], %1195 {strides = array<i32>} : memref<16x121xf32, #tpu.memory_space<vmem>>, vector<1x121xf32>,
    %1197 = vector.extract_strided_slice %1175 {offsets = [12, 0], sizes = [1, 122], strides = [1, 1]} : vector<16x122xf32> to vector<1x122xf32>
    %1198 = vector.extract_strided_slice %1175 {offsets = [13, 0], sizes = [1, 122], strides = [1, 1]} : vector<16x122xf32> to vector<1x122xf32>
    %1199 = arith.maximumf %1197, %1198 : vector<1x122xf32>
    %1200 = vector.extract_strided_slice %1199 {offsets = [0, 0], sizes = [1, 121], strides = [1, 1]} : vector<1x122xf32> to vector<1x121xf32>
    %1201 = vector.extract_strided_slice %1199 {offsets = [0, 1], sizes = [1, 121], strides = [1, 1]} : vector<1x122xf32> to vector<1x121xf32>
    %1202 = arith.maximumf %1200, %1201 : vector<1x121xf32>
    %c7_175 = arith.constant 7 : index
    %c0_176 = arith.constant 0 : index
    %1203 = vector.load %arg13[%c7_175, %c0_176] : memref<16x121xf32, #tpu.memory_space<vmem>>, vector<1x121xf32>
    tpu.vector_store %arg13[%c7_175, %c0_176], %1202 {strides = array<i32>} : memref<16x121xf32, #tpu.memory_space<vmem>>, vector<1x121xf32>,
    %cst_177 = arith.constant 0.000000e+00 : f32
    %1204 = vector.broadcast %cst_177 : f32 to vector<16x122xf32>
    %1205 = arith.cmpf ogt, %1115, %1204 : vector<16x122xf32>
    %cst_178 = arith.constant 0.000000e+00 : f32
    %1206 = vector.broadcast %cst_178 : f32 to vector<16x122xf32>
    %1207 = arith.minimumf %1115, %1206 : vector<16x122xf32>
    %1208 = math.exp %1207 : vector<16x122xf32>
    %cst_179 = arith.constant 1.000000e+00 : f32
    %1209 = vector.broadcast %cst_179 : f32 to vector<16x122xf32>
    %1210 = arith.subf %1208, %1209 : vector<16x122xf32>
    %1211 = arith.select %1205, %1115, %1210 : vector<16x122xi1>, vector<16x122xf32>
    %c6_180 = arith.constant 6 : index
    %1212 = memref.load %arg5[%c6_180] : memref<12xf32, #tpu.memory_space<smem>>
    %1213 = vector.broadcast %1212 : f32 to vector<16x122xf32>
    %1214 = arith.mulf %1211, %1213 : vector<16x122xf32>
    %c10_181 = arith.constant 10 : index
    %1215 = memref.load %arg5[%c10_181] : memref<12xf32, #tpu.memory_space<smem>>
    %1216 = vector.broadcast %1215 : f32 to vector<16x122xf32>
    %1217 = arith.addf %1214, %1216 : vector<16x122xf32>
    %1218 = vector.extract_strided_slice %1217 {offsets = [0, 0], sizes = [1, 122], strides = [1, 1]} : vector<16x122xf32> to vector<1x122xf32>
    %1219 = vector.extract_strided_slice %1217 {offsets = [1, 0], sizes = [1, 122], strides = [1, 1]} : vector<16x122xf32> to vector<1x122xf32>
    %1220 = arith.maximumf %1218, %1219 : vector<1x122xf32>
    %1221 = vector.extract_strided_slice %1220 {offsets = [0, 0], sizes = [1, 121], strides = [1, 1]} : vector<1x122xf32> to vector<1x121xf32>
    %1222 = vector.extract_strided_slice %1220 {offsets = [0, 1], sizes = [1, 121], strides = [1, 1]} : vector<1x122xf32> to vector<1x121xf32>
    %1223 = arith.maximumf %1221, %1222 : vector<1x121xf32>
    %c8_182 = arith.constant 8 : index
    %c0_183 = arith.constant 0 : index
    %1224 = vector.load %arg13[%c8_182, %c0_183] : memref<16x121xf32, #tpu.memory_space<vmem>>, vector<1x121xf32>
    tpu.vector_store %arg13[%c8_182, %c0_183], %1223 {strides = array<i32>} : memref<16x121xf32, #tpu.memory_space<vmem>>, vector<1x121xf32>,
    %1225 = vector.extract_strided_slice %1217 {offsets = [4, 0], sizes = [1, 122], strides = [1, 1]} : vector<16x122xf32> to vector<1x122xf32>
    %1226 = vector.extract_strided_slice %1217 {offsets = [5, 0], sizes = [1, 122], strides = [1, 1]} : vector<16x122xf32> to vector<1x122xf32>
    %1227 = arith.maximumf %1225, %1226 : vector<1x122xf32>
    %1228 = vector.extract_strided_slice %1227 {offsets = [0, 0], sizes = [1, 121], strides = [1, 1]} : vector<1x122xf32> to vector<1x121xf32>
    %1229 = vector.extract_strided_slice %1227 {offsets = [0, 1], sizes = [1, 121], strides = [1, 1]} : vector<1x122xf32> to vector<1x121xf32>
    %1230 = arith.maximumf %1228, %1229 : vector<1x121xf32>
    %c9_184 = arith.constant 9 : index
    %c0_185 = arith.constant 0 : index
    %1231 = vector.load %arg13[%c9_184, %c0_185] : memref<16x121xf32, #tpu.memory_space<vmem>>, vector<1x121xf32>
    tpu.vector_store %arg13[%c9_184, %c0_185], %1230 {strides = array<i32>} : memref<16x121xf32, #tpu.memory_space<vmem>>, vector<1x121xf32>,
    %1232 = vector.extract_strided_slice %1217 {offsets = [8, 0], sizes = [1, 122], strides = [1, 1]} : vector<16x122xf32> to vector<1x122xf32>
    %1233 = vector.extract_strided_slice %1217 {offsets = [9, 0], sizes = [1, 122], strides = [1, 1]} : vector<16x122xf32> to vector<1x122xf32>
    %1234 = arith.maximumf %1232, %1233 : vector<1x122xf32>
    %1235 = vector.extract_strided_slice %1234 {offsets = [0, 0], sizes = [1, 121], strides = [1, 1]} : vector<1x122xf32> to vector<1x121xf32>
    %1236 = vector.extract_strided_slice %1234 {offsets = [0, 1], sizes = [1, 121], strides = [1, 1]} : vector<1x122xf32> to vector<1x121xf32>
    %1237 = arith.maximumf %1235, %1236 : vector<1x121xf32>
    %c10_186 = arith.constant 10 : index
    %c0_187 = arith.constant 0 : index
    %1238 = vector.load %arg13[%c10_186, %c0_187] : memref<16x121xf32, #tpu.memory_space<vmem>>, vector<1x121xf32>
    tpu.vector_store %arg13[%c10_186, %c0_187], %1237 {strides = array<i32>} : memref<16x121xf32, #tpu.memory_space<vmem>>, vector<1x121xf32>,
    %1239 = vector.extract_strided_slice %1217 {offsets = [12, 0], sizes = [1, 122], strides = [1, 1]} : vector<16x122xf32> to vector<1x122xf32>
    %1240 = vector.extract_strided_slice %1217 {offsets = [13, 0], sizes = [1, 122], strides = [1, 1]} : vector<16x122xf32> to vector<1x122xf32>
    %1241 = arith.maximumf %1239, %1240 : vector<1x122xf32>
    %1242 = vector.extract_strided_slice %1241 {offsets = [0, 0], sizes = [1, 121], strides = [1, 1]} : vector<1x122xf32> to vector<1x121xf32>
    %1243 = vector.extract_strided_slice %1241 {offsets = [0, 1], sizes = [1, 121], strides = [1, 1]} : vector<1x122xf32> to vector<1x121xf32>
    %1244 = arith.maximumf %1242, %1243 : vector<1x121xf32>
    %c11_188 = arith.constant 11 : index
    %c0_189 = arith.constant 0 : index
    %1245 = vector.load %arg13[%c11_188, %c0_189] : memref<16x121xf32, #tpu.memory_space<vmem>>, vector<1x121xf32>
    tpu.vector_store %arg13[%c11_188, %c0_189], %1244 {strides = array<i32>} : memref<16x121xf32, #tpu.memory_space<vmem>>, vector<1x121xf32>,
    %cst_190 = arith.constant 0.000000e+00 : f32
    %1246 = vector.broadcast %cst_190 : f32 to vector<16x122xf32>
    %1247 = arith.cmpf ogt, %1119, %1246 : vector<16x122xf32>
    %cst_191 = arith.constant 0.000000e+00 : f32
    %1248 = vector.broadcast %cst_191 : f32 to vector<16x122xf32>
    %1249 = arith.minimumf %1119, %1248 : vector<16x122xf32>
    %1250 = math.exp %1249 : vector<16x122xf32>
    %cst_192 = arith.constant 1.000000e+00 : f32
    %1251 = vector.broadcast %cst_192 : f32 to vector<16x122xf32>
    %1252 = arith.subf %1250, %1251 : vector<16x122xf32>
    %1253 = arith.select %1247, %1119, %1252 : vector<16x122xi1>, vector<16x122xf32>
    %c7_193 = arith.constant 7 : index
    %1254 = memref.load %arg5[%c7_193] : memref<12xf32, #tpu.memory_space<smem>>
    %1255 = vector.broadcast %1254 : f32 to vector<16x122xf32>
    %1256 = arith.mulf %1253, %1255 : vector<16x122xf32>
    %c11_194 = arith.constant 11 : index
    %1257 = memref.load %arg5[%c11_194] : memref<12xf32, #tpu.memory_space<smem>>
    %1258 = vector.broadcast %1257 : f32 to vector<16x122xf32>
    %1259 = arith.addf %1256, %1258 : vector<16x122xf32>
    %1260 = vector.extract_strided_slice %1259 {offsets = [0, 0], sizes = [1, 122], strides = [1, 1]} : vector<16x122xf32> to vector<1x122xf32>
    %1261 = vector.extract_strided_slice %1259 {offsets = [1, 0], sizes = [1, 122], strides = [1, 1]} : vector<16x122xf32> to vector<1x122xf32>
    %1262 = arith.maximumf %1260, %1261 : vector<1x122xf32>
    %1263 = vector.extract_strided_slice %1262 {offsets = [0, 0], sizes = [1, 121], strides = [1, 1]} : vector<1x122xf32> to vector<1x121xf32>
    %1264 = vector.extract_strided_slice %1262 {offsets = [0, 1], sizes = [1, 121], strides = [1, 1]} : vector<1x122xf32> to vector<1x121xf32>
    %1265 = arith.maximumf %1263, %1264 : vector<1x121xf32>
    %c12_195 = arith.constant 12 : index
    %c0_196 = arith.constant 0 : index
    %1266 = vector.load %arg13[%c12_195, %c0_196] : memref<16x121xf32, #tpu.memory_space<vmem>>, vector<1x121xf32>
    tpu.vector_store %arg13[%c12_195, %c0_196], %1265 {strides = array<i32>} : memref<16x121xf32, #tpu.memory_space<vmem>>, vector<1x121xf32>,
    %1267 = vector.extract_strided_slice %1259 {offsets = [4, 0], sizes = [1, 122], strides = [1, 1]} : vector<16x122xf32> to vector<1x122xf32>
    %1268 = vector.extract_strided_slice %1259 {offsets = [5, 0], sizes = [1, 122], strides = [1, 1]} : vector<16x122xf32> to vector<1x122xf32>
    %1269 = arith.maximumf %1267, %1268 : vector<1x122xf32>
    %1270 = vector.extract_strided_slice %1269 {offsets = [0, 0], sizes = [1, 121], strides = [1, 1]} : vector<1x122xf32> to vector<1x121xf32>
    %1271 = vector.extract_strided_slice %1269 {offsets = [0, 1], sizes = [1, 121], strides = [1, 1]} : vector<1x122xf32> to vector<1x121xf32>
    %1272 = arith.maximumf %1270, %1271 : vector<1x121xf32>
    %c13_197 = arith.constant 13 : index
    %c0_198 = arith.constant 0 : index
    %1273 = vector.load %arg13[%c13_197, %c0_198] : memref<16x121xf32, #tpu.memory_space<vmem>>, vector<1x121xf32>
    tpu.vector_store %arg13[%c13_197, %c0_198], %1272 {strides = array<i32>} : memref<16x121xf32, #tpu.memory_space<vmem>>, vector<1x121xf32>,
    %1274 = vector.extract_strided_slice %1259 {offsets = [8, 0], sizes = [1, 122], strides = [1, 1]} : vector<16x122xf32> to vector<1x122xf32>
    %1275 = vector.extract_strided_slice %1259 {offsets = [9, 0], sizes = [1, 122], strides = [1, 1]} : vector<16x122xf32> to vector<1x122xf32>
    %1276 = arith.maximumf %1274, %1275 : vector<1x122xf32>
    %1277 = vector.extract_strided_slice %1276 {offsets = [0, 0], sizes = [1, 121], strides = [1, 1]} : vector<1x122xf32> to vector<1x121xf32>
    %1278 = vector.extract_strided_slice %1276 {offsets = [0, 1], sizes = [1, 121], strides = [1, 1]} : vector<1x122xf32> to vector<1x121xf32>
    %1279 = arith.maximumf %1277, %1278 : vector<1x121xf32>
    %c14_199 = arith.constant 14 : index
    %c0_200 = arith.constant 0 : index
    %1280 = vector.load %arg13[%c14_199, %c0_200] : memref<16x121xf32, #tpu.memory_space<vmem>>, vector<1x121xf32>
    tpu.vector_store %arg13[%c14_199, %c0_200], %1279 {strides = array<i32>} : memref<16x121xf32, #tpu.memory_space<vmem>>, vector<1x121xf32>,
    %1281 = vector.extract_strided_slice %1259 {offsets = [12, 0], sizes = [1, 122], strides = [1, 1]} : vector<16x122xf32> to vector<1x122xf32>
    %1282 = vector.extract_strided_slice %1259 {offsets = [13, 0], sizes = [1, 122], strides = [1, 1]} : vector<16x122xf32> to vector<1x122xf32>
    %1283 = arith.maximumf %1281, %1282 : vector<1x122xf32>
    %1284 = vector.extract_strided_slice %1283 {offsets = [0, 0], sizes = [1, 121], strides = [1, 1]} : vector<1x122xf32> to vector<1x121xf32>
    %1285 = vector.extract_strided_slice %1283 {offsets = [0, 1], sizes = [1, 121], strides = [1, 1]} : vector<1x122xf32> to vector<1x121xf32>
    %1286 = arith.maximumf %1284, %1285 : vector<1x121xf32>
    %c15_201 = arith.constant 15 : index
    %c0_202 = arith.constant 0 : index
    %1287 = vector.load %arg13[%c15_201, %c0_202] : memref<16x121xf32, #tpu.memory_space<vmem>>, vector<1x121xf32>
    tpu.vector_store %arg13[%c15_201, %c0_202], %1286 {strides = array<i32>} : memref<16x121xf32, #tpu.memory_space<vmem>>, vector<1x121xf32>,
    %c0_203 = arith.constant 0 : index
    %c0_204 = arith.constant 0 : index
    %1288 = vector.load %arg13[%c0_203, %c0_204] : memref<16x121xf32, #tpu.memory_space<vmem>>, vector<16x121xf32>
    %c0_205 = arith.constant 0 : index
    %c0_206 = arith.constant 0 : index
    %1289 = vector.load %arg6[%c0_205, %c0_206] : memref<121x31xf32, #tpu.memory_space<vmem>>, vector<121x31xf32>
    %cst_207 = arith.constant dense<0.000000e+00> : vector<16x31xf32>
    %1290 = tpu.matmul %1288, %1289, %cst_207 {dimension_numbers = #tpu.dot_dimension_numbers<[1], [0], [0], [1], [0, 0, 1, 1], [], []>} : vector<16x121xf32>, vector<121x31xf32>, vector<16x31xf32> -> vector<16x31xf32>
    %cst_208 = arith.constant 0.000000e+00 : f32
    %1291 = vector.broadcast %cst_208 : f32 to vector<16x34xf32>
    %c0_209 = arith.constant 0 : index
    %c0_210 = arith.constant 0 : index
    %1292 = vector.load %arg14[%c0_209, %c0_210] : memref<16x34xf32, #tpu.memory_space<vmem>>, vector<16x34xf32>
    tpu.vector_store %arg14[%c0_209, %c0_210], %1291 {strides = array<i32>} : memref<16x34xf32, #tpu.memory_space<vmem>>, vector<16x34xf32>,
    %c0_211 = arith.constant 0 : index
    %c2_212 = arith.constant 2 : index
    %1293 = vector.load %arg14[%c0_211, %c2_212] : memref<16x34xf32, #tpu.memory_space<vmem>>, vector<16x31xf32>
    tpu.vector_store %arg14[%c0_211, %c2_212], %1290 {strides = array<i32>} : memref<16x34xf32, #tpu.memory_space<vmem>>, vector<16x31xf32>,
    %c0_213 = arith.constant 0 : index
    %c0_214 = arith.constant 0 : index
    %1294 = vector.load %arg8[%c0_213, %c0_214] : memref<4x3xf32, #tpu.memory_space<vmem>>, vector<4x1xf32>
    %c0_215 = arith.constant 0 : index
    %c1_216 = arith.constant 1 : index
    %1295 = vector.load %arg8[%c0_215, %c1_216] : memref<4x3xf32, #tpu.memory_space<vmem>>, vector<4x1xf32>
    %c0_217 = arith.constant 0 : index
    %c2_218 = arith.constant 2 : index
    %1296 = vector.load %arg8[%c0_217, %c2_218] : memref<4x3xf32, #tpu.memory_space<vmem>>, vector<4x1xf32>
    %cst_219 = arith.constant 0.000000e+00 : f32
    %1297 = vector.broadcast %cst_219 : f32 to vector<4x31xf32>
    %c0_220 = arith.constant 0 : index
    %c0_221 = arith.constant 0 : index
    %c0_222 = arith.constant 0 : index
    %1298 = vector.load %arg7[%c0_220, %c0_221, %c0_222] : memref<16x4x16xf32, #tpu.memory_space<vmem>>, vector<1x4x16xf32>
    %1299 = vector.shape_cast %1298 : vector<1x4x16xf32> to vector<4x16xf32>
    %c0_223 = arith.constant 0 : index
    %c0_224 = arith.constant 0 : index
    %1300 = vector.load %arg14[%c0_223, %c0_224] : memref<16x34xf32, #tpu.memory_space<vmem>>, vector<16x31xf32>
    %cst_225 = arith.constant dense<0.000000e+00> : vector<4x31xf32>
    %1301 = tpu.matmul %1299, %1300, %cst_225 {dimension_numbers = #tpu.dot_dimension_numbers<[1], [0], [0], [1], [0, 0, 1, 1], [], []>} : vector<4x16xf32>, vector<16x31xf32>, vector<4x31xf32> -> vector<4x31xf32>
    %1302 = arith.addf %1297, %1301 : vector<4x31xf32>
    %c1_226 = arith.constant 1 : index
    %c0_227 = arith.constant 0 : index
    %c0_228 = arith.constant 0 : index
    %1303 = vector.load %arg7[%c1_226, %c0_227, %c0_228] : memref<16x4x16xf32, #tpu.memory_space<vmem>>, vector<1x4x16xf32>
    %1304 = vector.shape_cast %1303 : vector<1x4x16xf32> to vector<4x16xf32>
    %c0_229 = arith.constant 0 : index
    %c1_230 = arith.constant 1 : index
    %1305 = vector.load %arg14[%c0_229, %c1_230] : memref<16x34xf32, #tpu.memory_space<vmem>>, vector<16x31xf32>
    %cst_231 = arith.constant dense<0.000000e+00> : vector<4x31xf32>
    %1306 = tpu.matmul %1304, %1305, %cst_231 {dimension_numbers = #tpu.dot_dimension_numbers<[1], [0], [0], [1], [0, 0, 1, 1], [], []>} : vector<4x16xf32>, vector<16x31xf32>, vector<4x31xf32> -> vector<4x31xf32>
    %1307 = arith.addf %1302, %1306 : vector<4x31xf32>
    %c2_232 = arith.constant 2 : index
    %c0_233 = arith.constant 0 : index
    %c0_234 = arith.constant 0 : index
    %1308 = vector.load %arg7[%c2_232, %c0_233, %c0_234] : memref<16x4x16xf32, #tpu.memory_space<vmem>>, vector<1x4x16xf32>
    %1309 = vector.shape_cast %1308 : vector<1x4x16xf32> to vector<4x16xf32>
    %c0_235 = arith.constant 0 : index
    %c2_236 = arith.constant 2 : index
    %1310 = vector.load %arg14[%c0_235, %c2_236] : memref<16x34xf32, #tpu.memory_space<vmem>>, vector<16x31xf32>
    %cst_237 = arith.constant dense<0.000000e+00> : vector<4x31xf32>
    %1311 = tpu.matmul %1309, %1310, %cst_237 {dimension_numbers = #tpu.dot_dimension_numbers<[1], [0], [0], [1], [0, 0, 1, 1], [], []>} : vector<4x16xf32>, vector<16x31xf32>, vector<4x31xf32> -> vector<4x31xf32>
    %1312 = arith.addf %1307, %1311 : vector<4x31xf32>
    %c3_238 = arith.constant 3 : index
    %c0_239 = arith.constant 0 : index
    %c0_240 = arith.constant 0 : index
    %1313 = vector.load %arg7[%c3_238, %c0_239, %c0_240] : memref<16x4x16xf32, #tpu.memory_space<vmem>>, vector<1x4x16xf32>
    %1314 = vector.shape_cast %1313 : vector<1x4x16xf32> to vector<4x16xf32>
    %c0_241 = arith.constant 0 : index
    %c3_242 = arith.constant 3 : index
    %1315 = vector.load %arg14[%c0_241, %c3_242] : memref<16x34xf32, #tpu.memory_space<vmem>>, vector<16x31xf32>
    %cst_243 = arith.constant dense<0.000000e+00> : vector<4x31xf32>
    %1316 = tpu.matmul %1314, %1315, %cst_243 {dimension_numbers = #tpu.dot_dimension_numbers<[1], [0], [0], [1], [0, 0, 1, 1], [], []>} : vector<4x16xf32>, vector<16x31xf32>, vector<4x31xf32> -> vector<4x31xf32>
    %1317 = arith.addf %1312, %1316 : vector<4x31xf32>
    %1318 = vector.broadcast %1294 : vector<4x1xf32> to vector<4x31xf32>
    %1319 = arith.addf %1317, %1318 : vector<4x31xf32>
    %cst_244 = arith.constant 0.000000e+00 : f32
    %1320 = vector.broadcast %cst_244 : f32 to vector<4x31xf32>
    %1321 = arith.cmpf ogt, %1319, %1320 : vector<4x31xf32>
    %cst_245 = arith.constant 0.000000e+00 : f32
    %1322 = vector.broadcast %cst_245 : f32 to vector<4x31xf32>
    %1323 = arith.minimumf %1319, %1322 : vector<4x31xf32>
    %1324 = math.exp %1323 : vector<4x31xf32>
    %cst_246 = arith.constant 1.000000e+00 : f32
    %1325 = vector.broadcast %cst_246 : f32 to vector<4x31xf32>
    %1326 = arith.subf %1324, %1325 : vector<4x31xf32>
    %1327 = arith.select %1321, %1319, %1326 : vector<4x31xi1>, vector<4x31xf32>
    %1328 = vector.broadcast %1295 : vector<4x1xf32> to vector<4x31xf32>
    %1329 = arith.mulf %1327, %1328 : vector<4x31xf32>
    %1330 = vector.broadcast %1296 : vector<4x1xf32> to vector<4x31xf32>
    %1331 = arith.addf %1329, %1330 : vector<4x31xf32>
    %cst_247 = arith.constant 0.000000e+00 : f32
    %1332 = vector.broadcast %cst_247 : f32 to vector<4x31xf32>
    %c4_248 = arith.constant 4 : index
    %c0_249 = arith.constant 0 : index
    %c0_250 = arith.constant 0 : index
    %1333 = vector.load %arg7[%c4_248, %c0_249, %c0_250] : memref<16x4x16xf32, #tpu.memory_space<vmem>>, vector<1x4x16xf32>
    %1334 = vector.shape_cast %1333 : vector<1x4x16xf32> to vector<4x16xf32>
    %c0_251 = arith.constant 0 : index
    %c0_252 = arith.constant 0 : index
    %1335 = vector.load %arg14[%c0_251, %c0_252] : memref<16x34xf32, #tpu.memory_space<vmem>>, vector<16x31xf32>
    %cst_253 = arith.constant dense<0.000000e+00> : vector<4x31xf32>
    %1336 = tpu.matmul %1334, %1335, %cst_253 {dimension_numbers = #tpu.dot_dimension_numbers<[1], [0], [0], [1], [0, 0, 1, 1], [], []>} : vector<4x16xf32>, vector<16x31xf32>, vector<4x31xf32> -> vector<4x31xf32>
    %1337 = arith.addf %1332, %1336 : vector<4x31xf32>
    %c5_254 = arith.constant 5 : index
    %c0_255 = arith.constant 0 : index
    %c0_256 = arith.constant 0 : index
    %1338 = vector.load %arg7[%c5_254, %c0_255, %c0_256] : memref<16x4x16xf32, #tpu.memory_space<vmem>>, vector<1x4x16xf32>
    %1339 = vector.shape_cast %1338 : vector<1x4x16xf32> to vector<4x16xf32>
    %c0_257 = arith.constant 0 : index
    %c1_258 = arith.constant 1 : index
    %1340 = vector.load %arg14[%c0_257, %c1_258] : memref<16x34xf32, #tpu.memory_space<vmem>>, vector<16x31xf32>
    %cst_259 = arith.constant dense<0.000000e+00> : vector<4x31xf32>
    %1341 = tpu.matmul %1339, %1340, %cst_259 {dimension_numbers = #tpu.dot_dimension_numbers<[1], [0], [0], [1], [0, 0, 1, 1], [], []>} : vector<4x16xf32>, vector<16x31xf32>, vector<4x31xf32> -> vector<4x31xf32>
    %1342 = arith.addf %1337, %1341 : vector<4x31xf32>
    %c6_260 = arith.constant 6 : index
    %c0_261 = arith.constant 0 : index
    %c0_262 = arith.constant 0 : index
    %1343 = vector.load %arg7[%c6_260, %c0_261, %c0_262] : memref<16x4x16xf32, #tpu.memory_space<vmem>>, vector<1x4x16xf32>
    %1344 = vector.shape_cast %1343 : vector<1x4x16xf32> to vector<4x16xf32>
    %c0_263 = arith.constant 0 : index
    %c2_264 = arith.constant 2 : index
    %1345 = vector.load %arg14[%c0_263, %c2_264] : memref<16x34xf32, #tpu.memory_space<vmem>>, vector<16x31xf32>
    %cst_265 = arith.constant dense<0.000000e+00> : vector<4x31xf32>
    %1346 = tpu.matmul %1344, %1345, %cst_265 {dimension_numbers = #tpu.dot_dimension_numbers<[1], [0], [0], [1], [0, 0, 1, 1], [], []>} : vector<4x16xf32>, vector<16x31xf32>, vector<4x31xf32> -> vector<4x31xf32>
    %1347 = arith.addf %1342, %1346 : vector<4x31xf32>
    %c7_266 = arith.constant 7 : index
    %c0_267 = arith.constant 0 : index
    %c0_268 = arith.constant 0 : index
    %1348 = vector.load %arg7[%c7_266, %c0_267, %c0_268] : memref<16x4x16xf32, #tpu.memory_space<vmem>>, vector<1x4x16xf32>
    %1349 = vector.shape_cast %1348 : vector<1x4x16xf32> to vector<4x16xf32>
    %c0_269 = arith.constant 0 : index
    %c3_270 = arith.constant 3 : index
    %1350 = vector.load %arg14[%c0_269, %c3_270] : memref<16x34xf32, #tpu.memory_space<vmem>>, vector<16x31xf32>
    %cst_271 = arith.constant dense<0.000000e+00> : vector<4x31xf32>
    %1351 = tpu.matmul %1349, %1350, %cst_271 {dimension_numbers = #tpu.dot_dimension_numbers<[1], [0], [0], [1], [0, 0, 1, 1], [], []>} : vector<4x16xf32>, vector<16x31xf32>, vector<4x31xf32> -> vector<4x31xf32>
    %1352 = arith.addf %1347, %1351 : vector<4x31xf32>
    %1353 = vector.broadcast %1294 : vector<4x1xf32> to vector<4x31xf32>
    %1354 = arith.addf %1352, %1353 : vector<4x31xf32>
    %cst_272 = arith.constant 0.000000e+00 : f32
    %1355 = vector.broadcast %cst_272 : f32 to vector<4x31xf32>
    %1356 = arith.cmpf ogt, %1354, %1355 : vector<4x31xf32>
    %cst_273 = arith.constant 0.000000e+00 : f32
    %1357 = vector.broadcast %cst_273 : f32 to vector<4x31xf32>
    %1358 = arith.minimumf %1354, %1357 : vector<4x31xf32>
    %1359 = math.exp %1358 : vector<4x31xf32>
    %cst_274 = arith.constant 1.000000e+00 : f32
    %1360 = vector.broadcast %cst_274 : f32 to vector<4x31xf32>
    %1361 = arith.subf %1359, %1360 : vector<4x31xf32>
    %1362 = arith.select %1356, %1354, %1361 : vector<4x31xi1>, vector<4x31xf32>
    %1363 = vector.broadcast %1295 : vector<4x1xf32> to vector<4x31xf32>
    %1364 = arith.mulf %1362, %1363 : vector<4x31xf32>
    %1365 = vector.broadcast %1296 : vector<4x1xf32> to vector<4x31xf32>
    %1366 = arith.addf %1364, %1365 : vector<4x31xf32>
    %cst_275 = arith.constant 0.000000e+00 : f32
    %1367 = vector.broadcast %cst_275 : f32 to vector<4x31xf32>
    %c8_276 = arith.constant 8 : index
    %c0_277 = arith.constant 0 : index
    %c0_278 = arith.constant 0 : index
    %1368 = vector.load %arg7[%c8_276, %c0_277, %c0_278] : memref<16x4x16xf32, #tpu.memory_space<vmem>>, vector<1x4x16xf32>
    %1369 = vector.shape_cast %1368 : vector<1x4x16xf32> to vector<4x16xf32>
    %c0_279 = arith.constant 0 : index
    %c0_280 = arith.constant 0 : index
    %1370 = vector.load %arg14[%c0_279, %c0_280] : memref<16x34xf32, #tpu.memory_space<vmem>>, vector<16x31xf32>
    %cst_281 = arith.constant dense<0.000000e+00> : vector<4x31xf32>
    %1371 = tpu.matmul %1369, %1370, %cst_281 {dimension_numbers = #tpu.dot_dimension_numbers<[1], [0], [0], [1], [0, 0, 1, 1], [], []>} : vector<4x16xf32>, vector<16x31xf32>, vector<4x31xf32> -> vector<4x31xf32>
    %1372 = arith.addf %1367, %1371 : vector<4x31xf32>
    %c9_282 = arith.constant 9 : index
    %c0_283 = arith.constant 0 : index
    %c0_284 = arith.constant 0 : index
    %1373 = vector.load %arg7[%c9_282, %c0_283, %c0_284] : memref<16x4x16xf32, #tpu.memory_space<vmem>>, vector<1x4x16xf32>
    %1374 = vector.shape_cast %1373 : vector<1x4x16xf32> to vector<4x16xf32>
    %c0_285 = arith.constant 0 : index
    %c1_286 = arith.constant 1 : index
    %1375 = vector.load %arg14[%c0_285, %c1_286] : memref<16x34xf32, #tpu.memory_space<vmem>>, vector<16x31xf32>
    %cst_287 = arith.constant dense<0.000000e+00> : vector<4x31xf32>
    %1376 = tpu.matmul %1374, %1375, %cst_287 {dimension_numbers = #tpu.dot_dimension_numbers<[1], [0], [0], [1], [0, 0, 1, 1], [], []>} : vector<4x16xf32>, vector<16x31xf32>, vector<4x31xf32> -> vector<4x31xf32>
    %1377 = arith.addf %1372, %1376 : vector<4x31xf32>
    %c10_288 = arith.constant 10 : index
    %c0_289 = arith.constant 0 : index
    %c0_290 = arith.constant 0 : index
    %1378 = vector.load %arg7[%c10_288, %c0_289, %c0_290] : memref<16x4x16xf32, #tpu.memory_space<vmem>>, vector<1x4x16xf32>
    %1379 = vector.shape_cast %1378 : vector<1x4x16xf32> to vector<4x16xf32>
    %c0_291 = arith.constant 0 : index
    %c2_292 = arith.constant 2 : index
    %1380 = vector.load %arg14[%c0_291, %c2_292] : memref<16x34xf32, #tpu.memory_space<vmem>>, vector<16x31xf32>
    %cst_293 = arith.constant dense<0.000000e+00> : vector<4x31xf32>
    %1381 = tpu.matmul %1379, %1380, %cst_293 {dimension_numbers = #tpu.dot_dimension_numbers<[1], [0], [0], [1], [0, 0, 1, 1], [], []>} : vector<4x16xf32>, vector<16x31xf32>, vector<4x31xf32> -> vector<4x31xf32>
    %1382 = arith.addf %1377, %1381 : vector<4x31xf32>
    %c11_294 = arith.constant 11 : index
    %c0_295 = arith.constant 0 : index
    %c0_296 = arith.constant 0 : index
    %1383 = vector.load %arg7[%c11_294, %c0_295, %c0_296] : memref<16x4x16xf32, #tpu.memory_space<vmem>>, vector<1x4x16xf32>
    %1384 = vector.shape_cast %1383 : vector<1x4x16xf32> to vector<4x16xf32>
    %c0_297 = arith.constant 0 : index
    %c3_298 = arith.constant 3 : index
    %1385 = vector.load %arg14[%c0_297, %c3_298] : memref<16x34xf32, #tpu.memory_space<vmem>>, vector<16x31xf32>
    %cst_299 = arith.constant dense<0.000000e+00> : vector<4x31xf32>
    %1386 = tpu.matmul %1384, %1385, %cst_299 {dimension_numbers = #tpu.dot_dimension_numbers<[1], [0], [0], [1], [0, 0, 1, 1], [], []>} : vector<4x16xf32>, vector<16x31xf32>, vector<4x31xf32> -> vector<4x31xf32>
    %1387 = arith.addf %1382, %1386 : vector<4x31xf32>
    %1388 = vector.broadcast %1294 : vector<4x1xf32> to vector<4x31xf32>
    %1389 = arith.addf %1387, %1388 : vector<4x31xf32>
    %cst_300 = arith.constant 0.000000e+00 : f32
    %1390 = vector.broadcast %cst_300 : f32 to vector<4x31xf32>
    %1391 = arith.cmpf ogt, %1389, %1390 : vector<4x31xf32>
    %cst_301 = arith.constant 0.000000e+00 : f32
    %1392 = vector.broadcast %cst_301 : f32 to vector<4x31xf32>
    %1393 = arith.minimumf %1389, %1392 : vector<4x31xf32>
    %1394 = math.exp %1393 : vector<4x31xf32>
    %cst_302 = arith.constant 1.000000e+00 : f32
    %1395 = vector.broadcast %cst_302 : f32 to vector<4x31xf32>
    %1396 = arith.subf %1394, %1395 : vector<4x31xf32>
    %1397 = arith.select %1391, %1389, %1396 : vector<4x31xi1>, vector<4x31xf32>
    %1398 = vector.broadcast %1295 : vector<4x1xf32> to vector<4x31xf32>
    %1399 = arith.mulf %1397, %1398 : vector<4x31xf32>
    %1400 = vector.broadcast %1296 : vector<4x1xf32> to vector<4x31xf32>
    %1401 = arith.addf %1399, %1400 : vector<4x31xf32>
    %cst_303 = arith.constant 0.000000e+00 : f32
    %1402 = vector.broadcast %cst_303 : f32 to vector<4x31xf32>
    %c12_304 = arith.constant 12 : index
    %c0_305 = arith.constant 0 : index
    %c0_306 = arith.constant 0 : index
    %1403 = vector.load %arg7[%c12_304, %c0_305, %c0_306] : memref<16x4x16xf32, #tpu.memory_space<vmem>>, vector<1x4x16xf32>
    %1404 = vector.shape_cast %1403 : vector<1x4x16xf32> to vector<4x16xf32>
    %c0_307 = arith.constant 0 : index
    %c0_308 = arith.constant 0 : index
    %1405 = vector.load %arg14[%c0_307, %c0_308] : memref<16x34xf32, #tpu.memory_space<vmem>>, vector<16x31xf32>
    %cst_309 = arith.constant dense<0.000000e+00> : vector<4x31xf32>
    %1406 = tpu.matmul %1404, %1405, %cst_309 {dimension_numbers = #tpu.dot_dimension_numbers<[1], [0], [0], [1], [0, 0, 1, 1], [], []>} : vector<4x16xf32>, vector<16x31xf32>, vector<4x31xf32> -> vector<4x31xf32>
    %1407 = arith.addf %1402, %1406 : vector<4x31xf32>
    %c13_310 = arith.constant 13 : index
    %c0_311 = arith.constant 0 : index
    %c0_312 = arith.constant 0 : index
    %1408 = vector.load %arg7[%c13_310, %c0_311, %c0_312] : memref<16x4x16xf32, #tpu.memory_space<vmem>>, vector<1x4x16xf32>
    %1409 = vector.shape_cast %1408 : vector<1x4x16xf32> to vector<4x16xf32>
    %c0_313 = arith.constant 0 : index
    %c1_314 = arith.constant 1 : index
    %1410 = vector.load %arg14[%c0_313, %c1_314] : memref<16x34xf32, #tpu.memory_space<vmem>>, vector<16x31xf32>
    %cst_315 = arith.constant dense<0.000000e+00> : vector<4x31xf32>
    %1411 = tpu.matmul %1409, %1410, %cst_315 {dimension_numbers = #tpu.dot_dimension_numbers<[1], [0], [0], [1], [0, 0, 1, 1], [], []>} : vector<4x16xf32>, vector<16x31xf32>, vector<4x31xf32> -> vector<4x31xf32>
    %1412 = arith.addf %1407, %1411 : vector<4x31xf32>
    %c14_316 = arith.constant 14 : index
    %c0_317 = arith.constant 0 : index
    %c0_318 = arith.constant 0 : index
    %1413 = vector.load %arg7[%c14_316, %c0_317, %c0_318] : memref<16x4x16xf32, #tpu.memory_space<vmem>>, vector<1x4x16xf32>
    %1414 = vector.shape_cast %1413 : vector<1x4x16xf32> to vector<4x16xf32>
    %c0_319 = arith.constant 0 : index
    %c2_320 = arith.constant 2 : index
    %1415 = vector.load %arg14[%c0_319, %c2_320] : memref<16x34xf32, #tpu.memory_space<vmem>>, vector<16x31xf32>
    %cst_321 = arith.constant dense<0.000000e+00> : vector<4x31xf32>
    %1416 = tpu.matmul %1414, %1415, %cst_321 {dimension_numbers = #tpu.dot_dimension_numbers<[1], [0], [0], [1], [0, 0, 1, 1], [], []>} : vector<4x16xf32>, vector<16x31xf32>, vector<4x31xf32> -> vector<4x31xf32>
    %1417 = arith.addf %1412, %1416 : vector<4x31xf32>
    %c15_322 = arith.constant 15 : index
    %c0_323 = arith.constant 0 : index
    %c0_324 = arith.constant 0 : index
    %1418 = vector.load %arg7[%c15_322, %c0_323, %c0_324] : memref<16x4x16xf32, #tpu.memory_space<vmem>>, vector<1x4x16xf32>
    %1419 = vector.shape_cast %1418 : vector<1x4x16xf32> to vector<4x16xf32>
    %c0_325 = arith.constant 0 : index
    %c3_326 = arith.constant 3 : index
    %1420 = vector.load %arg14[%c0_325, %c3_326] : memref<16x34xf32, #tpu.memory_space<vmem>>, vector<16x31xf32>
    %cst_327 = arith.constant dense<0.000000e+00> : vector<4x31xf32>
    %1421 = tpu.matmul %1419, %1420, %cst_327 {dimension_numbers = #tpu.dot_dimension_numbers<[1], [0], [0], [1], [0, 0, 1, 1], [], []>} : vector<4x16xf32>, vector<16x31xf32>, vector<4x31xf32> -> vector<4x31xf32>
    %1422 = arith.addf %1417, %1421 : vector<4x31xf32>
    %1423 = vector.broadcast %1294 : vector<4x1xf32> to vector<4x31xf32>
    %1424 = arith.addf %1422, %1423 : vector<4x31xf32>
    %cst_328 = arith.constant 0.000000e+00 : f32
    %1425 = vector.broadcast %cst_328 : f32 to vector<4x31xf32>
    %1426 = arith.cmpf ogt, %1424, %1425 : vector<4x31xf32>
    %cst_329 = arith.constant 0.000000e+00 : f32
    %1427 = vector.broadcast %cst_329 : f32 to vector<4x31xf32>
    %1428 = arith.minimumf %1424, %1427 : vector<4x31xf32>
    %1429 = math.exp %1428 : vector<4x31xf32>
    %cst_330 = arith.constant 1.000000e+00 : f32
    %1430 = vector.broadcast %cst_330 : f32 to vector<4x31xf32>
    %1431 = arith.subf %1429, %1430 : vector<4x31xf32>
    %1432 = arith.select %1426, %1424, %1431 : vector<4x31xi1>, vector<4x31xf32>
    %1433 = vector.broadcast %1295 : vector<4x1xf32> to vector<4x31xf32>
    %1434 = arith.mulf %1432, %1433 : vector<4x31xf32>
    %1435 = vector.broadcast %1296 : vector<4x1xf32> to vector<4x31xf32>
    %1436 = arith.addf %1434, %1435 : vector<4x31xf32>
    %c0_331 = arith.constant 0 : index
    %1437 = memref.load %arg10[%c0_331] : memref<1xf32, #tpu.memory_space<smem>>
    %1438 = arith.maximumf %1331, %1366 : vector<4x31xf32>
    %1439 = vector.extract_strided_slice %1438 {offsets = [0, 0], sizes = [4, 28], strides = [1, 1]} : vector<4x31xf32> to vector<4x28xf32>
    %1440 = vector.extract_strided_slice %1438 {offsets = [0, 1], sizes = [4, 28], strides = [1, 1]} : vector<4x31xf32> to vector<4x28xf32>
    %1441 = arith.maximumf %1439, %1440 : vector<4x28xf32>
    %1442 = vector.extract_strided_slice %1438 {offsets = [0, 2], sizes = [4, 28], strides = [1, 1]} : vector<4x31xf32> to vector<4x28xf32>
    %1443 = vector.extract_strided_slice %1438 {offsets = [0, 3], sizes = [4, 28], strides = [1, 1]} : vector<4x31xf32> to vector<4x28xf32>
    %1444 = arith.maximumf %1442, %1443 : vector<4x28xf32>
    %1445 = arith.maximumf %1441, %1444 : vector<4x28xf32>
    %c0_332 = arith.constant 0 : index
    %c0_333 = arith.constant 0 : index
    %c0_334 = arith.constant 0 : index
    %1446 = vector.load %arg9[%c0_332, %c0_333, %c0_334] : memref<2x4x28xf32, #tpu.memory_space<vmem>>, vector<1x4x28xf32>
    %1447 = vector.shape_cast %1446 : vector<1x4x28xf32> to vector<4x28xf32>
    %1448 = arith.mulf %1447, %1445 : vector<4x28xf32>
    %1449 = vector.shape_cast %1448 : vector<4x28xf32> to vector<1x4x28xf32>
    %cst_335 = arith.constant dense<0.000000e+00> : vector<1xf32>
    %1450 = vector.multi_reduction <add>, %1449, %cst_335 [1, 2] : vector<1x4x28xf32> to vector<1xf32>
    %1451 = vector.shape_cast %1450 : vector<1xf32> to vector<1x1x1xf32>
    %1452 = vector.extract %1451[0, 0, 0] : f32 from vector<1x1x1xf32>
    %1453 = arith.addf %1437, %1452 : f32
    %1454 = arith.maximumf %1401, %1436 : vector<4x31xf32>
    %1455 = vector.extract_strided_slice %1454 {offsets = [0, 0], sizes = [4, 28], strides = [1, 1]} : vector<4x31xf32> to vector<4x28xf32>
    %1456 = vector.extract_strided_slice %1454 {offsets = [0, 1], sizes = [4, 28], strides = [1, 1]} : vector<4x31xf32> to vector<4x28xf32>
    %1457 = arith.maximumf %1455, %1456 : vector<4x28xf32>
    %1458 = vector.extract_strided_slice %1454 {offsets = [0, 2], sizes = [4, 28], strides = [1, 1]} : vector<4x31xf32> to vector<4x28xf32>
    %1459 = vector.extract_strided_slice %1454 {offsets = [0, 3], sizes = [4, 28], strides = [1, 1]} : vector<4x31xf32> to vector<4x28xf32>
    %1460 = arith.maximumf %1458, %1459 : vector<4x28xf32>
    %1461 = arith.maximumf %1457, %1460 : vector<4x28xf32>
    %c1_336 = arith.constant 1 : index
    %c0_337 = arith.constant 0 : index
    %c0_338 = arith.constant 0 : index
    %1462 = vector.load %arg9[%c1_336, %c0_337, %c0_338] : memref<2x4x28xf32, #tpu.memory_space<vmem>>, vector<1x4x28xf32>
    %1463 = vector.shape_cast %1462 : vector<1x4x28xf32> to vector<4x28xf32>
    %1464 = arith.mulf %1463, %1461 : vector<4x28xf32>
    %1465 = vector.shape_cast %1464 : vector<4x28xf32> to vector<1x4x28xf32>
    %cst_339 = arith.constant dense<0.000000e+00> : vector<1xf32>
    %1466 = vector.multi_reduction <add>, %1465, %cst_339 [1, 2] : vector<1x4x28xf32> to vector<1xf32>
    %1467 = vector.shape_cast %1466 : vector<1xf32> to vector<1x1x1xf32>
    %1468 = vector.extract %1467[0, 0, 0] : f32 from vector<1x1x1xf32>
    %1469 = arith.addf %1453, %1468 : f32
    %cst_340 = arith.constant 0.000000e+00 : f32
    %1470 = arith.subf %cst_340, %1469 : f32
    %1471 = math.exp %1470 : f32
    %cst_341 = arith.constant 1.000000e+00 : f32
    %1472 = arith.addf %cst_341, %1471 : f32
    %cst_342 = arith.constant 1.000000e+00 : f32
    %1473 = arith.divf %cst_342, %1472 : f32
    %1474 = vector.broadcast %1473 : f32 to vector<8x128xf32>
    %c0_343 = arith.constant 0 : index
    %c0_344 = arith.constant 0 : index
    %1475 = vector.load %arg11[%c0_343, %c0_344] : memref<8x128xf32, #tpu.memory_space<vmem>>, vector<8x128xf32>
    tpu.vector_store %arg11[%c0_343, %c0_344], %1474 {strides = array<i32>} : memref<8x128xf32, #tpu.memory_space<vmem>>, vector<8x128xf32>,
    return
  }
  func.func @transform_0(%arg0: i32) -> (i32, i32, i32) {
    %c0_i32 = arith.constant 0 : i32
    %c0_i32_0 = arith.constant 0 : i32
    %c0_i32_1 = arith.constant 0 : i32
    return %arg0, %c0_i32, %c0_i32_0 : i32, i32, i32
  }
  func.func @transform_1(%arg0: i32) -> (i32, i32) {
    %c0_i32 = arith.constant 0 : i32
    %c0_i32_0 = arith.constant 0 : i32
    %c0_i32_1 = arith.constant 0 : i32
    return %c0_i32, %c0_i32_0 : i32, i32
  }
  func.func @transform_2(%arg0: i32) -> (i32, i32) {
    %c0_i32 = arith.constant 0 : i32
    %c0_i32_0 = arith.constant 0 : i32
    %c0_i32_1 = arith.constant 0 : i32
    return %c0_i32, %c0_i32_0 : i32, i32
  }
  func.func @transform_3(%arg0: i32) -> i32 {
    %c0_i32 = arith.constant 0 : i32
    %c0_i32_0 = arith.constant 0 : i32
    return %c0_i32 : i32
  }
  func.func @transform_4(%arg0: i32) -> i32 {
    %c0_i32 = arith.constant 0 : i32
    %c0_i32_0 = arith.constant 0 : i32
    return %c0_i32 : i32
  }
  func.func @transform_5(%arg0: i32) -> (i32, i32) {
    %c0_i32 = arith.constant 0 : i32
    %c0_i32_0 = arith.constant 0 : i32
    %c0_i32_1 = arith.constant 0 : i32
    return %c0_i32, %c0_i32_0 : i32, i32
  }
  func.func @transform_6(%arg0: i32) -> (i32, i32, i32) {
    %c0_i32 = arith.constant 0 : i32
    %c0_i32_0 = arith.constant 0 : i32
    %c0_i32_1 = arith.constant 0 : i32
    %c0_i32_2 = arith.constant 0 : i32
    return %c0_i32, %c0_i32_0, %c0_i32_1 : i32, i32, i32
  }
  func.func @transform_7(%arg0: i32) -> (i32, i32) {
    %c0_i32 = arith.constant 0 : i32
    %c0_i32_0 = arith.constant 0 : i32
    %c0_i32_1 = arith.constant 0 : i32
    return %c0_i32, %c0_i32_0 : i32, i32
  }
  func.func @transform_8(%arg0: i32) -> (i32, i32, i32) {
    %c0_i32 = arith.constant 0 : i32
    %c0_i32_0 = arith.constant 0 : i32
    %c0_i32_1 = arith.constant 0 : i32
    %c0_i32_2 = arith.constant 0 : i32
    return %c0_i32, %c0_i32_0, %c0_i32_1 : i32, i32, i32
  }
  func.func @transform_9(%arg0: i32) -> i32 {
    %c0_i32 = arith.constant 0 : i32
    %c0_i32_0 = arith.constant 0 : i32
    return %c0_i32 : i32
  }
  func.func @transform_10(%arg0: i32) -> (i32, i32) {
    %c0_i32 = arith.constant 0 : i32
    %c0_i32_0 = arith.constant 0 : i32
    return %arg0, %c0_i32 : i32, i32
  }
}

</mosaic_0001>

<llo_original>
// kernel: eegnet_forward.1
$region0: #{eegnet_forward.1}
  #allocation0 [shape = 'u32[]', space=smem, size = 0x4, offset = 0x4, fixed_abs, tag = 'smem constant byte address 0x4 - core index']
  #allocation1 [shape = 'u32[72,128]{1,0:T(1,128)}', space=vmem, size = 0x9000, scoped, tag = 'internal scratch']
  #allocation2 [shape = 'f32[17,153]{1,0:T(8,128)}', space=vmem, size = 0x6000, scoped, tag = 'scratch operand']
  #allocation3 [shape = 'f32[16,121]{1,0:T(8,128)}', space=vmem, size = 0x2000, scoped, tag = 'scratch operand']
  #allocation4 [shape = 'f32[16,34]{1,0:T(8,128)}', space=vmem, size = 0x2000, scoped, tag = 'scratch operand']
  #allocation5 [shape = 'f32[1]{0:T(128)S(6)}', space=smem, size = 0x200, scoped, tag = 'scoped memory for eegnet_forward.1']
  %s0 = inlined_call_operand.vmem [shape: f32[2,64,120], index: 0, kind: input, shape index: {}]
  %s1 = inlined_call_operand.vmem [shape: f32[16,64], index: 1, kind: input, shape index: {}]
  %s2 = inlined_call_operand.vmem [shape: f32[16,3], index: 2, kind: input, shape index: {}]
  %s3 = inlined_call_operand.vmem [shape: f32[256], index: 3, kind: input, shape index: {}]
  %s4 = inlined_call_operand.vmem [shape: f32[12], index: 4, kind: input, shape index: {}]
  %s5 = inlined_call_operand.vmem [shape: f32[121,31], index: 5, kind: input, shape index: {}]
  %s6 = inlined_call_operand.hbm [shape: f32[16,4,16], index: 6, kind: input, shape index: {}]
  %s7 = inlined_call_operand.vmem [shape: f32[4,3], index: 7, kind: input, shape index: {}]
  %s8 = inlined_call_operand.vmem [shape: f32[2,4,28], index: 8, kind: input, shape index: {}]
  %s9 = inlined_call_operand.<no memory space> [shape: f32[1], index: 9, kind: input, shape index: {}]
  %s10 = inlined_call_operand.vmem [shape: f32[16,128], index: 10, kind: output, shape index: {}]
  %s11 = sld [smem:[#allocation0]]
  $region85: #{eegnet_forward.1} parent=0
    _
  %s13 = ssub.s32 1, %s11
  %s14 = scalar_select 0, %s13, %s11
  %15 = sst [smem:[#allocation5]] %s9
  $region1: #{eegnet_forward.1} parent=0
    #allocation6 [shape = 'u8[1024]{0}', space=smem, size = 0x400, scoped, tag = 'input window, operand 3, single buffered']
    #allocation7 [shape = 's32[2]{0}', space=sflag, size = 0x8, scoped, tag = 'scoped memory for eegnet_forward.1']
    #allocation8 [shape = 's32[2]{0}', space=sflag, size = 0x8, scoped, tag = 'scoped memory for eegnet_forward.1']
    #allocation9 [shape = 'u8[512]{0}', space=smem, size = 0x200, scoped, tag = 'input window, operand 4, single buffered']
    #allocation10 [shape = 's32[1]{0}', space=sflag, size = 0x4, scoped, tag = 'scoped memory for eegnet_forward.1']
    #allocation11 [shape = 'u8[32768]{0}', space=vmem, size = 0x8000, scoped, tag = 'input window, operand 6, single buffered']
    %16 = vsyncpa [#allocation8], 0
    %17 = vsyncpa [#allocation10], 0
    %18 = vsyncpa [#allocation7], 0
    loop: start=0, step=1, limit=4
    $region2: #{eegnet_forward.1} parent=1 // loop_pre_header
      _
    $region3: #{eegnet_forward.1} parent=1 // loop_header
      %s20 = sphi 0, %s24
      %p21 = scmp.ge.s32.totalorder %s20, 4
      %s30 = sphi 0, %s32
      %s33 = sphi 0, %s30
      %s34 = sphi 0, %s33
      %s50 = sphi 0, %s34
      %s54 = sphi 0, %s54
      %s56 = sphi 0, %s54
      %s57 = sphi 0, %s56
      %s71 = sphi 0, %s57
      %s75 = sphi 0, %s75
      %s77 = sphi 0, %s75
      %s78 = sphi 0, %s77
      %s92 = sphi 0, %s78
      %s96 = sphi 0, %s96
      %s98 = sphi 0, %s96
      %s99 = sphi 0, %s98
      %s113 = sphi 0, %s99
      %s117 = sphi 0, %s117
      %s119 = sphi 0, %s117
      %s120 = sphi 0, %s119
      %s134 = sphi 0, %s120
      %s138 = sphi 0, %s138
      %s140 = sphi 0, %s138
      %s141 = sphi 0, %s140
      %s155 = sphi 0, %s141
      %s159 = sphi 0, %s159
      %s161 = sphi 0, %s159
      %s162 = sphi 0, %s161
      %s176 = sphi 0, %s162
      %s180 = sphi 0, %s180
      %s182 = sphi 0, %s180
      %s183 = sphi 0, %s182
      %s197 = sphi 0, %s183
      %s201 = sphi 0, %s201
      %s203 = sphi 0, %s201
      %s204 = sphi 0, %s203
      %s218 = sphi 0, %s204
      %s222 = sphi 0, %s222
      %s224 = sphi 0, %s222
      %s225 = sphi 0, %s224
      %s239 = sphi 0, %s225
      %s245 = sphi 0, %s247
      %s248 = sphi 0, %s245
      %s249 = sphi 0, %s248
      %s265 = sphi 0, %s249
    $region4: #{eegnet_forward.1} parent=1 // loop_header_branch
      %23 = sbr.rel (%p21) target = $region8
    $region5: #{eegnet_forward.1} parent=1 // loop_body
      %s25 = ssub.s32 %s20, 1
      %s26 = ssub.s32 %s20, 2
      %s27 = sadd.s32 %s20, 1
      %s28 = ssub.s32 %s20, %s27
      %p29 = scmp.eq.s32.totalorder %s28, 0
      %s31 = sadd.s32 %s30, 1
      %s32 = scalar_select %p29, %s30, %s31
      %p35 = pneg %p29
      %p36 = scmp.eq.s32.totalorder %s20, 1
      %p37 = por %p35, %p36
      %p38 = scmp.ne.s32.totalorder %s30, %s33
      %p39 = scmp.eq.s32.totalorder %s20, 0
      %p40 = por %p38, %p39
      %p41 = scmp.ne.s32.totalorder %s30, %s33
      %p42 = scmp.eq.s32.totalorder %s25, 1
      %p43 = por %p41, %p42
      %p44 = scmp.ne.s32.totalorder %s33, %s34
      %p45 = scmp.eq.s32.totalorder %s25, 0
      %p46 = por %p44, %p45
      %p47 = scmp.ne.s32.totalorder %s33, %s34
      %p48 = scmp.eq.s32.totalorder %s26, 1
      %p49 = por %p47, %p48
      %p51 = scmp.ne.s32.totalorder %s34, %s50
      %p52 = scmp.eq.s32.totalorder %s26, 0
      %p53 = por %p51, %p52
      %s55 = sadd.s32 %s54, 1
      %p58 = scmp.eq.s32.totalorder %s20, 1
      %p59 = scmp.ne.s32.totalorder %s54, %s56
      %p60 = scmp.eq.s32.totalorder %s20, 0
      %p61 = por %p59, %p60
      %p62 = scmp.ne.s32.totalorder %s54, %s56
      %p63 = scmp.eq.s32.totalorder %s25, 1
      %p64 = por %p62, %p63
      %p65 = scmp.ne.s32.totalorder %s56, %s57
      %p66 = scmp.eq.s32.totalorder %s25, 0
      %p67 = por %p65, %p66
      %p68 = scmp.ne.s32.totalorder %s56, %s57
      %p69 = scmp.eq.s32.totalorder %s26, 1
      %p70 = por %p68, %p69
      %p72 = scmp.ne.s32.totalorder %s57, %s71
      %p73 = scmp.eq.s32.totalorder %s26, 0
      %p74 = por %p72, %p73
      %s76 = sadd.s32 %s75, 1
      %p79 = scmp.eq.s32.totalorder %s20, 1
      %p80 = scmp.ne.s32.totalorder %s75, %s77
      %p81 = scmp.eq.s32.totalorder %s20, 0
      %p82 = por %p80, %p81
      %p83 = scmp.ne.s32.totalorder %s75, %s77
      %p84 = scmp.eq.s32.totalorder %s25, 1
      %p85 = por %p83, %p84
      %p86 = scmp.ne.s32.totalorder %s77, %s78
      %p87 = scmp.eq.s32.totalorder %s25, 0
      %p88 = por %p86, %p87
      %p89 = scmp.ne.s32.totalorder %s77, %s78
      %p90 = scmp.eq.s32.totalorder %s26, 1
      %p91 = por %p89, %p90
      %p93 = scmp.ne.s32.totalorder %s78, %s92
      %p94 = scmp.eq.s32.totalorder %s26, 0
      %p95 = por %p93, %p94
      %s97 = sadd.s32 %s96, 1
      %p100 = scmp.eq.s32.totalorder %s20, 1
      %p101 = scmp.ne.s32.totalorder %s96, %s98
      %p102 = scmp.eq.s32.totalorder %s20, 0
      %p103 = por %p101, %p102
      %p104 = scmp.ne.s32.totalorder %s96, %s98
      %p105 = scmp.eq.s32.totalorder %s25, 1
      %p106 = por %p104, %p105
      %p107 = scmp.ne.s32.totalorder %s98, %s99
      %p108 = scmp.eq.s32.totalorder %s25, 0
      %p109 = por %p107, %p108
      %p110 = scmp.ne.s32.totalorder %s98, %s99
      %p111 = scmp.eq.s32.totalorder %s26, 1
      %p112 = por %p110, %p111
      %p114 = scmp.ne.s32.totalorder %s99, %s113
      %p115 = scmp.eq.s32.totalorder %s26, 0
      %p116 = por %p114, %p115
      %s118 = sadd.s32 %s117, 1
      %p121 = scmp.eq.s32.totalorder %s20, 1
      %p122 = scmp.ne.s32.totalorder %s117, %s119
      %p123 = scmp.eq.s32.totalorder %s20, 0
      %p124 = por %p122, %p123
      %p125 = scmp.ne.s32.totalorder %s117, %s119
      %p126 = scmp.eq.s32.totalorder %s25, 1
      %p127 = por %p125, %p126
      %p128 = scmp.ne.s32.totalorder %s119, %s120
      %p129 = scmp.eq.s32.totalorder %s25, 0
      %p130 = por %p128, %p129
      %p131 = scmp.ne.s32.totalorder %s119, %s120
      %p132 = scmp.eq.s32.totalorder %s26, 1
      %p133 = por %p131, %p132
      %p135 = scmp.ne.s32.totalorder %s120, %s134
      %p136 = scmp.eq.s32.totalorder %s26, 0
      %p137 = por %p135, %p136
      %s139 = sadd.s32 %s138, 1
      %p142 = scmp.eq.s32.totalorder %s20, 1
      %p143 = scmp.ne.s32.totalorder %s138, %s140
      %p144 = scmp.eq.s32.totalorder %s20, 0
      %p145 = por %p143, %p144
      %p146 = scmp.ne.s32.totalorder %s138, %s140
      %p147 = scmp.eq.s32.totalorder %s25, 1
      %p148 = por %p146, %p147
      %p149 = scmp.ne.s32.totalorder %s140, %s141
      %p150 = scmp.eq.s32.totalorder %s25, 0
      %p151 = por %p149, %p150
      %p152 = scmp.ne.s32.totalorder %s140, %s141
      %p153 = scmp.eq.s32.totalorder %s26, 1
      %p154 = por %p152, %p153
      %p156 = scmp.ne.s32.totalorder %s141, %s155
      %p157 = scmp.eq.s32.totalorder %s26, 0
      %p158 = por %p156, %p157
      %s160 = sadd.s32 %s159, 1
      %p163 = scmp.eq.s32.totalorder %s20, 1
      %p164 = scmp.ne.s32.totalorder %s159, %s161
      %p165 = scmp.eq.s32.totalorder %s20, 0
      %p166 = por %p164, %p165
      %p167 = scmp.ne.s32.totalorder %s159, %s161
      %p168 = scmp.eq.s32.totalorder %s25, 1
      %p169 = por %p167, %p168
      %p170 = scmp.ne.s32.totalorder %s161, %s162
      %p171 = scmp.eq.s32.totalorder %s25, 0
      %p172 = por %p170, %p171
      %p173 = scmp.ne.s32.totalorder %s161, %s162
      %p174 = scmp.eq.s32.totalorder %s26, 1
      %p175 = por %p173, %p174
      %p177 = scmp.ne.s32.totalorder %s162, %s176
      %p178 = scmp.eq.s32.totalorder %s26, 0
      %p179 = por %p177, %p178
      %s181 = sadd.s32 %s180, 1
      %p184 = scmp.eq.s32.totalorder %s20, 1
      %p185 = scmp.ne.s32.totalorder %s180, %s182
      %p186 = scmp.eq.s32.totalorder %s20, 0
      %p187 = por %p185, %p186
      %p188 = scmp.ne.s32.totalorder %s180, %s182
      %p189 = scmp.eq.s32.totalorder %s25, 1
      %p190 = por %p188, %p189
      %p191 = scmp.ne.s32.totalorder %s182, %s183
      %p192 = scmp.eq.s32.totalorder %s25, 0
      %p193 = por %p191, %p192
      %p194 = scmp.ne.s32.totalorder %s182, %s183
      %p195 = scmp.eq.s32.totalorder %s26, 1
      %p196 = por %p194, %p195
      %p198 = scmp.ne.s32.totalorder %s183, %s197
      %p199 = scmp.eq.s32.totalorder %s26, 0
      %p200 = por %p198, %p199
      %s202 = sadd.s32 %s201, 1
      %p205 = scmp.eq.s32.totalorder %s20, 1
      %p206 = scmp.ne.s32.totalorder %s201, %s203
      %p207 = scmp.eq.s32.totalorder %s20, 0
      %p208 = por %p206, %p207
      %p209 = scmp.ne.s32.totalorder %s201, %s203
      %p210 = scmp.eq.s32.totalorder %s25, 1
      %p211 = por %p209, %p210
      %p212 = scmp.ne.s32.totalorder %s203, %s204
      %p213 = scmp.eq.s32.totalorder %s25, 0
      %p214 = por %p212, %p213
      %p215 = scmp.ne.s32.totalorder %s203, %s204
      %p216 = scmp.eq.s32.totalorder %s26, 1
      %p217 = por %p215, %p216
      %p219 = scmp.ne.s32.totalorder %s204, %s218
      %p220 = scmp.eq.s32.totalorder %s26, 0
      %p221 = por %p219, %p220
      %s223 = sadd.s32 %s222, 1
      %p226 = scmp.eq.s32.totalorder %s20, 1
      %p227 = scmp.ne.s32.totalorder %s222, %s224
      %p228 = scmp.eq.s32.totalorder %s20, 0
      %p229 = por %p227, %p228
      %p230 = scmp.ne.s32.totalorder %s222, %s224
      %p231 = scmp.eq.s32.totalorder %s25, 1
      %p232 = por %p230, %p231
      %p233 = scmp.ne.s32.totalorder %s224, %s225
      %p234 = scmp.eq.s32.totalorder %s25, 0
      %p235 = por %p233, %p234
      %p236 = scmp.ne.s32.totalorder %s224, %s225
      %p237 = scmp.eq.s32.totalorder %s26, 1
      %p238 = por %p236, %p237
      %p240 = scmp.ne.s32.totalorder %s225, %s239
      %p241 = scmp.eq.s32.totalorder %s26, 0
      %p242 = por %p240, %p241
      %s243 = ssub.s32 %s20, %s27
      %p244 = scmp.eq.s32.totalorder %s243, 0
      %s246 = sadd.s32 %s245, 1
      %s247 = scalar_select %p244, %s245, %s246
      %p250 = pneg %p244
      %p251 = scmp.eq.s32.totalorder %s20, 1
      %p252 = por %p250, %p251
      %p253 = scmp.ne.s32.totalorder %s245, %s248
      %p254 = scmp.eq.s32.totalorder %s20, 0
      %p255 = por %p253, %p254
      %p256 = scmp.ne.s32.totalorder %s245, %s248
      %p257 = scmp.eq.s32.totalorder %s25, 1
      %p258 = por %p256, %p257
      %p259 = scmp.ne.s32.totalorder %s248, %s249
      %p260 = scmp.eq.s32.totalorder %s25, 0
      %p261 = por %p259, %p260
      %p262 = scmp.ne.s32.totalorder %s248, %s249
      %p263 = scmp.eq.s32.totalorder %s26, 1
      %p264 = por %p262, %p263
      %p266 = scmp.ne.s32.totalorder %s249, %s265
      %p267 = scmp.eq.s32.totalorder %s26, 0
      %p268 = por %p266, %p267
      %p269 = scmp.le.s32.totalorder 1, %s20
      %p270 = scmp.lt.s32.totalorder %s20, 3
      %p271 = pnand %p269, %p270
      %p272 = pneg %p271
      // Predicated region
      $region9: #{eegnet_forward.1} parent=5 // pred_check
        _
      $region10: #{eegnet_forward.1} parent=5 // pred_check_branch
        %274 = sbr.rel (%p271) target = $region12
      $region11: #{eegnet_forward.1} parent=5 // pred_region
        %s275 = ssub.s32 %s20, 1
        // Predicated region
        $region13: #{eegnet_forward.1} parent=11 // pred_check
          %p276 = pneg %p67
        $region14: #{eegnet_forward.1} parent=11 // pred_check_branch
          %278 = sbr.rel (%p276) target = $region16
        $region15: #{eegnet_forward.1} parent=11 // pred_region
          _
        $region16: #{eegnet_forward.1} parent=11 // pred_fallthru
          _
        // Predicated region
        $region17: #{eegnet_forward.1} parent=11 // pred_check
          %p279 = pneg %p88
        $region18: #{eegnet_forward.1} parent=11 // pred_check_branch
          %281 = sbr.rel (%p279) target = $region20
        $region19: #{eegnet_forward.1} parent=11 // pred_region
          _
        $region20: #{eegnet_forward.1} parent=11 // pred_fallthru
          _
        // Predicated region
        $region21: #{eegnet_forward.1} parent=11 // pred_check
          %p282 = pneg %p109
        $region22: #{eegnet_forward.1} parent=11 // pred_check_branch
          %284 = sbr.rel (%p282) target = $region24
        $region23: #{eegnet_forward.1} parent=11 // pred_region
          %286 = vsyncadd [#allocation8], 0
          %s288 = sshll.u32 %s3, 4
          %s289 = int_to_ptr.vmem [resolvable:$true] %s288
          %291 = dma.vmem_to_smem %s289, 32, [#allocation6], [#allocation8]
        $region24: #{eegnet_forward.1} parent=11 // pred_fallthru
          _
        // Predicated region
        $region25: #{eegnet_forward.1} parent=11 // pred_check
          %p292 = pneg %p130
        $region26: #{eegnet_forward.1} parent=11 // pred_check_branch
          %294 = sbr.rel (%p292) target = $region28
        $region27: #{eegnet_forward.1} parent=11 // pred_region
          %296 = vsyncadd [#allocation10], 0
          %s298 = sshll.u32 %s4, 4
          %s299 = int_to_ptr.vmem [resolvable:$true] %s298
          %301 = dma.vmem_to_smem %s299, 16, [#allocation9], [#allocation10]
        $region28: #{eegnet_forward.1} parent=11 // pred_fallthru
          _
        // Predicated region
        $region29: #{eegnet_forward.1} parent=11 // pred_check
          %p302 = pneg %p151
        $region30: #{eegnet_forward.1} parent=11 // pred_check_branch
          %304 = sbr.rel (%p302) target = $region32
        $region31: #{eegnet_forward.1} parent=11 // pred_region
          _
        $region32: #{eegnet_forward.1} parent=11 // pred_fallthru
          _
        // Predicated region
        $region33: #{eegnet_forward.1} parent=11 // pred_check
          %p305 = pneg %p172
        $region34: #{eegnet_forward.1} parent=11 // pred_check_branch
          %307 = sbr.rel (%p305) target = $region36
        $region35: #{eegnet_forward.1} parent=11 // pred_region
          %309 = vsyncadd [#allocation7], 0
          %s310 = sshll.u32 %s6, 4
          %s311 = int_to_ptr.hbm [resolvable:$true] %s310
          %s312 = sshll.u32 [#allocation11], 4
          %s313 = int_to_ptr.vmem [resolvable:$true] %s312
          %318 = dma.hbm_to_vmem [thread:$0]  %s311, 1024, %s313, [#allocation7], 64, 64, 4
        $region36: #{eegnet_forward.1} parent=11 // pred_fallthru
          _
        // Predicated region
        $region37: #{eegnet_forward.1} parent=11 // pred_check
          %p319 = pneg %p193
        $region38: #{eegnet_forward.1} parent=11 // pred_check_branch
          %321 = sbr.rel (%p319) target = $region40
        $region39: #{eegnet_forward.1} parent=11 // pred_region
          _
        $region40: #{eegnet_forward.1} parent=11 // pred_fallthru
          _
        // Predicated region
        $region41: #{eegnet_forward.1} parent=11 // pred_check
          %p322 = pneg %p214
        $region42: #{eegnet_forward.1} parent=11 // pred_check_branch
          %324 = sbr.rel (%p322) target = $region44
        $region43: #{eegnet_forward.1} parent=11 // pred_region
          _
        $region44: #{eegnet_forward.1} parent=11 // pred_fallthru
          _
        // Predicated region
        $region45: #{eegnet_forward.1} parent=11 // pred_check
          %p325 = pneg %p235
        $region46: #{eegnet_forward.1} parent=11 // pred_check_branch
          %327 = sbr.rel (%p325) target = $region48
        $region47: #{eegnet_forward.1} parent=11 // pred_region
          _
        $region48: #{eegnet_forward.1} parent=11 // pred_fallthru
          _
      $region12: #{eegnet_forward.1} parent=5 // pred_fallthru
        _
      %p328 = scmp.lt.s32.totalorder %s20, 2
      // Predicated region
      $region49: #{eegnet_forward.1} parent=5 // pred_check
        %p329 = pneg %p328
      $region50: #{eegnet_forward.1} parent=5 // pred_check_branch
        %331 = sbr.rel (%p329) target = $region52
      $region51: #{eegnet_forward.1} parent=5 // pred_region
        // Predicated region
        $region53: #{eegnet_forward.1} parent=51 // pred_check
          %p332 = pneg %p40
        $region54: #{eegnet_forward.1} parent=51 // pred_check_branch
          %334 = sbr.rel (%p332) target = $region56
        $region55: #{eegnet_forward.1} parent=51 // pred_region
          %p335 = scmp.lt.s32.totalorder %s20, 1
          %s336 = scalar_select %p335, %s20, 1
          %s337 = smul.addr %s336, 8
          %s338 = smul.addr %s337, 8
          %s339 = scalar_lea.vmem %s0, %s338
        $region56: #{eegnet_forward.1} parent=51 // pred_fallthru
          _
      $region52: #{eegnet_forward.1} parent=5 // pred_fallthru
        _
      %p340 = scmp.le.s32.totalorder 1, %s20
      %p341 = scmp.lt.s32.totalorder %s20, 3
      %p342 = pnand %p340, %p341
      %p343 = pneg %p342
      // Predicated region
      $region57: #{eegnet_forward.1} parent=5 // pred_check
        _
      $region58: #{eegnet_forward.1} parent=5 // pred_check_branch
        %345 = sbr.rel (%p342) target = $region60
      $region59: #{eegnet_forward.1} parent=5 // pred_region
        %s346 = ssub.s32 %s20, 1
        // Predicated region
        $region61: #{eegnet_forward.1} parent=59 // pred_check
          %p347 = pneg %p109
        $region62: #{eegnet_forward.1} parent=59 // pred_check_branch
          %349 = sbr.rel (%p347) target = $region64
        $region63: #{eegnet_forward.1} parent=59 // pred_region
          %351 = dma.done [#allocation8], 32
        $region64: #{eegnet_forward.1} parent=59 // pred_fallthru
          _
        // Predicated region
        $region65: #{eegnet_forward.1} parent=59 // pred_check
          %p352 = pneg %p130
        $region66: #{eegnet_forward.1} parent=59 // pred_check_branch
          %354 = sbr.rel (%p352) target = $region68
        $region67: #{eegnet_forward.1} parent=59 // pred_region
          %356 = dma.done [#allocation10], 16
        $region68: #{eegnet_forward.1} parent=59 // pred_fallthru
          _
        // Predicated region
        $region69: #{eegnet_forward.1} parent=59 // pred_check
          %p357 = pneg %p172
        $region70: #{eegnet_forward.1} parent=59 // pred_check_branch
          %359 = sbr.rel (%p357) target = $region72
        $region71: #{eegnet_forward.1} parent=59 // pred_region
          %361 = dma.done [#allocation7], 1024
        $region72: #{eegnet_forward.1} parent=59 // pred_fallthru
          _
        %362 = sfence
        %p363 = scmp.lt.s32.totalorder %s25, 1
        %s364 = scalar_select %p363, %s25, 1
        %s365 = smul.addr %s364, 8
        %s366 = smul.addr %s365, 8
        %s367 = scalar_lea.vmem %s0, %s366
        %p368 = pneg %p46
        %p369 = pneg %p43
        %p370 = pneg %p67
        %p371 = pneg %p64
        %p372 = pneg %p88
        %p373 = pneg %p85
        %p374 = pneg %p109
        %p375 = pneg %p106
        %p376 = pneg %p130
        %p377 = pneg %p127
        %p378 = pneg %p151
        %p379 = pneg %p148
        %p380 = pneg %p172
        %p381 = pneg %p169
        %p382 = pneg %p193
        %p383 = pneg %p190
        %p384 = pneg %p214
        %p385 = pneg %p211
        %p386 = pneg %p235
        %p387 = pneg %p232
        %p388 = pneg %p261
        %p389 = pneg %p258
        %p390 = scmp.lt.s32.totalorder %s25, 1
        %s391 = scalar_select %p390, %s25, 1
        %s392 = smul.addr %s391, 8
        %s393 = scalar_lea.vmem %s10, %s392
        %p394 = scmp.lt.s32.totalorder %s25, 1
        %s395 = scalar_select %p394, %s25, 1
        %s396 = smul.addr %s395, 8
        %s397 = smul.addr %s396, 8
        %s398 = scalar_lea.vmem %s0, %s397
        %p399 = scmp.lt.s32.totalorder %s25, 1
        %s400 = scalar_select %p399, %s25, 1
        %s401 = smul.addr %s400, 8
        %s402 = scalar_lea.vmem %s10, %s401
        %v403 = vld [vmem:[%s1] sm:$0xff]
        %v404 = vld [vmem:[%s1 + $0x8] sm:$0xff]
        %v405 = vld [vmem:[%s398] sm:$0xff]
        %v406 = vld [vmem:[%s398 + $0x8] sm:$0xff]
        %v407 = vld [vmem:[%s398 + $0x10] sm:$0xff]
        %v408 = vld [vmem:[%s398 + $0x18] sm:$0xff]
        %v409 = vld [vmem:[%s398 + $0x20] sm:$0xff]
        %v410 = vld [vmem:[%s398 + $0x28] sm:$0xff]
        %v411 = vld [vmem:[%s398 + $0x30] sm:$0xff]
        %v412 = vld [vmem:[%s398 + $0x38] sm:$0xff]
        %v413 = vld [vmem:[%s2] sm:$0xff]
        %v414 = vld [vmem:[%s2 + $0x8] sm:$0xff]
        %416 = vset.pattern.permute.xlu0 0
        %417 = vperm.xlu0 %416, %v413
        %v418 = vpop.permute.xlu0 %417
        %421 = vset.pattern.permute.xlu0 0
        %422 = vperm.xlu0 %421, %v414
        %v423 = vpop.permute.xlu0 %422
        %vm425 = vcmask 523264
        %v427 = vsel %vm425, %v403, 0
        %v430 = vsel %vm425, %v404, 0
        %432 = vmatpush.msra.mxu0 0.0
        %433 = vmatpush.msra.mxu0 0.0
        %434 = vmatpush.msra.mxu0 0.0
        %435 = vmatpush.msra.mxu0 0.0
        %436 = vmatpush.msra.mxu0 0.0
        %437 = vmatpush.msra.mxu0 0.0
        %438 = vmatpush.msra.mxu0 0.0
        %439 = vmatpush.msra.mxu0 0.0
        %440 = vmatpush.msra.mxu0 %v412
        %441 = vmatpush.msra.mxu0 %v411
        %442 = vmatpush.msra.mxu0 %v410
        %443 = vmatpush.msra.mxu0 %v409
        %444 = vmatpush.msra.mxu0 %v408
        %445 = vmatpush.msra.mxu0 %v407
        %446 = vmatpush.msra.mxu0 %v406
        %447 = vmatpush.msra.mxu0 %v405
        %448 = vmatmul.f32.gmra.mxu0 %v427
        %v449 = vpop.f32.mrf.mxu0
        %v450 = vadd.f32 %v418, %v449
        %451 = vmatmul.f32.gmra.mxu0 %v430
        %v452 = vpop.f32.mrf.mxu0
        %v453 = vadd.f32 %v423, %v452
        %454 = vdwg.mxu0
        %vm455 = vcmp.gt.f32.partialorder %v450, 0.0
        %vm456 = vcmp.gt.f32.partialorder %v453, 0.0
        %v457 = vmin.f32 %v450, 0.0
        %v458 = vmin.f32 %v453, 0.0
        %v459 = vmul.f32 %v457, 1.442695
        %v460 = vpow.pop %v459
        %v461 = vmul.f32 %v458, 1.442695
        %v462 = vpow.pop %v461
        %v463 = vsub.f32 %v460, 1.0
        %v464 = vsub.f32 %v462, 1.0
        %v465 = vsel %vm455, %v450, %v463
        %v466 = vsel %vm456, %v453, %v464
        %467 = vset.pattern.permute.xlu0 1
        %468 = vperm.xlu0 %467, %v413
        %v469 = vpop.permute.xlu0 %468
        %471 = vset.pattern.permute.xlu0 1
        %472 = vperm.xlu0 %471, %v414
        %v473 = vpop.permute.xlu0 %472
        %v475 = vmul.f32 %v465, %v469
        %v476 = vmul.f32 %v466, %v473
        %477 = vset.pattern.permute.xlu0 2
        %478 = vperm.xlu0 %477, %v413
        %v479 = vpop.permute.xlu0 %478
        %481 = vset.pattern.permute.xlu0 2
        %482 = vperm.xlu0 %481, %v414
        %v483 = vpop.permute.xlu0 %482
        %v485 = vadd.f32 %v475, %v479
        %v486 = vadd.f32 %v476, %v483
        %487 = vst [vmem:[#allocation2] sm:$0xff] 0.0
        %vm488 = vcmask 203776
        %489 = vst.msk [vmem:[#allocation2 + $0x8] sm:$0xff] %vm488, 0.0
        %490 = vst [vmem:[#allocation2 + $0x10] sm:$0xff] 0.0
        %491 = vst.msk [vmem:[#allocation2 + $0x18] sm:$0xff] %vm488, 0.0
        %492 = vst [vmem:[#allocation2 + $0x20] sm:$0x1] 0.0
        %vm493 = vcmask 196608
        %494 = vst.msk [vmem:[#allocation2 + $0x28] sm:$0x1] %vm493, 0.0
        %497 = vrot.lane.b32.xlu0 %v485, 16
        %v498 = vpop.permute.xlu0 %497
        %499 = vrot.lane.b32.xlu0 %v486, 16
        %v500 = vpop.permute.xlu0 %499
        %vm503 = vcmask 1047680
        %504 = vst.msk [vmem:[#allocation2] sm:$0xff] %vm503, %v498
        %vm505 = vcmask 64512
        %506 = vst.msk [vmem:[#allocation2 + $0x8] sm:$0xff] %vm505, %v498
        %507 = vst.msk [vmem:[#allocation2 + $0x10] sm:$0xff] %vm503, %v500
        %508 = vst.msk [vmem:[#allocation2 + $0x18] sm:$0xff] %vm505, %v500
        %s509 = sld [smem:[#allocation9]]
        %v510 = vstv %s509
        %s511 = sld [smem:[#allocation9 + $0x1]]
        %v512 = vstv %s511
        %s513 = sld [smem:[#allocation9 + $0x2]]
        %v514 = vstv %s513
        %s515 = sld [smem:[#allocation9 + $0x3]]
        %v516 = vstv %s515
        %v517 = vld [vmem:[#allocation2] sm:$0xff]
        %v518 = vld [vmem:[#allocation2 + $0x10] sm:$0xff]
        %s519 = sld [smem:[#allocation6]]
        %v520 = vstv %s519
        %v521 = vmul.f32 %v520, %v517
        %v522 = vmul.f32 %v520, %v518
        %v523 = vadd.f32 %v510, %v521
        %v524 = vadd.f32 %v510, %v522
        %s525 = sld [smem:[#allocation6 + $0x40]]
        %v526 = vstv %s525
        %v527 = vmul.f32 %v526, %v517
        %v528 = vmul.f32 %v526, %v518
        %v529 = vadd.f32 %v512, %v527
        %v530 = vadd.f32 %v512, %v528
        %s531 = sld [smem:[#allocation6 + $0x80]]
        %v532 = vstv %s531
        %v533 = vmul.f32 %v532, %v517
        %v534 = vmul.f32 %v532, %v518
        %v535 = vadd.f32 %v514, %v533
        %v536 = vadd.f32 %v514, %v534
        %s537 = sld [smem:[#allocation6 + $0xc0]]
        %v538 = vstv %s537
        %v539 = vmul.f32 %v538, %v517
        %v540 = vmul.f32 %v538, %v518
        %v541 = vadd.f32 %v516, %v539
        %v542 = vadd.f32 %v516, %v540
        %s543 = sld [smem:[#allocation6 + $0x1]]
        %v544 = vstv %s543
        %v545 = vmul.f32 %v544, %v517
        %v546 = vmul.f32 %v544, %v518
        %549 = vrot.lane.b32.xlu0 %v545, 127
        %v550 = vpop.permute.xlu0 %549
        %551 = vrot.lane.b32.xlu0 %v546, 127
        %v552 = vpop.permute.xlu0 %551
        %v555 = vadd.f32 %v523, %v550
        %v556 = vadd.f32 %v524, %v552
        %s557 = sld [smem:[#allocation6 + $0x41]]
        %v558 = vstv %s557
        %v559 = vmul.f32 %v558, %v517
        %v560 = vmul.f32 %v558, %v518
        %563 = vrot.lane.b32.xlu0 %v559, 127
        %v564 = vpop.permute.xlu0 %563
        %565 = vrot.lane.b32.xlu0 %v560, 127
        %v566 = vpop.permute.xlu0 %565
        %v569 = vadd.f32 %v529, %v564
        %v570 = vadd.f32 %v530, %v566
        %s571 = sld [smem:[#allocation6 + $0x81]]
        %v572 = vstv %s571
        %v573 = vmul.f32 %v572, %v517
        %v574 = vmul.f32 %v572, %v518
        %577 = vrot.lane.b32.xlu0 %v573, 127
        %v578 = vpop.permute.xlu0 %577
        %579 = vrot.lane.b32.xlu0 %v574, 127
        %v580 = vpop.permute.xlu0 %579
        %v583 = vadd.f32 %v535, %v578
        %v584 = vadd.f32 %v536, %v580
        %s585 = sld [smem:[#allocation6 + $0xc1]]
        %v586 = vstv %s585
        %v587 = vmul.f32 %v586, %v517
        %v588 = vmul.f32 %v586, %v518
        %591 = vrot.lane.b32.xlu0 %v587, 127
        %v592 = vpop.permute.xlu0 %591
        %593 = vrot.lane.b32.xlu0 %v588, 127
        %v594 = vpop.permute.xlu0 %593
        %v597 = vadd.f32 %v541, %v592
        %v598 = vadd.f32 %v542, %v594
        %s599 = sld [smem:[#allocation6 + $0x2]]
        %v600 = vstv %s599
        %v601 = vmul.f32 %v600, %v517
        %v602 = vmul.f32 %v600, %v518
        %605 = vrot.lane.b32.xlu0 %v601, 126
        %v606 = vpop.permute.xlu0 %605
        %607 = vrot.lane.b32.xlu0 %v602, 126
        %v608 = vpop.permute.xlu0 %607
        %v611 = vadd.f32 %v555, %v606
        %v612 = vadd.f32 %v556, %v608
        %s613 = sld [smem:[#allocation6 + $0x42]]
        %v614 = vstv %s613
        %v615 = vmul.f32 %v614, %v517
        %v616 = vmul.f32 %v614, %v518
        %619 = vrot.lane.b32.xlu0 %v615, 126
        %v620 = vpop.permute.xlu0 %619
        %621 = vrot.lane.b32.xlu0 %v616, 126
        %v622 = vpop.permute.xlu0 %621
        %v625 = vadd.f32 %v569, %v620
        %v626 = vadd.f32 %v570, %v622
        %s627 = sld [smem:[#allocation6 + $0x82]]
        %v628 = vstv %s627
        %v629 = vmul.f32 %v628, %v517
        %v630 = vmul.f32 %v628, %v518
        %633 = vrot.lane.b32.xlu0 %v629, 126
        %v634 = vpop.permute.xlu0 %633
        %635 = vrot.lane.b32.xlu0 %v630, 126
        %v636 = vpop.permute.xlu0 %635
        %v639 = vadd.f32 %v583, %v634
        %v640 = vadd.f32 %v584, %v636
        %s641 = sld [smem:[#allocation6 + $0xc2]]
        %v642 = vstv %s641
        %v643 = vmul.f32 %v642, %v517
        %v644 = vmul.f32 %v642, %v518
        %647 = vrot.lane.b32.xlu0 %v643, 126
        %v648 = vpop.permute.xlu0 %647
        %649 = vrot.lane.b32.xlu0 %v644, 126
        %v650 = vpop.permute.xlu0 %649
        %v653 = vadd.f32 %v597, %v648
        %v654 = vadd.f32 %v598, %v650
        %s655 = sld [smem:[#allocation6 + $0x3]]
        %v656 = vstv %s655
        %v657 = vmul.f32 %v656, %v517
        %v658 = vmul.f32 %v656, %v518
        %661 = vrot.lane.b32.xlu0 %v657, 125
        %v662 = vpop.permute.xlu0 %661
        %663 = vrot.lane.b32.xlu0 %v658, 125
        %v664 = vpop.permute.xlu0 %663
        %v667 = vadd.f32 %v611, %v662
        %v668 = vadd.f32 %v612, %v664
        %s669 = sld [smem:[#allocation6 + $0x43]]
        %v670 = vstv %s669
        %v671 = vmul.f32 %v670, %v517
        %v672 = vmul.f32 %v670, %v518
        %675 = vrot.lane.b32.xlu0 %v671, 125
        %v676 = vpop.permute.xlu0 %675
        %677 = vrot.lane.b32.xlu0 %v672, 125
        %v678 = vpop.permute.xlu0 %677
        %v681 = vadd.f32 %v625, %v676
        %v682 = vadd.f32 %v626, %v678
        %s683 = sld [smem:[#allocation6 + $0x83]]
        %v684 = vstv %s683
        %v685 = vmul.f32 %v684, %v517
        %v686 = vmul.f32 %v684, %v518
        %689 = vrot.lane.b32.xlu0 %v685, 125
        %v690 = vpop.permute.xlu0 %689
        %691 = vrot.lane.b32.xlu0 %v686, 125
        %v692 = vpop.permute.xlu0 %691
        %v695 = vadd.f32 %v639, %v690
        %v696 = vadd.f32 %v640, %v692
        %s697 = sld [smem:[#allocation6 + $0xc3]]
        %v698 = vstv %s697
        %v699 = vmul.f32 %v698, %v517
        %v700 = vmul.f32 %v698, %v518
        %703 = vrot.lane.b32.xlu0 %v699, 125
        %v704 = vpop.permute.xlu0 %703
        %705 = vrot.lane.b32.xlu0 %v700, 125
        %v706 = vpop.permute.xlu0 %705
        %v709 = vadd.f32 %v653, %v704
        %v710 = vadd.f32 %v654, %v706
        %s711 = sld [smem:[#allocation6 + $0x4]]
        %v712 = vstv %s711
        %v713 = vmul.f32 %v712, %v517
        %v714 = vmul.f32 %v712, %v518
        %717 = vrot.lane.b32.xlu0 %v713, 124
        %v718 = vpop.permute.xlu0 %717
        %719 = vrot.lane.b32.xlu0 %v714, 124
        %v720 = vpop.permute.xlu0 %719
        %v723 = vadd.f32 %v667, %v718
        %v724 = vadd.f32 %v668, %v720
        %s725 = sld [smem:[#allocation6 + $0x44]]
        %v726 = vstv %s725
        %v727 = vmul.f32 %v726, %v517
        %v728 = vmul.f32 %v726, %v518
        %731 = vrot.lane.b32.xlu0 %v727, 124
        %v732 = vpop.permute.xlu0 %731
        %733 = vrot.lane.b32.xlu0 %v728, 124
        %v734 = vpop.permute.xlu0 %733
        %v737 = vadd.f32 %v681, %v732
        %v738 = vadd.f32 %v682, %v734
        %s739 = sld [smem:[#allocation6 + $0x84]]
        %v740 = vstv %s739
        %v741 = vmul.f32 %v740, %v517
        %v742 = vmul.f32 %v740, %v518
        %745 = vrot.lane.b32.xlu0 %v741, 124
        %v746 = vpop.permute.xlu0 %745
        %747 = vrot.lane.b32.xlu0 %v742, 124
        %v748 = vpop.permute.xlu0 %747
        %v751 = vadd.f32 %v695, %v746
        %v752 = vadd.f32 %v696, %v748
        %s753 = sld [smem:[#allocation6 + $0xc4]]
        %v754 = vstv %s753
        %v755 = vmul.f32 %v754, %v517
        %v756 = vmul.f32 %v754, %v518
        %759 = vrot.lane.b32.xlu0 %v755, 124
        %v760 = vpop.permute.xlu0 %759
        %761 = vrot.lane.b32.xlu0 %v756, 124
        %v762 = vpop.permute.xlu0 %761
        %v765 = vadd.f32 %v709, %v760
        %v766 = vadd.f32 %v710, %v762
        %s767 = sld [smem:[#allocation6 + $0x5]]
        %v768 = vstv %s767
        %v769 = vmul.f32 %v768, %v517
        %v770 = vmul.f32 %v768, %v518
        %773 = vrot.lane.b32.xlu0 %v769, 123
        %v774 = vpop.permute.xlu0 %773
        %775 = vrot.lane.b32.xlu0 %v770, 123
        %v776 = vpop.permute.xlu0 %775
        %v779 = vadd.f32 %v723, %v774
        %v780 = vadd.f32 %v724, %v776
        %s781 = sld [smem:[#allocation6 + $0x45]]
        %v782 = vstv %s781
        %v783 = vmul.f32 %v782, %v517
        %v784 = vmul.f32 %v782, %v518
        %787 = vrot.lane.b32.xlu0 %v783, 123
        %v788 = vpop.permute.xlu0 %787
        %789 = vrot.lane.b32.xlu0 %v784, 123
        %v790 = vpop.permute.xlu0 %789
        %v793 = vadd.f32 %v737, %v788
        %v794 = vadd.f32 %v738, %v790
        %s795 = sld [smem:[#allocation6 + $0x85]]
        %v796 = vstv %s795
        %v797 = vmul.f32 %v796, %v517
        %v798 = vmul.f32 %v796, %v518
        %801 = vrot.lane.b32.xlu0 %v797, 123
        %v802 = vpop.permute.xlu0 %801
        %803 = vrot.lane.b32.xlu0 %v798, 123
        %v804 = vpop.permute.xlu0 %803
        %v807 = vadd.f32 %v751, %v802
        %v808 = vadd.f32 %v752, %v804
        %s809 = sld [smem:[#allocation6 + $0xc5]]
        %v810 = vstv %s809
        %v811 = vmul.f32 %v810, %v517
        %v812 = vmul.f32 %v810, %v518
        %815 = vrot.lane.b32.xlu0 %v811, 123
        %v816 = vpop.permute.xlu0 %815
        %817 = vrot.lane.b32.xlu0 %v812, 123
        %v818 = vpop.permute.xlu0 %817
        %v821 = vadd.f32 %v765, %v816
        %v822 = vadd.f32 %v766, %v818
        %s823 = sld [smem:[#allocation6 + $0x6]]
        %v824 = vstv %s823
        %v825 = vmul.f32 %v824, %v517
        %v826 = vmul.f32 %v824, %v518
        %829 = vrot.lane.b32.xlu0 %v825, 122
        %v830 = vpop.permute.xlu0 %829
        %831 = vrot.lane.b32.xlu0 %v826, 122
        %v832 = vpop.permute.xlu0 %831
        %v835 = vadd.f32 %v779, %v830
        %v836 = vadd.f32 %v780, %v832
        %s837 = sld [smem:[#allocation6 + $0x46]]
        %v838 = vstv %s837
        %v839 = vmul.f32 %v838, %v517
        %v840 = vmul.f32 %v838, %v518
        %843 = vrot.lane.b32.xlu0 %v839, 122
        %v844 = vpop.permute.xlu0 %843
        %845 = vrot.lane.b32.xlu0 %v840, 122
        %v846 = vpop.permute.xlu0 %845
        %v849 = vadd.f32 %v793, %v844
        %v850 = vadd.f32 %v794, %v846
        %s851 = sld [smem:[#allocation6 + $0x86]]
        %v852 = vstv %s851
        %v853 = vmul.f32 %v852, %v517
        %v854 = vmul.f32 %v852, %v518
        %857 = vrot.lane.b32.xlu0 %v853, 122
        %v858 = vpop.permute.xlu0 %857
        %859 = vrot.lane.b32.xlu0 %v854, 122
        %v860 = vpop.permute.xlu0 %859
        %v863 = vadd.f32 %v807, %v858
        %v864 = vadd.f32 %v808, %v860
        %s865 = sld [smem:[#allocation6 + $0xc6]]
        %v866 = vstv %s865
        %v867 = vmul.f32 %v866, %v517
        %v868 = vmul.f32 %v866, %v518
        %871 = vrot.lane.b32.xlu0 %v867, 122
        %v872 = vpop.permute.xlu0 %871
        %873 = vrot.lane.b32.xlu0 %v868, 122
        %v874 = vpop.permute.xlu0 %873
        %v877 = vadd.f32 %v821, %v872
        %v878 = vadd.f32 %v822, %v874
        %v879 = vld [vmem:[#allocation2] sm:$0xff]
        %v880 = vld [vmem:[#allocation2 + $0x8] sm:$0xff]
        %v881 = vld [vmem:[#allocation2 + $0x10] sm:$0xff]
        %v882 = vld [vmem:[#allocation2 + $0x18] sm:$0xff]
        %s883 = sld [smem:[#allocation6 + $0x7]]
        %v884 = vstv %s883
        %v885 = vmul.f32 %v884, %v879
        %v886 = vmul.f32 %v884, %v880
        %v887 = vmul.f32 %v884, %v881
        %v888 = vmul.f32 %v884, %v882
        %893 = vrot.lane.b32.xlu0 %v885, 121
        %v894 = vpop.permute.xlu0 %893
        %895 = vrot.lane.b32.xlu0 %v886, 121
        %v896 = vpop.permute.xlu0 %895
        %897 = vrot.lane.b32.xlu0 %v887, 121
        %v898 = vpop.permute.xlu0 %897
        %899 = vrot.lane.b32.xlu0 %v888, 121
        %v900 = vpop.permute.xlu0 %899
        %vm901 = vcmask 990208
        %v902 = vsel %vm901, %v894, %v896
        %v903 = vsel %vm901, %v898, %v900
        %v906 = vadd.f32 %v835, %v902
        %v907 = vadd.f32 %v836, %v903
        %s908 = sld [smem:[#allocation6 + $0x47]]
        %v909 = vstv %s908
        %v910 = vmul.f32 %v909, %v879
        %v911 = vmul.f32 %v909, %v880
        %v912 = vmul.f32 %v909, %v881
        %v913 = vmul.f32 %v909, %v882
        %918 = vrot.lane.b32.xlu0 %v910, 121
        %v919 = vpop.permute.xlu0 %918
        %920 = vrot.lane.b32.xlu0 %v911, 121
        %v921 = vpop.permute.xlu0 %920
        %922 = vrot.lane.b32.xlu0 %v912, 121
        %v923 = vpop.permute.xlu0 %922
        %924 = vrot.lane.b32.xlu0 %v913, 121
        %v925 = vpop.permute.xlu0 %924
        %v926 = vsel %vm901, %v919, %v921
        %v927 = vsel %vm901, %v923, %v925
        %v930 = vadd.f32 %v849, %v926
        %v931 = vadd.f32 %v850, %v927
        %s932 = sld [smem:[#allocation6 + $0x87]]
        %v933 = vstv %s932
        %v934 = vmul.f32 %v933, %v879
        %v935 = vmul.f32 %v933, %v880
        %v936 = vmul.f32 %v933, %v881
        %v937 = vmul.f32 %v933, %v882
        %942 = vrot.lane.b32.xlu0 %v934, 121
        %v943 = vpop.permute.xlu0 %942
        %944 = vrot.lane.b32.xlu0 %v935, 121
        %v945 = vpop.permute.xlu0 %944
        %946 = vrot.lane.b32.xlu0 %v936, 121
        %v947 = vpop.permute.xlu0 %946
        %948 = vrot.lane.b32.xlu0 %v937, 121
        %v949 = vpop.permute.xlu0 %948
        %v950 = vsel %vm901, %v943, %v945
        %v951 = vsel %vm901, %v947, %v949
        %v954 = vadd.f32 %v863, %v950
        %v955 = vadd.f32 %v864, %v951
        %s956 = sld [smem:[#allocation6 + $0xc7]]
        %v957 = vstv %s956
        %v958 = vmul.f32 %v957, %v879
        %v959 = vmul.f32 %v957, %v880
        %v960 = vmul.f32 %v957, %v881
        %v961 = vmul.f32 %v957, %v882
        %966 = vrot.lane.b32.xlu0 %v958, 121
        %v967 = vpop.permute.xlu0 %966
        %968 = vrot.lane.b32.xlu0 %v959, 121
        %v969 = vpop.permute.xlu0 %968
        %970 = vrot.lane.b32.xlu0 %v960, 121
        %v971 = vpop.permute.xlu0 %970
        %972 = vrot.lane.b32.xlu0 %v961, 121
        %v973 = vpop.permute.xlu0 %972
        %v974 = vsel %vm901, %v967, %v969
        %v975 = vsel %vm901, %v971, %v973
        %v978 = vadd.f32 %v877, %v974
        %v979 = vadd.f32 %v878, %v975
        %s980 = sld [smem:[#allocation6 + $0x8]]
        %v981 = vstv %s980
        %v982 = vmul.f32 %v981, %v879
        %v983 = vmul.f32 %v981, %v880
        %v984 = vmul.f32 %v981, %v881
        %v985 = vmul.f32 %v981, %v882
        %990 = vrot.lane.b32.xlu0 %v982, 120
        %v991 = vpop.permute.xlu0 %990
        %992 = vrot.lane.b32.xlu0 %v983, 120
        %v993 = vpop.permute.xlu0 %992
        %994 = vrot.lane.b32.xlu0 %v984, 120
        %v995 = vpop.permute.xlu0 %994
        %996 = vrot.lane.b32.xlu0 %v985, 120
        %v997 = vpop.permute.xlu0 %996
        %vm998 = vcmask 982016
        %v999 = vsel %vm998, %v991, %v993
        %v1000 = vsel %vm998, %v995, %v997
        %v1003 = vadd.f32 %v906, %v999
        %v1004 = vadd.f32 %v907, %v1000
        %s1005 = sld [smem:[#allocation6 + $0x48]]
        %v1006 = vstv %s1005
        %v1007 = vmul.f32 %v1006, %v879
        %v1008 = vmul.f32 %v1006, %v880
        %v1009 = vmul.f32 %v1006, %v881
        %v1010 = vmul.f32 %v1006, %v882
        %1015 = vrot.lane.b32.xlu0 %v1007, 120
        %v1016 = vpop.permute.xlu0 %1015
        %1017 = vrot.lane.b32.xlu0 %v1008, 120
        %v1018 = vpop.permute.xlu0 %1017
        %1019 = vrot.lane.b32.xlu0 %v1009, 120
        %v1020 = vpop.permute.xlu0 %1019
        %1021 = vrot.lane.b32.xlu0 %v1010, 120
        %v1022 = vpop.permute.xlu0 %1021
        %v1023 = vsel %vm998, %v1016, %v1018
        %v1024 = vsel %vm998, %v1020, %v1022
        %v1027 = vadd.f32 %v930, %v1023
        %v1028 = vadd.f32 %v931, %v1024
        %s1029 = sld [smem:[#allocation6 + $0x88]]
        %v1030 = vstv %s1029
        %v1031 = vmul.f32 %v1030, %v879
        %v1032 = vmul.f32 %v1030, %v880
        %v1033 = vmul.f32 %v1030, %v881
        %v1034 = vmul.f32 %v1030, %v882
        %1039 = vrot.lane.b32.xlu0 %v1031, 120
        %v1040 = vpop.permute.xlu0 %1039
        %1041 = vrot.lane.b32.xlu0 %v1032, 120
        %v1042 = vpop.permute.xlu0 %1041
        %1043 = vrot.lane.b32.xlu0 %v1033, 120
        %v1044 = vpop.permute.xlu0 %1043
        %1045 = vrot.lane.b32.xlu0 %v1034, 120
        %v1046 = vpop.permute.xlu0 %1045
        %v1047 = vsel %vm998, %v1040, %v1042
        %v1048 = vsel %vm998, %v1044, %v1046
        %v1051 = vadd.f32 %v954, %v1047
        %v1052 = vadd.f32 %v955, %v1048
        %s1053 = sld [smem:[#allocation6 + $0xc8]]
        %v1054 = vstv %s1053
        %v1055 = vmul.f32 %v1054, %v879
        %v1056 = vmul.f32 %v1054, %v880
        %v1057 = vmul.f32 %v1054, %v881
        %v1058 = vmul.f32 %v1054, %v882
        %1063 = vrot.lane.b32.xlu0 %v1055, 120
        %v1064 = vpop.permute.xlu0 %1063
        %1065 = vrot.lane.b32.xlu0 %v1056, 120
        %v1066 = vpop.permute.xlu0 %1065
        %1067 = vrot.lane.b32.xlu0 %v1057, 120
        %v1068 = vpop.permute.xlu0 %1067
        %1069 = vrot.lane.b32.xlu0 %v1058, 120
        %v1070 = vpop.permute.xlu0 %1069
        %v1071 = vsel %vm998, %v1064, %v1066
        %v1072 = vsel %vm998, %v1068, %v1070
        %v1075 = vadd.f32 %v978, %v1071
        %v1076 = vadd.f32 %v979, %v1072
        %s1077 = sld [smem:[#allocation6 + $0x9]]
        %v1078 = vstv %s1077
        %v1079 = vmul.f32 %v1078, %v879
        %v1080 = vmul.f32 %v1078, %v880
        %v1081 = vmul.f32 %v1078, %v881
        %v1082 = vmul.f32 %v1078, %v882
        %1087 = vrot.lane.b32.xlu0 %v1079, 119
        %v1088 = vpop.permute.xlu0 %1087
        %1089 = vrot.lane.b32.xlu0 %v1080, 119
        %v1090 = vpop.permute.xlu0 %1089
        %1091 = vrot.lane.b32.xlu0 %v1081, 119
        %v1092 = vpop.permute.xlu0 %1091
        %1093 = vrot.lane.b32.xlu0 %v1082, 119
        %v1094 = vpop.permute.xlu0 %1093
        %vm1095 = vcmask 973824
        %v1096 = vsel %vm1095, %v1088, %v1090
        %v1097 = vsel %vm1095, %v1092, %v1094
        %v1100 = vadd.f32 %v1003, %v1096
        %v1101 = vadd.f32 %v1004, %v1097
        %s1102 = sld [smem:[#allocation6 + $0x49]]
        %v1103 = vstv %s1102
        %v1104 = vmul.f32 %v1103, %v879
        %v1105 = vmul.f32 %v1103, %v880
        %v1106 = vmul.f32 %v1103, %v881
        %v1107 = vmul.f32 %v1103, %v882
        %1112 = vrot.lane.b32.xlu0 %v1104, 119
        %v1113 = vpop.permute.xlu0 %1112
        %1114 = vrot.lane.b32.xlu0 %v1105, 119
        %v1115 = vpop.permute.xlu0 %1114
        %1116 = vrot.lane.b32.xlu0 %v1106, 119
        %v1117 = vpop.permute.xlu0 %1116
        %1118 = vrot.lane.b32.xlu0 %v1107, 119
        %v1119 = vpop.permute.xlu0 %1118
        %v1120 = vsel %vm1095, %v1113, %v1115
        %v1121 = vsel %vm1095, %v1117, %v1119
        %v1124 = vadd.f32 %v1027, %v1120
        %v1125 = vadd.f32 %v1028, %v1121
        %s1126 = sld [smem:[#allocation6 + $0x89]]
        %v1127 = vstv %s1126
        %v1128 = vmul.f32 %v1127, %v879
        %v1129 = vmul.f32 %v1127, %v880
        %v1130 = vmul.f32 %v1127, %v881
        %v1131 = vmul.f32 %v1127, %v882
        %1136 = vrot.lane.b32.xlu0 %v1128, 119
        %v1137 = vpop.permute.xlu0 %1136
        %1138 = vrot.lane.b32.xlu0 %v1129, 119
        %v1139 = vpop.permute.xlu0 %1138
        %1140 = vrot.lane.b32.xlu0 %v1130, 119
        %v1141 = vpop.permute.xlu0 %1140
        %1142 = vrot.lane.b32.xlu0 %v1131, 119
        %v1143 = vpop.permute.xlu0 %1142
        %v1144 = vsel %vm1095, %v1137, %v1139
        %v1145 = vsel %vm1095, %v1141, %v1143
        %v1148 = vadd.f32 %v1051, %v1144
        %v1149 = vadd.f32 %v1052, %v1145
        %s1150 = sld [smem:[#allocation6 + $0xc9]]
        %v1151 = vstv %s1150
        %v1152 = vmul.f32 %v1151, %v879
        %v1153 = vmul.f32 %v1151, %v880
        %v1154 = vmul.f32 %v1151, %v881
        %v1155 = vmul.f32 %v1151, %v882
        %1160 = vrot.lane.b32.xlu0 %v1152, 119
        %v1161 = vpop.permute.xlu0 %1160
        %1162 = vrot.lane.b32.xlu0 %v1153, 119
        %v1163 = vpop.permute.xlu0 %1162
        %1164 = vrot.lane.b32.xlu0 %v1154, 119
        %v1165 = vpop.permute.xlu0 %1164
        %1166 = vrot.lane.b32.xlu0 %v1155, 119
        %v1167 = vpop.permute.xlu0 %1166
        %v1168 = vsel %vm1095, %v1161, %v1163
        %v1169 = vsel %vm1095, %v1165, %v1167
        %v1172 = vadd.f32 %v1075, %v1168
        %v1173 = vadd.f32 %v1076, %v1169
        %s1174 = sld [smem:[#allocation6 + $0xa]]
        %v1175 = vstv %s1174
        %v1176 = vmul.f32 %v1175, %v879
        %v1177 = vmul.f32 %v1175, %v880
        %v1178 = vmul.f32 %v1175, %v881
        %v1179 = vmul.f32 %v1175, %v882
        %1184 = vrot.lane.b32.xlu0 %v1176, 118
        %v1185 = vpop.permute.xlu0 %1184
        %1186 = vrot.lane.b32.xlu0 %v1177, 118
        %v1187 = vpop.permute.xlu0 %1186
        %1188 = vrot.lane.b32.xlu0 %v1178, 118
        %v1189 = vpop.permute.xlu0 %1188
        %1190 = vrot.lane.b32.xlu0 %v1179, 118
        %v1191 = vpop.permute.xlu0 %1190
        %vm1192 = vcmask 965632
        %v1193 = vsel %vm1192, %v1185, %v1187
        %v1194 = vsel %vm1192, %v1189, %v1191
        %v1197 = vadd.f32 %v1100, %v1193
        %v1198 = vadd.f32 %v1101, %v1194
        %s1199 = sld [smem:[#allocation6 + $0x4a]]
        %v1200 = vstv %s1199
        %v1201 = vmul.f32 %v1200, %v879
        %v1202 = vmul.f32 %v1200, %v880
        %v1203 = vmul.f32 %v1200, %v881
        %v1204 = vmul.f32 %v1200, %v882
        %1209 = vrot.lane.b32.xlu0 %v1201, 118
        %v1210 = vpop.permute.xlu0 %1209
        %1211 = vrot.lane.b32.xlu0 %v1202, 118
        %v1212 = vpop.permute.xlu0 %1211
        %1213 = vrot.lane.b32.xlu0 %v1203, 118
        %v1214 = vpop.permute.xlu0 %1213
        %1215 = vrot.lane.b32.xlu0 %v1204, 118
        %v1216 = vpop.permute.xlu0 %1215
        %v1217 = vsel %vm1192, %v1210, %v1212
        %v1218 = vsel %vm1192, %v1214, %v1216
        %v1221 = vadd.f32 %v1124, %v1217
        %v1222 = vadd.f32 %v1125, %v1218
        %s1223 = sld [smem:[#allocation6 + $0x8a]]
        %v1224 = vstv %s1223
        %v1225 = vmul.f32 %v1224, %v879
        %v1226 = vmul.f32 %v1224, %v880
        %v1227 = vmul.f32 %v1224, %v881
        %v1228 = vmul.f32 %v1224, %v882
        %1233 = vrot.lane.b32.xlu0 %v1225, 118
        %v1234 = vpop.permute.xlu0 %1233
        %1235 = vrot.lane.b32.xlu0 %v1226, 118
        %v1236 = vpop.permute.xlu0 %1235
        %1237 = vrot.lane.b32.xlu0 %v1227, 118
        %v1238 = vpop.permute.xlu0 %1237
        %1239 = vrot.lane.b32.xlu0 %v1228, 118
        %v1240 = vpop.permute.xlu0 %1239
        %v1241 = vsel %vm1192, %v1234, %v1236
        %v1242 = vsel %vm1192, %v1238, %v1240
        %v1245 = vadd.f32 %v1148, %v1241
        %v1246 = vadd.f32 %v1149, %v1242
        %s1247 = sld [smem:[#allocation6 + $0xca]]
        %v1248 = vstv %s1247
        %v1249 = vmul.f32 %v1248, %v879
        %v1250 = vmul.f32 %v1248, %v880
        %v1251 = vmul.f32 %v1248, %v881
        %v1252 = vmul.f32 %v1248, %v882
        %1257 = vrot.lane.b32.xlu0 %v1249, 118
        %v1258 = vpop.permute.xlu0 %1257
        %1259 = vrot.lane.b32.xlu0 %v1250, 118
        %v1260 = vpop.permute.xlu0 %1259
        %1261 = vrot.lane.b32.xlu0 %v1251, 118
        %v1262 = vpop.permute.xlu0 %1261
        %1263 = vrot.lane.b32.xlu0 %v1252, 118
        %v1264 = vpop.permute.xlu0 %1263
        %v1265 = vsel %vm1192, %v1258, %v1260
        %v1266 = vsel %vm1192, %v1262, %v1264
        %v1269 = vadd.f32 %v1172, %v1265
        %v1270 = vadd.f32 %v1173, %v1266
        %s1271 = sld [smem:[#allocation6 + $0xb]]
        %v1272 = vstv %s1271
        %v1273 = vmul.f32 %v1272, %v879
        %v1274 = vmul.f32 %v1272, %v880
        %v1275 = vmul.f32 %v1272, %v881
        %v1276 = vmul.f32 %v1272, %v882
        %1281 = vrot.lane.b32.xlu0 %v1273, 117
        %v1282 = vpop.permute.xlu0 %1281
        %1283 = vrot.lane.b32.xlu0 %v1274, 117
        %v1284 = vpop.permute.xlu0 %1283
        %1285 = vrot.lane.b32.xlu0 %v1275, 117
        %v1286 = vpop.permute.xlu0 %1285
        %1287 = vrot.lane.b32.xlu0 %v1276, 117
        %v1288 = vpop.permute.xlu0 %1287
        %vm1289 = vcmask 957440
        %v1290 = vsel %vm1289, %v1282, %v1284
        %v1291 = vsel %vm1289, %v1286, %v1288
        %v1294 = vadd.f32 %v1197, %v1290
        %v1295 = vadd.f32 %v1198, %v1291
        %s1296 = sld [smem:[#allocation6 + $0x4b]]
        %v1297 = vstv %s1296
        %v1298 = vmul.f32 %v1297, %v879
        %v1299 = vmul.f32 %v1297, %v880
        %v1300 = vmul.f32 %v1297, %v881
        %v1301 = vmul.f32 %v1297, %v882
        %1306 = vrot.lane.b32.xlu0 %v1298, 117
        %v1307 = vpop.permute.xlu0 %1306
        %1308 = vrot.lane.b32.xlu0 %v1299, 117
        %v1309 = vpop.permute.xlu0 %1308
        %1310 = vrot.lane.b32.xlu0 %v1300, 117
        %v1311 = vpop.permute.xlu0 %1310
        %1312 = vrot.lane.b32.xlu0 %v1301, 117
        %v1313 = vpop.permute.xlu0 %1312
        %v1314 = vsel %vm1289, %v1307, %v1309
        %v1315 = vsel %vm1289, %v1311, %v1313
        %v1318 = vadd.f32 %v1221, %v1314
        %v1319 = vadd.f32 %v1222, %v1315
        %s1320 = sld [smem:[#allocation6 + $0x8b]]
        %v1321 = vstv %s1320
        %v1322 = vmul.f32 %v1321, %v879
        %v1323 = vmul.f32 %v1321, %v880
        %v1324 = vmul.f32 %v1321, %v881
        %v1325 = vmul.f32 %v1321, %v882
        %1330 = vrot.lane.b32.xlu0 %v1322, 117
        %v1331 = vpop.permute.xlu0 %1330
        %1332 = vrot.lane.b32.xlu0 %v1323, 117
        %v1333 = vpop.permute.xlu0 %1332
        %1334 = vrot.lane.b32.xlu0 %v1324, 117
        %v1335 = vpop.permute.xlu0 %1334
        %1336 = vrot.lane.b32.xlu0 %v1325, 117
        %v1337 = vpop.permute.xlu0 %1336
        %v1338 = vsel %vm1289, %v1331, %v1333
        %v1339 = vsel %vm1289, %v1335, %v1337
        %v1342 = vadd.f32 %v1245, %v1338
        %v1343 = vadd.f32 %v1246, %v1339
        %s1344 = sld [smem:[#allocation6 + $0xcb]]
        %v1345 = vstv %s1344
        %v1346 = vmul.f32 %v1345, %v879
        %v1347 = vmul.f32 %v1345, %v880
        %v1348 = vmul.f32 %v1345, %v881
        %v1349 = vmul.f32 %v1345, %v882
        %1354 = vrot.lane.b32.xlu0 %v1346, 117
        %v1355 = vpop.permute.xlu0 %1354
        %1356 = vrot.lane.b32.xlu0 %v1347, 117
        %v1357 = vpop.permute.xlu0 %1356
        %1358 = vrot.lane.b32.xlu0 %v1348, 117
        %v1359 = vpop.permute.xlu0 %1358
        %1360 = vrot.lane.b32.xlu0 %v1349, 117
        %v1361 = vpop.permute.xlu0 %1360
        %v1362 = vsel %vm1289, %v1355, %v1357
        %v1363 = vsel %vm1289, %v1359, %v1361
        %v1366 = vadd.f32 %v1269, %v1362
        %v1367 = vadd.f32 %v1270, %v1363
        %s1368 = sld [smem:[#allocation6 + $0xc]]
        %v1369 = vstv %s1368
        %v1370 = vmul.f32 %v1369, %v879
        %v1371 = vmul.f32 %v1369, %v880
        %v1372 = vmul.f32 %v1369, %v881
        %v1373 = vmul.f32 %v1369, %v882
        %1378 = vrot.lane.b32.xlu0 %v1370, 116
        %v1379 = vpop.permute.xlu0 %1378
        %1380 = vrot.lane.b32.xlu0 %v1371, 116
        %v1381 = vpop.permute.xlu0 %1380
        %1382 = vrot.lane.b32.xlu0 %v1372, 116
        %v1383 = vpop.permute.xlu0 %1382
        %1384 = vrot.lane.b32.xlu0 %v1373, 116
        %v1385 = vpop.permute.xlu0 %1384
        %vm1386 = vcmask 949248
        %v1387 = vsel %vm1386, %v1379, %v1381
        %v1388 = vsel %vm1386, %v1383, %v1385
        %v1391 = vadd.f32 %v1294, %v1387
        %v1392 = vadd.f32 %v1295, %v1388
        %s1393 = sld [smem:[#allocation6 + $0x4c]]
        %v1394 = vstv %s1393
        %v1395 = vmul.f32 %v1394, %v879
        %v1396 = vmul.f32 %v1394, %v880
        %v1397 = vmul.f32 %v1394, %v881
        %v1398 = vmul.f32 %v1394, %v882
        %1403 = vrot.lane.b32.xlu0 %v1395, 116
        %v1404 = vpop.permute.xlu0 %1403
        %1405 = vrot.lane.b32.xlu0 %v1396, 116
        %v1406 = vpop.permute.xlu0 %1405
        %1407 = vrot.lane.b32.xlu0 %v1397, 116
        %v1408 = vpop.permute.xlu0 %1407
        %1409 = vrot.lane.b32.xlu0 %v1398, 116
        %v1410 = vpop.permute.xlu0 %1409
        %v1411 = vsel %vm1386, %v1404, %v1406
        %v1412 = vsel %vm1386, %v1408, %v1410
        %v1415 = vadd.f32 %v1318, %v1411
        %v1416 = vadd.f32 %v1319, %v1412
        %s1417 = sld [smem:[#allocation6 + $0x8c]]
        %v1418 = vstv %s1417
        %v1419 = vmul.f32 %v1418, %v879
        %v1420 = vmul.f32 %v1418, %v880
        %v1421 = vmul.f32 %v1418, %v881
        %v1422 = vmul.f32 %v1418, %v882
        %1427 = vrot.lane.b32.xlu0 %v1419, 116
        %v1428 = vpop.permute.xlu0 %1427
        %1429 = vrot.lane.b32.xlu0 %v1420, 116
        %v1430 = vpop.permute.xlu0 %1429
        %1431 = vrot.lane.b32.xlu0 %v1421, 116
        %v1432 = vpop.permute.xlu0 %1431
        %1433 = vrot.lane.b32.xlu0 %v1422, 116
        %v1434 = vpop.permute.xlu0 %1433
        %v1435 = vsel %vm1386, %v1428, %v1430
        %v1436 = vsel %vm1386, %v1432, %v1434
        %v1439 = vadd.f32 %v1342, %v1435
        %v1440 = vadd.f32 %v1343, %v1436
        %s1441 = sld [smem:[#allocation6 + $0xcc]]
        %v1442 = vstv %s1441
        %v1443 = vmul.f32 %v1442, %v879
        %v1444 = vmul.f32 %v1442, %v880
        %v1445 = vmul.f32 %v1442, %v881
        %v1446 = vmul.f32 %v1442, %v882
        %1451 = vrot.lane.b32.xlu0 %v1443, 116
        %v1452 = vpop.permute.xlu0 %1451
        %1453 = vrot.lane.b32.xlu0 %v1444, 116
        %v1454 = vpop.permute.xlu0 %1453
        %1455 = vrot.lane.b32.xlu0 %v1445, 116
        %v1456 = vpop.permute.xlu0 %1455
        %1457 = vrot.lane.b32.xlu0 %v1446, 116
        %v1458 = vpop.permute.xlu0 %1457
        %v1459 = vsel %vm1386, %v1452, %v1454
        %v1460 = vsel %vm1386, %v1456, %v1458
        %v1463 = vadd.f32 %v1366, %v1459
        %v1464 = vadd.f32 %v1367, %v1460
        %s1465 = sld [smem:[#allocation6 + $0xd]]
        %v1466 = vstv %s1465
        %v1467 = vmul.f32 %v1466, %v879
        %v1468 = vmul.f32 %v1466, %v880
        %v1469 = vmul.f32 %v1466, %v881
        %v1470 = vmul.f32 %v1466, %v882
        %1475 = vrot.lane.b32.xlu0 %v1467, 115
        %v1476 = vpop.permute.xlu0 %1475
        %1477 = vrot.lane.b32.xlu0 %v1468, 115
        %v1478 = vpop.permute.xlu0 %1477
        %1479 = vrot.lane.b32.xlu0 %v1469, 115
        %v1480 = vpop.permute.xlu0 %1479
        %1481 = vrot.lane.b32.xlu0 %v1470, 115
        %v1482 = vpop.permute.xlu0 %1481
        %vm1483 = vcmask 941056
        %v1484 = vsel %vm1483, %v1476, %v1478
        %v1485 = vsel %vm1483, %v1480, %v1482
        %v1488 = vadd.f32 %v1391, %v1484
        %v1489 = vadd.f32 %v1392, %v1485
        %s1490 = sld [smem:[#allocation6 + $0x4d]]
        %v1491 = vstv %s1490
        %v1492 = vmul.f32 %v1491, %v879
        %v1493 = vmul.f32 %v1491, %v880
        %v1494 = vmul.f32 %v1491, %v881
        %v1495 = vmul.f32 %v1491, %v882
        %1500 = vrot.lane.b32.xlu0 %v1492, 115
        %v1501 = vpop.permute.xlu0 %1500
        %1502 = vrot.lane.b32.xlu0 %v1493, 115
        %v1503 = vpop.permute.xlu0 %1502
        %1504 = vrot.lane.b32.xlu0 %v1494, 115
        %v1505 = vpop.permute.xlu0 %1504
        %1506 = vrot.lane.b32.xlu0 %v1495, 115
        %v1507 = vpop.permute.xlu0 %1506
        %v1508 = vsel %vm1483, %v1501, %v1503
        %v1509 = vsel %vm1483, %v1505, %v1507
        %v1512 = vadd.f32 %v1415, %v1508
        %v1513 = vadd.f32 %v1416, %v1509
        %s1514 = sld [smem:[#allocation6 + $0x8d]]
        %v1515 = vstv %s1514
        %v1516 = vmul.f32 %v1515, %v879
        %v1517 = vmul.f32 %v1515, %v880
        %v1518 = vmul.f32 %v1515, %v881
        %v1519 = vmul.f32 %v1515, %v882
        %1524 = vrot.lane.b32.xlu0 %v1516, 115
        %v1525 = vpop.permute.xlu0 %1524
        %1526 = vrot.lane.b32.xlu0 %v1517, 115
        %v1527 = vpop.permute.xlu0 %1526
        %1528 = vrot.lane.b32.xlu0 %v1518, 115
        %v1529 = vpop.permute.xlu0 %1528
        %1530 = vrot.lane.b32.xlu0 %v1519, 115
        %v1531 = vpop.permute.xlu0 %1530
        %v1532 = vsel %vm1483, %v1525, %v1527
        %v1533 = vsel %vm1483, %v1529, %v1531
        %v1536 = vadd.f32 %v1439, %v1532
        %v1537 = vadd.f32 %v1440, %v1533
        %s1538 = sld [smem:[#allocation6 + $0xcd]]
        %v1539 = vstv %s1538
        %v1540 = vmul.f32 %v1539, %v879
        %v1541 = vmul.f32 %v1539, %v880
        %v1542 = vmul.f32 %v1539, %v881
        %v1543 = vmul.f32 %v1539, %v882
        %1548 = vrot.lane.b32.xlu0 %v1540, 115
        %v1549 = vpop.permute.xlu0 %1548
        %1550 = vrot.lane.b32.xlu0 %v1541, 115
        %v1551 = vpop.permute.xlu0 %1550
        %1552 = vrot.lane.b32.xlu0 %v1542, 115
        %v1553 = vpop.permute.xlu0 %1552
        %1554 = vrot.lane.b32.xlu0 %v1543, 115
        %v1555 = vpop.permute.xlu0 %1554
        %v1556 = vsel %vm1483, %v1549, %v1551
        %v1557 = vsel %vm1483, %v1553, %v1555
        %v1560 = vadd.f32 %v1463, %v1556
        %v1561 = vadd.f32 %v1464, %v1557
        %s1562 = sld [smem:[#allocation6 + $0xe]]
        %v1563 = vstv %s1562
        %v1564 = vmul.f32 %v1563, %v879
        %v1565 = vmul.f32 %v1563, %v880
        %v1566 = vmul.f32 %v1563, %v881
        %v1567 = vmul.f32 %v1563, %v882
        %1572 = vrot.lane.b32.xlu0 %v1564, 114
        %v1573 = vpop.permute.xlu0 %1572
        %1574 = vrot.lane.b32.xlu0 %v1565, 114
        %v1575 = vpop.permute.xlu0 %1574
        %1576 = vrot.lane.b32.xlu0 %v1566, 114
        %v1577 = vpop.permute.xlu0 %1576
        %1578 = vrot.lane.b32.xlu0 %v1567, 114
        %v1579 = vpop.permute.xlu0 %1578
        %vm1580 = vcmask 932864
        %v1581 = vsel %vm1580, %v1573, %v1575
        %v1582 = vsel %vm1580, %v1577, %v1579
        %v1585 = vadd.f32 %v1488, %v1581
        %v1586 = vadd.f32 %v1489, %v1582
        %s1587 = sld [smem:[#allocation6 + $0x4e]]
        %v1588 = vstv %s1587
        %v1589 = vmul.f32 %v1588, %v879
        %v1590 = vmul.f32 %v1588, %v880
        %v1591 = vmul.f32 %v1588, %v881
        %v1592 = vmul.f32 %v1588, %v882
        %1597 = vrot.lane.b32.xlu0 %v1589, 114
        %v1598 = vpop.permute.xlu0 %1597
        %1599 = vrot.lane.b32.xlu0 %v1590, 114
        %v1600 = vpop.permute.xlu0 %1599
        %1601 = vrot.lane.b32.xlu0 %v1591, 114
        %v1602 = vpop.permute.xlu0 %1601
        %1603 = vrot.lane.b32.xlu0 %v1592, 114
        %v1604 = vpop.permute.xlu0 %1603
        %v1605 = vsel %vm1580, %v1598, %v1600
        %v1606 = vsel %vm1580, %v1602, %v1604
        %v1609 = vadd.f32 %v1512, %v1605
        %v1610 = vadd.f32 %v1513, %v1606
        %s1611 = sld [smem:[#allocation6 + $0x8e]]
        %v1612 = vstv %s1611
        %v1613 = vmul.f32 %v1612, %v879
        %v1614 = vmul.f32 %v1612, %v880
        %v1615 = vmul.f32 %v1612, %v881
        %v1616 = vmul.f32 %v1612, %v882
        %1621 = vrot.lane.b32.xlu0 %v1613, 114
        %v1622 = vpop.permute.xlu0 %1621
        %1623 = vrot.lane.b32.xlu0 %v1614, 114
        %v1624 = vpop.permute.xlu0 %1623
        %1625 = vrot.lane.b32.xlu0 %v1615, 114
        %v1626 = vpop.permute.xlu0 %1625
        %1627 = vrot.lane.b32.xlu0 %v1616, 114
        %v1628 = vpop.permute.xlu0 %1627
        %v1629 = vsel %vm1580, %v1622, %v1624
        %v1630 = vsel %vm1580, %v1626, %v1628
        %v1633 = vadd.f32 %v1536, %v1629
        %v1634 = vadd.f32 %v1537, %v1630
        %s1635 = sld [smem:[#allocation6 + $0xce]]
        %v1636 = vstv %s1635
        %v1637 = vmul.f32 %v1636, %v879
        %v1638 = vmul.f32 %v1636, %v880
        %v1639 = vmul.f32 %v1636, %v881
        %v1640 = vmul.f32 %v1636, %v882
        %1645 = vrot.lane.b32.xlu0 %v1637, 114
        %v1646 = vpop.permute.xlu0 %1645
        %1647 = vrot.lane.b32.xlu0 %v1638, 114
        %v1648 = vpop.permute.xlu0 %1647
        %1649 = vrot.lane.b32.xlu0 %v1639, 114
        %v1650 = vpop.permute.xlu0 %1649
        %1651 = vrot.lane.b32.xlu0 %v1640, 114
        %v1652 = vpop.permute.xlu0 %1651
        %v1653 = vsel %vm1580, %v1646, %v1648
        %v1654 = vsel %vm1580, %v1650, %v1652
        %v1657 = vadd.f32 %v1560, %v1653
        %v1658 = vadd.f32 %v1561, %v1654
        %s1659 = sld [smem:[#allocation6 + $0xf]]
        %v1660 = vstv %s1659
        %v1661 = vmul.f32 %v1660, %v879
        %v1662 = vmul.f32 %v1660, %v880
        %v1663 = vmul.f32 %v1660, %v881
        %v1664 = vmul.f32 %v1660, %v882
        %1669 = vrot.lane.b32.xlu0 %v1661, 113
        %v1670 = vpop.permute.xlu0 %1669
        %1671 = vrot.lane.b32.xlu0 %v1662, 113
        %v1672 = vpop.permute.xlu0 %1671
        %1673 = vrot.lane.b32.xlu0 %v1663, 113
        %v1674 = vpop.permute.xlu0 %1673
        %1675 = vrot.lane.b32.xlu0 %v1664, 113
        %v1676 = vpop.permute.xlu0 %1675
        %vm1677 = vcmask 924672
        %v1678 = vsel %vm1677, %v1670, %v1672
        %v1679 = vsel %vm1677, %v1674, %v1676
        %v1682 = vadd.f32 %v1585, %v1678
        %v1683 = vadd.f32 %v1586, %v1679
        %s1684 = sld [smem:[#allocation6 + $0x4f]]
        %v1685 = vstv %s1684
        %v1686 = vmul.f32 %v1685, %v879
        %v1687 = vmul.f32 %v1685, %v880
        %v1688 = vmul.f32 %v1685, %v881
        %v1689 = vmul.f32 %v1685, %v882
        %1694 = vrot.lane.b32.xlu0 %v1686, 113
        %v1695 = vpop.permute.xlu0 %1694
        %1696 = vrot.lane.b32.xlu0 %v1687, 113
        %v1697 = vpop.permute.xlu0 %1696
        %1698 = vrot.lane.b32.xlu0 %v1688, 113
        %v1699 = vpop.permute.xlu0 %1698
        %1700 = vrot.lane.b32.xlu0 %v1689, 113
        %v1701 = vpop.permute.xlu0 %1700
        %v1702 = vsel %vm1677, %v1695, %v1697
        %v1703 = vsel %vm1677, %v1699, %v1701
        %v1706 = vadd.f32 %v1609, %v1702
        %v1707 = vadd.f32 %v1610, %v1703
        %s1708 = sld [smem:[#allocation6 + $0x8f]]
        %v1709 = vstv %s1708
        %v1710 = vmul.f32 %v1709, %v879
        %v1711 = vmul.f32 %v1709, %v880
        %v1712 = vmul.f32 %v1709, %v881
        %v1713 = vmul.f32 %v1709, %v882
        %1718 = vrot.lane.b32.xlu0 %v1710, 113
        %v1719 = vpop.permute.xlu0 %1718
        %1720 = vrot.lane.b32.xlu0 %v1711, 113
        %v1721 = vpop.permute.xlu0 %1720
        %1722 = vrot.lane.b32.xlu0 %v1712, 113
        %v1723 = vpop.permute.xlu0 %1722
        %1724 = vrot.lane.b32.xlu0 %v1713, 113
        %v1725 = vpop.permute.xlu0 %1724
        %v1726 = vsel %vm1677, %v1719, %v1721
        %v1727 = vsel %vm1677, %v1723, %v1725
        %v1730 = vadd.f32 %v1633, %v1726
        %v1731 = vadd.f32 %v1634, %v1727
        %s1732 = sld [smem:[#allocation6 + $0xcf]]
        %v1733 = vstv %s1732
        %v1734 = vmul.f32 %v1733, %v879
        %v1735 = vmul.f32 %v1733, %v880
        %v1736 = vmul.f32 %v1733, %v881
        %v1737 = vmul.f32 %v1733, %v882
        %1742 = vrot.lane.b32.xlu0 %v1734, 113
        %v1743 = vpop.permute.xlu0 %1742
        %1744 = vrot.lane.b32.xlu0 %v1735, 113
        %v1745 = vpop.permute.xlu0 %1744
        %1746 = vrot.lane.b32.xlu0 %v1736, 113
        %v1747 = vpop.permute.xlu0 %1746
        %1748 = vrot.lane.b32.xlu0 %v1737, 113
        %v1749 = vpop.permute.xlu0 %1748
        %v1750 = vsel %vm1677, %v1743, %v1745
        %v1751 = vsel %vm1677, %v1747, %v1749
        %v1754 = vadd.f32 %v1657, %v1750
        %v1755 = vadd.f32 %v1658, %v1751
        %s1756 = sld [smem:[#allocation6 + $0x10]]
        %v1757 = vstv %s1756
        %v1758 = vmul.f32 %v1757, %v879
        %v1759 = vmul.f32 %v1757, %v880
        %v1760 = vmul.f32 %v1757, %v881
        %v1761 = vmul.f32 %v1757, %v882
        %1766 = vrot.lane.b32.xlu0 %v1758, 112
        %v1767 = vpop.permute.xlu0 %1766
        %1768 = vrot.lane.b32.xlu0 %v1759, 112
        %v1769 = vpop.permute.xlu0 %1768
        %1770 = vrot.lane.b32.xlu0 %v1760, 112
        %v1771 = vpop.permute.xlu0 %1770
        %1772 = vrot.lane.b32.xlu0 %v1761, 112
        %v1773 = vpop.permute.xlu0 %1772
        %vm1774 = vcmask 916480
        %v1775 = vsel %vm1774, %v1767, %v1769
        %v1776 = vsel %vm1774, %v1771, %v1773
        %v1779 = vadd.f32 %v1682, %v1775
        %v1780 = vadd.f32 %v1683, %v1776
        %s1781 = sld [smem:[#allocation6 + $0x50]]
        %v1782 = vstv %s1781
        %v1783 = vmul.f32 %v1782, %v879
        %v1784 = vmul.f32 %v1782, %v880
        %v1785 = vmul.f32 %v1782, %v881
        %v1786 = vmul.f32 %v1782, %v882
        %1791 = vrot.lane.b32.xlu0 %v1783, 112
        %v1792 = vpop.permute.xlu0 %1791
        %1793 = vrot.lane.b32.xlu0 %v1784, 112
        %v1794 = vpop.permute.xlu0 %1793
        %1795 = vrot.lane.b32.xlu0 %v1785, 112
        %v1796 = vpop.permute.xlu0 %1795
        %1797 = vrot.lane.b32.xlu0 %v1786, 112
        %v1798 = vpop.permute.xlu0 %1797
        %v1799 = vsel %vm1774, %v1792, %v1794
        %v1800 = vsel %vm1774, %v1796, %v1798
        %v1803 = vadd.f32 %v1706, %v1799
        %v1804 = vadd.f32 %v1707, %v1800
        %s1805 = sld [smem:[#allocation6 + $0x90]]
        %v1806 = vstv %s1805
        %v1807 = vmul.f32 %v1806, %v879
        %v1808 = vmul.f32 %v1806, %v880
        %v1809 = vmul.f32 %v1806, %v881
        %v1810 = vmul.f32 %v1806, %v882
        %1815 = vrot.lane.b32.xlu0 %v1807, 112
        %v1816 = vpop.permute.xlu0 %1815
        %1817 = vrot.lane.b32.xlu0 %v1808, 112
        %v1818 = vpop.permute.xlu0 %1817
        %1819 = vrot.lane.b32.xlu0 %v1809, 112
        %v1820 = vpop.permute.xlu0 %1819
        %1821 = vrot.lane.b32.xlu0 %v1810, 112
        %v1822 = vpop.permute.xlu0 %1821
        %v1823 = vsel %vm1774, %v1816, %v1818
        %v1824 = vsel %vm1774, %v1820, %v1822
        %v1827 = vadd.f32 %v1730, %v1823
        %v1828 = vadd.f32 %v1731, %v1824
        %s1829 = sld [smem:[#allocation6 + $0xd0]]
        %v1830 = vstv %s1829
        %v1831 = vmul.f32 %v1830, %v879
        %v1832 = vmul.f32 %v1830, %v880
        %v1833 = vmul.f32 %v1830, %v881
        %v1834 = vmul.f32 %v1830, %v882
        %1839 = vrot.lane.b32.xlu0 %v1831, 112
        %v1840 = vpop.permute.xlu0 %1839
        %1841 = vrot.lane.b32.xlu0 %v1832, 112
        %v1842 = vpop.permute.xlu0 %1841
        %1843 = vrot.lane.b32.xlu0 %v1833, 112
        %v1844 = vpop.permute.xlu0 %1843
        %1845 = vrot.lane.b32.xlu0 %v1834, 112
        %v1846 = vpop.permute.xlu0 %1845
        %v1847 = vsel %vm1774, %v1840, %v1842
        %v1848 = vsel %vm1774, %v1844, %v1846
        %v1851 = vadd.f32 %v1754, %v1847
        %v1852 = vadd.f32 %v1755, %v1848
        %s1853 = sld [smem:[#allocation6 + $0x11]]
        %v1854 = vstv %s1853
        %v1855 = vmul.f32 %v1854, %v879
        %v1856 = vmul.f32 %v1854, %v880
        %v1857 = vmul.f32 %v1854, %v881
        %v1858 = vmul.f32 %v1854, %v882
        %1863 = vrot.lane.b32.xlu0 %v1855, 111
        %v1864 = vpop.permute.xlu0 %1863
        %1865 = vrot.lane.b32.xlu0 %v1856, 111
        %v1866 = vpop.permute.xlu0 %1865
        %1867 = vrot.lane.b32.xlu0 %v1857, 111
        %v1868 = vpop.permute.xlu0 %1867
        %1869 = vrot.lane.b32.xlu0 %v1858, 111
        %v1870 = vpop.permute.xlu0 %1869
        %vm1871 = vcmask 908288
        %v1872 = vsel %vm1871, %v1864, %v1866
        %v1873 = vsel %vm1871, %v1868, %v1870
        %v1876 = vadd.f32 %v1779, %v1872
        %v1877 = vadd.f32 %v1780, %v1873
        %s1878 = sld [smem:[#allocation6 + $0x51]]
        %v1879 = vstv %s1878
        %v1880 = vmul.f32 %v1879, %v879
        %v1881 = vmul.f32 %v1879, %v880
        %v1882 = vmul.f32 %v1879, %v881
        %v1883 = vmul.f32 %v1879, %v882
        %1888 = vrot.lane.b32.xlu0 %v1880, 111
        %v1889 = vpop.permute.xlu0 %1888
        %1890 = vrot.lane.b32.xlu0 %v1881, 111
        %v1891 = vpop.permute.xlu0 %1890
        %1892 = vrot.lane.b32.xlu0 %v1882, 111
        %v1893 = vpop.permute.xlu0 %1892
        %1894 = vrot.lane.b32.xlu0 %v1883, 111
        %v1895 = vpop.permute.xlu0 %1894
        %v1896 = vsel %vm1871, %v1889, %v1891
        %v1897 = vsel %vm1871, %v1893, %v1895
        %v1900 = vadd.f32 %v1803, %v1896
        %v1901 = vadd.f32 %v1804, %v1897
        %s1902 = sld [smem:[#allocation6 + $0x91]]
        %v1903 = vstv %s1902
        %v1904 = vmul.f32 %v1903, %v879
        %v1905 = vmul.f32 %v1903, %v880
        %v1906 = vmul.f32 %v1903, %v881
        %v1907 = vmul.f32 %v1903, %v882
        %1912 = vrot.lane.b32.xlu0 %v1904, 111
        %v1913 = vpop.permute.xlu0 %1912
        %1914 = vrot.lane.b32.xlu0 %v1905, 111
        %v1915 = vpop.permute.xlu0 %1914
        %1916 = vrot.lane.b32.xlu0 %v1906, 111
        %v1917 = vpop.permute.xlu0 %1916
        %1918 = vrot.lane.b32.xlu0 %v1907, 111
        %v1919 = vpop.permute.xlu0 %1918
        %v1920 = vsel %vm1871, %v1913, %v1915
        %v1921 = vsel %vm1871, %v1917, %v1919
        %v1924 = vadd.f32 %v1827, %v1920
        %v1925 = vadd.f32 %v1828, %v1921
        %s1926 = sld [smem:[#allocation6 + $0xd1]]
        %v1927 = vstv %s1926
        %v1928 = vmul.f32 %v1927, %v879
        %v1929 = vmul.f32 %v1927, %v880
        %v1930 = vmul.f32 %v1927, %v881
        %v1931 = vmul.f32 %v1927, %v882
        %1936 = vrot.lane.b32.xlu0 %v1928, 111
        %v1937 = vpop.permute.xlu0 %1936
        %1938 = vrot.lane.b32.xlu0 %v1929, 111
        %v1939 = vpop.permute.xlu0 %1938
        %1940 = vrot.lane.b32.xlu0 %v1930, 111
        %v1941 = vpop.permute.xlu0 %1940
        %1942 = vrot.lane.b32.xlu0 %v1931, 111
        %v1943 = vpop.permute.xlu0 %1942
        %v1944 = vsel %vm1871, %v1937, %v1939
        %v1945 = vsel %vm1871, %v1941, %v1943
        %v1948 = vadd.f32 %v1851, %v1944
        %v1949 = vadd.f32 %v1852, %v1945
        %s1950 = sld [smem:[#allocation6 + $0x12]]
        %v1951 = vstv %s1950
        %v1952 = vmul.f32 %v1951, %v879
        %v1953 = vmul.f32 %v1951, %v880
        %v1954 = vmul.f32 %v1951, %v881
        %v1955 = vmul.f32 %v1951, %v882
        %1960 = vrot.lane.b32.xlu0 %v1952, 110
        %v1961 = vpop.permute.xlu0 %1960
        %1962 = vrot.lane.b32.xlu0 %v1953, 110
        %v1963 = vpop.permute.xlu0 %1962
        %1964 = vrot.lane.b32.xlu0 %v1954, 110
        %v1965 = vpop.permute.xlu0 %1964
        %1966 = vrot.lane.b32.xlu0 %v1955, 110
        %v1967 = vpop.permute.xlu0 %1966
        %vm1968 = vcmask 900096
        %v1969 = vsel %vm1968, %v1961, %v1963
        %v1970 = vsel %vm1968, %v1965, %v1967
        %v1973 = vadd.f32 %v1876, %v1969
        %v1974 = vadd.f32 %v1877, %v1970
        %s1975 = sld [smem:[#allocation6 + $0x52]]
        %v1976 = vstv %s1975
        %v1977 = vmul.f32 %v1976, %v879
        %v1978 = vmul.f32 %v1976, %v880
        %v1979 = vmul.f32 %v1976, %v881
        %v1980 = vmul.f32 %v1976, %v882
        %1985 = vrot.lane.b32.xlu0 %v1977, 110
        %v1986 = vpop.permute.xlu0 %1985
        %1987 = vrot.lane.b32.xlu0 %v1978, 110
        %v1988 = vpop.permute.xlu0 %1987
        %1989 = vrot.lane.b32.xlu0 %v1979, 110
        %v1990 = vpop.permute.xlu0 %1989
        %1991 = vrot.lane.b32.xlu0 %v1980, 110
        %v1992 = vpop.permute.xlu0 %1991
        %v1993 = vsel %vm1968, %v1986, %v1988
        %v1994 = vsel %vm1968, %v1990, %v1992
        %v1997 = vadd.f32 %v1900, %v1993
        %v1998 = vadd.f32 %v1901, %v1994
        %s1999 = sld [smem:[#allocation6 + $0x92]]
        %v2000 = vstv %s1999
        %v2001 = vmul.f32 %v2000, %v879
        %v2002 = vmul.f32 %v2000, %v880
        %v2003 = vmul.f32 %v2000, %v881
        %v2004 = vmul.f32 %v2000, %v882
        %2009 = vrot.lane.b32.xlu0 %v2001, 110
        %v2010 = vpop.permute.xlu0 %2009
        %2011 = vrot.lane.b32.xlu0 %v2002, 110
        %v2012 = vpop.permute.xlu0 %2011
        %2013 = vrot.lane.b32.xlu0 %v2003, 110
        %v2014 = vpop.permute.xlu0 %2013
        %2015 = vrot.lane.b32.xlu0 %v2004, 110
        %v2016 = vpop.permute.xlu0 %2015
        %v2017 = vsel %vm1968, %v2010, %v2012
        %v2018 = vsel %vm1968, %v2014, %v2016
        %v2021 = vadd.f32 %v1924, %v2017
        %v2022 = vadd.f32 %v1925, %v2018
        %s2023 = sld [smem:[#allocation6 + $0xd2]]
        %v2024 = vstv %s2023
        %v2025 = vmul.f32 %v2024, %v879
        %v2026 = vmul.f32 %v2024, %v880
        %v2027 = vmul.f32 %v2024, %v881
        %v2028 = vmul.f32 %v2024, %v882
        %2033 = vrot.lane.b32.xlu0 %v2025, 110
        %v2034 = vpop.permute.xlu0 %2033
        %2035 = vrot.lane.b32.xlu0 %v2026, 110
        %v2036 = vpop.permute.xlu0 %2035
        %2037 = vrot.lane.b32.xlu0 %v2027, 110
        %v2038 = vpop.permute.xlu0 %2037
        %2039 = vrot.lane.b32.xlu0 %v2028, 110
        %v2040 = vpop.permute.xlu0 %2039
        %v2041 = vsel %vm1968, %v2034, %v2036
        %v2042 = vsel %vm1968, %v2038, %v2040
        %v2045 = vadd.f32 %v1948, %v2041
        %v2046 = vadd.f32 %v1949, %v2042
        %s2047 = sld [smem:[#allocation6 + $0x13]]
        %v2048 = vstv %s2047
        %v2049 = vmul.f32 %v2048, %v879
        %v2050 = vmul.f32 %v2048, %v880
        %v2051 = vmul.f32 %v2048, %v881
        %v2052 = vmul.f32 %v2048, %v882
        %2057 = vrot.lane.b32.xlu0 %v2049, 109
        %v2058 = vpop.permute.xlu0 %2057
        %2059 = vrot.lane.b32.xlu0 %v2050, 109
        %v2060 = vpop.permute.xlu0 %2059
        %2061 = vrot.lane.b32.xlu0 %v2051, 109
        %v2062 = vpop.permute.xlu0 %2061
        %2063 = vrot.lane.b32.xlu0 %v2052, 109
        %v2064 = vpop.permute.xlu0 %2063
        %vm2065 = vcmask 891904
        %v2066 = vsel %vm2065, %v2058, %v2060
        %v2067 = vsel %vm2065, %v2062, %v2064
        %v2070 = vadd.f32 %v1973, %v2066
        %v2071 = vadd.f32 %v1974, %v2067
        %s2072 = sld [smem:[#allocation6 + $0x53]]
        %v2073 = vstv %s2072
        %v2074 = vmul.f32 %v2073, %v879
        %v2075 = vmul.f32 %v2073, %v880
        %v2076 = vmul.f32 %v2073, %v881
        %v2077 = vmul.f32 %v2073, %v882
        %2082 = vrot.lane.b32.xlu0 %v2074, 109
        %v2083 = vpop.permute.xlu0 %2082
        %2084 = vrot.lane.b32.xlu0 %v2075, 109
        %v2085 = vpop.permute.xlu0 %2084
        %2086 = vrot.lane.b32.xlu0 %v2076, 109
        %v2087 = vpop.permute.xlu0 %2086
        %2088 = vrot.lane.b32.xlu0 %v2077, 109
        %v2089 = vpop.permute.xlu0 %2088
        %v2090 = vsel %vm2065, %v2083, %v2085
        %v2091 = vsel %vm2065, %v2087, %v2089
        %v2094 = vadd.f32 %v1997, %v2090
        %v2095 = vadd.f32 %v1998, %v2091
        %s2096 = sld [smem:[#allocation6 + $0x93]]
        %v2097 = vstv %s2096
        %v2098 = vmul.f32 %v2097, %v879
        %v2099 = vmul.f32 %v2097, %v880
        %v2100 = vmul.f32 %v2097, %v881
        %v2101 = vmul.f32 %v2097, %v882
        %2106 = vrot.lane.b32.xlu0 %v2098, 109
        %v2107 = vpop.permute.xlu0 %2106
        %2108 = vrot.lane.b32.xlu0 %v2099, 109
        %v2109 = vpop.permute.xlu0 %2108
        %2110 = vrot.lane.b32.xlu0 %v2100, 109
        %v2111 = vpop.permute.xlu0 %2110
        %2112 = vrot.lane.b32.xlu0 %v2101, 109
        %v2113 = vpop.permute.xlu0 %2112
        %v2114 = vsel %vm2065, %v2107, %v2109
        %v2115 = vsel %vm2065, %v2111, %v2113
        %v2118 = vadd.f32 %v2021, %v2114
        %v2119 = vadd.f32 %v2022, %v2115
        %s2120 = sld [smem:[#allocation6 + $0xd3]]
        %v2121 = vstv %s2120
        %v2122 = vmul.f32 %v2121, %v879
        %v2123 = vmul.f32 %v2121, %v880
        %v2124 = vmul.f32 %v2121, %v881
        %v2125 = vmul.f32 %v2121, %v882
        %2130 = vrot.lane.b32.xlu0 %v2122, 109
        %v2131 = vpop.permute.xlu0 %2130
        %2132 = vrot.lane.b32.xlu0 %v2123, 109
        %v2133 = vpop.permute.xlu0 %2132
        %2134 = vrot.lane.b32.xlu0 %v2124, 109
        %v2135 = vpop.permute.xlu0 %2134
        %2136 = vrot.lane.b32.xlu0 %v2125, 109
        %v2137 = vpop.permute.xlu0 %2136
        %v2138 = vsel %vm2065, %v2131, %v2133
        %v2139 = vsel %vm2065, %v2135, %v2137
        %v2142 = vadd.f32 %v2045, %v2138
        %v2143 = vadd.f32 %v2046, %v2139
        %s2144 = sld [smem:[#allocation6 + $0x14]]
        %v2145 = vstv %s2144
        %v2146 = vmul.f32 %v2145, %v879
        %v2147 = vmul.f32 %v2145, %v880
        %v2148 = vmul.f32 %v2145, %v881
        %v2149 = vmul.f32 %v2145, %v882
        %2154 = vrot.lane.b32.xlu0 %v2146, 108
        %v2155 = vpop.permute.xlu0 %2154
        %2156 = vrot.lane.b32.xlu0 %v2147, 108
        %v2157 = vpop.permute.xlu0 %2156
        %2158 = vrot.lane.b32.xlu0 %v2148, 108
        %v2159 = vpop.permute.xlu0 %2158
        %2160 = vrot.lane.b32.xlu0 %v2149, 108
        %v2161 = vpop.permute.xlu0 %2160
        %vm2162 = vcmask 883712
        %v2163 = vsel %vm2162, %v2155, %v2157
        %v2164 = vsel %vm2162, %v2159, %v2161
        %v2167 = vadd.f32 %v2070, %v2163
        %v2168 = vadd.f32 %v2071, %v2164
        %s2169 = sld [smem:[#allocation6 + $0x54]]
        %v2170 = vstv %s2169
        %v2171 = vmul.f32 %v2170, %v879
        %v2172 = vmul.f32 %v2170, %v880
        %v2173 = vmul.f32 %v2170, %v881
        %v2174 = vmul.f32 %v2170, %v882
        %2179 = vrot.lane.b32.xlu0 %v2171, 108
        %v2180 = vpop.permute.xlu0 %2179
        %2181 = vrot.lane.b32.xlu0 %v2172, 108
        %v2182 = vpop.permute.xlu0 %2181
        %2183 = vrot.lane.b32.xlu0 %v2173, 108
        %v2184 = vpop.permute.xlu0 %2183
        %2185 = vrot.lane.b32.xlu0 %v2174, 108
        %v2186 = vpop.permute.xlu0 %2185
        %v2187 = vsel %vm2162, %v2180, %v2182
        %v2188 = vsel %vm2162, %v2184, %v2186
        %v2191 = vadd.f32 %v2094, %v2187
        %v2192 = vadd.f32 %v2095, %v2188
        %s2193 = sld [smem:[#allocation6 + $0x94]]
        %v2194 = vstv %s2193
        %v2195 = vmul.f32 %v2194, %v879
        %v2196 = vmul.f32 %v2194, %v880
        %v2197 = vmul.f32 %v2194, %v881
        %v2198 = vmul.f32 %v2194, %v882
        %2203 = vrot.lane.b32.xlu0 %v2195, 108
        %v2204 = vpop.permute.xlu0 %2203
        %2205 = vrot.lane.b32.xlu0 %v2196, 108
        %v2206 = vpop.permute.xlu0 %2205
        %2207 = vrot.lane.b32.xlu0 %v2197, 108
        %v2208 = vpop.permute.xlu0 %2207
        %2209 = vrot.lane.b32.xlu0 %v2198, 108
        %v2210 = vpop.permute.xlu0 %2209
        %v2211 = vsel %vm2162, %v2204, %v2206
        %v2212 = vsel %vm2162, %v2208, %v2210
        %v2215 = vadd.f32 %v2118, %v2211
        %v2216 = vadd.f32 %v2119, %v2212
        %s2217 = sld [smem:[#allocation6 + $0xd4]]
        %v2218 = vstv %s2217
        %v2219 = vmul.f32 %v2218, %v879
        %v2220 = vmul.f32 %v2218, %v880
        %v2221 = vmul.f32 %v2218, %v881
        %v2222 = vmul.f32 %v2218, %v882
        %2227 = vrot.lane.b32.xlu0 %v2219, 108
        %v2228 = vpop.permute.xlu0 %2227
        %2229 = vrot.lane.b32.xlu0 %v2220, 108
        %v2230 = vpop.permute.xlu0 %2229
        %2231 = vrot.lane.b32.xlu0 %v2221, 108
        %v2232 = vpop.permute.xlu0 %2231
        %2233 = vrot.lane.b32.xlu0 %v2222, 108
        %v2234 = vpop.permute.xlu0 %2233
        %v2235 = vsel %vm2162, %v2228, %v2230
        %v2236 = vsel %vm2162, %v2232, %v2234
        %v2239 = vadd.f32 %v2142, %v2235
        %v2240 = vadd.f32 %v2143, %v2236
        %s2241 = sld [smem:[#allocation6 + $0x15]]
        %v2242 = vstv %s2241
        %v2243 = vmul.f32 %v2242, %v879
        %v2244 = vmul.f32 %v2242, %v880
        %v2245 = vmul.f32 %v2242, %v881
        %v2246 = vmul.f32 %v2242, %v882
        %2251 = vrot.lane.b32.xlu0 %v2243, 107
        %v2252 = vpop.permute.xlu0 %2251
        %2253 = vrot.lane.b32.xlu0 %v2244, 107
        %v2254 = vpop.permute.xlu0 %2253
        %2255 = vrot.lane.b32.xlu0 %v2245, 107
        %v2256 = vpop.permute.xlu0 %2255
        %2257 = vrot.lane.b32.xlu0 %v2246, 107
        %v2258 = vpop.permute.xlu0 %2257
        %vm2259 = vcmask 875520
        %v2260 = vsel %vm2259, %v2252, %v2254
        %v2261 = vsel %vm2259, %v2256, %v2258
        %v2264 = vadd.f32 %v2167, %v2260
        %v2265 = vadd.f32 %v2168, %v2261
        %s2266 = sld [smem:[#allocation6 + $0x55]]
        %v2267 = vstv %s2266
        %v2268 = vmul.f32 %v2267, %v879
        %v2269 = vmul.f32 %v2267, %v880
        %v2270 = vmul.f32 %v2267, %v881
        %v2271 = vmul.f32 %v2267, %v882
        %2276 = vrot.lane.b32.xlu0 %v2268, 107
        %v2277 = vpop.permute.xlu0 %2276
        %2278 = vrot.lane.b32.xlu0 %v2269, 107
        %v2279 = vpop.permute.xlu0 %2278
        %2280 = vrot.lane.b32.xlu0 %v2270, 107
        %v2281 = vpop.permute.xlu0 %2280
        %2282 = vrot.lane.b32.xlu0 %v2271, 107
        %v2283 = vpop.permute.xlu0 %2282
        %v2284 = vsel %vm2259, %v2277, %v2279
        %v2285 = vsel %vm2259, %v2281, %v2283
        %v2288 = vadd.f32 %v2191, %v2284
        %v2289 = vadd.f32 %v2192, %v2285
        %s2290 = sld [smem:[#allocation6 + $0x95]]
        %v2291 = vstv %s2290
        %v2292 = vmul.f32 %v2291, %v879
        %v2293 = vmul.f32 %v2291, %v880
        %v2294 = vmul.f32 %v2291, %v881
        %v2295 = vmul.f32 %v2291, %v882
        %2300 = vrot.lane.b32.xlu0 %v2292, 107
        %v2301 = vpop.permute.xlu0 %2300
        %2302 = vrot.lane.b32.xlu0 %v2293, 107
        %v2303 = vpop.permute.xlu0 %2302
        %2304 = vrot.lane.b32.xlu0 %v2294, 107
        %v2305 = vpop.permute.xlu0 %2304
        %2306 = vrot.lane.b32.xlu0 %v2295, 107
        %v2307 = vpop.permute.xlu0 %2306
        %v2308 = vsel %vm2259, %v2301, %v2303
        %v2309 = vsel %vm2259, %v2305, %v2307
        %v2312 = vadd.f32 %v2215, %v2308
        %v2313 = vadd.f32 %v2216, %v2309
        %s2314 = sld [smem:[#allocation6 + $0xd5]]
        %v2315 = vstv %s2314
        %v2316 = vmul.f32 %v2315, %v879
        %v2317 = vmul.f32 %v2315, %v880
        %v2318 = vmul.f32 %v2315, %v881
        %v2319 = vmul.f32 %v2315, %v882
        %2324 = vrot.lane.b32.xlu0 %v2316, 107
        %v2325 = vpop.permute.xlu0 %2324
        %2326 = vrot.lane.b32.xlu0 %v2317, 107
        %v2327 = vpop.permute.xlu0 %2326
        %2328 = vrot.lane.b32.xlu0 %v2318, 107
        %v2329 = vpop.permute.xlu0 %2328
        %2330 = vrot.lane.b32.xlu0 %v2319, 107
        %v2331 = vpop.permute.xlu0 %2330
        %v2332 = vsel %vm2259, %v2325, %v2327
        %v2333 = vsel %vm2259, %v2329, %v2331
        %v2336 = vadd.f32 %v2239, %v2332
        %v2337 = vadd.f32 %v2240, %v2333
        %s2338 = sld [smem:[#allocation6 + $0x16]]
        %v2339 = vstv %s2338
        %v2340 = vmul.f32 %v2339, %v879
        %v2341 = vmul.f32 %v2339, %v880
        %v2342 = vmul.f32 %v2339, %v881
        %v2343 = vmul.f32 %v2339, %v882
        %2348 = vrot.lane.b32.xlu0 %v2340, 106
        %v2349 = vpop.permute.xlu0 %2348
        %2350 = vrot.lane.b32.xlu0 %v2341, 106
        %v2351 = vpop.permute.xlu0 %2350
        %2352 = vrot.lane.b32.xlu0 %v2342, 106
        %v2353 = vpop.permute.xlu0 %2352
        %2354 = vrot.lane.b32.xlu0 %v2343, 106
        %v2355 = vpop.permute.xlu0 %2354
        %vm2356 = vcmask 867328
        %v2357 = vsel %vm2356, %v2349, %v2351
        %v2358 = vsel %vm2356, %v2353, %v2355
        %v2361 = vadd.f32 %v2264, %v2357
        %v2362 = vadd.f32 %v2265, %v2358
        %s2363 = sld [smem:[#allocation6 + $0x56]]
        %v2364 = vstv %s2363
        %v2365 = vmul.f32 %v2364, %v879
        %v2366 = vmul.f32 %v2364, %v880
        %v2367 = vmul.f32 %v2364, %v881
        %v2368 = vmul.f32 %v2364, %v882
        %2373 = vrot.lane.b32.xlu0 %v2365, 106
        %v2374 = vpop.permute.xlu0 %2373
        %2375 = vrot.lane.b32.xlu0 %v2366, 106
        %v2376 = vpop.permute.xlu0 %2375
        %2377 = vrot.lane.b32.xlu0 %v2367, 106
        %v2378 = vpop.permute.xlu0 %2377
        %2379 = vrot.lane.b32.xlu0 %v2368, 106
        %v2380 = vpop.permute.xlu0 %2379
        %v2381 = vsel %vm2356, %v2374, %v2376
        %v2382 = vsel %vm2356, %v2378, %v2380
        %v2385 = vadd.f32 %v2288, %v2381
        %v2386 = vadd.f32 %v2289, %v2382
        %s2387 = sld [smem:[#allocation6 + $0x96]]
        %v2388 = vstv %s2387
        %v2389 = vmul.f32 %v2388, %v879
        %v2390 = vmul.f32 %v2388, %v880
        %v2391 = vmul.f32 %v2388, %v881
        %v2392 = vmul.f32 %v2388, %v882
        %2397 = vrot.lane.b32.xlu0 %v2389, 106
        %v2398 = vpop.permute.xlu0 %2397
        %2399 = vrot.lane.b32.xlu0 %v2390, 106
        %v2400 = vpop.permute.xlu0 %2399
        %2401 = vrot.lane.b32.xlu0 %v2391, 106
        %v2402 = vpop.permute.xlu0 %2401
        %2403 = vrot.lane.b32.xlu0 %v2392, 106
        %v2404 = vpop.permute.xlu0 %2403
        %v2405 = vsel %vm2356, %v2398, %v2400
        %v2406 = vsel %vm2356, %v2402, %v2404
        %v2409 = vadd.f32 %v2312, %v2405
        %v2410 = vadd.f32 %v2313, %v2406
        %s2411 = sld [smem:[#allocation6 + $0xd6]]
        %v2412 = vstv %s2411
        %v2413 = vmul.f32 %v2412, %v879
        %v2414 = vmul.f32 %v2412, %v880
        %v2415 = vmul.f32 %v2412, %v881
        %v2416 = vmul.f32 %v2412, %v882
        %2421 = vrot.lane.b32.xlu0 %v2413, 106
        %v2422 = vpop.permute.xlu0 %2421
        %2423 = vrot.lane.b32.xlu0 %v2414, 106
        %v2424 = vpop.permute.xlu0 %2423
        %2425 = vrot.lane.b32.xlu0 %v2415, 106
        %v2426 = vpop.permute.xlu0 %2425
        %2427 = vrot.lane.b32.xlu0 %v2416, 106
        %v2428 = vpop.permute.xlu0 %2427
        %v2429 = vsel %vm2356, %v2422, %v2424
        %v2430 = vsel %vm2356, %v2426, %v2428
        %v2433 = vadd.f32 %v2336, %v2429
        %v2434 = vadd.f32 %v2337, %v2430
        %s2435 = sld [smem:[#allocation6 + $0x17]]
        %v2436 = vstv %s2435
        %v2437 = vmul.f32 %v2436, %v879
        %v2438 = vmul.f32 %v2436, %v880
        %v2439 = vmul.f32 %v2436, %v881
        %v2440 = vmul.f32 %v2436, %v882
        %2445 = vrot.lane.b32.xlu0 %v2437, 105
        %v2446 = vpop.permute.xlu0 %2445
        %2447 = vrot.lane.b32.xlu0 %v2438, 105
        %v2448 = vpop.permute.xlu0 %2447
        %2449 = vrot.lane.b32.xlu0 %v2439, 105
        %v2450 = vpop.permute.xlu0 %2449
        %2451 = vrot.lane.b32.xlu0 %v2440, 105
        %v2452 = vpop.permute.xlu0 %2451
        %vm2453 = vcmask 859136
        %v2454 = vsel %vm2453, %v2446, %v2448
        %v2455 = vsel %vm2453, %v2450, %v2452
        %v2458 = vadd.f32 %v2361, %v2454
        %v2459 = vadd.f32 %v2362, %v2455
        %s2460 = sld [smem:[#allocation6 + $0x57]]
        %v2461 = vstv %s2460
        %v2462 = vmul.f32 %v2461, %v879
        %v2463 = vmul.f32 %v2461, %v880
        %v2464 = vmul.f32 %v2461, %v881
        %v2465 = vmul.f32 %v2461, %v882
        %2470 = vrot.lane.b32.xlu0 %v2462, 105
        %v2471 = vpop.permute.xlu0 %2470
        %2472 = vrot.lane.b32.xlu0 %v2463, 105
        %v2473 = vpop.permute.xlu0 %2472
        %2474 = vrot.lane.b32.xlu0 %v2464, 105
        %v2475 = vpop.permute.xlu0 %2474
        %2476 = vrot.lane.b32.xlu0 %v2465, 105
        %v2477 = vpop.permute.xlu0 %2476
        %v2478 = vsel %vm2453, %v2471, %v2473
        %v2479 = vsel %vm2453, %v2475, %v2477
        %v2482 = vadd.f32 %v2385, %v2478
        %v2483 = vadd.f32 %v2386, %v2479
        %s2484 = sld [smem:[#allocation6 + $0x97]]
        %v2485 = vstv %s2484
        %v2486 = vmul.f32 %v2485, %v879
        %v2487 = vmul.f32 %v2485, %v880
        %v2488 = vmul.f32 %v2485, %v881
        %v2489 = vmul.f32 %v2485, %v882
        %2494 = vrot.lane.b32.xlu0 %v2486, 105
        %v2495 = vpop.permute.xlu0 %2494
        %2496 = vrot.lane.b32.xlu0 %v2487, 105
        %v2497 = vpop.permute.xlu0 %2496
        %2498 = vrot.lane.b32.xlu0 %v2488, 105
        %v2499 = vpop.permute.xlu0 %2498
        %2500 = vrot.lane.b32.xlu0 %v2489, 105
        %v2501 = vpop.permute.xlu0 %2500
        %v2502 = vsel %vm2453, %v2495, %v2497
        %v2503 = vsel %vm2453, %v2499, %v2501
        %v2506 = vadd.f32 %v2409, %v2502
        %v2507 = vadd.f32 %v2410, %v2503
        %s2508 = sld [smem:[#allocation6 + $0xd7]]
        %v2509 = vstv %s2508
        %v2510 = vmul.f32 %v2509, %v879
        %v2511 = vmul.f32 %v2509, %v880
        %v2512 = vmul.f32 %v2509, %v881
        %v2513 = vmul.f32 %v2509, %v882
        %2518 = vrot.lane.b32.xlu0 %v2510, 105
        %v2519 = vpop.permute.xlu0 %2518
        %2520 = vrot.lane.b32.xlu0 %v2511, 105
        %v2521 = vpop.permute.xlu0 %2520
        %2522 = vrot.lane.b32.xlu0 %v2512, 105
        %v2523 = vpop.permute.xlu0 %2522
        %2524 = vrot.lane.b32.xlu0 %v2513, 105
        %v2525 = vpop.permute.xlu0 %2524
        %v2526 = vsel %vm2453, %v2519, %v2521
        %v2527 = vsel %vm2453, %v2523, %v2525
        %v2530 = vadd.f32 %v2433, %v2526
        %v2531 = vadd.f32 %v2434, %v2527
        %s2532 = sld [smem:[#allocation6 + $0x18]]
        %v2533 = vstv %s2532
        %v2534 = vmul.f32 %v2533, %v879
        %v2535 = vmul.f32 %v2533, %v880
        %v2536 = vmul.f32 %v2533, %v881
        %v2537 = vmul.f32 %v2533, %v882
        %2542 = vrot.lane.b32.xlu0 %v2534, 104
        %v2543 = vpop.permute.xlu0 %2542
        %2544 = vrot.lane.b32.xlu0 %v2535, 104
        %v2545 = vpop.permute.xlu0 %2544
        %2546 = vrot.lane.b32.xlu0 %v2536, 104
        %v2547 = vpop.permute.xlu0 %2546
        %2548 = vrot.lane.b32.xlu0 %v2537, 104
        %v2549 = vpop.permute.xlu0 %2548
        %vm2550 = vcmask 850944
        %v2551 = vsel %vm2550, %v2543, %v2545
        %v2552 = vsel %vm2550, %v2547, %v2549
        %v2555 = vadd.f32 %v2458, %v2551
        %v2556 = vadd.f32 %v2459, %v2552
        %s2557 = sld [smem:[#allocation6 + $0x58]]
        %v2558 = vstv %s2557
        %v2559 = vmul.f32 %v2558, %v879
        %v2560 = vmul.f32 %v2558, %v880
        %v2561 = vmul.f32 %v2558, %v881
        %v2562 = vmul.f32 %v2558, %v882
        %2567 = vrot.lane.b32.xlu0 %v2559, 104
        %v2568 = vpop.permute.xlu0 %2567
        %2569 = vrot.lane.b32.xlu0 %v2560, 104
        %v2570 = vpop.permute.xlu0 %2569
        %2571 = vrot.lane.b32.xlu0 %v2561, 104
        %v2572 = vpop.permute.xlu0 %2571
        %2573 = vrot.lane.b32.xlu0 %v2562, 104
        %v2574 = vpop.permute.xlu0 %2573
        %v2575 = vsel %vm2550, %v2568, %v2570
        %v2576 = vsel %vm2550, %v2572, %v2574
        %v2579 = vadd.f32 %v2482, %v2575
        %v2580 = vadd.f32 %v2483, %v2576
        %s2581 = sld [smem:[#allocation6 + $0x98]]
        %v2582 = vstv %s2581
        %v2583 = vmul.f32 %v2582, %v879
        %v2584 = vmul.f32 %v2582, %v880
        %v2585 = vmul.f32 %v2582, %v881
        %v2586 = vmul.f32 %v2582, %v882
        %2591 = vrot.lane.b32.xlu0 %v2583, 104
        %v2592 = vpop.permute.xlu0 %2591
        %2593 = vrot.lane.b32.xlu0 %v2584, 104
        %v2594 = vpop.permute.xlu0 %2593
        %2595 = vrot.lane.b32.xlu0 %v2585, 104
        %v2596 = vpop.permute.xlu0 %2595
        %2597 = vrot.lane.b32.xlu0 %v2586, 104
        %v2598 = vpop.permute.xlu0 %2597
        %v2599 = vsel %vm2550, %v2592, %v2594
        %v2600 = vsel %vm2550, %v2596, %v2598
        %v2603 = vadd.f32 %v2506, %v2599
        %v2604 = vadd.f32 %v2507, %v2600
        %s2605 = sld [smem:[#allocation6 + $0xd8]]
        %v2606 = vstv %s2605
        %v2607 = vmul.f32 %v2606, %v879
        %v2608 = vmul.f32 %v2606, %v880
        %v2609 = vmul.f32 %v2606, %v881
        %v2610 = vmul.f32 %v2606, %v882
        %2615 = vrot.lane.b32.xlu0 %v2607, 104
        %v2616 = vpop.permute.xlu0 %2615
        %2617 = vrot.lane.b32.xlu0 %v2608, 104
        %v2618 = vpop.permute.xlu0 %2617
        %2619 = vrot.lane.b32.xlu0 %v2609, 104
        %v2620 = vpop.permute.xlu0 %2619
        %2621 = vrot.lane.b32.xlu0 %v2610, 104
        %v2622 = vpop.permute.xlu0 %2621
        %v2623 = vsel %vm2550, %v2616, %v2618
        %v2624 = vsel %vm2550, %v2620, %v2622
        %v2627 = vadd.f32 %v2530, %v2623
        %v2628 = vadd.f32 %v2531, %v2624
        %s2629 = sld [smem:[#allocation6 + $0x19]]
        %v2630 = vstv %s2629
        %v2631 = vmul.f32 %v2630, %v879
        %v2632 = vmul.f32 %v2630, %v880
        %v2633 = vmul.f32 %v2630, %v881
        %v2634 = vmul.f32 %v2630, %v882
        %2639 = vrot.lane.b32.xlu0 %v2631, 103
        %v2640 = vpop.permute.xlu0 %2639
        %2641 = vrot.lane.b32.xlu0 %v2632, 103
        %v2642 = vpop.permute.xlu0 %2641
        %2643 = vrot.lane.b32.xlu0 %v2633, 103
        %v2644 = vpop.permute.xlu0 %2643
        %2645 = vrot.lane.b32.xlu0 %v2634, 103
        %v2646 = vpop.permute.xlu0 %2645
        %vm2647 = vcmask 842752
        %v2648 = vsel %vm2647, %v2640, %v2642
        %v2649 = vsel %vm2647, %v2644, %v2646
        %v2652 = vadd.f32 %v2555, %v2648
        %v2653 = vadd.f32 %v2556, %v2649
        %s2654 = sld [smem:[#allocation6 + $0x59]]
        %v2655 = vstv %s2654
        %v2656 = vmul.f32 %v2655, %v879
        %v2657 = vmul.f32 %v2655, %v880
        %v2658 = vmul.f32 %v2655, %v881
        %v2659 = vmul.f32 %v2655, %v882
        %2664 = vrot.lane.b32.xlu0 %v2656, 103
        %v2665 = vpop.permute.xlu0 %2664
        %2666 = vrot.lane.b32.xlu0 %v2657, 103
        %v2667 = vpop.permute.xlu0 %2666
        %2668 = vrot.lane.b32.xlu0 %v2658, 103
        %v2669 = vpop.permute.xlu0 %2668
        %2670 = vrot.lane.b32.xlu0 %v2659, 103
        %v2671 = vpop.permute.xlu0 %2670
        %v2672 = vsel %vm2647, %v2665, %v2667
        %v2673 = vsel %vm2647, %v2669, %v2671
        %v2676 = vadd.f32 %v2579, %v2672
        %v2677 = vadd.f32 %v2580, %v2673
        %s2678 = sld [smem:[#allocation6 + $0x99]]
        %v2679 = vstv %s2678
        %v2680 = vmul.f32 %v2679, %v879
        %v2681 = vmul.f32 %v2679, %v880
        %v2682 = vmul.f32 %v2679, %v881
        %v2683 = vmul.f32 %v2679, %v882
        %2688 = vrot.lane.b32.xlu0 %v2680, 103
        %v2689 = vpop.permute.xlu0 %2688
        %2690 = vrot.lane.b32.xlu0 %v2681, 103
        %v2691 = vpop.permute.xlu0 %2690
        %2692 = vrot.lane.b32.xlu0 %v2682, 103
        %v2693 = vpop.permute.xlu0 %2692
        %2694 = vrot.lane.b32.xlu0 %v2683, 103
        %v2695 = vpop.permute.xlu0 %2694
        %v2696 = vsel %vm2647, %v2689, %v2691
        %v2697 = vsel %vm2647, %v2693, %v2695
        %v2700 = vadd.f32 %v2603, %v2696
        %v2701 = vadd.f32 %v2604, %v2697
        %s2702 = sld [smem:[#allocation6 + $0xd9]]
        %v2703 = vstv %s2702
        %v2704 = vmul.f32 %v2703, %v879
        %v2705 = vmul.f32 %v2703, %v880
        %v2706 = vmul.f32 %v2703, %v881
        %v2707 = vmul.f32 %v2703, %v882
        %2712 = vrot.lane.b32.xlu0 %v2704, 103
        %v2713 = vpop.permute.xlu0 %2712
        %2714 = vrot.lane.b32.xlu0 %v2705, 103
        %v2715 = vpop.permute.xlu0 %2714
        %2716 = vrot.lane.b32.xlu0 %v2706, 103
        %v2717 = vpop.permute.xlu0 %2716
        %2718 = vrot.lane.b32.xlu0 %v2707, 103
        %v2719 = vpop.permute.xlu0 %2718
        %v2720 = vsel %vm2647, %v2713, %v2715
        %v2721 = vsel %vm2647, %v2717, %v2719
        %v2724 = vadd.f32 %v2627, %v2720
        %v2725 = vadd.f32 %v2628, %v2721
        %s2726 = sld [smem:[#allocation6 + $0x1a]]
        %v2727 = vstv %s2726
        %v2728 = vmul.f32 %v2727, %v879
        %v2729 = vmul.f32 %v2727, %v880
        %v2730 = vmul.f32 %v2727, %v881
        %v2731 = vmul.f32 %v2727, %v882
        %2736 = vrot.lane.b32.xlu0 %v2728, 102
        %v2737 = vpop.permute.xlu0 %2736
        %2738 = vrot.lane.b32.xlu0 %v2729, 102
        %v2739 = vpop.permute.xlu0 %2738
        %2740 = vrot.lane.b32.xlu0 %v2730, 102
        %v2741 = vpop.permute.xlu0 %2740
        %2742 = vrot.lane.b32.xlu0 %v2731, 102
        %v2743 = vpop.permute.xlu0 %2742
        %vm2744 = vcmask 834560
        %v2745 = vsel %vm2744, %v2737, %v2739
        %v2746 = vsel %vm2744, %v2741, %v2743
        %v2749 = vadd.f32 %v2652, %v2745
        %v2750 = vadd.f32 %v2653, %v2746
        %s2751 = sld [smem:[#allocation6 + $0x5a]]
        %v2752 = vstv %s2751
        %v2753 = vmul.f32 %v2752, %v879
        %v2754 = vmul.f32 %v2752, %v880
        %v2755 = vmul.f32 %v2752, %v881
        %v2756 = vmul.f32 %v2752, %v882
        %2761 = vrot.lane.b32.xlu0 %v2753, 102
        %v2762 = vpop.permute.xlu0 %2761
        %2763 = vrot.lane.b32.xlu0 %v2754, 102
        %v2764 = vpop.permute.xlu0 %2763
        %2765 = vrot.lane.b32.xlu0 %v2755, 102
        %v2766 = vpop.permute.xlu0 %2765
        %2767 = vrot.lane.b32.xlu0 %v2756, 102
        %v2768 = vpop.permute.xlu0 %2767
        %v2769 = vsel %vm2744, %v2762, %v2764
        %v2770 = vsel %vm2744, %v2766, %v2768
        %v2773 = vadd.f32 %v2676, %v2769
        %v2774 = vadd.f32 %v2677, %v2770
        %s2775 = sld [smem:[#allocation6 + $0x9a]]
        %v2776 = vstv %s2775
        %v2777 = vmul.f32 %v2776, %v879
        %v2778 = vmul.f32 %v2776, %v880
        %v2779 = vmul.f32 %v2776, %v881
        %v2780 = vmul.f32 %v2776, %v882
        %2785 = vrot.lane.b32.xlu0 %v2777, 102
        %v2786 = vpop.permute.xlu0 %2785
        %2787 = vrot.lane.b32.xlu0 %v2778, 102
        %v2788 = vpop.permute.xlu0 %2787
        %2789 = vrot.lane.b32.xlu0 %v2779, 102
        %v2790 = vpop.permute.xlu0 %2789
        %2791 = vrot.lane.b32.xlu0 %v2780, 102
        %v2792 = vpop.permute.xlu0 %2791
        %v2793 = vsel %vm2744, %v2786, %v2788
        %v2794 = vsel %vm2744, %v2790, %v2792
        %v2797 = vadd.f32 %v2700, %v2793
        %v2798 = vadd.f32 %v2701, %v2794
        %s2799 = sld [smem:[#allocation6 + $0xda]]
        %v2800 = vstv %s2799
        %v2801 = vmul.f32 %v2800, %v879
        %v2802 = vmul.f32 %v2800, %v880
        %v2803 = vmul.f32 %v2800, %v881
        %v2804 = vmul.f32 %v2800, %v882
        %2809 = vrot.lane.b32.xlu0 %v2801, 102
        %v2810 = vpop.permute.xlu0 %2809
        %2811 = vrot.lane.b32.xlu0 %v2802, 102
        %v2812 = vpop.permute.xlu0 %2811
        %2813 = vrot.lane.b32.xlu0 %v2803, 102
        %v2814 = vpop.permute.xlu0 %2813
        %2815 = vrot.lane.b32.xlu0 %v2804, 102
        %v2816 = vpop.permute.xlu0 %2815
        %v2817 = vsel %vm2744, %v2810, %v2812
        %v2818 = vsel %vm2744, %v2814, %v2816
        %v2821 = vadd.f32 %v2724, %v2817
        %v2822 = vadd.f32 %v2725, %v2818
        %s2823 = sld [smem:[#allocation6 + $0x1b]]
        %v2824 = vstv %s2823
        %v2825 = vmul.f32 %v2824, %v879
        %v2826 = vmul.f32 %v2824, %v880
        %v2827 = vmul.f32 %v2824, %v881
        %v2828 = vmul.f32 %v2824, %v882
        %2833 = vrot.lane.b32.xlu0 %v2825, 101
        %v2834 = vpop.permute.xlu0 %2833
        %2835 = vrot.lane.b32.xlu0 %v2826, 101
        %v2836 = vpop.permute.xlu0 %2835
        %2837 = vrot.lane.b32.xlu0 %v2827, 101
        %v2838 = vpop.permute.xlu0 %2837
        %2839 = vrot.lane.b32.xlu0 %v2828, 101
        %v2840 = vpop.permute.xlu0 %2839
        %vm2841 = vcmask 826368
        %v2842 = vsel %vm2841, %v2834, %v2836
        %v2843 = vsel %vm2841, %v2838, %v2840
        %v2846 = vadd.f32 %v2749, %v2842
        %v2847 = vadd.f32 %v2750, %v2843
        %s2848 = sld [smem:[#allocation6 + $0x5b]]
        %v2849 = vstv %s2848
        %v2850 = vmul.f32 %v2849, %v879
        %v2851 = vmul.f32 %v2849, %v880
        %v2852 = vmul.f32 %v2849, %v881
        %v2853 = vmul.f32 %v2849, %v882
        %2858 = vrot.lane.b32.xlu0 %v2850, 101
        %v2859 = vpop.permute.xlu0 %2858
        %2860 = vrot.lane.b32.xlu0 %v2851, 101
        %v2861 = vpop.permute.xlu0 %2860
        %2862 = vrot.lane.b32.xlu0 %v2852, 101
        %v2863 = vpop.permute.xlu0 %2862
        %2864 = vrot.lane.b32.xlu0 %v2853, 101
        %v2865 = vpop.permute.xlu0 %2864
        %v2866 = vsel %vm2841, %v2859, %v2861
        %v2867 = vsel %vm2841, %v2863, %v2865
        %v2870 = vadd.f32 %v2773, %v2866
        %v2871 = vadd.f32 %v2774, %v2867
        %s2872 = sld [smem:[#allocation6 + $0x9b]]
        %v2873 = vstv %s2872
        %v2874 = vmul.f32 %v2873, %v879
        %v2875 = vmul.f32 %v2873, %v880
        %v2876 = vmul.f32 %v2873, %v881
        %v2877 = vmul.f32 %v2873, %v882
        %2882 = vrot.lane.b32.xlu0 %v2874, 101
        %v2883 = vpop.permute.xlu0 %2882
        %2884 = vrot.lane.b32.xlu0 %v2875, 101
        %v2885 = vpop.permute.xlu0 %2884
        %2886 = vrot.lane.b32.xlu0 %v2876, 101
        %v2887 = vpop.permute.xlu0 %2886
        %2888 = vrot.lane.b32.xlu0 %v2877, 101
        %v2889 = vpop.permute.xlu0 %2888
        %v2890 = vsel %vm2841, %v2883, %v2885
        %v2891 = vsel %vm2841, %v2887, %v2889
        %v2894 = vadd.f32 %v2797, %v2890
        %v2895 = vadd.f32 %v2798, %v2891
        %s2896 = sld [smem:[#allocation6 + $0xdb]]
        %v2897 = vstv %s2896
        %v2898 = vmul.f32 %v2897, %v879
        %v2899 = vmul.f32 %v2897, %v880
        %v2900 = vmul.f32 %v2897, %v881
        %v2901 = vmul.f32 %v2897, %v882
        %2906 = vrot.lane.b32.xlu0 %v2898, 101
        %v2907 = vpop.permute.xlu0 %2906
        %2908 = vrot.lane.b32.xlu0 %v2899, 101
        %v2909 = vpop.permute.xlu0 %2908
        %2910 = vrot.lane.b32.xlu0 %v2900, 101
        %v2911 = vpop.permute.xlu0 %2910
        %2912 = vrot.lane.b32.xlu0 %v2901, 101
        %v2913 = vpop.permute.xlu0 %2912
        %v2914 = vsel %vm2841, %v2907, %v2909
        %v2915 = vsel %vm2841, %v2911, %v2913
        %v2918 = vadd.f32 %v2821, %v2914
        %v2919 = vadd.f32 %v2822, %v2915
        %s2920 = sld [smem:[#allocation6 + $0x1c]]
        %v2921 = vstv %s2920
        %v2922 = vmul.f32 %v2921, %v879
        %v2923 = vmul.f32 %v2921, %v880
        %v2924 = vmul.f32 %v2921, %v881
        %v2925 = vmul.f32 %v2921, %v882
        %2930 = vrot.lane.b32.xlu0 %v2922, 100
        %v2931 = vpop.permute.xlu0 %2930
        %2932 = vrot.lane.b32.xlu0 %v2923, 100
        %v2933 = vpop.permute.xlu0 %2932
        %2934 = vrot.lane.b32.xlu0 %v2924, 100
        %v2935 = vpop.permute.xlu0 %2934
        %2936 = vrot.lane.b32.xlu0 %v2925, 100
        %v2937 = vpop.permute.xlu0 %2936
        %vm2938 = vcmask 818176
        %v2939 = vsel %vm2938, %v2931, %v2933
        %v2940 = vsel %vm2938, %v2935, %v2937
        %v2943 = vadd.f32 %v2846, %v2939
        %v2944 = vadd.f32 %v2847, %v2940
        %s2945 = sld [smem:[#allocation6 + $0x5c]]
        %v2946 = vstv %s2945
        %v2947 = vmul.f32 %v2946, %v879
        %v2948 = vmul.f32 %v2946, %v880
        %v2949 = vmul.f32 %v2946, %v881
        %v2950 = vmul.f32 %v2946, %v882
        %2955 = vrot.lane.b32.xlu0 %v2947, 100
        %v2956 = vpop.permute.xlu0 %2955
        %2957 = vrot.lane.b32.xlu0 %v2948, 100
        %v2958 = vpop.permute.xlu0 %2957
        %2959 = vrot.lane.b32.xlu0 %v2949, 100
        %v2960 = vpop.permute.xlu0 %2959
        %2961 = vrot.lane.b32.xlu0 %v2950, 100
        %v2962 = vpop.permute.xlu0 %2961
        %v2963 = vsel %vm2938, %v2956, %v2958
        %v2964 = vsel %vm2938, %v2960, %v2962
        %v2967 = vadd.f32 %v2870, %v2963
        %v2968 = vadd.f32 %v2871, %v2964
        %s2969 = sld [smem:[#allocation6 + $0x9c]]
        %v2970 = vstv %s2969
        %v2971 = vmul.f32 %v2970, %v879
        %v2972 = vmul.f32 %v2970, %v880
        %v2973 = vmul.f32 %v2970, %v881
        %v2974 = vmul.f32 %v2970, %v882
        %2979 = vrot.lane.b32.xlu0 %v2971, 100
        %v2980 = vpop.permute.xlu0 %2979
        %2981 = vrot.lane.b32.xlu0 %v2972, 100
        %v2982 = vpop.permute.xlu0 %2981
        %2983 = vrot.lane.b32.xlu0 %v2973, 100
        %v2984 = vpop.permute.xlu0 %2983
        %2985 = vrot.lane.b32.xlu0 %v2974, 100
        %v2986 = vpop.permute.xlu0 %2985
        %v2987 = vsel %vm2938, %v2980, %v2982
        %v2988 = vsel %vm2938, %v2984, %v2986
        %v2991 = vadd.f32 %v2894, %v2987
        %v2992 = vadd.f32 %v2895, %v2988
        %s2993 = sld [smem:[#allocation6 + $0xdc]]
        %v2994 = vstv %s2993
        %v2995 = vmul.f32 %v2994, %v879
        %v2996 = vmul.f32 %v2994, %v880
        %v2997 = vmul.f32 %v2994, %v881
        %v2998 = vmul.f32 %v2994, %v882
        %3003 = vrot.lane.b32.xlu0 %v2995, 100
        %v3004 = vpop.permute.xlu0 %3003
        %3005 = vrot.lane.b32.xlu0 %v2996, 100
        %v3006 = vpop.permute.xlu0 %3005
        %3007 = vrot.lane.b32.xlu0 %v2997, 100
        %v3008 = vpop.permute.xlu0 %3007
        %3009 = vrot.lane.b32.xlu0 %v2998, 100
        %v3010 = vpop.permute.xlu0 %3009
        %v3011 = vsel %vm2938, %v3004, %v3006
        %v3012 = vsel %vm2938, %v3008, %v3010
        %v3015 = vadd.f32 %v2918, %v3011
        %v3016 = vadd.f32 %v2919, %v3012
        %s3017 = sld [smem:[#allocation6 + $0x1d]]
        %v3018 = vstv %s3017
        %v3019 = vmul.f32 %v3018, %v879
        %v3020 = vmul.f32 %v3018, %v880
        %v3021 = vmul.f32 %v3018, %v881
        %v3022 = vmul.f32 %v3018, %v882
        %3027 = vrot.lane.b32.xlu0 %v3019, 99
        %v3028 = vpop.permute.xlu0 %3027
        %3029 = vrot.lane.b32.xlu0 %v3020, 99
        %v3030 = vpop.permute.xlu0 %3029
        %3031 = vrot.lane.b32.xlu0 %v3021, 99
        %v3032 = vpop.permute.xlu0 %3031
        %3033 = vrot.lane.b32.xlu0 %v3022, 99
        %v3034 = vpop.permute.xlu0 %3033
        %vm3035 = vcmask 809984
        %v3036 = vsel %vm3035, %v3028, %v3030
        %v3037 = vsel %vm3035, %v3032, %v3034
        %v3040 = vadd.f32 %v2943, %v3036
        %v3041 = vadd.f32 %v2944, %v3037
        %s3042 = sld [smem:[#allocation6 + $0x5d]]
        %v3043 = vstv %s3042
        %v3044 = vmul.f32 %v3043, %v879
        %v3045 = vmul.f32 %v3043, %v880
        %v3046 = vmul.f32 %v3043, %v881
        %v3047 = vmul.f32 %v3043, %v882
        %3052 = vrot.lane.b32.xlu0 %v3044, 99
        %v3053 = vpop.permute.xlu0 %3052
        %3054 = vrot.lane.b32.xlu0 %v3045, 99
        %v3055 = vpop.permute.xlu0 %3054
        %3056 = vrot.lane.b32.xlu0 %v3046, 99
        %v3057 = vpop.permute.xlu0 %3056
        %3058 = vrot.lane.b32.xlu0 %v3047, 99
        %v3059 = vpop.permute.xlu0 %3058
        %v3060 = vsel %vm3035, %v3053, %v3055
        %v3061 = vsel %vm3035, %v3057, %v3059
        %v3064 = vadd.f32 %v2967, %v3060
        %v3065 = vadd.f32 %v2968, %v3061
        %s3066 = sld [smem:[#allocation6 + $0x9d]]
        %v3067 = vstv %s3066
        %v3068 = vmul.f32 %v3067, %v879
        %v3069 = vmul.f32 %v3067, %v880
        %v3070 = vmul.f32 %v3067, %v881
        %v3071 = vmul.f32 %v3067, %v882
        %3076 = vrot.lane.b32.xlu0 %v3068, 99
        %v3077 = vpop.permute.xlu0 %3076
        %3078 = vrot.lane.b32.xlu0 %v3069, 99
        %v3079 = vpop.permute.xlu0 %3078
        %3080 = vrot.lane.b32.xlu0 %v3070, 99
        %v3081 = vpop.permute.xlu0 %3080
        %3082 = vrot.lane.b32.xlu0 %v3071, 99
        %v3083 = vpop.permute.xlu0 %3082
        %v3084 = vsel %vm3035, %v3077, %v3079
        %v3085 = vsel %vm3035, %v3081, %v3083
        %v3088 = vadd.f32 %v2991, %v3084
        %v3089 = vadd.f32 %v2992, %v3085
        %s3090 = sld [smem:[#allocation6 + $0xdd]]
        %v3091 = vstv %s3090
        %v3092 = vmul.f32 %v3091, %v879
        %v3093 = vmul.f32 %v3091, %v880
        %v3094 = vmul.f32 %v3091, %v881
        %v3095 = vmul.f32 %v3091, %v882
        %3100 = vrot.lane.b32.xlu0 %v3092, 99
        %v3101 = vpop.permute.xlu0 %3100
        %3102 = vrot.lane.b32.xlu0 %v3093, 99
        %v3103 = vpop.permute.xlu0 %3102
        %3104 = vrot.lane.b32.xlu0 %v3094, 99
        %v3105 = vpop.permute.xlu0 %3104
        %3106 = vrot.lane.b32.xlu0 %v3095, 99
        %v3107 = vpop.permute.xlu0 %3106
        %v3108 = vsel %vm3035, %v3101, %v3103
        %v3109 = vsel %vm3035, %v3105, %v3107
        %v3112 = vadd.f32 %v3015, %v3108
        %v3113 = vadd.f32 %v3016, %v3109
        %s3114 = sld [smem:[#allocation6 + $0x1e]]
        %v3115 = vstv %s3114
        %v3116 = vmul.f32 %v3115, %v879
        %v3117 = vmul.f32 %v3115, %v880
        %v3118 = vmul.f32 %v3115, %v881
        %v3119 = vmul.f32 %v3115, %v882
        %3124 = vrot.lane.b32.xlu0 %v3116, 98
        %v3125 = vpop.permute.xlu0 %3124
        %3126 = vrot.lane.b32.xlu0 %v3117, 98
        %v3127 = vpop.permute.xlu0 %3126
        %3128 = vrot.lane.b32.xlu0 %v3118, 98
        %v3129 = vpop.permute.xlu0 %3128
        %3130 = vrot.lane.b32.xlu0 %v3119, 98
        %v3131 = vpop.permute.xlu0 %3130
        %vm3132 = vcmask 801792
        %v3133 = vsel %vm3132, %v3125, %v3127
        %v3134 = vsel %vm3132, %v3129, %v3131
        %v3137 = vadd.f32 %v3040, %v3133
        %v3138 = vadd.f32 %v3041, %v3134
        %s3139 = sld [smem:[#allocation6 + $0x5e]]
        %v3140 = vstv %s3139
        %v3141 = vmul.f32 %v3140, %v879
        %v3142 = vmul.f32 %v3140, %v880
        %v3143 = vmul.f32 %v3140, %v881
        %v3144 = vmul.f32 %v3140, %v882
        %3149 = vrot.lane.b32.xlu0 %v3141, 98
        %v3150 = vpop.permute.xlu0 %3149
        %3151 = vrot.lane.b32.xlu0 %v3142, 98
        %v3152 = vpop.permute.xlu0 %3151
        %3153 = vrot.lane.b32.xlu0 %v3143, 98
        %v3154 = vpop.permute.xlu0 %3153
        %3155 = vrot.lane.b32.xlu0 %v3144, 98
        %v3156 = vpop.permute.xlu0 %3155
        %v3157 = vsel %vm3132, %v3150, %v3152
        %v3158 = vsel %vm3132, %v3154, %v3156
        %v3161 = vadd.f32 %v3064, %v3157
        %v3162 = vadd.f32 %v3065, %v3158
        %s3163 = sld [smem:[#allocation6 + $0x9e]]
        %v3164 = vstv %s3163
        %v3165 = vmul.f32 %v3164, %v879
        %v3166 = vmul.f32 %v3164, %v880
        %v3167 = vmul.f32 %v3164, %v881
        %v3168 = vmul.f32 %v3164, %v882
        %3173 = vrot.lane.b32.xlu0 %v3165, 98
        %v3174 = vpop.permute.xlu0 %3173
        %3175 = vrot.lane.b32.xlu0 %v3166, 98
        %v3176 = vpop.permute.xlu0 %3175
        %3177 = vrot.lane.b32.xlu0 %v3167, 98
        %v3178 = vpop.permute.xlu0 %3177
        %3179 = vrot.lane.b32.xlu0 %v3168, 98
        %v3180 = vpop.permute.xlu0 %3179
        %v3181 = vsel %vm3132, %v3174, %v3176
        %v3182 = vsel %vm3132, %v3178, %v3180
        %v3185 = vadd.f32 %v3088, %v3181
        %v3186 = vadd.f32 %v3089, %v3182
        %s3187 = sld [smem:[#allocation6 + $0xde]]
        %v3188 = vstv %s3187
        %v3189 = vmul.f32 %v3188, %v879
        %v3190 = vmul.f32 %v3188, %v880
        %v3191 = vmul.f32 %v3188, %v881
        %v3192 = vmul.f32 %v3188, %v882
        %3197 = vrot.lane.b32.xlu0 %v3189, 98
        %v3198 = vpop.permute.xlu0 %3197
        %3199 = vrot.lane.b32.xlu0 %v3190, 98
        %v3200 = vpop.permute.xlu0 %3199
        %3201 = vrot.lane.b32.xlu0 %v3191, 98
        %v3202 = vpop.permute.xlu0 %3201
        %3203 = vrot.lane.b32.xlu0 %v3192, 98
        %v3204 = vpop.permute.xlu0 %3203
        %v3205 = vsel %vm3132, %v3198, %v3200
        %v3206 = vsel %vm3132, %v3202, %v3204
        %v3209 = vadd.f32 %v3112, %v3205
        %v3210 = vadd.f32 %v3113, %v3206
        %s3211 = sld [smem:[#allocation6 + $0x1f]]
        %v3212 = vstv %s3211
        %v3213 = vmul.f32 %v3212, %v879
        %v3214 = vmul.f32 %v3212, %v880
        %v3215 = vmul.f32 %v3212, %v881
        %v3216 = vmul.f32 %v3212, %v882
        %3221 = vrot.lane.b32.xlu0 %v3213, 97
        %v3222 = vpop.permute.xlu0 %3221
        %3223 = vrot.lane.b32.xlu0 %v3214, 97
        %v3224 = vpop.permute.xlu0 %3223
        %3225 = vrot.lane.b32.xlu0 %v3215, 97
        %v3226 = vpop.permute.xlu0 %3225
        %3227 = vrot.lane.b32.xlu0 %v3216, 97
        %v3228 = vpop.permute.xlu0 %3227
        %vm3229 = vcmask 793600
        %v3230 = vsel %vm3229, %v3222, %v3224
        %v3231 = vsel %vm3229, %v3226, %v3228
        %v3234 = vadd.f32 %v3137, %v3230
        %v3235 = vadd.f32 %v3138, %v3231
        %s3236 = sld [smem:[#allocation6 + $0x5f]]
        %v3237 = vstv %s3236
        %v3238 = vmul.f32 %v3237, %v879
        %v3239 = vmul.f32 %v3237, %v880
        %v3240 = vmul.f32 %v3237, %v881
        %v3241 = vmul.f32 %v3237, %v882
        %3246 = vrot.lane.b32.xlu0 %v3238, 97
        %v3247 = vpop.permute.xlu0 %3246
        %3248 = vrot.lane.b32.xlu0 %v3239, 97
        %v3249 = vpop.permute.xlu0 %3248
        %3250 = vrot.lane.b32.xlu0 %v3240, 97
        %v3251 = vpop.permute.xlu0 %3250
        %3252 = vrot.lane.b32.xlu0 %v3241, 97
        %v3253 = vpop.permute.xlu0 %3252
        %v3254 = vsel %vm3229, %v3247, %v3249
        %v3255 = vsel %vm3229, %v3251, %v3253
        %v3258 = vadd.f32 %v3161, %v3254
        %v3259 = vadd.f32 %v3162, %v3255
        %s3260 = sld [smem:[#allocation6 + $0x9f]]
        %v3261 = vstv %s3260
        %v3262 = vmul.f32 %v3261, %v879
        %v3263 = vmul.f32 %v3261, %v880
        %v3264 = vmul.f32 %v3261, %v881
        %v3265 = vmul.f32 %v3261, %v882
        %3270 = vrot.lane.b32.xlu0 %v3262, 97
        %v3271 = vpop.permute.xlu0 %3270
        %3272 = vrot.lane.b32.xlu0 %v3263, 97
        %v3273 = vpop.permute.xlu0 %3272
        %3274 = vrot.lane.b32.xlu0 %v3264, 97
        %v3275 = vpop.permute.xlu0 %3274
        %3276 = vrot.lane.b32.xlu0 %v3265, 97
        %v3277 = vpop.permute.xlu0 %3276
        %v3278 = vsel %vm3229, %v3271, %v3273
        %v3279 = vsel %vm3229, %v3275, %v3277
        %v3282 = vadd.f32 %v3185, %v3278
        %v3283 = vadd.f32 %v3186, %v3279
        %s3284 = sld [smem:[#allocation6 + $0xdf]]
        %v3285 = vstv %s3284
        %v3286 = vmul.f32 %v3285, %v879
        %v3287 = vmul.f32 %v3285, %v880
        %v3288 = vmul.f32 %v3285, %v881
        %v3289 = vmul.f32 %v3285, %v882
        %3294 = vrot.lane.b32.xlu0 %v3286, 97
        %v3295 = vpop.permute.xlu0 %3294
        %3296 = vrot.lane.b32.xlu0 %v3287, 97
        %v3297 = vpop.permute.xlu0 %3296
        %3298 = vrot.lane.b32.xlu0 %v3288, 97
        %v3299 = vpop.permute.xlu0 %3298
        %3300 = vrot.lane.b32.xlu0 %v3289, 97
        %v3301 = vpop.permute.xlu0 %3300
        %v3302 = vsel %vm3229, %v3295, %v3297
        %v3303 = vsel %vm3229, %v3299, %v3301
        %v3306 = vadd.f32 %v3209, %v3302
        %v3307 = vadd.f32 %v3210, %v3303
        %v3308 = vld [vmem:[#allocation2] sm:$0xfe]
        %v3309 = vld [vmem:[#allocation2 + $0x10] sm:$0xff]
        %v3310 = vld [vmem:[#allocation2 + $0x20] sm:$0x1]
        %s3311 = sld [smem:[#allocation6 + $0x20]]
        %v3312 = vstv %s3311
        %v3313 = vmul.f32 %v3312, %v3308
        %v3314 = vmul.f32 %v3312, %v3309
        %v3315 = vmul.f32 %v3312, %v3310
        %vm3319 = vcmask 1046528
        %v3320 = vrot.slane %v3313, 1
        %v3321 = vrot.slane %v3314, 1
        %v3322 = vsel %vm3319, %v3320, %v3321
        %v3323 = vrot.slane %v3315, 1
        %v3324 = vsel %vm3319, %v3321, %v3323
        %v3327 = vadd.f32 %v3234, %v3322
        %v3328 = vadd.f32 %v3235, %v3324
        %s3329 = sld [smem:[#allocation6 + $0x60]]
        %v3330 = vstv %s3329
        %v3331 = vmul.f32 %v3330, %v3308
        %v3332 = vmul.f32 %v3330, %v3309
        %v3333 = vmul.f32 %v3330, %v3310
        %v3337 = vrot.slane %v3331, 1
        %v3338 = vrot.slane %v3332, 1
        %v3339 = vsel %vm3319, %v3337, %v3338
        %v3340 = vrot.slane %v3333, 1
        %v3341 = vsel %vm3319, %v3338, %v3340
        %v3344 = vadd.f32 %v3258, %v3339
        %v3345 = vadd.f32 %v3259, %v3341
        %s3346 = sld [smem:[#allocation6 + $0xa0]]
        %v3347 = vstv %s3346
        %v3348 = vmul.f32 %v3347, %v3308
        %v3349 = vmul.f32 %v3347, %v3309
        %v3350 = vmul.f32 %v3347, %v3310
        %v3354 = vrot.slane %v3348, 1
        %v3355 = vrot.slane %v3349, 1
        %v3356 = vsel %vm3319, %v3354, %v3355
        %v3357 = vrot.slane %v3350, 1
        %v3358 = vsel %vm3319, %v3355, %v3357
        %v3361 = vadd.f32 %v3282, %v3356
        %v3362 = vadd.f32 %v3283, %v3358
        %s3363 = sld [smem:[#allocation6 + $0xe0]]
        %v3364 = vstv %s3363
        %v3365 = vmul.f32 %v3364, %v3308
        %v3366 = vmul.f32 %v3364, %v3309
        %v3367 = vmul.f32 %v3364, %v3310
        %v3371 = vrot.slane %v3365, 1
        %v3372 = vrot.slane %v3366, 1
        %v3373 = vsel %vm3319, %v3371, %v3372
        %v3374 = vrot.slane %v3367, 1
        %v3375 = vsel %vm3319, %v3372, %v3374
        %v3378 = vadd.f32 %v3306, %v3373
        %v3379 = vadd.f32 %v3307, %v3375
        %s3380 = sld [smem:[#allocation6 + $0x21]]
        %v3381 = vstv %s3380
        %v3382 = vmul.f32 %v3381, %v3308
        %v3383 = vmul.f32 %v3381, %v3309
        %v3384 = vmul.f32 %v3381, %v3310
        %v3388 = vrot.slane %v3382, 1
        %v3389 = vrot.slane %v3383, 1
        %v3390 = vsel %vm3319, %v3388, %v3389
        %v3391 = vrot.slane %v3384, 1
        %v3392 = vsel %vm3319, %v3389, %v3391
        %3393 = vrot.lane.b32.xlu0 %v3390, 127
        %v3394 = vpop.permute.xlu0 %3393
        %3395 = vrot.lane.b32.xlu0 %v3392, 127
        %v3396 = vpop.permute.xlu0 %3395
        %v3399 = vadd.f32 %v3327, %v3394
        %v3400 = vadd.f32 %v3328, %v3396
        %s3401 = sld [smem:[#allocation6 + $0x61]]
        %v3402 = vstv %s3401
        %v3403 = vmul.f32 %v3402, %v3308
        %v3404 = vmul.f32 %v3402, %v3309
        %v3405 = vmul.f32 %v3402, %v3310
        %v3409 = vrot.slane %v3403, 1
        %v3410 = vrot.slane %v3404, 1
        %v3411 = vsel %vm3319, %v3409, %v3410
        %v3412 = vrot.slane %v3405, 1
        %v3413 = vsel %vm3319, %v3410, %v3412
        %3414 = vrot.lane.b32.xlu0 %v3411, 127
        %v3415 = vpop.permute.xlu0 %3414
        %3416 = vrot.lane.b32.xlu0 %v3413, 127
        %v3417 = vpop.permute.xlu0 %3416
        %v3420 = vadd.f32 %v3344, %v3415
        %v3421 = vadd.f32 %v3345, %v3417
        %s3422 = sld [smem:[#allocation6 + $0xa1]]
        %v3423 = vstv %s3422
        %v3424 = vmul.f32 %v3423, %v3308
        %v3425 = vmul.f32 %v3423, %v3309
        %v3426 = vmul.f32 %v3423, %v3310
        %v3430 = vrot.slane %v3424, 1
        %v3431 = vrot.slane %v3425, 1
        %v3432 = vsel %vm3319, %v3430, %v3431
        %v3433 = vrot.slane %v3426, 1
        %v3434 = vsel %vm3319, %v3431, %v3433
        %3435 = vrot.lane.b32.xlu0 %v3432, 127
        %v3436 = vpop.permute.xlu0 %3435
        %3437 = vrot.lane.b32.xlu0 %v3434, 127
        %v3438 = vpop.permute.xlu0 %3437
        %v3441 = vadd.f32 %v3361, %v3436
        %v3442 = vadd.f32 %v3362, %v3438
        %s3443 = sld [smem:[#allocation6 + $0xe1]]
        %v3444 = vstv %s3443
        %v3445 = vmul.f32 %v3444, %v3308
        %v3446 = vmul.f32 %v3444, %v3309
        %v3447 = vmul.f32 %v3444, %v3310
        %v3451 = vrot.slane %v3445, 1
        %v3452 = vrot.slane %v3446, 1
        %v3453 = vsel %vm3319, %v3451, %v3452
        %v3454 = vrot.slane %v3447, 1
        %v3455 = vsel %vm3319, %v3452, %v3454
        %3456 = vrot.lane.b32.xlu0 %v3453, 127
        %v3457 = vpop.permute.xlu0 %3456
        %3458 = vrot.lane.b32.xlu0 %v3455, 127
        %v3459 = vpop.permute.xlu0 %3458
        %v3462 = vadd.f32 %v3378, %v3457
        %v3463 = vadd.f32 %v3379, %v3459
        %s3464 = sld [smem:[#allocation6 + $0x22]]
        %v3465 = vstv %s3464
        %v3466 = vmul.f32 %v3465, %v3308
        %v3467 = vmul.f32 %v3465, %v3309
        %v3468 = vmul.f32 %v3465, %v3310
        %v3472 = vrot.slane %v3466, 1
        %v3473 = vrot.slane %v3467, 1
        %v3474 = vsel %vm3319, %v3472, %v3473
        %v3475 = vrot.slane %v3468, 1
        %v3476 = vsel %vm3319, %v3473, %v3475
        %3477 = vrot.lane.b32.xlu0 %v3474, 126
        %v3478 = vpop.permute.xlu0 %3477
        %3479 = vrot.lane.b32.xlu0 %v3476, 126
        %v3480 = vpop.permute.xlu0 %3479
        %v3483 = vadd.f32 %v3399, %v3478
        %v3484 = vadd.f32 %v3400, %v3480
        %s3485 = sld [smem:[#allocation6 + $0x62]]
        %v3486 = vstv %s3485
        %v3487 = vmul.f32 %v3486, %v3308
        %v3488 = vmul.f32 %v3486, %v3309
        %v3489 = vmul.f32 %v3486, %v3310
        %v3493 = vrot.slane %v3487, 1
        %v3494 = vrot.slane %v3488, 1
        %v3495 = vsel %vm3319, %v3493, %v3494
        %v3496 = vrot.slane %v3489, 1
        %v3497 = vsel %vm3319, %v3494, %v3496
        %3498 = vrot.lane.b32.xlu0 %v3495, 126
        %v3499 = vpop.permute.xlu0 %3498
        %3500 = vrot.lane.b32.xlu0 %v3497, 126
        %v3501 = vpop.permute.xlu0 %3500
        %v3504 = vadd.f32 %v3420, %v3499
        %v3505 = vadd.f32 %v3421, %v3501
        %s3506 = sld [smem:[#allocation6 + $0xa2]]
        %v3507 = vstv %s3506
        %v3508 = vmul.f32 %v3507, %v3308
        %v3509 = vmul.f32 %v3507, %v3309
        %v3510 = vmul.f32 %v3507, %v3310
        %v3514 = vrot.slane %v3508, 1
        %v3515 = vrot.slane %v3509, 1
        %v3516 = vsel %vm3319, %v3514, %v3515
        %v3517 = vrot.slane %v3510, 1
        %v3518 = vsel %vm3319, %v3515, %v3517
        %3519 = vrot.lane.b32.xlu0 %v3516, 126
        %v3520 = vpop.permute.xlu0 %3519
        %3521 = vrot.lane.b32.xlu0 %v3518, 126
        %v3522 = vpop.permute.xlu0 %3521
        %v3525 = vadd.f32 %v3441, %v3520
        %v3526 = vadd.f32 %v3442, %v3522
        %s3527 = sld [smem:[#allocation6 + $0xe2]]
        %v3528 = vstv %s3527
        %v3529 = vmul.f32 %v3528, %v3308
        %v3530 = vmul.f32 %v3528, %v3309
        %v3531 = vmul.f32 %v3528, %v3310
        %v3535 = vrot.slane %v3529, 1
        %v3536 = vrot.slane %v3530, 1
        %v3537 = vsel %vm3319, %v3535, %v3536
        %v3538 = vrot.slane %v3531, 1
        %v3539 = vsel %vm3319, %v3536, %v3538
        %3540 = vrot.lane.b32.xlu0 %v3537, 126
        %v3541 = vpop.permute.xlu0 %3540
        %3542 = vrot.lane.b32.xlu0 %v3539, 126
        %v3543 = vpop.permute.xlu0 %3542
        %v3546 = vadd.f32 %v3462, %v3541
        %v3547 = vadd.f32 %v3463, %v3543
        %s3548 = sld [smem:[#allocation6 + $0x23]]
        %v3549 = vstv %s3548
        %v3550 = vmul.f32 %v3549, %v3308
        %v3551 = vmul.f32 %v3549, %v3309
        %v3552 = vmul.f32 %v3549, %v3310
        %v3556 = vrot.slane %v3550, 1
        %v3557 = vrot.slane %v3551, 1
        %v3558 = vsel %vm3319, %v3556, %v3557
        %v3559 = vrot.slane %v3552, 1
        %v3560 = vsel %vm3319, %v3557, %v3559
        %3561 = vrot.lane.b32.xlu0 %v3558, 125
        %v3562 = vpop.permute.xlu0 %3561
        %3563 = vrot.lane.b32.xlu0 %v3560, 125
        %v3564 = vpop.permute.xlu0 %3563
        %v3567 = vadd.f32 %v3483, %v3562
        %v3568 = vadd.f32 %v3484, %v3564
        %s3569 = sld [smem:[#allocation6 + $0x63]]
        %v3570 = vstv %s3569
        %v3571 = vmul.f32 %v3570, %v3308
        %v3572 = vmul.f32 %v3570, %v3309
        %v3573 = vmul.f32 %v3570, %v3310
        %v3577 = vrot.slane %v3571, 1
        %v3578 = vrot.slane %v3572, 1
        %v3579 = vsel %vm3319, %v3577, %v3578
        %v3580 = vrot.slane %v3573, 1
        %v3581 = vsel %vm3319, %v3578, %v3580
        %3582 = vrot.lane.b32.xlu0 %v3579, 125
        %v3583 = vpop.permute.xlu0 %3582
        %3584 = vrot.lane.b32.xlu0 %v3581, 125
        %v3585 = vpop.permute.xlu0 %3584
        %v3588 = vadd.f32 %v3504, %v3583
        %v3589 = vadd.f32 %v3505, %v3585
        %s3590 = sld [smem:[#allocation6 + $0xa3]]
        %v3591 = vstv %s3590
        %v3592 = vmul.f32 %v3591, %v3308
        %v3593 = vmul.f32 %v3591, %v3309
        %v3594 = vmul.f32 %v3591, %v3310
        %v3598 = vrot.slane %v3592, 1
        %v3599 = vrot.slane %v3593, 1
        %v3600 = vsel %vm3319, %v3598, %v3599
        %v3601 = vrot.slane %v3594, 1
        %v3602 = vsel %vm3319, %v3599, %v3601
        %3603 = vrot.lane.b32.xlu0 %v3600, 125
        %v3604 = vpop.permute.xlu0 %3603
        %3605 = vrot.lane.b32.xlu0 %v3602, 125
        %v3606 = vpop.permute.xlu0 %3605
        %v3609 = vadd.f32 %v3525, %v3604
        %v3610 = vadd.f32 %v3526, %v3606
        %s3611 = sld [smem:[#allocation6 + $0xe3]]
        %v3612 = vstv %s3611
        %v3613 = vmul.f32 %v3612, %v3308
        %v3614 = vmul.f32 %v3612, %v3309
        %v3615 = vmul.f32 %v3612, %v3310
        %v3619 = vrot.slane %v3613, 1
        %v3620 = vrot.slane %v3614, 1
        %v3621 = vsel %vm3319, %v3619, %v3620
        %v3622 = vrot.slane %v3615, 1
        %v3623 = vsel %vm3319, %v3620, %v3622
        %3624 = vrot.lane.b32.xlu0 %v3621, 125
        %v3625 = vpop.permute.xlu0 %3624
        %3626 = vrot.lane.b32.xlu0 %v3623, 125
        %v3627 = vpop.permute.xlu0 %3626
        %v3630 = vadd.f32 %v3546, %v3625
        %v3631 = vadd.f32 %v3547, %v3627
        %s3632 = sld [smem:[#allocation6 + $0x24]]
        %v3633 = vstv %s3632
        %v3634 = vmul.f32 %v3633, %v3308
        %v3635 = vmul.f32 %v3633, %v3309
        %v3636 = vmul.f32 %v3633, %v3310
        %v3640 = vrot.slane %v3634, 1
        %v3641 = vrot.slane %v3635, 1
        %v3642 = vsel %vm3319, %v3640, %v3641
        %v3643 = vrot.slane %v3636, 1
        %v3644 = vsel %vm3319, %v3641, %v3643
        %3645 = vrot.lane.b32.xlu0 %v3642, 124
        %v3646 = vpop.permute.xlu0 %3645
        %3647 = vrot.lane.b32.xlu0 %v3644, 124
        %v3648 = vpop.permute.xlu0 %3647
        %v3651 = vadd.f32 %v3567, %v3646
        %v3652 = vadd.f32 %v3568, %v3648
        %s3653 = sld [smem:[#allocation6 + $0x64]]
        %v3654 = vstv %s3653
        %v3655 = vmul.f32 %v3654, %v3308
        %v3656 = vmul.f32 %v3654, %v3309
        %v3657 = vmul.f32 %v3654, %v3310
        %v3661 = vrot.slane %v3655, 1
        %v3662 = vrot.slane %v3656, 1
        %v3663 = vsel %vm3319, %v3661, %v3662
        %v3664 = vrot.slane %v3657, 1
        %v3665 = vsel %vm3319, %v3662, %v3664
        %3666 = vrot.lane.b32.xlu0 %v3663, 124
        %v3667 = vpop.permute.xlu0 %3666
        %3668 = vrot.lane.b32.xlu0 %v3665, 124
        %v3669 = vpop.permute.xlu0 %3668
        %v3672 = vadd.f32 %v3588, %v3667
        %v3673 = vadd.f32 %v3589, %v3669
        %s3674 = sld [smem:[#allocation6 + $0xa4]]
        %v3675 = vstv %s3674
        %v3676 = vmul.f32 %v3675, %v3308
        %v3677 = vmul.f32 %v3675, %v3309
        %v3678 = vmul.f32 %v3675, %v3310
        %v3682 = vrot.slane %v3676, 1
        %v3683 = vrot.slane %v3677, 1
        %v3684 = vsel %vm3319, %v3682, %v3683
        %v3685 = vrot.slane %v3678, 1
        %v3686 = vsel %vm3319, %v3683, %v3685
        %3687 = vrot.lane.b32.xlu0 %v3684, 124
        %v3688 = vpop.permute.xlu0 %3687
        %3689 = vrot.lane.b32.xlu0 %v3686, 124
        %v3690 = vpop.permute.xlu0 %3689
        %v3693 = vadd.f32 %v3609, %v3688
        %v3694 = vadd.f32 %v3610, %v3690
        %s3695 = sld [smem:[#allocation6 + $0xe4]]
        %v3696 = vstv %s3695
        %v3697 = vmul.f32 %v3696, %v3308
        %v3698 = vmul.f32 %v3696, %v3309
        %v3699 = vmul.f32 %v3696, %v3310
        %v3703 = vrot.slane %v3697, 1
        %v3704 = vrot.slane %v3698, 1
        %v3705 = vsel %vm3319, %v3703, %v3704
        %v3706 = vrot.slane %v3699, 1
        %v3707 = vsel %vm3319, %v3704, %v3706
        %3708 = vrot.lane.b32.xlu0 %v3705, 124
        %v3709 = vpop.permute.xlu0 %3708
        %3710 = vrot.lane.b32.xlu0 %v3707, 124
        %v3711 = vpop.permute.xlu0 %3710
        %v3714 = vadd.f32 %v3630, %v3709
        %v3715 = vadd.f32 %v3631, %v3711
        %s3716 = sld [smem:[#allocation6 + $0x25]]
        %v3717 = vstv %s3716
        %v3718 = vmul.f32 %v3717, %v3308
        %v3719 = vmul.f32 %v3717, %v3309
        %v3720 = vmul.f32 %v3717, %v3310
        %v3724 = vrot.slane %v3718, 1
        %v3725 = vrot.slane %v3719, 1
        %v3726 = vsel %vm3319, %v3724, %v3725
        %v3727 = vrot.slane %v3720, 1
        %v3728 = vsel %vm3319, %v3725, %v3727
        %3729 = vrot.lane.b32.xlu0 %v3726, 123
        %v3730 = vpop.permute.xlu0 %3729
        %3731 = vrot.lane.b32.xlu0 %v3728, 123
        %v3732 = vpop.permute.xlu0 %3731
        %v3735 = vadd.f32 %v3651, %v3730
        %v3736 = vadd.f32 %v3652, %v3732
        %s3737 = sld [smem:[#allocation6 + $0x65]]
        %v3738 = vstv %s3737
        %v3739 = vmul.f32 %v3738, %v3308
        %v3740 = vmul.f32 %v3738, %v3309
        %v3741 = vmul.f32 %v3738, %v3310
        %v3745 = vrot.slane %v3739, 1
        %v3746 = vrot.slane %v3740, 1
        %v3747 = vsel %vm3319, %v3745, %v3746
        %v3748 = vrot.slane %v3741, 1
        %v3749 = vsel %vm3319, %v3746, %v3748
        %3750 = vrot.lane.b32.xlu0 %v3747, 123
        %v3751 = vpop.permute.xlu0 %3750
        %3752 = vrot.lane.b32.xlu0 %v3749, 123
        %v3753 = vpop.permute.xlu0 %3752
        %v3756 = vadd.f32 %v3672, %v3751
        %v3757 = vadd.f32 %v3673, %v3753
        %s3758 = sld [smem:[#allocation6 + $0xa5]]
        %v3759 = vstv %s3758
        %v3760 = vmul.f32 %v3759, %v3308
        %v3761 = vmul.f32 %v3759, %v3309
        %v3762 = vmul.f32 %v3759, %v3310
        %v3766 = vrot.slane %v3760, 1
        %v3767 = vrot.slane %v3761, 1
        %v3768 = vsel %vm3319, %v3766, %v3767
        %v3769 = vrot.slane %v3762, 1
        %v3770 = vsel %vm3319, %v3767, %v3769
        %3771 = vrot.lane.b32.xlu0 %v3768, 123
        %v3772 = vpop.permute.xlu0 %3771
        %3773 = vrot.lane.b32.xlu0 %v3770, 123
        %v3774 = vpop.permute.xlu0 %3773
        %v3777 = vadd.f32 %v3693, %v3772
        %v3778 = vadd.f32 %v3694, %v3774
        %s3779 = sld [smem:[#allocation6 + $0xe5]]
        %v3780 = vstv %s3779
        %v3781 = vmul.f32 %v3780, %v3308
        %v3782 = vmul.f32 %v3780, %v3309
        %v3783 = vmul.f32 %v3780, %v3310
        %v3787 = vrot.slane %v3781, 1
        %v3788 = vrot.slane %v3782, 1
        %v3789 = vsel %vm3319, %v3787, %v3788
        %v3790 = vrot.slane %v3783, 1
        %v3791 = vsel %vm3319, %v3788, %v3790
        %3792 = vrot.lane.b32.xlu0 %v3789, 123
        %v3793 = vpop.permute.xlu0 %3792
        %3794 = vrot.lane.b32.xlu0 %v3791, 123
        %v3795 = vpop.permute.xlu0 %3794
        %v3798 = vadd.f32 %v3714, %v3793
        %v3799 = vadd.f32 %v3715, %v3795
        %s3800 = sld [smem:[#allocation6 + $0x26]]
        %v3801 = vstv %s3800
        %v3802 = vmul.f32 %v3801, %v3308
        %v3803 = vmul.f32 %v3801, %v3309
        %v3804 = vmul.f32 %v3801, %v3310
        %v3808 = vrot.slane %v3802, 1
        %v3809 = vrot.slane %v3803, 1
        %v3810 = vsel %vm3319, %v3808, %v3809
        %v3811 = vrot.slane %v3804, 1
        %v3812 = vsel %vm3319, %v3809, %v3811
        %3813 = vrot.lane.b32.xlu0 %v3810, 122
        %v3814 = vpop.permute.xlu0 %3813
        %3815 = vrot.lane.b32.xlu0 %v3812, 122
        %v3816 = vpop.permute.xlu0 %3815
        %v3819 = vadd.f32 %v3735, %v3814
        %v3820 = vadd.f32 %v3736, %v3816
        %s3821 = sld [smem:[#allocation6 + $0x66]]
        %v3822 = vstv %s3821
        %v3823 = vmul.f32 %v3822, %v3308
        %v3824 = vmul.f32 %v3822, %v3309
        %v3825 = vmul.f32 %v3822, %v3310
        %v3829 = vrot.slane %v3823, 1
        %v3830 = vrot.slane %v3824, 1
        %v3831 = vsel %vm3319, %v3829, %v3830
        %v3832 = vrot.slane %v3825, 1
        %v3833 = vsel %vm3319, %v3830, %v3832
        %3834 = vrot.lane.b32.xlu0 %v3831, 122
        %v3835 = vpop.permute.xlu0 %3834
        %3836 = vrot.lane.b32.xlu0 %v3833, 122
        %v3837 = vpop.permute.xlu0 %3836
        %v3840 = vadd.f32 %v3756, %v3835
        %v3841 = vadd.f32 %v3757, %v3837
        %s3842 = sld [smem:[#allocation6 + $0xa6]]
        %v3843 = vstv %s3842
        %v3844 = vmul.f32 %v3843, %v3308
        %v3845 = vmul.f32 %v3843, %v3309
        %v3846 = vmul.f32 %v3843, %v3310
        %v3850 = vrot.slane %v3844, 1
        %v3851 = vrot.slane %v3845, 1
        %v3852 = vsel %vm3319, %v3850, %v3851
        %v3853 = vrot.slane %v3846, 1
        %v3854 = vsel %vm3319, %v3851, %v3853
        %3855 = vrot.lane.b32.xlu0 %v3852, 122
        %v3856 = vpop.permute.xlu0 %3855
        %3857 = vrot.lane.b32.xlu0 %v3854, 122
        %v3858 = vpop.permute.xlu0 %3857
        %v3861 = vadd.f32 %v3777, %v3856
        %v3862 = vadd.f32 %v3778, %v3858
        %s3863 = sld [smem:[#allocation6 + $0xe6]]
        %v3864 = vstv %s3863
        %v3865 = vmul.f32 %v3864, %v3308
        %v3866 = vmul.f32 %v3864, %v3309
        %v3867 = vmul.f32 %v3864, %v3310
        %v3871 = vrot.slane %v3865, 1
        %v3872 = vrot.slane %v3866, 1
        %v3873 = vsel %vm3319, %v3871, %v3872
        %v3874 = vrot.slane %v3867, 1
        %v3875 = vsel %vm3319, %v3872, %v3874
        %3876 = vrot.lane.b32.xlu0 %v3873, 122
        %v3877 = vpop.permute.xlu0 %3876
        %3878 = vrot.lane.b32.xlu0 %v3875, 122
        %v3879 = vpop.permute.xlu0 %3878
        %v3882 = vadd.f32 %v3798, %v3877
        %v3883 = vadd.f32 %v3799, %v3879
        %v3884 = vld [vmem:[#allocation2] sm:$0xfe]
        %v3885 = vld [vmem:[#allocation2 + $0x8] sm:$0xfe]
        %v3886 = vld [vmem:[#allocation2 + $0x10] sm:$0xff]
        %v3887 = vld [vmem:[#allocation2 + $0x18] sm:$0xff]
        %v3888 = vld [vmem:[#allocation2 + $0x20] sm:$0x1]
        %v3889 = vld [vmem:[#allocation2 + $0x28] sm:$0x1]
        %s3890 = sld [smem:[#allocation6 + $0x27]]
        %v3891 = vstv %s3890
        %v3892 = vmul.f32 %v3891, %v3884
        %v3893 = vmul.f32 %v3891, %v3885
        %v3894 = vmul.f32 %v3891, %v3886
        %v3895 = vmul.f32 %v3891, %v3887
        %v3896 = vmul.f32 %v3891, %v3888
        %v3897 = vmul.f32 %v3891, %v3889
        %v3904 = vrot.slane %v3892, 1
        %v3905 = vrot.slane %v3894, 1
        %v3906 = vsel %vm3319, %v3904, %v3905
        %v3907 = vrot.slane %v3893, 1
        %v3908 = vrot.slane %v3895, 1
        %v3909 = vsel %vm3319, %v3907, %v3908
        %v3910 = vrot.slane %v3896, 1
        %v3911 = vsel %vm3319, %v3905, %v3910
        %v3912 = vrot.slane %v3897, 1
        %v3913 = vsel %vm3319, %v3908, %v3912
        %3914 = vrot.lane.b32.xlu0 %v3906, 121
        %v3915 = vpop.permute.xlu0 %3914
        %3916 = vrot.lane.b32.xlu0 %v3909, 121
        %v3917 = vpop.permute.xlu0 %3916
        %3918 = vrot.lane.b32.xlu0 %v3911, 121
        %v3919 = vpop.permute.xlu0 %3918
        %3920 = vrot.lane.b32.xlu0 %v3913, 121
        %v3921 = vpop.permute.xlu0 %3920
        %v3922 = vsel %vm901, %v3915, %v3917
        %v3923 = vsel %vm901, %v3919, %v3921
        %v3926 = vadd.f32 %v3819, %v3922
        %v3927 = vadd.f32 %v3820, %v3923
        %s3928 = sld [smem:[#allocation6 + $0x67]]
        %v3929 = vstv %s3928
        %v3930 = vmul.f32 %v3929, %v3884
        %v3931 = vmul.f32 %v3929, %v3885
        %v3932 = vmul.f32 %v3929, %v3886
        %v3933 = vmul.f32 %v3929, %v3887
        %v3934 = vmul.f32 %v3929, %v3888
        %v3935 = vmul.f32 %v3929, %v3889
        %v3942 = vrot.slane %v3930, 1
        %v3943 = vrot.slane %v3932, 1
        %v3944 = vsel %vm3319, %v3942, %v3943
        %v3945 = vrot.slane %v3931, 1
        %v3946 = vrot.slane %v3933, 1
        %v3947 = vsel %vm3319, %v3945, %v3946
        %v3948 = vrot.slane %v3934, 1
        %v3949 = vsel %vm3319, %v3943, %v3948
        %v3950 = vrot.slane %v3935, 1
        %v3951 = vsel %vm3319, %v3946, %v3950
        %3952 = vrot.lane.b32.xlu0 %v3944, 121
        %v3953 = vpop.permute.xlu0 %3952
        %3954 = vrot.lane.b32.xlu0 %v3947, 121
        %v3955 = vpop.permute.xlu0 %3954
        %3956 = vrot.lane.b32.xlu0 %v3949, 121
        %v3957 = vpop.permute.xlu0 %3956
        %3958 = vrot.lane.b32.xlu0 %v3951, 121
        %v3959 = vpop.permute.xlu0 %3958
        %v3960 = vsel %vm901, %v3953, %v3955
        %v3961 = vsel %vm901, %v3957, %v3959
        %v3964 = vadd.f32 %v3840, %v3960
        %v3965 = vadd.f32 %v3841, %v3961
        %s3966 = sld [smem:[#allocation6 + $0xa7]]
        %v3967 = vstv %s3966
        %v3968 = vmul.f32 %v3967, %v3884
        %v3969 = vmul.f32 %v3967, %v3885
        %v3970 = vmul.f32 %v3967, %v3886
        %v3971 = vmul.f32 %v3967, %v3887
        %v3972 = vmul.f32 %v3967, %v3888
        %v3973 = vmul.f32 %v3967, %v3889
        %v3980 = vrot.slane %v3968, 1
        %v3981 = vrot.slane %v3970, 1
        %v3982 = vsel %vm3319, %v3980, %v3981
        %v3983 = vrot.slane %v3969, 1
        %v3984 = vrot.slane %v3971, 1
        %v3985 = vsel %vm3319, %v3983, %v3984
        %v3986 = vrot.slane %v3972, 1
        %v3987 = vsel %vm3319, %v3981, %v3986
        %v3988 = vrot.slane %v3973, 1
        %v3989 = vsel %vm3319, %v3984, %v3988
        %3990 = vrot.lane.b32.xlu0 %v3982, 121
        %v3991 = vpop.permute.xlu0 %3990
        %3992 = vrot.lane.b32.xlu0 %v3985, 121
        %v3993 = vpop.permute.xlu0 %3992
        %3994 = vrot.lane.b32.xlu0 %v3987, 121
        %v3995 = vpop.permute.xlu0 %3994
        %3996 = vrot.lane.b32.xlu0 %v3989, 121
        %v3997 = vpop.permute.xlu0 %3996
        %v3998 = vsel %vm901, %v3991, %v3993
        %v3999 = vsel %vm901, %v3995, %v3997
        %v4002 = vadd.f32 %v3861, %v3998
        %v4003 = vadd.f32 %v3862, %v3999
        %s4004 = sld [smem:[#allocation6 + $0xe7]]
        %v4005 = vstv %s4004
        %v4006 = vmul.f32 %v4005, %v3884
        %v4007 = vmul.f32 %v4005, %v3885
        %v4008 = vmul.f32 %v4005, %v3886
        %v4009 = vmul.f32 %v4005, %v3887
        %v4010 = vmul.f32 %v4005, %v3888
        %v4011 = vmul.f32 %v4005, %v3889
        %v4018 = vrot.slane %v4006, 1
        %v4019 = vrot.slane %v4008, 1
        %v4020 = vsel %vm3319, %v4018, %v4019
        %v4021 = vrot.slane %v4007, 1
        %v4022 = vrot.slane %v4009, 1
        %v4023 = vsel %vm3319, %v4021, %v4022
        %v4024 = vrot.slane %v4010, 1
        %v4025 = vsel %vm3319, %v4019, %v4024
        %v4026 = vrot.slane %v4011, 1
        %v4027 = vsel %vm3319, %v4022, %v4026
        %4028 = vrot.lane.b32.xlu0 %v4020, 121
        %v4029 = vpop.permute.xlu0 %4028
        %4030 = vrot.lane.b32.xlu0 %v4023, 121
        %v4031 = vpop.permute.xlu0 %4030
        %4032 = vrot.lane.b32.xlu0 %v4025, 121
        %v4033 = vpop.permute.xlu0 %4032
        %4034 = vrot.lane.b32.xlu0 %v4027, 121
        %v4035 = vpop.permute.xlu0 %4034
        %v4036 = vsel %vm901, %v4029, %v4031
        %v4037 = vsel %vm901, %v4033, %v4035
        %v4040 = vadd.f32 %v3882, %v4036
        %v4041 = vadd.f32 %v3883, %v4037
        %s4042 = sld [smem:[#allocation6 + $0x28]]
        %v4043 = vstv %s4042
        %v4044 = vmul.f32 %v4043, %v3884
        %v4045 = vmul.f32 %v4043, %v3885
        %v4046 = vmul.f32 %v4043, %v3886
        %v4047 = vmul.f32 %v4043, %v3887
        %v4048 = vmul.f32 %v4043, %v3888
        %v4049 = vmul.f32 %v4043, %v3889
        %v4056 = vrot.slane %v4044, 1
        %v4057 = vrot.slane %v4046, 1
        %v4058 = vsel %vm3319, %v4056, %v4057
        %v4059 = vrot.slane %v4045, 1
        %v4060 = vrot.slane %v4047, 1
        %v4061 = vsel %vm3319, %v4059, %v4060
        %v4062 = vrot.slane %v4048, 1
        %v4063 = vsel %vm3319, %v4057, %v4062
        %v4064 = vrot.slane %v4049, 1
        %v4065 = vsel %vm3319, %v4060, %v4064
        %4066 = vrot.lane.b32.xlu0 %v4058, 120
        %v4067 = vpop.permute.xlu0 %4066
        %4068 = vrot.lane.b32.xlu0 %v4061, 120
        %v4069 = vpop.permute.xlu0 %4068
        %4070 = vrot.lane.b32.xlu0 %v4063, 120
        %v4071 = vpop.permute.xlu0 %4070
        %4072 = vrot.lane.b32.xlu0 %v4065, 120
        %v4073 = vpop.permute.xlu0 %4072
        %v4074 = vsel %vm998, %v4067, %v4069
        %v4075 = vsel %vm998, %v4071, %v4073
        %v4078 = vadd.f32 %v3926, %v4074
        %v4079 = vadd.f32 %v3927, %v4075
        %s4080 = sld [smem:[#allocation6 + $0x68]]
        %v4081 = vstv %s4080
        %v4082 = vmul.f32 %v4081, %v3884
        %v4083 = vmul.f32 %v4081, %v3885
        %v4084 = vmul.f32 %v4081, %v3886
        %v4085 = vmul.f32 %v4081, %v3887
        %v4086 = vmul.f32 %v4081, %v3888
        %v4087 = vmul.f32 %v4081, %v3889
        %v4094 = vrot.slane %v4082, 1
        %v4095 = vrot.slane %v4084, 1
        %v4096 = vsel %vm3319, %v4094, %v4095
        %v4097 = vrot.slane %v4083, 1
        %v4098 = vrot.slane %v4085, 1
        %v4099 = vsel %vm3319, %v4097, %v4098
        %v4100 = vrot.slane %v4086, 1
        %v4101 = vsel %vm3319, %v4095, %v4100
        %v4102 = vrot.slane %v4087, 1
        %v4103 = vsel %vm3319, %v4098, %v4102
        %4104 = vrot.lane.b32.xlu0 %v4096, 120
        %v4105 = vpop.permute.xlu0 %4104
        %4106 = vrot.lane.b32.xlu0 %v4099, 120
        %v4107 = vpop.permute.xlu0 %4106
        %4108 = vrot.lane.b32.xlu0 %v4101, 120
        %v4109 = vpop.permute.xlu0 %4108
        %4110 = vrot.lane.b32.xlu0 %v4103, 120
        %v4111 = vpop.permute.xlu0 %4110
        %v4112 = vsel %vm998, %v4105, %v4107
        %v4113 = vsel %vm998, %v4109, %v4111
        %v4116 = vadd.f32 %v3964, %v4112
        %v4117 = vadd.f32 %v3965, %v4113
        %s4118 = sld [smem:[#allocation6 + $0xa8]]
        %v4119 = vstv %s4118
        %v4120 = vmul.f32 %v4119, %v3884
        %v4121 = vmul.f32 %v4119, %v3885
        %v4122 = vmul.f32 %v4119, %v3886
        %v4123 = vmul.f32 %v4119, %v3887
        %v4124 = vmul.f32 %v4119, %v3888
        %v4125 = vmul.f32 %v4119, %v3889
        %v4132 = vrot.slane %v4120, 1
        %v4133 = vrot.slane %v4122, 1
        %v4134 = vsel %vm3319, %v4132, %v4133
        %v4135 = vrot.slane %v4121, 1
        %v4136 = vrot.slane %v4123, 1
        %v4137 = vsel %vm3319, %v4135, %v4136
        %v4138 = vrot.slane %v4124, 1
        %v4139 = vsel %vm3319, %v4133, %v4138
        %v4140 = vrot.slane %v4125, 1
        %v4141 = vsel %vm3319, %v4136, %v4140
        %4142 = vrot.lane.b32.xlu0 %v4134, 120
        %v4143 = vpop.permute.xlu0 %4142
        %4144 = vrot.lane.b32.xlu0 %v4137, 120
        %v4145 = vpop.permute.xlu0 %4144
        %4146 = vrot.lane.b32.xlu0 %v4139, 120
        %v4147 = vpop.permute.xlu0 %4146
        %4148 = vrot.lane.b32.xlu0 %v4141, 120
        %v4149 = vpop.permute.xlu0 %4148
        %v4150 = vsel %vm998, %v4143, %v4145
        %v4151 = vsel %vm998, %v4147, %v4149
        %v4154 = vadd.f32 %v4002, %v4150
        %v4155 = vadd.f32 %v4003, %v4151
        %s4156 = sld [smem:[#allocation6 + $0xe8]]
        %v4157 = vstv %s4156
        %v4158 = vmul.f32 %v4157, %v3884
        %v4159 = vmul.f32 %v4157, %v3885
        %v4160 = vmul.f32 %v4157, %v3886
        %v4161 = vmul.f32 %v4157, %v3887
        %v4162 = vmul.f32 %v4157, %v3888
        %v4163 = vmul.f32 %v4157, %v3889
        %v4170 = vrot.slane %v4158, 1
        %v4171 = vrot.slane %v4160, 1
        %v4172 = vsel %vm3319, %v4170, %v4171
        %v4173 = vrot.slane %v4159, 1
        %v4174 = vrot.slane %v4161, 1
        %v4175 = vsel %vm3319, %v4173, %v4174
        %v4176 = vrot.slane %v4162, 1
        %v4177 = vsel %vm3319, %v4171, %v4176
        %v4178 = vrot.slane %v4163, 1
        %v4179 = vsel %vm3319, %v4174, %v4178
        %4180 = vrot.lane.b32.xlu0 %v4172, 120
        %v4181 = vpop.permute.xlu0 %4180
        %4182 = vrot.lane.b32.xlu0 %v4175, 120
        %v4183 = vpop.permute.xlu0 %4182
        %4184 = vrot.lane.b32.xlu0 %v4177, 120
        %v4185 = vpop.permute.xlu0 %4184
        %4186 = vrot.lane.b32.xlu0 %v4179, 120
        %v4187 = vpop.permute.xlu0 %4186
        %v4188 = vsel %vm998, %v4181, %v4183
        %v4189 = vsel %vm998, %v4185, %v4187
        %v4192 = vadd.f32 %v4040, %v4188
        %v4193 = vadd.f32 %v4041, %v4189
        %s4194 = sld [smem:[#allocation6 + $0x29]]
        %v4195 = vstv %s4194
        %v4196 = vmul.f32 %v4195, %v3884
        %v4197 = vmul.f32 %v4195, %v3885
        %v4198 = vmul.f32 %v4195, %v3886
        %v4199 = vmul.f32 %v4195, %v3887
        %v4200 = vmul.f32 %v4195, %v3888
        %v4201 = vmul.f32 %v4195, %v3889
        %v4208 = vrot.slane %v4196, 1
        %v4209 = vrot.slane %v4198, 1
        %v4210 = vsel %vm3319, %v4208, %v4209
        %v4211 = vrot.slane %v4197, 1
        %v4212 = vrot.slane %v4199, 1
        %v4213 = vsel %vm3319, %v4211, %v4212
        %v4214 = vrot.slane %v4200, 1
        %v4215 = vsel %vm3319, %v4209, %v4214
        %v4216 = vrot.slane %v4201, 1
        %v4217 = vsel %vm3319, %v4212, %v4216
        %4218 = vrot.lane.b32.xlu0 %v4210, 119
        %v4219 = vpop.permute.xlu0 %4218
        %4220 = vrot.lane.b32.xlu0 %v4213, 119
        %v4221 = vpop.permute.xlu0 %4220
        %4222 = vrot.lane.b32.xlu0 %v4215, 119
        %v4223 = vpop.permute.xlu0 %4222
        %4224 = vrot.lane.b32.xlu0 %v4217, 119
        %v4225 = vpop.permute.xlu0 %4224
        %v4226 = vsel %vm1095, %v4219, %v4221
        %v4227 = vsel %vm1095, %v4223, %v4225
        %v4230 = vadd.f32 %v4078, %v4226
        %v4231 = vadd.f32 %v4079, %v4227
        %s4232 = sld [smem:[#allocation6 + $0x69]]
        %v4233 = vstv %s4232
        %v4234 = vmul.f32 %v4233, %v3884
        %v4235 = vmul.f32 %v4233, %v3885
        %v4236 = vmul.f32 %v4233, %v3886
        %v4237 = vmul.f32 %v4233, %v3887
        %v4238 = vmul.f32 %v4233, %v3888
        %v4239 = vmul.f32 %v4233, %v3889
        %v4246 = vrot.slane %v4234, 1
        %v4247 = vrot.slane %v4236, 1
        %v4248 = vsel %vm3319, %v4246, %v4247
        %v4249 = vrot.slane %v4235, 1
        %v4250 = vrot.slane %v4237, 1
        %v4251 = vsel %vm3319, %v4249, %v4250
        %v4252 = vrot.slane %v4238, 1
        %v4253 = vsel %vm3319, %v4247, %v4252
        %v4254 = vrot.slane %v4239, 1
        %v4255 = vsel %vm3319, %v4250, %v4254
        %4256 = vrot.lane.b32.xlu0 %v4248, 119
        %v4257 = vpop.permute.xlu0 %4256
        %4258 = vrot.lane.b32.xlu0 %v4251, 119
        %v4259 = vpop.permute.xlu0 %4258
        %4260 = vrot.lane.b32.xlu0 %v4253, 119
        %v4261 = vpop.permute.xlu0 %4260
        %4262 = vrot.lane.b32.xlu0 %v4255, 119
        %v4263 = vpop.permute.xlu0 %4262
        %v4264 = vsel %vm1095, %v4257, %v4259
        %v4265 = vsel %vm1095, %v4261, %v4263
        %v4268 = vadd.f32 %v4116, %v4264
        %v4269 = vadd.f32 %v4117, %v4265
        %s4270 = sld [smem:[#allocation6 + $0xa9]]
        %v4271 = vstv %s4270
        %v4272 = vmul.f32 %v4271, %v3884
        %v4273 = vmul.f32 %v4271, %v3885
        %v4274 = vmul.f32 %v4271, %v3886
        %v4275 = vmul.f32 %v4271, %v3887
        %v4276 = vmul.f32 %v4271, %v3888
        %v4277 = vmul.f32 %v4271, %v3889
        %v4284 = vrot.slane %v4272, 1
        %v4285 = vrot.slane %v4274, 1
        %v4286 = vsel %vm3319, %v4284, %v4285
        %v4287 = vrot.slane %v4273, 1
        %v4288 = vrot.slane %v4275, 1
        %v4289 = vsel %vm3319, %v4287, %v4288
        %v4290 = vrot.slane %v4276, 1
        %v4291 = vsel %vm3319, %v4285, %v4290
        %v4292 = vrot.slane %v4277, 1
        %v4293 = vsel %vm3319, %v4288, %v4292
        %4294 = vrot.lane.b32.xlu0 %v4286, 119
        %v4295 = vpop.permute.xlu0 %4294
        %4296 = vrot.lane.b32.xlu0 %v4289, 119
        %v4297 = vpop.permute.xlu0 %4296
        %4298 = vrot.lane.b32.xlu0 %v4291, 119
        %v4299 = vpop.permute.xlu0 %4298
        %4300 = vrot.lane.b32.xlu0 %v4293, 119
        %v4301 = vpop.permute.xlu0 %4300
        %v4302 = vsel %vm1095, %v4295, %v4297
        %v4303 = vsel %vm1095, %v4299, %v4301
        %v4306 = vadd.f32 %v4154, %v4302
        %v4307 = vadd.f32 %v4155, %v4303
        %s4308 = sld [smem:[#allocation6 + $0xe9]]
        %v4309 = vstv %s4308
        %v4310 = vmul.f32 %v4309, %v3884
        %v4311 = vmul.f32 %v4309, %v3885
        %v4312 = vmul.f32 %v4309, %v3886
        %v4313 = vmul.f32 %v4309, %v3887
        %v4314 = vmul.f32 %v4309, %v3888
        %v4315 = vmul.f32 %v4309, %v3889
        %v4322 = vrot.slane %v4310, 1
        %v4323 = vrot.slane %v4312, 1
        %v4324 = vsel %vm3319, %v4322, %v4323
        %v4325 = vrot.slane %v4311, 1
        %v4326 = vrot.slane %v4313, 1
        %v4327 = vsel %vm3319, %v4325, %v4326
        %v4328 = vrot.slane %v4314, 1
        %v4329 = vsel %vm3319, %v4323, %v4328
        %v4330 = vrot.slane %v4315, 1
        %v4331 = vsel %vm3319, %v4326, %v4330
        %4332 = vrot.lane.b32.xlu0 %v4324, 119
        %v4333 = vpop.permute.xlu0 %4332
        %4334 = vrot.lane.b32.xlu0 %v4327, 119
        %v4335 = vpop.permute.xlu0 %4334
        %4336 = vrot.lane.b32.xlu0 %v4329, 119
        %v4337 = vpop.permute.xlu0 %4336
        %4338 = vrot.lane.b32.xlu0 %v4331, 119
        %v4339 = vpop.permute.xlu0 %4338
        %v4340 = vsel %vm1095, %v4333, %v4335
        %v4341 = vsel %vm1095, %v4337, %v4339
        %v4344 = vadd.f32 %v4192, %v4340
        %v4345 = vadd.f32 %v4193, %v4341
        %s4346 = sld [smem:[#allocation6 + $0x2a]]
        %v4347 = vstv %s4346
        %v4348 = vmul.f32 %v4347, %v3884
        %v4349 = vmul.f32 %v4347, %v3885
        %v4350 = vmul.f32 %v4347, %v3886
        %v4351 = vmul.f32 %v4347, %v3887
        %v4352 = vmul.f32 %v4347, %v3888
        %v4353 = vmul.f32 %v4347, %v3889
        %v4360 = vrot.slane %v4348, 1
        %v4361 = vrot.slane %v4350, 1
        %v4362 = vsel %vm3319, %v4360, %v4361
        %v4363 = vrot.slane %v4349, 1
        %v4364 = vrot.slane %v4351, 1
        %v4365 = vsel %vm3319, %v4363, %v4364
        %v4366 = vrot.slane %v4352, 1
        %v4367 = vsel %vm3319, %v4361, %v4366
        %v4368 = vrot.slane %v4353, 1
        %v4369 = vsel %vm3319, %v4364, %v4368
        %4370 = vrot.lane.b32.xlu0 %v4362, 118
        %v4371 = vpop.permute.xlu0 %4370
        %4372 = vrot.lane.b32.xlu0 %v4365, 118
        %v4373 = vpop.permute.xlu0 %4372
        %4374 = vrot.lane.b32.xlu0 %v4367, 118
        %v4375 = vpop.permute.xlu0 %4374
        %4376 = vrot.lane.b32.xlu0 %v4369, 118
        %v4377 = vpop.permute.xlu0 %4376
        %v4378 = vsel %vm1192, %v4371, %v4373
        %v4379 = vsel %vm1192, %v4375, %v4377
        %v4382 = vadd.f32 %v4230, %v4378
        %v4383 = vadd.f32 %v4231, %v4379
        %s4384 = sld [smem:[#allocation6 + $0x6a]]
        %v4385 = vstv %s4384
        %v4386 = vmul.f32 %v4385, %v3884
        %v4387 = vmul.f32 %v4385, %v3885
        %v4388 = vmul.f32 %v4385, %v3886
        %v4389 = vmul.f32 %v4385, %v3887
        %v4390 = vmul.f32 %v4385, %v3888
        %v4391 = vmul.f32 %v4385, %v3889
        %v4398 = vrot.slane %v4386, 1
        %v4399 = vrot.slane %v4388, 1
        %v4400 = vsel %vm3319, %v4398, %v4399
        %v4401 = vrot.slane %v4387, 1
        %v4402 = vrot.slane %v4389, 1
        %v4403 = vsel %vm3319, %v4401, %v4402
        %v4404 = vrot.slane %v4390, 1
        %v4405 = vsel %vm3319, %v4399, %v4404
        %v4406 = vrot.slane %v4391, 1
        %v4407 = vsel %vm3319, %v4402, %v4406
        %4408 = vrot.lane.b32.xlu0 %v4400, 118
        %v4409 = vpop.permute.xlu0 %4408
        %4410 = vrot.lane.b32.xlu0 %v4403, 118
        %v4411 = vpop.permute.xlu0 %4410
        %4412 = vrot.lane.b32.xlu0 %v4405, 118
        %v4413 = vpop.permute.xlu0 %4412
        %4414 = vrot.lane.b32.xlu0 %v4407, 118
        %v4415 = vpop.permute.xlu0 %4414
        %v4416 = vsel %vm1192, %v4409, %v4411
        %v4417 = vsel %vm1192, %v4413, %v4415
        %v4420 = vadd.f32 %v4268, %v4416
        %v4421 = vadd.f32 %v4269, %v4417
        %s4422 = sld [smem:[#allocation6 + $0xaa]]
        %v4423 = vstv %s4422
        %v4424 = vmul.f32 %v4423, %v3884
        %v4425 = vmul.f32 %v4423, %v3885
        %v4426 = vmul.f32 %v4423, %v3886
        %v4427 = vmul.f32 %v4423, %v3887
        %v4428 = vmul.f32 %v4423, %v3888
        %v4429 = vmul.f32 %v4423, %v3889
        %v4436 = vrot.slane %v4424, 1
        %v4437 = vrot.slane %v4426, 1
        %v4438 = vsel %vm3319, %v4436, %v4437
        %v4439 = vrot.slane %v4425, 1
        %v4440 = vrot.slane %v4427, 1
        %v4441 = vsel %vm3319, %v4439, %v4440
        %v4442 = vrot.slane %v4428, 1
        %v4443 = vsel %vm3319, %v4437, %v4442
        %v4444 = vrot.slane %v4429, 1
        %v4445 = vsel %vm3319, %v4440, %v4444
        %4446 = vrot.lane.b32.xlu0 %v4438, 118
        %v4447 = vpop.permute.xlu0 %4446
        %4448 = vrot.lane.b32.xlu0 %v4441, 118
        %v4449 = vpop.permute.xlu0 %4448
        %4450 = vrot.lane.b32.xlu0 %v4443, 118
        %v4451 = vpop.permute.xlu0 %4450
        %4452 = vrot.lane.b32.xlu0 %v4445, 118
        %v4453 = vpop.permute.xlu0 %4452
        %v4454 = vsel %vm1192, %v4447, %v4449
        %v4455 = vsel %vm1192, %v4451, %v4453
        %v4458 = vadd.f32 %v4306, %v4454
        %v4459 = vadd.f32 %v4307, %v4455
        %s4460 = sld [smem:[#allocation6 + $0xea]]
        %v4461 = vstv %s4460
        %v4462 = vmul.f32 %v4461, %v3884
        %v4463 = vmul.f32 %v4461, %v3885
        %v4464 = vmul.f32 %v4461, %v3886
        %v4465 = vmul.f32 %v4461, %v3887
        %v4466 = vmul.f32 %v4461, %v3888
        %v4467 = vmul.f32 %v4461, %v3889
        %v4474 = vrot.slane %v4462, 1
        %v4475 = vrot.slane %v4464, 1
        %v4476 = vsel %vm3319, %v4474, %v4475
        %v4477 = vrot.slane %v4463, 1
        %v4478 = vrot.slane %v4465, 1
        %v4479 = vsel %vm3319, %v4477, %v4478
        %v4480 = vrot.slane %v4466, 1
        %v4481 = vsel %vm3319, %v4475, %v4480
        %v4482 = vrot.slane %v4467, 1
        %v4483 = vsel %vm3319, %v4478, %v4482
        %4484 = vrot.lane.b32.xlu0 %v4476, 118
        %v4485 = vpop.permute.xlu0 %4484
        %4486 = vrot.lane.b32.xlu0 %v4479, 118
        %v4487 = vpop.permute.xlu0 %4486
        %4488 = vrot.lane.b32.xlu0 %v4481, 118
        %v4489 = vpop.permute.xlu0 %4488
        %4490 = vrot.lane.b32.xlu0 %v4483, 118
        %v4491 = vpop.permute.xlu0 %4490
        %v4492 = vsel %vm1192, %v4485, %v4487
        %v4493 = vsel %vm1192, %v4489, %v4491
        %v4496 = vadd.f32 %v4344, %v4492
        %v4497 = vadd.f32 %v4345, %v4493
        %s4498 = sld [smem:[#allocation6 + $0x2b]]
        %v4499 = vstv %s4498
        %v4500 = vmul.f32 %v4499, %v3884
        %v4501 = vmul.f32 %v4499, %v3885
        %v4502 = vmul.f32 %v4499, %v3886
        %v4503 = vmul.f32 %v4499, %v3887
        %v4504 = vmul.f32 %v4499, %v3888
        %v4505 = vmul.f32 %v4499, %v3889
        %v4512 = vrot.slane %v4500, 1
        %v4513 = vrot.slane %v4502, 1
        %v4514 = vsel %vm3319, %v4512, %v4513
        %v4515 = vrot.slane %v4501, 1
        %v4516 = vrot.slane %v4503, 1
        %v4517 = vsel %vm3319, %v4515, %v4516
        %v4518 = vrot.slane %v4504, 1
        %v4519 = vsel %vm3319, %v4513, %v4518
        %v4520 = vrot.slane %v4505, 1
        %v4521 = vsel %vm3319, %v4516, %v4520
        %4522 = vrot.lane.b32.xlu0 %v4514, 117
        %v4523 = vpop.permute.xlu0 %4522
        %4524 = vrot.lane.b32.xlu0 %v4517, 117
        %v4525 = vpop.permute.xlu0 %4524
        %4526 = vrot.lane.b32.xlu0 %v4519, 117
        %v4527 = vpop.permute.xlu0 %4526
        %4528 = vrot.lane.b32.xlu0 %v4521, 117
        %v4529 = vpop.permute.xlu0 %4528
        %v4530 = vsel %vm1289, %v4523, %v4525
        %v4531 = vsel %vm1289, %v4527, %v4529
        %v4534 = vadd.f32 %v4382, %v4530
        %v4535 = vadd.f32 %v4383, %v4531
        %s4536 = sld [smem:[#allocation6 + $0x6b]]
        %v4537 = vstv %s4536
        %v4538 = vmul.f32 %v4537, %v3884
        %v4539 = vmul.f32 %v4537, %v3885
        %v4540 = vmul.f32 %v4537, %v3886
        %v4541 = vmul.f32 %v4537, %v3887
        %v4542 = vmul.f32 %v4537, %v3888
        %v4543 = vmul.f32 %v4537, %v3889
        %v4550 = vrot.slane %v4538, 1
        %v4551 = vrot.slane %v4540, 1
        %v4552 = vsel %vm3319, %v4550, %v4551
        %v4553 = vrot.slane %v4539, 1
        %v4554 = vrot.slane %v4541, 1
        %v4555 = vsel %vm3319, %v4553, %v4554
        %v4556 = vrot.slane %v4542, 1
        %v4557 = vsel %vm3319, %v4551, %v4556
        %v4558 = vrot.slane %v4543, 1
        %v4559 = vsel %vm3319, %v4554, %v4558
        %4560 = vrot.lane.b32.xlu0 %v4552, 117
        %v4561 = vpop.permute.xlu0 %4560
        %4562 = vrot.lane.b32.xlu0 %v4555, 117
        %v4563 = vpop.permute.xlu0 %4562
        %4564 = vrot.lane.b32.xlu0 %v4557, 117
        %v4565 = vpop.permute.xlu0 %4564
        %4566 = vrot.lane.b32.xlu0 %v4559, 117
        %v4567 = vpop.permute.xlu0 %4566
        %v4568 = vsel %vm1289, %v4561, %v4563
        %v4569 = vsel %vm1289, %v4565, %v4567
        %v4572 = vadd.f32 %v4420, %v4568
        %v4573 = vadd.f32 %v4421, %v4569
        %s4574 = sld [smem:[#allocation6 + $0xab]]
        %v4575 = vstv %s4574
        %v4576 = vmul.f32 %v4575, %v3884
        %v4577 = vmul.f32 %v4575, %v3885
        %v4578 = vmul.f32 %v4575, %v3886
        %v4579 = vmul.f32 %v4575, %v3887
        %v4580 = vmul.f32 %v4575, %v3888
        %v4581 = vmul.f32 %v4575, %v3889
        %v4588 = vrot.slane %v4576, 1
        %v4589 = vrot.slane %v4578, 1
        %v4590 = vsel %vm3319, %v4588, %v4589
        %v4591 = vrot.slane %v4577, 1
        %v4592 = vrot.slane %v4579, 1
        %v4593 = vsel %vm3319, %v4591, %v4592
        %v4594 = vrot.slane %v4580, 1
        %v4595 = vsel %vm3319, %v4589, %v4594
        %v4596 = vrot.slane %v4581, 1
        %v4597 = vsel %vm3319, %v4592, %v4596
        %4598 = vrot.lane.b32.xlu0 %v4590, 117
        %v4599 = vpop.permute.xlu0 %4598
        %4600 = vrot.lane.b32.xlu0 %v4593, 117
        %v4601 = vpop.permute.xlu0 %4600
        %4602 = vrot.lane.b32.xlu0 %v4595, 117
        %v4603 = vpop.permute.xlu0 %4602
        %4604 = vrot.lane.b32.xlu0 %v4597, 117
        %v4605 = vpop.permute.xlu0 %4604
        %v4606 = vsel %vm1289, %v4599, %v4601
        %v4607 = vsel %vm1289, %v4603, %v4605
        %v4610 = vadd.f32 %v4458, %v4606
        %v4611 = vadd.f32 %v4459, %v4607
        %s4612 = sld [smem:[#allocation6 + $0xeb]]
        %v4613 = vstv %s4612
        %v4614 = vmul.f32 %v4613, %v3884
        %v4615 = vmul.f32 %v4613, %v3885
        %v4616 = vmul.f32 %v4613, %v3886
        %v4617 = vmul.f32 %v4613, %v3887
        %v4618 = vmul.f32 %v4613, %v3888
        %v4619 = vmul.f32 %v4613, %v3889
        %v4626 = vrot.slane %v4614, 1
        %v4627 = vrot.slane %v4616, 1
        %v4628 = vsel %vm3319, %v4626, %v4627
        %v4629 = vrot.slane %v4615, 1
        %v4630 = vrot.slane %v4617, 1
        %v4631 = vsel %vm3319, %v4629, %v4630
        %v4632 = vrot.slane %v4618, 1
        %v4633 = vsel %vm3319, %v4627, %v4632
        %v4634 = vrot.slane %v4619, 1
        %v4635 = vsel %vm3319, %v4630, %v4634
        %4636 = vrot.lane.b32.xlu0 %v4628, 117
        %v4637 = vpop.permute.xlu0 %4636
        %4638 = vrot.lane.b32.xlu0 %v4631, 117
        %v4639 = vpop.permute.xlu0 %4638
        %4640 = vrot.lane.b32.xlu0 %v4633, 117
        %v4641 = vpop.permute.xlu0 %4640
        %4642 = vrot.lane.b32.xlu0 %v4635, 117
        %v4643 = vpop.permute.xlu0 %4642
        %v4644 = vsel %vm1289, %v4637, %v4639
        %v4645 = vsel %vm1289, %v4641, %v4643
        %v4648 = vadd.f32 %v4496, %v4644
        %v4649 = vadd.f32 %v4497, %v4645
        %s4650 = sld [smem:[#allocation6 + $0x2c]]
        %v4651 = vstv %s4650
        %v4652 = vmul.f32 %v4651, %v3884
        %v4653 = vmul.f32 %v4651, %v3885
        %v4654 = vmul.f32 %v4651, %v3886
        %v4655 = vmul.f32 %v4651, %v3887
        %v4656 = vmul.f32 %v4651, %v3888
        %v4657 = vmul.f32 %v4651, %v3889
        %v4664 = vrot.slane %v4652, 1
        %v4665 = vrot.slane %v4654, 1
        %v4666 = vsel %vm3319, %v4664, %v4665
        %v4667 = vrot.slane %v4653, 1
        %v4668 = vrot.slane %v4655, 1
        %v4669 = vsel %vm3319, %v4667, %v4668
        %v4670 = vrot.slane %v4656, 1
        %v4671 = vsel %vm3319, %v4665, %v4670
        %v4672 = vrot.slane %v4657, 1
        %v4673 = vsel %vm3319, %v4668, %v4672
        %4674 = vrot.lane.b32.xlu0 %v4666, 116
        %v4675 = vpop.permute.xlu0 %4674
        %4676 = vrot.lane.b32.xlu0 %v4669, 116
        %v4677 = vpop.permute.xlu0 %4676
        %4678 = vrot.lane.b32.xlu0 %v4671, 116
        %v4679 = vpop.permute.xlu0 %4678
        %4680 = vrot.lane.b32.xlu0 %v4673, 116
        %v4681 = vpop.permute.xlu0 %4680
        %v4682 = vsel %vm1386, %v4675, %v4677
        %v4683 = vsel %vm1386, %v4679, %v4681
        %v4686 = vadd.f32 %v4534, %v4682
        %v4687 = vadd.f32 %v4535, %v4683
        %s4688 = sld [smem:[#allocation6 + $0x6c]]
        %v4689 = vstv %s4688
        %v4690 = vmul.f32 %v4689, %v3884
        %v4691 = vmul.f32 %v4689, %v3885
        %v4692 = vmul.f32 %v4689, %v3886
        %v4693 = vmul.f32 %v4689, %v3887
        %v4694 = vmul.f32 %v4689, %v3888
        %v4695 = vmul.f32 %v4689, %v3889
        %v4702 = vrot.slane %v4690, 1
        %v4703 = vrot.slane %v4692, 1
        %v4704 = vsel %vm3319, %v4702, %v4703
        %v4705 = vrot.slane %v4691, 1
        %v4706 = vrot.slane %v4693, 1
        %v4707 = vsel %vm3319, %v4705, %v4706
        %v4708 = vrot.slane %v4694, 1
        %v4709 = vsel %vm3319, %v4703, %v4708
        %v4710 = vrot.slane %v4695, 1
        %v4711 = vsel %vm3319, %v4706, %v4710
        %4712 = vrot.lane.b32.xlu0 %v4704, 116
        %v4713 = vpop.permute.xlu0 %4712
        %4714 = vrot.lane.b32.xlu0 %v4707, 116
        %v4715 = vpop.permute.xlu0 %4714
        %4716 = vrot.lane.b32.xlu0 %v4709, 116
        %v4717 = vpop.permute.xlu0 %4716
        %4718 = vrot.lane.b32.xlu0 %v4711, 116
        %v4719 = vpop.permute.xlu0 %4718
        %v4720 = vsel %vm1386, %v4713, %v4715
        %v4721 = vsel %vm1386, %v4717, %v4719
        %v4724 = vadd.f32 %v4572, %v4720
        %v4725 = vadd.f32 %v4573, %v4721
        %s4726 = sld [smem:[#allocation6 + $0xac]]
        %v4727 = vstv %s4726
        %v4728 = vmul.f32 %v4727, %v3884
        %v4729 = vmul.f32 %v4727, %v3885
        %v4730 = vmul.f32 %v4727, %v3886
        %v4731 = vmul.f32 %v4727, %v3887
        %v4732 = vmul.f32 %v4727, %v3888
        %v4733 = vmul.f32 %v4727, %v3889
        %v4740 = vrot.slane %v4728, 1
        %v4741 = vrot.slane %v4730, 1
        %v4742 = vsel %vm3319, %v4740, %v4741
        %v4743 = vrot.slane %v4729, 1
        %v4744 = vrot.slane %v4731, 1
        %v4745 = vsel %vm3319, %v4743, %v4744
        %v4746 = vrot.slane %v4732, 1
        %v4747 = vsel %vm3319, %v4741, %v4746
        %v4748 = vrot.slane %v4733, 1
        %v4749 = vsel %vm3319, %v4744, %v4748
        %4750 = vrot.lane.b32.xlu0 %v4742, 116
        %v4751 = vpop.permute.xlu0 %4750
        %4752 = vrot.lane.b32.xlu0 %v4745, 116
        %v4753 = vpop.permute.xlu0 %4752
        %4754 = vrot.lane.b32.xlu0 %v4747, 116
        %v4755 = vpop.permute.xlu0 %4754
        %4756 = vrot.lane.b32.xlu0 %v4749, 116
        %v4757 = vpop.permute.xlu0 %4756
        %v4758 = vsel %vm1386, %v4751, %v4753
        %v4759 = vsel %vm1386, %v4755, %v4757
        %v4762 = vadd.f32 %v4610, %v4758
        %v4763 = vadd.f32 %v4611, %v4759
        %s4764 = sld [smem:[#allocation6 + $0xec]]
        %v4765 = vstv %s4764
        %v4766 = vmul.f32 %v4765, %v3884
        %v4767 = vmul.f32 %v4765, %v3885
        %v4768 = vmul.f32 %v4765, %v3886
        %v4769 = vmul.f32 %v4765, %v3887
        %v4770 = vmul.f32 %v4765, %v3888
        %v4771 = vmul.f32 %v4765, %v3889
        %v4778 = vrot.slane %v4766, 1
        %v4779 = vrot.slane %v4768, 1
        %v4780 = vsel %vm3319, %v4778, %v4779
        %v4781 = vrot.slane %v4767, 1
        %v4782 = vrot.slane %v4769, 1
        %v4783 = vsel %vm3319, %v4781, %v4782
        %v4784 = vrot.slane %v4770, 1
        %v4785 = vsel %vm3319, %v4779, %v4784
        %v4786 = vrot.slane %v4771, 1
        %v4787 = vsel %vm3319, %v4782, %v4786
        %4788 = vrot.lane.b32.xlu0 %v4780, 116
        %v4789 = vpop.permute.xlu0 %4788
        %4790 = vrot.lane.b32.xlu0 %v4783, 116
        %v4791 = vpop.permute.xlu0 %4790
        %4792 = vrot.lane.b32.xlu0 %v4785, 116
        %v4793 = vpop.permute.xlu0 %4792
        %4794 = vrot.lane.b32.xlu0 %v4787, 116
        %v4795 = vpop.permute.xlu0 %4794
        %v4796 = vsel %vm1386, %v4789, %v4791
        %v4797 = vsel %vm1386, %v4793, %v4795
        %v4800 = vadd.f32 %v4648, %v4796
        %v4801 = vadd.f32 %v4649, %v4797
        %s4802 = sld [smem:[#allocation6 + $0x2d]]
        %v4803 = vstv %s4802
        %v4804 = vmul.f32 %v4803, %v3884
        %v4805 = vmul.f32 %v4803, %v3885
        %v4806 = vmul.f32 %v4803, %v3886
        %v4807 = vmul.f32 %v4803, %v3887
        %v4808 = vmul.f32 %v4803, %v3888
        %v4809 = vmul.f32 %v4803, %v3889
        %v4816 = vrot.slane %v4804, 1
        %v4817 = vrot.slane %v4806, 1
        %v4818 = vsel %vm3319, %v4816, %v4817
        %v4819 = vrot.slane %v4805, 1
        %v4820 = vrot.slane %v4807, 1
        %v4821 = vsel %vm3319, %v4819, %v4820
        %v4822 = vrot.slane %v4808, 1
        %v4823 = vsel %vm3319, %v4817, %v4822
        %v4824 = vrot.slane %v4809, 1
        %v4825 = vsel %vm3319, %v4820, %v4824
        %4826 = vrot.lane.b32.xlu0 %v4818, 115
        %v4827 = vpop.permute.xlu0 %4826
        %4828 = vrot.lane.b32.xlu0 %v4821, 115
        %v4829 = vpop.permute.xlu0 %4828
        %4830 = vrot.lane.b32.xlu0 %v4823, 115
        %v4831 = vpop.permute.xlu0 %4830
        %4832 = vrot.lane.b32.xlu0 %v4825, 115
        %v4833 = vpop.permute.xlu0 %4832
        %v4834 = vsel %vm1483, %v4827, %v4829
        %v4835 = vsel %vm1483, %v4831, %v4833
        %v4838 = vadd.f32 %v4686, %v4834
        %v4839 = vadd.f32 %v4687, %v4835
        %s4840 = sld [smem:[#allocation6 + $0x6d]]
        %v4841 = vstv %s4840
        %v4842 = vmul.f32 %v4841, %v3884
        %v4843 = vmul.f32 %v4841, %v3885
        %v4844 = vmul.f32 %v4841, %v3886
        %v4845 = vmul.f32 %v4841, %v3887
        %v4846 = vmul.f32 %v4841, %v3888
        %v4847 = vmul.f32 %v4841, %v3889
        %v4854 = vrot.slane %v4842, 1
        %v4855 = vrot.slane %v4844, 1
        %v4856 = vsel %vm3319, %v4854, %v4855
        %v4857 = vrot.slane %v4843, 1
        %v4858 = vrot.slane %v4845, 1
        %v4859 = vsel %vm3319, %v4857, %v4858
        %v4860 = vrot.slane %v4846, 1
        %v4861 = vsel %vm3319, %v4855, %v4860
        %v4862 = vrot.slane %v4847, 1
        %v4863 = vsel %vm3319, %v4858, %v4862
        %4864 = vrot.lane.b32.xlu0 %v4856, 115
        %v4865 = vpop.permute.xlu0 %4864
        %4866 = vrot.lane.b32.xlu0 %v4859, 115
        %v4867 = vpop.permute.xlu0 %4866
        %4868 = vrot.lane.b32.xlu0 %v4861, 115
        %v4869 = vpop.permute.xlu0 %4868
        %4870 = vrot.lane.b32.xlu0 %v4863, 115
        %v4871 = vpop.permute.xlu0 %4870
        %v4872 = vsel %vm1483, %v4865, %v4867
        %v4873 = vsel %vm1483, %v4869, %v4871
        %v4876 = vadd.f32 %v4724, %v4872
        %v4877 = vadd.f32 %v4725, %v4873
        %s4878 = sld [smem:[#allocation6 + $0xad]]
        %v4879 = vstv %s4878
        %v4880 = vmul.f32 %v4879, %v3884
        %v4881 = vmul.f32 %v4879, %v3885
        %v4882 = vmul.f32 %v4879, %v3886
        %v4883 = vmul.f32 %v4879, %v3887
        %v4884 = vmul.f32 %v4879, %v3888
        %v4885 = vmul.f32 %v4879, %v3889
        %v4892 = vrot.slane %v4880, 1
        %v4893 = vrot.slane %v4882, 1
        %v4894 = vsel %vm3319, %v4892, %v4893
        %v4895 = vrot.slane %v4881, 1
        %v4896 = vrot.slane %v4883, 1
        %v4897 = vsel %vm3319, %v4895, %v4896
        %v4898 = vrot.slane %v4884, 1
        %v4899 = vsel %vm3319, %v4893, %v4898
        %v4900 = vrot.slane %v4885, 1
        %v4901 = vsel %vm3319, %v4896, %v4900
        %4902 = vrot.lane.b32.xlu0 %v4894, 115
        %v4903 = vpop.permute.xlu0 %4902
        %4904 = vrot.lane.b32.xlu0 %v4897, 115
        %v4905 = vpop.permute.xlu0 %4904
        %4906 = vrot.lane.b32.xlu0 %v4899, 115
        %v4907 = vpop.permute.xlu0 %4906
        %4908 = vrot.lane.b32.xlu0 %v4901, 115
        %v4909 = vpop.permute.xlu0 %4908
        %v4910 = vsel %vm1483, %v4903, %v4905
        %v4911 = vsel %vm1483, %v4907, %v4909
        %v4914 = vadd.f32 %v4762, %v4910
        %v4915 = vadd.f32 %v4763, %v4911
        %s4916 = sld [smem:[#allocation6 + $0xed]]
        %v4917 = vstv %s4916
        %v4918 = vmul.f32 %v4917, %v3884
        %v4919 = vmul.f32 %v4917, %v3885
        %v4920 = vmul.f32 %v4917, %v3886
        %v4921 = vmul.f32 %v4917, %v3887
        %v4922 = vmul.f32 %v4917, %v3888
        %v4923 = vmul.f32 %v4917, %v3889
        %v4930 = vrot.slane %v4918, 1
        %v4931 = vrot.slane %v4920, 1
        %v4932 = vsel %vm3319, %v4930, %v4931
        %v4933 = vrot.slane %v4919, 1
        %v4934 = vrot.slane %v4921, 1
        %v4935 = vsel %vm3319, %v4933, %v4934
        %v4936 = vrot.slane %v4922, 1
        %v4937 = vsel %vm3319, %v4931, %v4936
        %v4938 = vrot.slane %v4923, 1
        %v4939 = vsel %vm3319, %v4934, %v4938
        %4940 = vrot.lane.b32.xlu0 %v4932, 115
        %v4941 = vpop.permute.xlu0 %4940
        %4942 = vrot.lane.b32.xlu0 %v4935, 115
        %v4943 = vpop.permute.xlu0 %4942
        %4944 = vrot.lane.b32.xlu0 %v4937, 115
        %v4945 = vpop.permute.xlu0 %4944
        %4946 = vrot.lane.b32.xlu0 %v4939, 115
        %v4947 = vpop.permute.xlu0 %4946
        %v4948 = vsel %vm1483, %v4941, %v4943
        %v4949 = vsel %vm1483, %v4945, %v4947
        %v4952 = vadd.f32 %v4800, %v4948
        %v4953 = vadd.f32 %v4801, %v4949
        %s4954 = sld [smem:[#allocation6 + $0x2e]]
        %v4955 = vstv %s4954
        %v4956 = vmul.f32 %v4955, %v3884
        %v4957 = vmul.f32 %v4955, %v3885
        %v4958 = vmul.f32 %v4955, %v3886
        %v4959 = vmul.f32 %v4955, %v3887
        %v4960 = vmul.f32 %v4955, %v3888
        %v4961 = vmul.f32 %v4955, %v3889
        %v4968 = vrot.slane %v4956, 1
        %v4969 = vrot.slane %v4958, 1
        %v4970 = vsel %vm3319, %v4968, %v4969
        %v4971 = vrot.slane %v4957, 1
        %v4972 = vrot.slane %v4959, 1
        %v4973 = vsel %vm3319, %v4971, %v4972
        %v4974 = vrot.slane %v4960, 1
        %v4975 = vsel %vm3319, %v4969, %v4974
        %v4976 = vrot.slane %v4961, 1
        %v4977 = vsel %vm3319, %v4972, %v4976
        %4978 = vrot.lane.b32.xlu0 %v4970, 114
        %v4979 = vpop.permute.xlu0 %4978
        %4980 = vrot.lane.b32.xlu0 %v4973, 114
        %v4981 = vpop.permute.xlu0 %4980
        %4982 = vrot.lane.b32.xlu0 %v4975, 114
        %v4983 = vpop.permute.xlu0 %4982
        %4984 = vrot.lane.b32.xlu0 %v4977, 114
        %v4985 = vpop.permute.xlu0 %4984
        %v4986 = vsel %vm1580, %v4979, %v4981
        %v4987 = vsel %vm1580, %v4983, %v4985
        %v4990 = vadd.f32 %v4838, %v4986
        %v4991 = vadd.f32 %v4839, %v4987
        %s4992 = sld [smem:[#allocation6 + $0x6e]]
        %v4993 = vstv %s4992
        %v4994 = vmul.f32 %v4993, %v3884
        %v4995 = vmul.f32 %v4993, %v3885
        %v4996 = vmul.f32 %v4993, %v3886
        %v4997 = vmul.f32 %v4993, %v3887
        %v4998 = vmul.f32 %v4993, %v3888
        %v4999 = vmul.f32 %v4993, %v3889
        %v5006 = vrot.slane %v4994, 1
        %v5007 = vrot.slane %v4996, 1
        %v5008 = vsel %vm3319, %v5006, %v5007
        %v5009 = vrot.slane %v4995, 1
        %v5010 = vrot.slane %v4997, 1
        %v5011 = vsel %vm3319, %v5009, %v5010
        %v5012 = vrot.slane %v4998, 1
        %v5013 = vsel %vm3319, %v5007, %v5012
        %v5014 = vrot.slane %v4999, 1
        %v5015 = vsel %vm3319, %v5010, %v5014
        %5016 = vrot.lane.b32.xlu0 %v5008, 114
        %v5017 = vpop.permute.xlu0 %5016
        %5018 = vrot.lane.b32.xlu0 %v5011, 114
        %v5019 = vpop.permute.xlu0 %5018
        %5020 = vrot.lane.b32.xlu0 %v5013, 114
        %v5021 = vpop.permute.xlu0 %5020
        %5022 = vrot.lane.b32.xlu0 %v5015, 114
        %v5023 = vpop.permute.xlu0 %5022
        %v5024 = vsel %vm1580, %v5017, %v5019
        %v5025 = vsel %vm1580, %v5021, %v5023
        %v5028 = vadd.f32 %v4876, %v5024
        %v5029 = vadd.f32 %v4877, %v5025
        %s5030 = sld [smem:[#allocation6 + $0xae]]
        %v5031 = vstv %s5030
        %v5032 = vmul.f32 %v5031, %v3884
        %v5033 = vmul.f32 %v5031, %v3885
        %v5034 = vmul.f32 %v5031, %v3886
        %v5035 = vmul.f32 %v5031, %v3887
        %v5036 = vmul.f32 %v5031, %v3888
        %v5037 = vmul.f32 %v5031, %v3889
        %v5044 = vrot.slane %v5032, 1
        %v5045 = vrot.slane %v5034, 1
        %v5046 = vsel %vm3319, %v5044, %v5045
        %v5047 = vrot.slane %v5033, 1
        %v5048 = vrot.slane %v5035, 1
        %v5049 = vsel %vm3319, %v5047, %v5048
        %v5050 = vrot.slane %v5036, 1
        %v5051 = vsel %vm3319, %v5045, %v5050
        %v5052 = vrot.slane %v5037, 1
        %v5053 = vsel %vm3319, %v5048, %v5052
        %5054 = vrot.lane.b32.xlu0 %v5046, 114
        %v5055 = vpop.permute.xlu0 %5054
        %5056 = vrot.lane.b32.xlu0 %v5049, 114
        %v5057 = vpop.permute.xlu0 %5056
        %5058 = vrot.lane.b32.xlu0 %v5051, 114
        %v5059 = vpop.permute.xlu0 %5058
        %5060 = vrot.lane.b32.xlu0 %v5053, 114
        %v5061 = vpop.permute.xlu0 %5060
        %v5062 = vsel %vm1580, %v5055, %v5057
        %v5063 = vsel %vm1580, %v5059, %v5061
        %v5066 = vadd.f32 %v4914, %v5062
        %v5067 = vadd.f32 %v4915, %v5063
        %s5068 = sld [smem:[#allocation6 + $0xee]]
        %v5069 = vstv %s5068
        %v5070 = vmul.f32 %v5069, %v3884
        %v5071 = vmul.f32 %v5069, %v3885
        %v5072 = vmul.f32 %v5069, %v3886
        %v5073 = vmul.f32 %v5069, %v3887
        %v5074 = vmul.f32 %v5069, %v3888
        %v5075 = vmul.f32 %v5069, %v3889
        %v5082 = vrot.slane %v5070, 1
        %v5083 = vrot.slane %v5072, 1
        %v5084 = vsel %vm3319, %v5082, %v5083
        %v5085 = vrot.slane %v5071, 1
        %v5086 = vrot.slane %v5073, 1
        %v5087 = vsel %vm3319, %v5085, %v5086
        %v5088 = vrot.slane %v5074, 1
        %v5089 = vsel %vm3319, %v5083, %v5088
        %v5090 = vrot.slane %v5075, 1
        %v5091 = vsel %vm3319, %v5086, %v5090
        %5092 = vrot.lane.b32.xlu0 %v5084, 114
        %v5093 = vpop.permute.xlu0 %5092
        %5094 = vrot.lane.b32.xlu0 %v5087, 114
        %v5095 = vpop.permute.xlu0 %5094
        %5096 = vrot.lane.b32.xlu0 %v5089, 114
        %v5097 = vpop.permute.xlu0 %5096
        %5098 = vrot.lane.b32.xlu0 %v5091, 114
        %v5099 = vpop.permute.xlu0 %5098
        %v5100 = vsel %vm1580, %v5093, %v5095
        %v5101 = vsel %vm1580, %v5097, %v5099
        %v5104 = vadd.f32 %v4952, %v5100
        %v5105 = vadd.f32 %v4953, %v5101
        %s5106 = sld [smem:[#allocation6 + $0x2f]]
        %v5107 = vstv %s5106
        %v5108 = vmul.f32 %v5107, %v3884
        %v5109 = vmul.f32 %v5107, %v3885
        %v5110 = vmul.f32 %v5107, %v3886
        %v5111 = vmul.f32 %v5107, %v3887
        %v5112 = vmul.f32 %v5107, %v3888
        %v5113 = vmul.f32 %v5107, %v3889
        %v5120 = vrot.slane %v5108, 1
        %v5121 = vrot.slane %v5110, 1
        %v5122 = vsel %vm3319, %v5120, %v5121
        %v5123 = vrot.slane %v5109, 1
        %v5124 = vrot.slane %v5111, 1
        %v5125 = vsel %vm3319, %v5123, %v5124
        %v5126 = vrot.slane %v5112, 1
        %v5127 = vsel %vm3319, %v5121, %v5126
        %v5128 = vrot.slane %v5113, 1
        %v5129 = vsel %vm3319, %v5124, %v5128
        %5130 = vrot.lane.b32.xlu0 %v5122, 113
        %v5131 = vpop.permute.xlu0 %5130
        %5132 = vrot.lane.b32.xlu0 %v5125, 113
        %v5133 = vpop.permute.xlu0 %5132
        %5134 = vrot.lane.b32.xlu0 %v5127, 113
        %v5135 = vpop.permute.xlu0 %5134
        %5136 = vrot.lane.b32.xlu0 %v5129, 113
        %v5137 = vpop.permute.xlu0 %5136
        %v5138 = vsel %vm1677, %v5131, %v5133
        %v5139 = vsel %vm1677, %v5135, %v5137
        %v5142 = vadd.f32 %v4990, %v5138
        %v5143 = vadd.f32 %v4991, %v5139
        %s5144 = sld [smem:[#allocation6 + $0x6f]]
        %v5145 = vstv %s5144
        %v5146 = vmul.f32 %v5145, %v3884
        %v5147 = vmul.f32 %v5145, %v3885
        %v5148 = vmul.f32 %v5145, %v3886
        %v5149 = vmul.f32 %v5145, %v3887
        %v5150 = vmul.f32 %v5145, %v3888
        %v5151 = vmul.f32 %v5145, %v3889
        %v5158 = vrot.slane %v5146, 1
        %v5159 = vrot.slane %v5148, 1
        %v5160 = vsel %vm3319, %v5158, %v5159
        %v5161 = vrot.slane %v5147, 1
        %v5162 = vrot.slane %v5149, 1
        %v5163 = vsel %vm3319, %v5161, %v5162
        %v5164 = vrot.slane %v5150, 1
        %v5165 = vsel %vm3319, %v5159, %v5164
        %v5166 = vrot.slane %v5151, 1
        %v5167 = vsel %vm3319, %v5162, %v5166
        %5168 = vrot.lane.b32.xlu0 %v5160, 113
        %v5169 = vpop.permute.xlu0 %5168
        %5170 = vrot.lane.b32.xlu0 %v5163, 113
        %v5171 = vpop.permute.xlu0 %5170
        %5172 = vrot.lane.b32.xlu0 %v5165, 113
        %v5173 = vpop.permute.xlu0 %5172
        %5174 = vrot.lane.b32.xlu0 %v5167, 113
        %v5175 = vpop.permute.xlu0 %5174
        %v5176 = vsel %vm1677, %v5169, %v5171
        %v5177 = vsel %vm1677, %v5173, %v5175
        %v5180 = vadd.f32 %v5028, %v5176
        %v5181 = vadd.f32 %v5029, %v5177
        %s5182 = sld [smem:[#allocation6 + $0xaf]]
        %v5183 = vstv %s5182
        %v5184 = vmul.f32 %v5183, %v3884
        %v5185 = vmul.f32 %v5183, %v3885
        %v5186 = vmul.f32 %v5183, %v3886
        %v5187 = vmul.f32 %v5183, %v3887
        %v5188 = vmul.f32 %v5183, %v3888
        %v5189 = vmul.f32 %v5183, %v3889
        %v5196 = vrot.slane %v5184, 1
        %v5197 = vrot.slane %v5186, 1
        %v5198 = vsel %vm3319, %v5196, %v5197
        %v5199 = vrot.slane %v5185, 1
        %v5200 = vrot.slane %v5187, 1
        %v5201 = vsel %vm3319, %v5199, %v5200
        %v5202 = vrot.slane %v5188, 1
        %v5203 = vsel %vm3319, %v5197, %v5202
        %v5204 = vrot.slane %v5189, 1
        %v5205 = vsel %vm3319, %v5200, %v5204
        %5206 = vrot.lane.b32.xlu0 %v5198, 113
        %v5207 = vpop.permute.xlu0 %5206
        %5208 = vrot.lane.b32.xlu0 %v5201, 113
        %v5209 = vpop.permute.xlu0 %5208
        %5210 = vrot.lane.b32.xlu0 %v5203, 113
        %v5211 = vpop.permute.xlu0 %5210
        %5212 = vrot.lane.b32.xlu0 %v5205, 113
        %v5213 = vpop.permute.xlu0 %5212
        %v5214 = vsel %vm1677, %v5207, %v5209
        %v5215 = vsel %vm1677, %v5211, %v5213
        %v5218 = vadd.f32 %v5066, %v5214
        %v5219 = vadd.f32 %v5067, %v5215
        %s5220 = sld [smem:[#allocation6 + $0xef]]
        %v5221 = vstv %s5220
        %v5222 = vmul.f32 %v5221, %v3884
        %v5223 = vmul.f32 %v5221, %v3885
        %v5224 = vmul.f32 %v5221, %v3886
        %v5225 = vmul.f32 %v5221, %v3887
        %v5226 = vmul.f32 %v5221, %v3888
        %v5227 = vmul.f32 %v5221, %v3889
        %v5234 = vrot.slane %v5222, 1
        %v5235 = vrot.slane %v5224, 1
        %v5236 = vsel %vm3319, %v5234, %v5235
        %v5237 = vrot.slane %v5223, 1
        %v5238 = vrot.slane %v5225, 1
        %v5239 = vsel %vm3319, %v5237, %v5238
        %v5240 = vrot.slane %v5226, 1
        %v5241 = vsel %vm3319, %v5235, %v5240
        %v5242 = vrot.slane %v5227, 1
        %v5243 = vsel %vm3319, %v5238, %v5242
        %5244 = vrot.lane.b32.xlu0 %v5236, 113
        %v5245 = vpop.permute.xlu0 %5244
        %5246 = vrot.lane.b32.xlu0 %v5239, 113
        %v5247 = vpop.permute.xlu0 %5246
        %5248 = vrot.lane.b32.xlu0 %v5241, 113
        %v5249 = vpop.permute.xlu0 %5248
        %5250 = vrot.lane.b32.xlu0 %v5243, 113
        %v5251 = vpop.permute.xlu0 %5250
        %v5252 = vsel %vm1677, %v5245, %v5247
        %v5253 = vsel %vm1677, %v5249, %v5251
        %v5256 = vadd.f32 %v5104, %v5252
        %v5257 = vadd.f32 %v5105, %v5253
        %s5258 = sld [smem:[#allocation6 + $0x30]]
        %v5259 = vstv %s5258
        %v5260 = vmul.f32 %v5259, %v3884
        %v5261 = vmul.f32 %v5259, %v3885
        %v5262 = vmul.f32 %v5259, %v3886
        %v5263 = vmul.f32 %v5259, %v3887
        %v5264 = vmul.f32 %v5259, %v3888
        %v5265 = vmul.f32 %v5259, %v3889
        %v5272 = vrot.slane %v5260, 1
        %v5273 = vrot.slane %v5262, 1
        %v5274 = vsel %vm3319, %v5272, %v5273
        %v5275 = vrot.slane %v5261, 1
        %v5276 = vrot.slane %v5263, 1
        %v5277 = vsel %vm3319, %v5275, %v5276
        %v5278 = vrot.slane %v5264, 1
        %v5279 = vsel %vm3319, %v5273, %v5278
        %v5280 = vrot.slane %v5265, 1
        %v5281 = vsel %vm3319, %v5276, %v5280
        %5282 = vrot.lane.b32.xlu0 %v5274, 112
        %v5283 = vpop.permute.xlu0 %5282
        %5284 = vrot.lane.b32.xlu0 %v5277, 112
        %v5285 = vpop.permute.xlu0 %5284
        %5286 = vrot.lane.b32.xlu0 %v5279, 112
        %v5287 = vpop.permute.xlu0 %5286
        %5288 = vrot.lane.b32.xlu0 %v5281, 112
        %v5289 = vpop.permute.xlu0 %5288
        %v5290 = vsel %vm1774, %v5283, %v5285
        %v5291 = vsel %vm1774, %v5287, %v5289
        %v5294 = vadd.f32 %v5142, %v5290
        %v5295 = vadd.f32 %v5143, %v5291
        %s5296 = sld [smem:[#allocation6 + $0x70]]
        %v5297 = vstv %s5296
        %v5298 = vmul.f32 %v5297, %v3884
        %v5299 = vmul.f32 %v5297, %v3885
        %v5300 = vmul.f32 %v5297, %v3886
        %v5301 = vmul.f32 %v5297, %v3887
        %v5302 = vmul.f32 %v5297, %v3888
        %v5303 = vmul.f32 %v5297, %v3889
        %v5310 = vrot.slane %v5298, 1
        %v5311 = vrot.slane %v5300, 1
        %v5312 = vsel %vm3319, %v5310, %v5311
        %v5313 = vrot.slane %v5299, 1
        %v5314 = vrot.slane %v5301, 1
        %v5315 = vsel %vm3319, %v5313, %v5314
        %v5316 = vrot.slane %v5302, 1
        %v5317 = vsel %vm3319, %v5311, %v5316
        %v5318 = vrot.slane %v5303, 1
        %v5319 = vsel %vm3319, %v5314, %v5318
        %5320 = vrot.lane.b32.xlu0 %v5312, 112
        %v5321 = vpop.permute.xlu0 %5320
        %5322 = vrot.lane.b32.xlu0 %v5315, 112
        %v5323 = vpop.permute.xlu0 %5322
        %5324 = vrot.lane.b32.xlu0 %v5317, 112
        %v5325 = vpop.permute.xlu0 %5324
        %5326 = vrot.lane.b32.xlu0 %v5319, 112
        %v5327 = vpop.permute.xlu0 %5326
        %v5328 = vsel %vm1774, %v5321, %v5323
        %v5329 = vsel %vm1774, %v5325, %v5327
        %v5332 = vadd.f32 %v5180, %v5328
        %v5333 = vadd.f32 %v5181, %v5329
        %s5334 = sld [smem:[#allocation6 + $0xb0]]
        %v5335 = vstv %s5334
        %v5336 = vmul.f32 %v5335, %v3884
        %v5337 = vmul.f32 %v5335, %v3885
        %v5338 = vmul.f32 %v5335, %v3886
        %v5339 = vmul.f32 %v5335, %v3887
        %v5340 = vmul.f32 %v5335, %v3888
        %v5341 = vmul.f32 %v5335, %v3889
        %v5348 = vrot.slane %v5336, 1
        %v5349 = vrot.slane %v5338, 1
        %v5350 = vsel %vm3319, %v5348, %v5349
        %v5351 = vrot.slane %v5337, 1
        %v5352 = vrot.slane %v5339, 1
        %v5353 = vsel %vm3319, %v5351, %v5352
        %v5354 = vrot.slane %v5340, 1
        %v5355 = vsel %vm3319, %v5349, %v5354
        %v5356 = vrot.slane %v5341, 1
        %v5357 = vsel %vm3319, %v5352, %v5356
        %5358 = vrot.lane.b32.xlu0 %v5350, 112
        %v5359 = vpop.permute.xlu0 %5358
        %5360 = vrot.lane.b32.xlu0 %v5353, 112
        %v5361 = vpop.permute.xlu0 %5360
        %5362 = vrot.lane.b32.xlu0 %v5355, 112
        %v5363 = vpop.permute.xlu0 %5362
        %5364 = vrot.lane.b32.xlu0 %v5357, 112
        %v5365 = vpop.permute.xlu0 %5364
        %v5366 = vsel %vm1774, %v5359, %v5361
        %v5367 = vsel %vm1774, %v5363, %v5365
        %v5370 = vadd.f32 %v5218, %v5366
        %v5371 = vadd.f32 %v5219, %v5367
        %s5372 = sld [smem:[#allocation6 + $0xf0]]
        %v5373 = vstv %s5372
        %v5374 = vmul.f32 %v5373, %v3884
        %v5375 = vmul.f32 %v5373, %v3885
        %v5376 = vmul.f32 %v5373, %v3886
        %v5377 = vmul.f32 %v5373, %v3887
        %v5378 = vmul.f32 %v5373, %v3888
        %v5379 = vmul.f32 %v5373, %v3889
        %v5386 = vrot.slane %v5374, 1
        %v5387 = vrot.slane %v5376, 1
        %v5388 = vsel %vm3319, %v5386, %v5387
        %v5389 = vrot.slane %v5375, 1
        %v5390 = vrot.slane %v5377, 1
        %v5391 = vsel %vm3319, %v5389, %v5390
        %v5392 = vrot.slane %v5378, 1
        %v5393 = vsel %vm3319, %v5387, %v5392
        %v5394 = vrot.slane %v5379, 1
        %v5395 = vsel %vm3319, %v5390, %v5394
        %5396 = vrot.lane.b32.xlu0 %v5388, 112
        %v5397 = vpop.permute.xlu0 %5396
        %5398 = vrot.lane.b32.xlu0 %v5391, 112
        %v5399 = vpop.permute.xlu0 %5398
        %5400 = vrot.lane.b32.xlu0 %v5393, 112
        %v5401 = vpop.permute.xlu0 %5400
        %5402 = vrot.lane.b32.xlu0 %v5395, 112
        %v5403 = vpop.permute.xlu0 %5402
        %v5404 = vsel %vm1774, %v5397, %v5399
        %v5405 = vsel %vm1774, %v5401, %v5403
        %v5408 = vadd.f32 %v5256, %v5404
        %v5409 = vadd.f32 %v5257, %v5405
        %s5410 = sld [smem:[#allocation6 + $0x31]]
        %v5411 = vstv %s5410
        %v5412 = vmul.f32 %v5411, %v3884
        %v5413 = vmul.f32 %v5411, %v3885
        %v5414 = vmul.f32 %v5411, %v3886
        %v5415 = vmul.f32 %v5411, %v3887
        %v5416 = vmul.f32 %v5411, %v3888
        %v5417 = vmul.f32 %v5411, %v3889
        %v5424 = vrot.slane %v5412, 1
        %v5425 = vrot.slane %v5414, 1
        %v5426 = vsel %vm3319, %v5424, %v5425
        %v5427 = vrot.slane %v5413, 1
        %v5428 = vrot.slane %v5415, 1
        %v5429 = vsel %vm3319, %v5427, %v5428
        %v5430 = vrot.slane %v5416, 1
        %v5431 = vsel %vm3319, %v5425, %v5430
        %v5432 = vrot.slane %v5417, 1
        %v5433 = vsel %vm3319, %v5428, %v5432
        %5434 = vrot.lane.b32.xlu0 %v5426, 111
        %v5435 = vpop.permute.xlu0 %5434
        %5436 = vrot.lane.b32.xlu0 %v5429, 111
        %v5437 = vpop.permute.xlu0 %5436
        %5438 = vrot.lane.b32.xlu0 %v5431, 111
        %v5439 = vpop.permute.xlu0 %5438
        %5440 = vrot.lane.b32.xlu0 %v5433, 111
        %v5441 = vpop.permute.xlu0 %5440
        %v5442 = vsel %vm1871, %v5435, %v5437
        %v5443 = vsel %vm1871, %v5439, %v5441
        %v5446 = vadd.f32 %v5294, %v5442
        %v5447 = vadd.f32 %v5295, %v5443
        %s5448 = sld [smem:[#allocation6 + $0x71]]
        %v5449 = vstv %s5448
        %v5450 = vmul.f32 %v5449, %v3884
        %v5451 = vmul.f32 %v5449, %v3885
        %v5452 = vmul.f32 %v5449, %v3886
        %v5453 = vmul.f32 %v5449, %v3887
        %v5454 = vmul.f32 %v5449, %v3888
        %v5455 = vmul.f32 %v5449, %v3889
        %v5462 = vrot.slane %v5450, 1
        %v5463 = vrot.slane %v5452, 1
        %v5464 = vsel %vm3319, %v5462, %v5463
        %v5465 = vrot.slane %v5451, 1
        %v5466 = vrot.slane %v5453, 1
        %v5467 = vsel %vm3319, %v5465, %v5466
        %v5468 = vrot.slane %v5454, 1
        %v5469 = vsel %vm3319, %v5463, %v5468
        %v5470 = vrot.slane %v5455, 1
        %v5471 = vsel %vm3319, %v5466, %v5470
        %5472 = vrot.lane.b32.xlu0 %v5464, 111
        %v5473 = vpop.permute.xlu0 %5472
        %5474 = vrot.lane.b32.xlu0 %v5467, 111
        %v5475 = vpop.permute.xlu0 %5474
        %5476 = vrot.lane.b32.xlu0 %v5469, 111
        %v5477 = vpop.permute.xlu0 %5476
        %5478 = vrot.lane.b32.xlu0 %v5471, 111
        %v5479 = vpop.permute.xlu0 %5478
        %v5480 = vsel %vm1871, %v5473, %v5475
        %v5481 = vsel %vm1871, %v5477, %v5479
        %v5484 = vadd.f32 %v5332, %v5480
        %v5485 = vadd.f32 %v5333, %v5481
        %s5486 = sld [smem:[#allocation6 + $0xb1]]
        %v5487 = vstv %s5486
        %v5488 = vmul.f32 %v5487, %v3884
        %v5489 = vmul.f32 %v5487, %v3885
        %v5490 = vmul.f32 %v5487, %v3886
        %v5491 = vmul.f32 %v5487, %v3887
        %v5492 = vmul.f32 %v5487, %v3888
        %v5493 = vmul.f32 %v5487, %v3889
        %v5500 = vrot.slane %v5488, 1
        %v5501 = vrot.slane %v5490, 1
        %v5502 = vsel %vm3319, %v5500, %v5501
        %v5503 = vrot.slane %v5489, 1
        %v5504 = vrot.slane %v5491, 1
        %v5505 = vsel %vm3319, %v5503, %v5504
        %v5506 = vrot.slane %v5492, 1
        %v5507 = vsel %vm3319, %v5501, %v5506
        %v5508 = vrot.slane %v5493, 1
        %v5509 = vsel %vm3319, %v5504, %v5508
        %5510 = vrot.lane.b32.xlu0 %v5502, 111
        %v5511 = vpop.permute.xlu0 %5510
        %5512 = vrot.lane.b32.xlu0 %v5505, 111
        %v5513 = vpop.permute.xlu0 %5512
        %5514 = vrot.lane.b32.xlu0 %v5507, 111
        %v5515 = vpop.permute.xlu0 %5514
        %5516 = vrot.lane.b32.xlu0 %v5509, 111
        %v5517 = vpop.permute.xlu0 %5516
        %v5518 = vsel %vm1871, %v5511, %v5513
        %v5519 = vsel %vm1871, %v5515, %v5517
        %v5522 = vadd.f32 %v5370, %v5518
        %v5523 = vadd.f32 %v5371, %v5519
        %s5524 = sld [smem:[#allocation6 + $0xf1]]
        %v5525 = vstv %s5524
        %v5526 = vmul.f32 %v5525, %v3884
        %v5527 = vmul.f32 %v5525, %v3885
        %v5528 = vmul.f32 %v5525, %v3886
        %v5529 = vmul.f32 %v5525, %v3887
        %v5530 = vmul.f32 %v5525, %v3888
        %v5531 = vmul.f32 %v5525, %v3889
        %v5538 = vrot.slane %v5526, 1
        %v5539 = vrot.slane %v5528, 1
        %v5540 = vsel %vm3319, %v5538, %v5539
        %v5541 = vrot.slane %v5527, 1
        %v5542 = vrot.slane %v5529, 1
        %v5543 = vsel %vm3319, %v5541, %v5542
        %v5544 = vrot.slane %v5530, 1
        %v5545 = vsel %vm3319, %v5539, %v5544
        %v5546 = vrot.slane %v5531, 1
        %v5547 = vsel %vm3319, %v5542, %v5546
        %5548 = vrot.lane.b32.xlu0 %v5540, 111
        %v5549 = vpop.permute.xlu0 %5548
        %5550 = vrot.lane.b32.xlu0 %v5543, 111
        %v5551 = vpop.permute.xlu0 %5550
        %5552 = vrot.lane.b32.xlu0 %v5545, 111
        %v5553 = vpop.permute.xlu0 %5552
        %5554 = vrot.lane.b32.xlu0 %v5547, 111
        %v5555 = vpop.permute.xlu0 %5554
        %v5556 = vsel %vm1871, %v5549, %v5551
        %v5557 = vsel %vm1871, %v5553, %v5555
        %v5560 = vadd.f32 %v5408, %v5556
        %v5561 = vadd.f32 %v5409, %v5557
        %s5562 = sld [smem:[#allocation6 + $0x32]]
        %v5563 = vstv %s5562
        %v5564 = vmul.f32 %v5563, %v3884
        %v5565 = vmul.f32 %v5563, %v3885
        %v5566 = vmul.f32 %v5563, %v3886
        %v5567 = vmul.f32 %v5563, %v3887
        %v5568 = vmul.f32 %v5563, %v3888
        %v5569 = vmul.f32 %v5563, %v3889
        %v5576 = vrot.slane %v5564, 1
        %v5577 = vrot.slane %v5566, 1
        %v5578 = vsel %vm3319, %v5576, %v5577
        %v5579 = vrot.slane %v5565, 1
        %v5580 = vrot.slane %v5567, 1
        %v5581 = vsel %vm3319, %v5579, %v5580
        %v5582 = vrot.slane %v5568, 1
        %v5583 = vsel %vm3319, %v5577, %v5582
        %v5584 = vrot.slane %v5569, 1
        %v5585 = vsel %vm3319, %v5580, %v5584
        %5586 = vrot.lane.b32.xlu0 %v5578, 110
        %v5587 = vpop.permute.xlu0 %5586
        %5588 = vrot.lane.b32.xlu0 %v5581, 110
        %v5589 = vpop.permute.xlu0 %5588
        %5590 = vrot.lane.b32.xlu0 %v5583, 110
        %v5591 = vpop.permute.xlu0 %5590
        %5592 = vrot.lane.b32.xlu0 %v5585, 110
        %v5593 = vpop.permute.xlu0 %5592
        %v5594 = vsel %vm1968, %v5587, %v5589
        %v5595 = vsel %vm1968, %v5591, %v5593
        %v5598 = vadd.f32 %v5446, %v5594
        %v5599 = vadd.f32 %v5447, %v5595
        %s5600 = sld [smem:[#allocation6 + $0x72]]
        %v5601 = vstv %s5600
        %v5602 = vmul.f32 %v5601, %v3884
        %v5603 = vmul.f32 %v5601, %v3885
        %v5604 = vmul.f32 %v5601, %v3886
        %v5605 = vmul.f32 %v5601, %v3887
        %v5606 = vmul.f32 %v5601, %v3888
        %v5607 = vmul.f32 %v5601, %v3889
        %v5614 = vrot.slane %v5602, 1
        %v5615 = vrot.slane %v5604, 1
        %v5616 = vsel %vm3319, %v5614, %v5615
        %v5617 = vrot.slane %v5603, 1
        %v5618 = vrot.slane %v5605, 1
        %v5619 = vsel %vm3319, %v5617, %v5618
        %v5620 = vrot.slane %v5606, 1
        %v5621 = vsel %vm3319, %v5615, %v5620
        %v5622 = vrot.slane %v5607, 1
        %v5623 = vsel %vm3319, %v5618, %v5622
        %5624 = vrot.lane.b32.xlu0 %v5616, 110
        %v5625 = vpop.permute.xlu0 %5624
        %5626 = vrot.lane.b32.xlu0 %v5619, 110
        %v5627 = vpop.permute.xlu0 %5626
        %5628 = vrot.lane.b32.xlu0 %v5621, 110
        %v5629 = vpop.permute.xlu0 %5628
        %5630 = vrot.lane.b32.xlu0 %v5623, 110
        %v5631 = vpop.permute.xlu0 %5630
        %v5632 = vsel %vm1968, %v5625, %v5627
        %v5633 = vsel %vm1968, %v5629, %v5631
        %v5636 = vadd.f32 %v5484, %v5632
        %v5637 = vadd.f32 %v5485, %v5633
        %s5638 = sld [smem:[#allocation6 + $0xb2]]
        %v5639 = vstv %s5638
        %v5640 = vmul.f32 %v5639, %v3884
        %v5641 = vmul.f32 %v5639, %v3885
        %v5642 = vmul.f32 %v5639, %v3886
        %v5643 = vmul.f32 %v5639, %v3887
        %v5644 = vmul.f32 %v5639, %v3888
        %v5645 = vmul.f32 %v5639, %v3889
        %v5652 = vrot.slane %v5640, 1
        %v5653 = vrot.slane %v5642, 1
        %v5654 = vsel %vm3319, %v5652, %v5653
        %v5655 = vrot.slane %v5641, 1
        %v5656 = vrot.slane %v5643, 1
        %v5657 = vsel %vm3319, %v5655, %v5656
        %v5658 = vrot.slane %v5644, 1
        %v5659 = vsel %vm3319, %v5653, %v5658
        %v5660 = vrot.slane %v5645, 1
        %v5661 = vsel %vm3319, %v5656, %v5660
        %5662 = vrot.lane.b32.xlu0 %v5654, 110
        %v5663 = vpop.permute.xlu0 %5662
        %5664 = vrot.lane.b32.xlu0 %v5657, 110
        %v5665 = vpop.permute.xlu0 %5664
        %5666 = vrot.lane.b32.xlu0 %v5659, 110
        %v5667 = vpop.permute.xlu0 %5666
        %5668 = vrot.lane.b32.xlu0 %v5661, 110
        %v5669 = vpop.permute.xlu0 %5668
        %v5670 = vsel %vm1968, %v5663, %v5665
        %v5671 = vsel %vm1968, %v5667, %v5669
        %v5674 = vadd.f32 %v5522, %v5670
        %v5675 = vadd.f32 %v5523, %v5671
        %s5676 = sld [smem:[#allocation6 + $0xf2]]
        %v5677 = vstv %s5676
        %v5678 = vmul.f32 %v5677, %v3884
        %v5679 = vmul.f32 %v5677, %v3885
        %v5680 = vmul.f32 %v5677, %v3886
        %v5681 = vmul.f32 %v5677, %v3887
        %v5682 = vmul.f32 %v5677, %v3888
        %v5683 = vmul.f32 %v5677, %v3889
        %v5690 = vrot.slane %v5678, 1
        %v5691 = vrot.slane %v5680, 1
        %v5692 = vsel %vm3319, %v5690, %v5691
        %v5693 = vrot.slane %v5679, 1
        %v5694 = vrot.slane %v5681, 1
        %v5695 = vsel %vm3319, %v5693, %v5694
        %v5696 = vrot.slane %v5682, 1
        %v5697 = vsel %vm3319, %v5691, %v5696
        %v5698 = vrot.slane %v5683, 1
        %v5699 = vsel %vm3319, %v5694, %v5698
        %5700 = vrot.lane.b32.xlu0 %v5692, 110
        %v5701 = vpop.permute.xlu0 %5700
        %5702 = vrot.lane.b32.xlu0 %v5695, 110
        %v5703 = vpop.permute.xlu0 %5702
        %5704 = vrot.lane.b32.xlu0 %v5697, 110
        %v5705 = vpop.permute.xlu0 %5704
        %5706 = vrot.lane.b32.xlu0 %v5699, 110
        %v5707 = vpop.permute.xlu0 %5706
        %v5708 = vsel %vm1968, %v5701, %v5703
        %v5709 = vsel %vm1968, %v5705, %v5707
        %v5712 = vadd.f32 %v5560, %v5708
        %v5713 = vadd.f32 %v5561, %v5709
        %s5714 = sld [smem:[#allocation6 + $0x33]]
        %v5715 = vstv %s5714
        %v5716 = vmul.f32 %v5715, %v3884
        %v5717 = vmul.f32 %v5715, %v3885
        %v5718 = vmul.f32 %v5715, %v3886
        %v5719 = vmul.f32 %v5715, %v3887
        %v5720 = vmul.f32 %v5715, %v3888
        %v5721 = vmul.f32 %v5715, %v3889
        %v5728 = vrot.slane %v5716, 1
        %v5729 = vrot.slane %v5718, 1
        %v5730 = vsel %vm3319, %v5728, %v5729
        %v5731 = vrot.slane %v5717, 1
        %v5732 = vrot.slane %v5719, 1
        %v5733 = vsel %vm3319, %v5731, %v5732
        %v5734 = vrot.slane %v5720, 1
        %v5735 = vsel %vm3319, %v5729, %v5734
        %v5736 = vrot.slane %v5721, 1
        %v5737 = vsel %vm3319, %v5732, %v5736
        %5738 = vrot.lane.b32.xlu0 %v5730, 109
        %v5739 = vpop.permute.xlu0 %5738
        %5740 = vrot.lane.b32.xlu0 %v5733, 109
        %v5741 = vpop.permute.xlu0 %5740
        %5742 = vrot.lane.b32.xlu0 %v5735, 109
        %v5743 = vpop.permute.xlu0 %5742
        %5744 = vrot.lane.b32.xlu0 %v5737, 109
        %v5745 = vpop.permute.xlu0 %5744
        %v5746 = vsel %vm2065, %v5739, %v5741
        %v5747 = vsel %vm2065, %v5743, %v5745
        %v5750 = vadd.f32 %v5598, %v5746
        %v5751 = vadd.f32 %v5599, %v5747
        %s5752 = sld [smem:[#allocation6 + $0x73]]
        %v5753 = vstv %s5752
        %v5754 = vmul.f32 %v5753, %v3884
        %v5755 = vmul.f32 %v5753, %v3885
        %v5756 = vmul.f32 %v5753, %v3886
        %v5757 = vmul.f32 %v5753, %v3887
        %v5758 = vmul.f32 %v5753, %v3888
        %v5759 = vmul.f32 %v5753, %v3889
        %v5766 = vrot.slane %v5754, 1
        %v5767 = vrot.slane %v5756, 1
        %v5768 = vsel %vm3319, %v5766, %v5767
        %v5769 = vrot.slane %v5755, 1
        %v5770 = vrot.slane %v5757, 1
        %v5771 = vsel %vm3319, %v5769, %v5770
        %v5772 = vrot.slane %v5758, 1
        %v5773 = vsel %vm3319, %v5767, %v5772
        %v5774 = vrot.slane %v5759, 1
        %v5775 = vsel %vm3319, %v5770, %v5774
        %5776 = vrot.lane.b32.xlu0 %v5768, 109
        %v5777 = vpop.permute.xlu0 %5776
        %5778 = vrot.lane.b32.xlu0 %v5771, 109
        %v5779 = vpop.permute.xlu0 %5778
        %5780 = vrot.lane.b32.xlu0 %v5773, 109
        %v5781 = vpop.permute.xlu0 %5780
        %5782 = vrot.lane.b32.xlu0 %v5775, 109
        %v5783 = vpop.permute.xlu0 %5782
        %v5784 = vsel %vm2065, %v5777, %v5779
        %v5785 = vsel %vm2065, %v5781, %v5783
        %v5788 = vadd.f32 %v5636, %v5784
        %v5789 = vadd.f32 %v5637, %v5785
        %s5790 = sld [smem:[#allocation6 + $0xb3]]
        %v5791 = vstv %s5790
        %v5792 = vmul.f32 %v5791, %v3884
        %v5793 = vmul.f32 %v5791, %v3885
        %v5794 = vmul.f32 %v5791, %v3886
        %v5795 = vmul.f32 %v5791, %v3887
        %v5796 = vmul.f32 %v5791, %v3888
        %v5797 = vmul.f32 %v5791, %v3889
        %v5804 = vrot.slane %v5792, 1
        %v5805 = vrot.slane %v5794, 1
        %v5806 = vsel %vm3319, %v5804, %v5805
        %v5807 = vrot.slane %v5793, 1
        %v5808 = vrot.slane %v5795, 1
        %v5809 = vsel %vm3319, %v5807, %v5808
        %v5810 = vrot.slane %v5796, 1
        %v5811 = vsel %vm3319, %v5805, %v5810
        %v5812 = vrot.slane %v5797, 1
        %v5813 = vsel %vm3319, %v5808, %v5812
        %5814 = vrot.lane.b32.xlu0 %v5806, 109
        %v5815 = vpop.permute.xlu0 %5814
        %5816 = vrot.lane.b32.xlu0 %v5809, 109
        %v5817 = vpop.permute.xlu0 %5816
        %5818 = vrot.lane.b32.xlu0 %v5811, 109
        %v5819 = vpop.permute.xlu0 %5818
        %5820 = vrot.lane.b32.xlu0 %v5813, 109
        %v5821 = vpop.permute.xlu0 %5820
        %v5822 = vsel %vm2065, %v5815, %v5817
        %v5823 = vsel %vm2065, %v5819, %v5821
        %v5826 = vadd.f32 %v5674, %v5822
        %v5827 = vadd.f32 %v5675, %v5823
        %s5828 = sld [smem:[#allocation6 + $0xf3]]
        %v5829 = vstv %s5828
        %v5830 = vmul.f32 %v5829, %v3884
        %v5831 = vmul.f32 %v5829, %v3885
        %v5832 = vmul.f32 %v5829, %v3886
        %v5833 = vmul.f32 %v5829, %v3887
        %v5834 = vmul.f32 %v5829, %v3888
        %v5835 = vmul.f32 %v5829, %v3889
        %v5842 = vrot.slane %v5830, 1
        %v5843 = vrot.slane %v5832, 1
        %v5844 = vsel %vm3319, %v5842, %v5843
        %v5845 = vrot.slane %v5831, 1
        %v5846 = vrot.slane %v5833, 1
        %v5847 = vsel %vm3319, %v5845, %v5846
        %v5848 = vrot.slane %v5834, 1
        %v5849 = vsel %vm3319, %v5843, %v5848
        %v5850 = vrot.slane %v5835, 1
        %v5851 = vsel %vm3319, %v5846, %v5850
        %5852 = vrot.lane.b32.xlu0 %v5844, 109
        %v5853 = vpop.permute.xlu0 %5852
        %5854 = vrot.lane.b32.xlu0 %v5847, 109
        %v5855 = vpop.permute.xlu0 %5854
        %5856 = vrot.lane.b32.xlu0 %v5849, 109
        %v5857 = vpop.permute.xlu0 %5856
        %5858 = vrot.lane.b32.xlu0 %v5851, 109
        %v5859 = vpop.permute.xlu0 %5858
        %v5860 = vsel %vm2065, %v5853, %v5855
        %v5861 = vsel %vm2065, %v5857, %v5859
        %v5864 = vadd.f32 %v5712, %v5860
        %v5865 = vadd.f32 %v5713, %v5861
        %s5866 = sld [smem:[#allocation6 + $0x34]]
        %v5867 = vstv %s5866
        %v5868 = vmul.f32 %v5867, %v3884
        %v5869 = vmul.f32 %v5867, %v3885
        %v5870 = vmul.f32 %v5867, %v3886
        %v5871 = vmul.f32 %v5867, %v3887
        %v5872 = vmul.f32 %v5867, %v3888
        %v5873 = vmul.f32 %v5867, %v3889
        %v5880 = vrot.slane %v5868, 1
        %v5881 = vrot.slane %v5870, 1
        %v5882 = vsel %vm3319, %v5880, %v5881
        %v5883 = vrot.slane %v5869, 1
        %v5884 = vrot.slane %v5871, 1
        %v5885 = vsel %vm3319, %v5883, %v5884
        %v5886 = vrot.slane %v5872, 1
        %v5887 = vsel %vm3319, %v5881, %v5886
        %v5888 = vrot.slane %v5873, 1
        %v5889 = vsel %vm3319, %v5884, %v5888
        %5890 = vrot.lane.b32.xlu0 %v5882, 108
        %v5891 = vpop.permute.xlu0 %5890
        %5892 = vrot.lane.b32.xlu0 %v5885, 108
        %v5893 = vpop.permute.xlu0 %5892
        %5894 = vrot.lane.b32.xlu0 %v5887, 108
        %v5895 = vpop.permute.xlu0 %5894
        %5896 = vrot.lane.b32.xlu0 %v5889, 108
        %v5897 = vpop.permute.xlu0 %5896
        %v5898 = vsel %vm2162, %v5891, %v5893
        %v5899 = vsel %vm2162, %v5895, %v5897
        %v5902 = vadd.f32 %v5750, %v5898
        %v5903 = vadd.f32 %v5751, %v5899
        %s5904 = sld [smem:[#allocation6 + $0x74]]
        %v5905 = vstv %s5904
        %v5906 = vmul.f32 %v5905, %v3884
        %v5907 = vmul.f32 %v5905, %v3885
        %v5908 = vmul.f32 %v5905, %v3886
        %v5909 = vmul.f32 %v5905, %v3887
        %v5910 = vmul.f32 %v5905, %v3888
        %v5911 = vmul.f32 %v5905, %v3889
        %v5918 = vrot.slane %v5906, 1
        %v5919 = vrot.slane %v5908, 1
        %v5920 = vsel %vm3319, %v5918, %v5919
        %v5921 = vrot.slane %v5907, 1
        %v5922 = vrot.slane %v5909, 1
        %v5923 = vsel %vm3319, %v5921, %v5922
        %v5924 = vrot.slane %v5910, 1
        %v5925 = vsel %vm3319, %v5919, %v5924
        %v5926 = vrot.slane %v5911, 1
        %v5927 = vsel %vm3319, %v5922, %v5926
        %5928 = vrot.lane.b32.xlu0 %v5920, 108
        %v5929 = vpop.permute.xlu0 %5928
        %5930 = vrot.lane.b32.xlu0 %v5923, 108
        %v5931 = vpop.permute.xlu0 %5930
        %5932 = vrot.lane.b32.xlu0 %v5925, 108
        %v5933 = vpop.permute.xlu0 %5932
        %5934 = vrot.lane.b32.xlu0 %v5927, 108
        %v5935 = vpop.permute.xlu0 %5934
        %v5936 = vsel %vm2162, %v5929, %v5931
        %v5937 = vsel %vm2162, %v5933, %v5935
        %v5940 = vadd.f32 %v5788, %v5936
        %v5941 = vadd.f32 %v5789, %v5937
        %s5942 = sld [smem:[#allocation6 + $0xb4]]
        %v5943 = vstv %s5942
        %v5944 = vmul.f32 %v5943, %v3884
        %v5945 = vmul.f32 %v5943, %v3885
        %v5946 = vmul.f32 %v5943, %v3886
        %v5947 = vmul.f32 %v5943, %v3887
        %v5948 = vmul.f32 %v5943, %v3888
        %v5949 = vmul.f32 %v5943, %v3889
        %v5956 = vrot.slane %v5944, 1
        %v5957 = vrot.slane %v5946, 1
        %v5958 = vsel %vm3319, %v5956, %v5957
        %v5959 = vrot.slane %v5945, 1
        %v5960 = vrot.slane %v5947, 1
        %v5961 = vsel %vm3319, %v5959, %v5960
        %v5962 = vrot.slane %v5948, 1
        %v5963 = vsel %vm3319, %v5957, %v5962
        %v5964 = vrot.slane %v5949, 1
        %v5965 = vsel %vm3319, %v5960, %v5964
        %5966 = vrot.lane.b32.xlu0 %v5958, 108
        %v5967 = vpop.permute.xlu0 %5966
        %5968 = vrot.lane.b32.xlu0 %v5961, 108
        %v5969 = vpop.permute.xlu0 %5968
        %5970 = vrot.lane.b32.xlu0 %v5963, 108
        %v5971 = vpop.permute.xlu0 %5970
        %5972 = vrot.lane.b32.xlu0 %v5965, 108
        %v5973 = vpop.permute.xlu0 %5972
        %v5974 = vsel %vm2162, %v5967, %v5969
        %v5975 = vsel %vm2162, %v5971, %v5973
        %v5978 = vadd.f32 %v5826, %v5974
        %v5979 = vadd.f32 %v5827, %v5975
        %s5980 = sld [smem:[#allocation6 + $0xf4]]
        %v5981 = vstv %s5980
        %v5982 = vmul.f32 %v5981, %v3884
        %v5983 = vmul.f32 %v5981, %v3885
        %v5984 = vmul.f32 %v5981, %v3886
        %v5985 = vmul.f32 %v5981, %v3887
        %v5986 = vmul.f32 %v5981, %v3888
        %v5987 = vmul.f32 %v5981, %v3889
        %v5994 = vrot.slane %v5982, 1
        %v5995 = vrot.slane %v5984, 1
        %v5996 = vsel %vm3319, %v5994, %v5995
        %v5997 = vrot.slane %v5983, 1
        %v5998 = vrot.slane %v5985, 1
        %v5999 = vsel %vm3319, %v5997, %v5998
        %v6000 = vrot.slane %v5986, 1
        %v6001 = vsel %vm3319, %v5995, %v6000
        %v6002 = vrot.slane %v5987, 1
        %v6003 = vsel %vm3319, %v5998, %v6002
        %6004 = vrot.lane.b32.xlu0 %v5996, 108
        %v6005 = vpop.permute.xlu0 %6004
        %6006 = vrot.lane.b32.xlu0 %v5999, 108
        %v6007 = vpop.permute.xlu0 %6006
        %6008 = vrot.lane.b32.xlu0 %v6001, 108
        %v6009 = vpop.permute.xlu0 %6008
        %6010 = vrot.lane.b32.xlu0 %v6003, 108
        %v6011 = vpop.permute.xlu0 %6010
        %v6012 = vsel %vm2162, %v6005, %v6007
        %v6013 = vsel %vm2162, %v6009, %v6011
        %v6016 = vadd.f32 %v5864, %v6012
        %v6017 = vadd.f32 %v5865, %v6013
        %s6018 = sld [smem:[#allocation6 + $0x35]]
        %v6019 = vstv %s6018
        %v6020 = vmul.f32 %v6019, %v3884
        %v6021 = vmul.f32 %v6019, %v3885
        %v6022 = vmul.f32 %v6019, %v3886
        %v6023 = vmul.f32 %v6019, %v3887
        %v6024 = vmul.f32 %v6019, %v3888
        %v6025 = vmul.f32 %v6019, %v3889
        %v6032 = vrot.slane %v6020, 1
        %v6033 = vrot.slane %v6022, 1
        %v6034 = vsel %vm3319, %v6032, %v6033
        %v6035 = vrot.slane %v6021, 1
        %v6036 = vrot.slane %v6023, 1
        %v6037 = vsel %vm3319, %v6035, %v6036
        %v6038 = vrot.slane %v6024, 1
        %v6039 = vsel %vm3319, %v6033, %v6038
        %v6040 = vrot.slane %v6025, 1
        %v6041 = vsel %vm3319, %v6036, %v6040
        %6042 = vrot.lane.b32.xlu0 %v6034, 107
        %v6043 = vpop.permute.xlu0 %6042
        %6044 = vrot.lane.b32.xlu0 %v6037, 107
        %v6045 = vpop.permute.xlu0 %6044
        %6046 = vrot.lane.b32.xlu0 %v6039, 107
        %v6047 = vpop.permute.xlu0 %6046
        %6048 = vrot.lane.b32.xlu0 %v6041, 107
        %v6049 = vpop.permute.xlu0 %6048
        %v6050 = vsel %vm2259, %v6043, %v6045
        %v6051 = vsel %vm2259, %v6047, %v6049
        %v6054 = vadd.f32 %v5902, %v6050
        %v6055 = vadd.f32 %v5903, %v6051
        %s6056 = sld [smem:[#allocation6 + $0x75]]
        %v6057 = vstv %s6056
        %v6058 = vmul.f32 %v6057, %v3884
        %v6059 = vmul.f32 %v6057, %v3885
        %v6060 = vmul.f32 %v6057, %v3886
        %v6061 = vmul.f32 %v6057, %v3887
        %v6062 = vmul.f32 %v6057, %v3888
        %v6063 = vmul.f32 %v6057, %v3889
        %v6070 = vrot.slane %v6058, 1
        %v6071 = vrot.slane %v6060, 1
        %v6072 = vsel %vm3319, %v6070, %v6071
        %v6073 = vrot.slane %v6059, 1
        %v6074 = vrot.slane %v6061, 1
        %v6075 = vsel %vm3319, %v6073, %v6074
        %v6076 = vrot.slane %v6062, 1
        %v6077 = vsel %vm3319, %v6071, %v6076
        %v6078 = vrot.slane %v6063, 1
        %v6079 = vsel %vm3319, %v6074, %v6078
        %6080 = vrot.lane.b32.xlu0 %v6072, 107
        %v6081 = vpop.permute.xlu0 %6080
        %6082 = vrot.lane.b32.xlu0 %v6075, 107
        %v6083 = vpop.permute.xlu0 %6082
        %6084 = vrot.lane.b32.xlu0 %v6077, 107
        %v6085 = vpop.permute.xlu0 %6084
        %6086 = vrot.lane.b32.xlu0 %v6079, 107
        %v6087 = vpop.permute.xlu0 %6086
        %v6088 = vsel %vm2259, %v6081, %v6083
        %v6089 = vsel %vm2259, %v6085, %v6087
        %v6092 = vadd.f32 %v5940, %v6088
        %v6093 = vadd.f32 %v5941, %v6089
        %s6094 = sld [smem:[#allocation6 + $0xb5]]
        %v6095 = vstv %s6094
        %v6096 = vmul.f32 %v6095, %v3884
        %v6097 = vmul.f32 %v6095, %v3885
        %v6098 = vmul.f32 %v6095, %v3886
        %v6099 = vmul.f32 %v6095, %v3887
        %v6100 = vmul.f32 %v6095, %v3888
        %v6101 = vmul.f32 %v6095, %v3889
        %v6108 = vrot.slane %v6096, 1
        %v6109 = vrot.slane %v6098, 1
        %v6110 = vsel %vm3319, %v6108, %v6109
        %v6111 = vrot.slane %v6097, 1
        %v6112 = vrot.slane %v6099, 1
        %v6113 = vsel %vm3319, %v6111, %v6112
        %v6114 = vrot.slane %v6100, 1
        %v6115 = vsel %vm3319, %v6109, %v6114
        %v6116 = vrot.slane %v6101, 1
        %v6117 = vsel %vm3319, %v6112, %v6116
        %6118 = vrot.lane.b32.xlu0 %v6110, 107
        %v6119 = vpop.permute.xlu0 %6118
        %6120 = vrot.lane.b32.xlu0 %v6113, 107
        %v6121 = vpop.permute.xlu0 %6120
        %6122 = vrot.lane.b32.xlu0 %v6115, 107
        %v6123 = vpop.permute.xlu0 %6122
        %6124 = vrot.lane.b32.xlu0 %v6117, 107
        %v6125 = vpop.permute.xlu0 %6124
        %v6126 = vsel %vm2259, %v6119, %v6121
        %v6127 = vsel %vm2259, %v6123, %v6125
        %v6130 = vadd.f32 %v5978, %v6126
        %v6131 = vadd.f32 %v5979, %v6127
        %s6132 = sld [smem:[#allocation6 + $0xf5]]
        %v6133 = vstv %s6132
        %v6134 = vmul.f32 %v6133, %v3884
        %v6135 = vmul.f32 %v6133, %v3885
        %v6136 = vmul.f32 %v6133, %v3886
        %v6137 = vmul.f32 %v6133, %v3887
        %v6138 = vmul.f32 %v6133, %v3888
        %v6139 = vmul.f32 %v6133, %v3889
        %v6146 = vrot.slane %v6134, 1
        %v6147 = vrot.slane %v6136, 1
        %v6148 = vsel %vm3319, %v6146, %v6147
        %v6149 = vrot.slane %v6135, 1
        %v6150 = vrot.slane %v6137, 1
        %v6151 = vsel %vm3319, %v6149, %v6150
        %v6152 = vrot.slane %v6138, 1
        %v6153 = vsel %vm3319, %v6147, %v6152
        %v6154 = vrot.slane %v6139, 1
        %v6155 = vsel %vm3319, %v6150, %v6154
        %6156 = vrot.lane.b32.xlu0 %v6148, 107
        %v6157 = vpop.permute.xlu0 %6156
        %6158 = vrot.lane.b32.xlu0 %v6151, 107
        %v6159 = vpop.permute.xlu0 %6158
        %6160 = vrot.lane.b32.xlu0 %v6153, 107
        %v6161 = vpop.permute.xlu0 %6160
        %6162 = vrot.lane.b32.xlu0 %v6155, 107
        %v6163 = vpop.permute.xlu0 %6162
        %v6164 = vsel %vm2259, %v6157, %v6159
        %v6165 = vsel %vm2259, %v6161, %v6163
        %v6168 = vadd.f32 %v6016, %v6164
        %v6169 = vadd.f32 %v6017, %v6165
        %s6170 = sld [smem:[#allocation6 + $0x36]]
        %v6171 = vstv %s6170
        %v6172 = vmul.f32 %v6171, %v3884
        %v6173 = vmul.f32 %v6171, %v3885
        %v6174 = vmul.f32 %v6171, %v3886
        %v6175 = vmul.f32 %v6171, %v3887
        %v6176 = vmul.f32 %v6171, %v3888
        %v6177 = vmul.f32 %v6171, %v3889
        %v6184 = vrot.slane %v6172, 1
        %v6185 = vrot.slane %v6174, 1
        %v6186 = vsel %vm3319, %v6184, %v6185
        %v6187 = vrot.slane %v6173, 1
        %v6188 = vrot.slane %v6175, 1
        %v6189 = vsel %vm3319, %v6187, %v6188
        %v6190 = vrot.slane %v6176, 1
        %v6191 = vsel %vm3319, %v6185, %v6190
        %v6192 = vrot.slane %v6177, 1
        %v6193 = vsel %vm3319, %v6188, %v6192
        %6194 = vrot.lane.b32.xlu0 %v6186, 106
        %v6195 = vpop.permute.xlu0 %6194
        %6196 = vrot.lane.b32.xlu0 %v6189, 106
        %v6197 = vpop.permute.xlu0 %6196
        %6198 = vrot.lane.b32.xlu0 %v6191, 106
        %v6199 = vpop.permute.xlu0 %6198
        %6200 = vrot.lane.b32.xlu0 %v6193, 106
        %v6201 = vpop.permute.xlu0 %6200
        %v6202 = vsel %vm2356, %v6195, %v6197
        %v6203 = vsel %vm2356, %v6199, %v6201
        %v6206 = vadd.f32 %v6054, %v6202
        %v6207 = vadd.f32 %v6055, %v6203
        %s6208 = sld [smem:[#allocation6 + $0x76]]
        %v6209 = vstv %s6208
        %v6210 = vmul.f32 %v6209, %v3884
        %v6211 = vmul.f32 %v6209, %v3885
        %v6212 = vmul.f32 %v6209, %v3886
        %v6213 = vmul.f32 %v6209, %v3887
        %v6214 = vmul.f32 %v6209, %v3888
        %v6215 = vmul.f32 %v6209, %v3889
        %v6222 = vrot.slane %v6210, 1
        %v6223 = vrot.slane %v6212, 1
        %v6224 = vsel %vm3319, %v6222, %v6223
        %v6225 = vrot.slane %v6211, 1
        %v6226 = vrot.slane %v6213, 1
        %v6227 = vsel %vm3319, %v6225, %v6226
        %v6228 = vrot.slane %v6214, 1
        %v6229 = vsel %vm3319, %v6223, %v6228
        %v6230 = vrot.slane %v6215, 1
        %v6231 = vsel %vm3319, %v6226, %v6230
        %6232 = vrot.lane.b32.xlu0 %v6224, 106
        %v6233 = vpop.permute.xlu0 %6232
        %6234 = vrot.lane.b32.xlu0 %v6227, 106
        %v6235 = vpop.permute.xlu0 %6234
        %6236 = vrot.lane.b32.xlu0 %v6229, 106
        %v6237 = vpop.permute.xlu0 %6236
        %6238 = vrot.lane.b32.xlu0 %v6231, 106
        %v6239 = vpop.permute.xlu0 %6238
        %v6240 = vsel %vm2356, %v6233, %v6235
        %v6241 = vsel %vm2356, %v6237, %v6239
        %v6244 = vadd.f32 %v6092, %v6240
        %v6245 = vadd.f32 %v6093, %v6241
        %s6246 = sld [smem:[#allocation6 + $0xb6]]
        %v6247 = vstv %s6246
        %v6248 = vmul.f32 %v6247, %v3884
        %v6249 = vmul.f32 %v6247, %v3885
        %v6250 = vmul.f32 %v6247, %v3886
        %v6251 = vmul.f32 %v6247, %v3887
        %v6252 = vmul.f32 %v6247, %v3888
        %v6253 = vmul.f32 %v6247, %v3889
        %v6260 = vrot.slane %v6248, 1
        %v6261 = vrot.slane %v6250, 1
        %v6262 = vsel %vm3319, %v6260, %v6261
        %v6263 = vrot.slane %v6249, 1
        %v6264 = vrot.slane %v6251, 1
        %v6265 = vsel %vm3319, %v6263, %v6264
        %v6266 = vrot.slane %v6252, 1
        %v6267 = vsel %vm3319, %v6261, %v6266
        %v6268 = vrot.slane %v6253, 1
        %v6269 = vsel %vm3319, %v6264, %v6268
        %6270 = vrot.lane.b32.xlu0 %v6262, 106
        %v6271 = vpop.permute.xlu0 %6270
        %6272 = vrot.lane.b32.xlu0 %v6265, 106
        %v6273 = vpop.permute.xlu0 %6272
        %6274 = vrot.lane.b32.xlu0 %v6267, 106
        %v6275 = vpop.permute.xlu0 %6274
        %6276 = vrot.lane.b32.xlu0 %v6269, 106
        %v6277 = vpop.permute.xlu0 %6276
        %v6278 = vsel %vm2356, %v6271, %v6273
        %v6279 = vsel %vm2356, %v6275, %v6277
        %v6282 = vadd.f32 %v6130, %v6278
        %v6283 = vadd.f32 %v6131, %v6279
        %s6284 = sld [smem:[#allocation6 + $0xf6]]
        %v6285 = vstv %s6284
        %v6286 = vmul.f32 %v6285, %v3884
        %v6287 = vmul.f32 %v6285, %v3885
        %v6288 = vmul.f32 %v6285, %v3886
        %v6289 = vmul.f32 %v6285, %v3887
        %v6290 = vmul.f32 %v6285, %v3888
        %v6291 = vmul.f32 %v6285, %v3889
        %v6298 = vrot.slane %v6286, 1
        %v6299 = vrot.slane %v6288, 1
        %v6300 = vsel %vm3319, %v6298, %v6299
        %v6301 = vrot.slane %v6287, 1
        %v6302 = vrot.slane %v6289, 1
        %v6303 = vsel %vm3319, %v6301, %v6302
        %v6304 = vrot.slane %v6290, 1
        %v6305 = vsel %vm3319, %v6299, %v6304
        %v6306 = vrot.slane %v6291, 1
        %v6307 = vsel %vm3319, %v6302, %v6306
        %6308 = vrot.lane.b32.xlu0 %v6300, 106
        %v6309 = vpop.permute.xlu0 %6308
        %6310 = vrot.lane.b32.xlu0 %v6303, 106
        %v6311 = vpop.permute.xlu0 %6310
        %6312 = vrot.lane.b32.xlu0 %v6305, 106
        %v6313 = vpop.permute.xlu0 %6312
        %6314 = vrot.lane.b32.xlu0 %v6307, 106
        %v6315 = vpop.permute.xlu0 %6314
        %v6316 = vsel %vm2356, %v6309, %v6311
        %v6317 = vsel %vm2356, %v6313, %v6315
        %v6320 = vadd.f32 %v6168, %v6316
        %v6321 = vadd.f32 %v6169, %v6317
        %s6322 = sld [smem:[#allocation6 + $0x37]]
        %v6323 = vstv %s6322
        %v6324 = vmul.f32 %v6323, %v3884
        %v6325 = vmul.f32 %v6323, %v3885
        %v6326 = vmul.f32 %v6323, %v3886
        %v6327 = vmul.f32 %v6323, %v3887
        %v6328 = vmul.f32 %v6323, %v3888
        %v6329 = vmul.f32 %v6323, %v3889
        %v6336 = vrot.slane %v6324, 1
        %v6337 = vrot.slane %v6326, 1
        %v6338 = vsel %vm3319, %v6336, %v6337
        %v6339 = vrot.slane %v6325, 1
        %v6340 = vrot.slane %v6327, 1
        %v6341 = vsel %vm3319, %v6339, %v6340
        %v6342 = vrot.slane %v6328, 1
        %v6343 = vsel %vm3319, %v6337, %v6342
        %v6344 = vrot.slane %v6329, 1
        %v6345 = vsel %vm3319, %v6340, %v6344
        %6346 = vrot.lane.b32.xlu0 %v6338, 105
        %v6347 = vpop.permute.xlu0 %6346
        %6348 = vrot.lane.b32.xlu0 %v6341, 105
        %v6349 = vpop.permute.xlu0 %6348
        %6350 = vrot.lane.b32.xlu0 %v6343, 105
        %v6351 = vpop.permute.xlu0 %6350
        %6352 = vrot.lane.b32.xlu0 %v6345, 105
        %v6353 = vpop.permute.xlu0 %6352
        %v6354 = vsel %vm2453, %v6347, %v6349
        %v6355 = vsel %vm2453, %v6351, %v6353
        %v6358 = vadd.f32 %v6206, %v6354
        %v6359 = vadd.f32 %v6207, %v6355
        %s6360 = sld [smem:[#allocation6 + $0x77]]
        %v6361 = vstv %s6360
        %v6362 = vmul.f32 %v6361, %v3884
        %v6363 = vmul.f32 %v6361, %v3885
        %v6364 = vmul.f32 %v6361, %v3886
        %v6365 = vmul.f32 %v6361, %v3887
        %v6366 = vmul.f32 %v6361, %v3888
        %v6367 = vmul.f32 %v6361, %v3889
        %v6374 = vrot.slane %v6362, 1
        %v6375 = vrot.slane %v6364, 1
        %v6376 = vsel %vm3319, %v6374, %v6375
        %v6377 = vrot.slane %v6363, 1
        %v6378 = vrot.slane %v6365, 1
        %v6379 = vsel %vm3319, %v6377, %v6378
        %v6380 = vrot.slane %v6366, 1
        %v6381 = vsel %vm3319, %v6375, %v6380
        %v6382 = vrot.slane %v6367, 1
        %v6383 = vsel %vm3319, %v6378, %v6382
        %6384 = vrot.lane.b32.xlu0 %v6376, 105
        %v6385 = vpop.permute.xlu0 %6384
        %6386 = vrot.lane.b32.xlu0 %v6379, 105
        %v6387 = vpop.permute.xlu0 %6386
        %6388 = vrot.lane.b32.xlu0 %v6381, 105
        %v6389 = vpop.permute.xlu0 %6388
        %6390 = vrot.lane.b32.xlu0 %v6383, 105
        %v6391 = vpop.permute.xlu0 %6390
        %v6392 = vsel %vm2453, %v6385, %v6387
        %v6393 = vsel %vm2453, %v6389, %v6391
        %v6396 = vadd.f32 %v6244, %v6392
        %v6397 = vadd.f32 %v6245, %v6393
        %s6398 = sld [smem:[#allocation6 + $0xb7]]
        %v6399 = vstv %s6398
        %v6400 = vmul.f32 %v6399, %v3884
        %v6401 = vmul.f32 %v6399, %v3885
        %v6402 = vmul.f32 %v6399, %v3886
        %v6403 = vmul.f32 %v6399, %v3887
        %v6404 = vmul.f32 %v6399, %v3888
        %v6405 = vmul.f32 %v6399, %v3889
        %v6412 = vrot.slane %v6400, 1
        %v6413 = vrot.slane %v6402, 1
        %v6414 = vsel %vm3319, %v6412, %v6413
        %v6415 = vrot.slane %v6401, 1
        %v6416 = vrot.slane %v6403, 1
        %v6417 = vsel %vm3319, %v6415, %v6416
        %v6418 = vrot.slane %v6404, 1
        %v6419 = vsel %vm3319, %v6413, %v6418
        %v6420 = vrot.slane %v6405, 1
        %v6421 = vsel %vm3319, %v6416, %v6420
        %6422 = vrot.lane.b32.xlu0 %v6414, 105
        %v6423 = vpop.permute.xlu0 %6422
        %6424 = vrot.lane.b32.xlu0 %v6417, 105
        %v6425 = vpop.permute.xlu0 %6424
        %6426 = vrot.lane.b32.xlu0 %v6419, 105
        %v6427 = vpop.permute.xlu0 %6426
        %6428 = vrot.lane.b32.xlu0 %v6421, 105
        %v6429 = vpop.permute.xlu0 %6428
        %v6430 = vsel %vm2453, %v6423, %v6425
        %v6431 = vsel %vm2453, %v6427, %v6429
        %v6434 = vadd.f32 %v6282, %v6430
        %v6435 = vadd.f32 %v6283, %v6431
        %s6436 = sld [smem:[#allocation6 + $0xf7]]
        %v6437 = vstv %s6436
        %v6438 = vmul.f32 %v6437, %v3884
        %v6439 = vmul.f32 %v6437, %v3885
        %v6440 = vmul.f32 %v6437, %v3886
        %v6441 = vmul.f32 %v6437, %v3887
        %v6442 = vmul.f32 %v6437, %v3888
        %v6443 = vmul.f32 %v6437, %v3889
        %v6450 = vrot.slane %v6438, 1
        %v6451 = vrot.slane %v6440, 1
        %v6452 = vsel %vm3319, %v6450, %v6451
        %v6453 = vrot.slane %v6439, 1
        %v6454 = vrot.slane %v6441, 1
        %v6455 = vsel %vm3319, %v6453, %v6454
        %v6456 = vrot.slane %v6442, 1
        %v6457 = vsel %vm3319, %v6451, %v6456
        %v6458 = vrot.slane %v6443, 1
        %v6459 = vsel %vm3319, %v6454, %v6458
        %6460 = vrot.lane.b32.xlu0 %v6452, 105
        %v6461 = vpop.permute.xlu0 %6460
        %6462 = vrot.lane.b32.xlu0 %v6455, 105
        %v6463 = vpop.permute.xlu0 %6462
        %6464 = vrot.lane.b32.xlu0 %v6457, 105
        %v6465 = vpop.permute.xlu0 %6464
        %6466 = vrot.lane.b32.xlu0 %v6459, 105
        %v6467 = vpop.permute.xlu0 %6466
        %v6468 = vsel %vm2453, %v6461, %v6463
        %v6469 = vsel %vm2453, %v6465, %v6467
        %v6472 = vadd.f32 %v6320, %v6468
        %v6473 = vadd.f32 %v6321, %v6469
        %s6474 = sld [smem:[#allocation6 + $0x38]]
        %v6475 = vstv %s6474
        %v6476 = vmul.f32 %v6475, %v3884
        %v6477 = vmul.f32 %v6475, %v3885
        %v6478 = vmul.f32 %v6475, %v3886
        %v6479 = vmul.f32 %v6475, %v3887
        %v6480 = vmul.f32 %v6475, %v3888
        %v6481 = vmul.f32 %v6475, %v3889
        %v6488 = vrot.slane %v6476, 1
        %v6489 = vrot.slane %v6478, 1
        %v6490 = vsel %vm3319, %v6488, %v6489
        %v6491 = vrot.slane %v6477, 1
        %v6492 = vrot.slane %v6479, 1
        %v6493 = vsel %vm3319, %v6491, %v6492
        %v6494 = vrot.slane %v6480, 1
        %v6495 = vsel %vm3319, %v6489, %v6494
        %v6496 = vrot.slane %v6481, 1
        %v6497 = vsel %vm3319, %v6492, %v6496
        %6498 = vrot.lane.b32.xlu0 %v6490, 104
        %v6499 = vpop.permute.xlu0 %6498
        %6500 = vrot.lane.b32.xlu0 %v6493, 104
        %v6501 = vpop.permute.xlu0 %6500
        %6502 = vrot.lane.b32.xlu0 %v6495, 104
        %v6503 = vpop.permute.xlu0 %6502
        %6504 = vrot.lane.b32.xlu0 %v6497, 104
        %v6505 = vpop.permute.xlu0 %6504
        %v6506 = vsel %vm2550, %v6499, %v6501
        %v6507 = vsel %vm2550, %v6503, %v6505
        %v6510 = vadd.f32 %v6358, %v6506
        %v6511 = vadd.f32 %v6359, %v6507
        %s6512 = sld [smem:[#allocation6 + $0x78]]
        %v6513 = vstv %s6512
        %v6514 = vmul.f32 %v6513, %v3884
        %v6515 = vmul.f32 %v6513, %v3885
        %v6516 = vmul.f32 %v6513, %v3886
        %v6517 = vmul.f32 %v6513, %v3887
        %v6518 = vmul.f32 %v6513, %v3888
        %v6519 = vmul.f32 %v6513, %v3889
        %v6526 = vrot.slane %v6514, 1
        %v6527 = vrot.slane %v6516, 1
        %v6528 = vsel %vm3319, %v6526, %v6527
        %v6529 = vrot.slane %v6515, 1
        %v6530 = vrot.slane %v6517, 1
        %v6531 = vsel %vm3319, %v6529, %v6530
        %v6532 = vrot.slane %v6518, 1
        %v6533 = vsel %vm3319, %v6527, %v6532
        %v6534 = vrot.slane %v6519, 1
        %v6535 = vsel %vm3319, %v6530, %v6534
        %6536 = vrot.lane.b32.xlu0 %v6528, 104
        %v6537 = vpop.permute.xlu0 %6536
        %6538 = vrot.lane.b32.xlu0 %v6531, 104
        %v6539 = vpop.permute.xlu0 %6538
        %6540 = vrot.lane.b32.xlu0 %v6533, 104
        %v6541 = vpop.permute.xlu0 %6540
        %6542 = vrot.lane.b32.xlu0 %v6535, 104
        %v6543 = vpop.permute.xlu0 %6542
        %v6544 = vsel %vm2550, %v6537, %v6539
        %v6545 = vsel %vm2550, %v6541, %v6543
        %v6548 = vadd.f32 %v6396, %v6544
        %v6549 = vadd.f32 %v6397, %v6545
        %s6550 = sld [smem:[#allocation6 + $0xb8]]
        %v6551 = vstv %s6550
        %v6552 = vmul.f32 %v6551, %v3884
        %v6553 = vmul.f32 %v6551, %v3885
        %v6554 = vmul.f32 %v6551, %v3886
        %v6555 = vmul.f32 %v6551, %v3887
        %v6556 = vmul.f32 %v6551, %v3888
        %v6557 = vmul.f32 %v6551, %v3889
        %v6564 = vrot.slane %v6552, 1
        %v6565 = vrot.slane %v6554, 1
        %v6566 = vsel %vm3319, %v6564, %v6565
        %v6567 = vrot.slane %v6553, 1
        %v6568 = vrot.slane %v6555, 1
        %v6569 = vsel %vm3319, %v6567, %v6568
        %v6570 = vrot.slane %v6556, 1
        %v6571 = vsel %vm3319, %v6565, %v6570
        %v6572 = vrot.slane %v6557, 1
        %v6573 = vsel %vm3319, %v6568, %v6572
        %6574 = vrot.lane.b32.xlu0 %v6566, 104
        %v6575 = vpop.permute.xlu0 %6574
        %6576 = vrot.lane.b32.xlu0 %v6569, 104
        %v6577 = vpop.permute.xlu0 %6576
        %6578 = vrot.lane.b32.xlu0 %v6571, 104
        %v6579 = vpop.permute.xlu0 %6578
        %6580 = vrot.lane.b32.xlu0 %v6573, 104
        %v6581 = vpop.permute.xlu0 %6580
        %v6582 = vsel %vm2550, %v6575, %v6577
        %v6583 = vsel %vm2550, %v6579, %v6581
        %v6586 = vadd.f32 %v6434, %v6582
        %v6587 = vadd.f32 %v6435, %v6583
        %s6588 = sld [smem:[#allocation6 + $0xf8]]
        %v6589 = vstv %s6588
        %v6590 = vmul.f32 %v6589, %v3884
        %v6591 = vmul.f32 %v6589, %v3885
        %v6592 = vmul.f32 %v6589, %v3886
        %v6593 = vmul.f32 %v6589, %v3887
        %v6594 = vmul.f32 %v6589, %v3888
        %v6595 = vmul.f32 %v6589, %v3889
        %v6602 = vrot.slane %v6590, 1
        %v6603 = vrot.slane %v6592, 1
        %v6604 = vsel %vm3319, %v6602, %v6603
        %v6605 = vrot.slane %v6591, 1
        %v6606 = vrot.slane %v6593, 1
        %v6607 = vsel %vm3319, %v6605, %v6606
        %v6608 = vrot.slane %v6594, 1
        %v6609 = vsel %vm3319, %v6603, %v6608
        %v6610 = vrot.slane %v6595, 1
        %v6611 = vsel %vm3319, %v6606, %v6610
        %6612 = vrot.lane.b32.xlu0 %v6604, 104
        %v6613 = vpop.permute.xlu0 %6612
        %6614 = vrot.lane.b32.xlu0 %v6607, 104
        %v6615 = vpop.permute.xlu0 %6614
        %6616 = vrot.lane.b32.xlu0 %v6609, 104
        %v6617 = vpop.permute.xlu0 %6616
        %6618 = vrot.lane.b32.xlu0 %v6611, 104
        %v6619 = vpop.permute.xlu0 %6618
        %v6620 = vsel %vm2550, %v6613, %v6615
        %v6621 = vsel %vm2550, %v6617, %v6619
        %v6624 = vadd.f32 %v6472, %v6620
        %v6625 = vadd.f32 %v6473, %v6621
        %s6626 = sld [smem:[#allocation6 + $0x39]]
        %v6627 = vstv %s6626
        %v6628 = vmul.f32 %v6627, %v3884
        %v6629 = vmul.f32 %v6627, %v3885
        %v6630 = vmul.f32 %v6627, %v3886
        %v6631 = vmul.f32 %v6627, %v3887
        %v6632 = vmul.f32 %v6627, %v3888
        %v6633 = vmul.f32 %v6627, %v3889
        %v6640 = vrot.slane %v6628, 1
        %v6641 = vrot.slane %v6630, 1
        %v6642 = vsel %vm3319, %v6640, %v6641
        %v6643 = vrot.slane %v6629, 1
        %v6644 = vrot.slane %v6631, 1
        %v6645 = vsel %vm3319, %v6643, %v6644
        %v6646 = vrot.slane %v6632, 1
        %v6647 = vsel %vm3319, %v6641, %v6646
        %v6648 = vrot.slane %v6633, 1
        %v6649 = vsel %vm3319, %v6644, %v6648
        %6650 = vrot.lane.b32.xlu0 %v6642, 103
        %v6651 = vpop.permute.xlu0 %6650
        %6652 = vrot.lane.b32.xlu0 %v6645, 103
        %v6653 = vpop.permute.xlu0 %6652
        %6654 = vrot.lane.b32.xlu0 %v6647, 103
        %v6655 = vpop.permute.xlu0 %6654
        %6656 = vrot.lane.b32.xlu0 %v6649, 103
        %v6657 = vpop.permute.xlu0 %6656
        %v6658 = vsel %vm2647, %v6651, %v6653
        %v6659 = vsel %vm2647, %v6655, %v6657
        %v6662 = vadd.f32 %v6510, %v6658
        %v6663 = vadd.f32 %v6511, %v6659
        %s6664 = sld [smem:[#allocation6 + $0x79]]
        %v6665 = vstv %s6664
        %v6666 = vmul.f32 %v6665, %v3884
        %v6667 = vmul.f32 %v6665, %v3885
        %v6668 = vmul.f32 %v6665, %v3886
        %v6669 = vmul.f32 %v6665, %v3887
        %v6670 = vmul.f32 %v6665, %v3888
        %v6671 = vmul.f32 %v6665, %v3889
        %v6678 = vrot.slane %v6666, 1
        %v6679 = vrot.slane %v6668, 1
        %v6680 = vsel %vm3319, %v6678, %v6679
        %v6681 = vrot.slane %v6667, 1
        %v6682 = vrot.slane %v6669, 1
        %v6683 = vsel %vm3319, %v6681, %v6682
        %v6684 = vrot.slane %v6670, 1
        %v6685 = vsel %vm3319, %v6679, %v6684
        %v6686 = vrot.slane %v6671, 1
        %v6687 = vsel %vm3319, %v6682, %v6686
        %6688 = vrot.lane.b32.xlu0 %v6680, 103
        %v6689 = vpop.permute.xlu0 %6688
        %6690 = vrot.lane.b32.xlu0 %v6683, 103
        %v6691 = vpop.permute.xlu0 %6690
        %6692 = vrot.lane.b32.xlu0 %v6685, 103
        %v6693 = vpop.permute.xlu0 %6692
        %6694 = vrot.lane.b32.xlu0 %v6687, 103
        %v6695 = vpop.permute.xlu0 %6694
        %v6696 = vsel %vm2647, %v6689, %v6691
        %v6697 = vsel %vm2647, %v6693, %v6695
        %v6700 = vadd.f32 %v6548, %v6696
        %v6701 = vadd.f32 %v6549, %v6697
        %s6702 = sld [smem:[#allocation6 + $0xb9]]
        %v6703 = vstv %s6702
        %v6704 = vmul.f32 %v6703, %v3884
        %v6705 = vmul.f32 %v6703, %v3885
        %v6706 = vmul.f32 %v6703, %v3886
        %v6707 = vmul.f32 %v6703, %v3887
        %v6708 = vmul.f32 %v6703, %v3888
        %v6709 = vmul.f32 %v6703, %v3889
        %v6716 = vrot.slane %v6704, 1
        %v6717 = vrot.slane %v6706, 1
        %v6718 = vsel %vm3319, %v6716, %v6717
        %v6719 = vrot.slane %v6705, 1
        %v6720 = vrot.slane %v6707, 1
        %v6721 = vsel %vm3319, %v6719, %v6720
        %v6722 = vrot.slane %v6708, 1
        %v6723 = vsel %vm3319, %v6717, %v6722
        %v6724 = vrot.slane %v6709, 1
        %v6725 = vsel %vm3319, %v6720, %v6724
        %6726 = vrot.lane.b32.xlu0 %v6718, 103
        %v6727 = vpop.permute.xlu0 %6726
        %6728 = vrot.lane.b32.xlu0 %v6721, 103
        %v6729 = vpop.permute.xlu0 %6728
        %6730 = vrot.lane.b32.xlu0 %v6723, 103
        %v6731 = vpop.permute.xlu0 %6730
        %6732 = vrot.lane.b32.xlu0 %v6725, 103
        %v6733 = vpop.permute.xlu0 %6732
        %v6734 = vsel %vm2647, %v6727, %v6729
        %v6735 = vsel %vm2647, %v6731, %v6733
        %v6738 = vadd.f32 %v6586, %v6734
        %v6739 = vadd.f32 %v6587, %v6735
        %s6740 = sld [smem:[#allocation6 + $0xf9]]
        %v6741 = vstv %s6740
        %v6742 = vmul.f32 %v6741, %v3884
        %v6743 = vmul.f32 %v6741, %v3885
        %v6744 = vmul.f32 %v6741, %v3886
        %v6745 = vmul.f32 %v6741, %v3887
        %v6746 = vmul.f32 %v6741, %v3888
        %v6747 = vmul.f32 %v6741, %v3889
        %v6754 = vrot.slane %v6742, 1
        %v6755 = vrot.slane %v6744, 1
        %v6756 = vsel %vm3319, %v6754, %v6755
        %v6757 = vrot.slane %v6743, 1
        %v6758 = vrot.slane %v6745, 1
        %v6759 = vsel %vm3319, %v6757, %v6758
        %v6760 = vrot.slane %v6746, 1
        %v6761 = vsel %vm3319, %v6755, %v6760
        %v6762 = vrot.slane %v6747, 1
        %v6763 = vsel %vm3319, %v6758, %v6762
        %6764 = vrot.lane.b32.xlu0 %v6756, 103
        %v6765 = vpop.permute.xlu0 %6764
        %6766 = vrot.lane.b32.xlu0 %v6759, 103
        %v6767 = vpop.permute.xlu0 %6766
        %6768 = vrot.lane.b32.xlu0 %v6761, 103
        %v6769 = vpop.permute.xlu0 %6768
        %6770 = vrot.lane.b32.xlu0 %v6763, 103
        %v6771 = vpop.permute.xlu0 %6770
        %v6772 = vsel %vm2647, %v6765, %v6767
        %v6773 = vsel %vm2647, %v6769, %v6771
        %v6776 = vadd.f32 %v6624, %v6772
        %v6777 = vadd.f32 %v6625, %v6773
        %s6778 = sld [smem:[#allocation6 + $0x3a]]
        %v6779 = vstv %s6778
        %v6780 = vmul.f32 %v6779, %v3884
        %v6781 = vmul.f32 %v6779, %v3885
        %v6782 = vmul.f32 %v6779, %v3886
        %v6783 = vmul.f32 %v6779, %v3887
        %v6784 = vmul.f32 %v6779, %v3888
        %v6785 = vmul.f32 %v6779, %v3889
        %v6792 = vrot.slane %v6780, 1
        %v6793 = vrot.slane %v6782, 1
        %v6794 = vsel %vm3319, %v6792, %v6793
        %v6795 = vrot.slane %v6781, 1
        %v6796 = vrot.slane %v6783, 1
        %v6797 = vsel %vm3319, %v6795, %v6796
        %v6798 = vrot.slane %v6784, 1
        %v6799 = vsel %vm3319, %v6793, %v6798
        %v6800 = vrot.slane %v6785, 1
        %v6801 = vsel %vm3319, %v6796, %v6800
        %6802 = vrot.lane.b32.xlu0 %v6794, 102
        %v6803 = vpop.permute.xlu0 %6802
        %6804 = vrot.lane.b32.xlu0 %v6797, 102
        %v6805 = vpop.permute.xlu0 %6804
        %6806 = vrot.lane.b32.xlu0 %v6799, 102
        %v6807 = vpop.permute.xlu0 %6806
        %6808 = vrot.lane.b32.xlu0 %v6801, 102
        %v6809 = vpop.permute.xlu0 %6808
        %v6810 = vsel %vm2744, %v6803, %v6805
        %v6811 = vsel %vm2744, %v6807, %v6809
        %v6814 = vadd.f32 %v6662, %v6810
        %v6815 = vadd.f32 %v6663, %v6811
        %s6816 = sld [smem:[#allocation6 + $0x7a]]
        %v6817 = vstv %s6816
        %v6818 = vmul.f32 %v6817, %v3884
        %v6819 = vmul.f32 %v6817, %v3885
        %v6820 = vmul.f32 %v6817, %v3886
        %v6821 = vmul.f32 %v6817, %v3887
        %v6822 = vmul.f32 %v6817, %v3888
        %v6823 = vmul.f32 %v6817, %v3889
        %v6830 = vrot.slane %v6818, 1
        %v6831 = vrot.slane %v6820, 1
        %v6832 = vsel %vm3319, %v6830, %v6831
        %v6833 = vrot.slane %v6819, 1
        %v6834 = vrot.slane %v6821, 1
        %v6835 = vsel %vm3319, %v6833, %v6834
        %v6836 = vrot.slane %v6822, 1
        %v6837 = vsel %vm3319, %v6831, %v6836
        %v6838 = vrot.slane %v6823, 1
        %v6839 = vsel %vm3319, %v6834, %v6838
        %6840 = vrot.lane.b32.xlu0 %v6832, 102
        %v6841 = vpop.permute.xlu0 %6840
        %6842 = vrot.lane.b32.xlu0 %v6835, 102
        %v6843 = vpop.permute.xlu0 %6842
        %6844 = vrot.lane.b32.xlu0 %v6837, 102
        %v6845 = vpop.permute.xlu0 %6844
        %6846 = vrot.lane.b32.xlu0 %v6839, 102
        %v6847 = vpop.permute.xlu0 %6846
        %v6848 = vsel %vm2744, %v6841, %v6843
        %v6849 = vsel %vm2744, %v6845, %v6847
        %v6852 = vadd.f32 %v6700, %v6848
        %v6853 = vadd.f32 %v6701, %v6849
        %s6854 = sld [smem:[#allocation6 + $0xba]]
        %v6855 = vstv %s6854
        %v6856 = vmul.f32 %v6855, %v3884
        %v6857 = vmul.f32 %v6855, %v3885
        %v6858 = vmul.f32 %v6855, %v3886
        %v6859 = vmul.f32 %v6855, %v3887
        %v6860 = vmul.f32 %v6855, %v3888
        %v6861 = vmul.f32 %v6855, %v3889
        %v6868 = vrot.slane %v6856, 1
        %v6869 = vrot.slane %v6858, 1
        %v6870 = vsel %vm3319, %v6868, %v6869
        %v6871 = vrot.slane %v6857, 1
        %v6872 = vrot.slane %v6859, 1
        %v6873 = vsel %vm3319, %v6871, %v6872
        %v6874 = vrot.slane %v6860, 1
        %v6875 = vsel %vm3319, %v6869, %v6874
        %v6876 = vrot.slane %v6861, 1
        %v6877 = vsel %vm3319, %v6872, %v6876
        %6878 = vrot.lane.b32.xlu0 %v6870, 102
        %v6879 = vpop.permute.xlu0 %6878
        %6880 = vrot.lane.b32.xlu0 %v6873, 102
        %v6881 = vpop.permute.xlu0 %6880
        %6882 = vrot.lane.b32.xlu0 %v6875, 102
        %v6883 = vpop.permute.xlu0 %6882
        %6884 = vrot.lane.b32.xlu0 %v6877, 102
        %v6885 = vpop.permute.xlu0 %6884
        %v6886 = vsel %vm2744, %v6879, %v6881
        %v6887 = vsel %vm2744, %v6883, %v6885
        %v6890 = vadd.f32 %v6738, %v6886
        %v6891 = vadd.f32 %v6739, %v6887
        %s6892 = sld [smem:[#allocation6 + $0xfa]]
        %v6893 = vstv %s6892
        %v6894 = vmul.f32 %v6893, %v3884
        %v6895 = vmul.f32 %v6893, %v3885
        %v6896 = vmul.f32 %v6893, %v3886
        %v6897 = vmul.f32 %v6893, %v3887
        %v6898 = vmul.f32 %v6893, %v3888
        %v6899 = vmul.f32 %v6893, %v3889
        %v6906 = vrot.slane %v6894, 1
        %v6907 = vrot.slane %v6896, 1
        %v6908 = vsel %vm3319, %v6906, %v6907
        %v6909 = vrot.slane %v6895, 1
        %v6910 = vrot.slane %v6897, 1
        %v6911 = vsel %vm3319, %v6909, %v6910
        %v6912 = vrot.slane %v6898, 1
        %v6913 = vsel %vm3319, %v6907, %v6912
        %v6914 = vrot.slane %v6899, 1
        %v6915 = vsel %vm3319, %v6910, %v6914
        %6916 = vrot.lane.b32.xlu0 %v6908, 102
        %v6917 = vpop.permute.xlu0 %6916
        %6918 = vrot.lane.b32.xlu0 %v6911, 102
        %v6919 = vpop.permute.xlu0 %6918
        %6920 = vrot.lane.b32.xlu0 %v6913, 102
        %v6921 = vpop.permute.xlu0 %6920
        %6922 = vrot.lane.b32.xlu0 %v6915, 102
        %v6923 = vpop.permute.xlu0 %6922
        %v6924 = vsel %vm2744, %v6917, %v6919
        %v6925 = vsel %vm2744, %v6921, %v6923
        %v6928 = vadd.f32 %v6776, %v6924
        %v6929 = vadd.f32 %v6777, %v6925
        %s6930 = sld [smem:[#allocation6 + $0x3b]]
        %v6931 = vstv %s6930
        %v6932 = vmul.f32 %v6931, %v3884
        %v6933 = vmul.f32 %v6931, %v3885
        %v6934 = vmul.f32 %v6931, %v3886
        %v6935 = vmul.f32 %v6931, %v3887
        %v6936 = vmul.f32 %v6931, %v3888
        %v6937 = vmul.f32 %v6931, %v3889
        %v6944 = vrot.slane %v6932, 1
        %v6945 = vrot.slane %v6934, 1
        %v6946 = vsel %vm3319, %v6944, %v6945
        %v6947 = vrot.slane %v6933, 1
        %v6948 = vrot.slane %v6935, 1
        %v6949 = vsel %vm3319, %v6947, %v6948
        %v6950 = vrot.slane %v6936, 1
        %v6951 = vsel %vm3319, %v6945, %v6950
        %v6952 = vrot.slane %v6937, 1
        %v6953 = vsel %vm3319, %v6948, %v6952
        %6954 = vrot.lane.b32.xlu0 %v6946, 101
        %v6955 = vpop.permute.xlu0 %6954
        %6956 = vrot.lane.b32.xlu0 %v6949, 101
        %v6957 = vpop.permute.xlu0 %6956
        %6958 = vrot.lane.b32.xlu0 %v6951, 101
        %v6959 = vpop.permute.xlu0 %6958
        %6960 = vrot.lane.b32.xlu0 %v6953, 101
        %v6961 = vpop.permute.xlu0 %6960
        %v6962 = vsel %vm2841, %v6955, %v6957
        %v6963 = vsel %vm2841, %v6959, %v6961
        %v6966 = vadd.f32 %v6814, %v6962
        %v6967 = vadd.f32 %v6815, %v6963
        %s6968 = sld [smem:[#allocation6 + $0x7b]]
        %v6969 = vstv %s6968
        %v6970 = vmul.f32 %v6969, %v3884
        %v6971 = vmul.f32 %v6969, %v3885
        %v6972 = vmul.f32 %v6969, %v3886
        %v6973 = vmul.f32 %v6969, %v3887
        %v6974 = vmul.f32 %v6969, %v3888
        %v6975 = vmul.f32 %v6969, %v3889
        %v6982 = vrot.slane %v6970, 1
        %v6983 = vrot.slane %v6972, 1
        %v6984 = vsel %vm3319, %v6982, %v6983
        %v6985 = vrot.slane %v6971, 1
        %v6986 = vrot.slane %v6973, 1
        %v6987 = vsel %vm3319, %v6985, %v6986
        %v6988 = vrot.slane %v6974, 1
        %v6989 = vsel %vm3319, %v6983, %v6988
        %v6990 = vrot.slane %v6975, 1
        %v6991 = vsel %vm3319, %v6986, %v6990
        %6992 = vrot.lane.b32.xlu0 %v6984, 101
        %v6993 = vpop.permute.xlu0 %6992
        %6994 = vrot.lane.b32.xlu0 %v6987, 101
        %v6995 = vpop.permute.xlu0 %6994
        %6996 = vrot.lane.b32.xlu0 %v6989, 101
        %v6997 = vpop.permute.xlu0 %6996
        %6998 = vrot.lane.b32.xlu0 %v6991, 101
        %v6999 = vpop.permute.xlu0 %6998
        %v7000 = vsel %vm2841, %v6993, %v6995
        %v7001 = vsel %vm2841, %v6997, %v6999
        %v7004 = vadd.f32 %v6852, %v7000
        %v7005 = vadd.f32 %v6853, %v7001
        %s7006 = sld [smem:[#allocation6 + $0xbb]]
        %v7007 = vstv %s7006
        %v7008 = vmul.f32 %v7007, %v3884
        %v7009 = vmul.f32 %v7007, %v3885
        %v7010 = vmul.f32 %v7007, %v3886
        %v7011 = vmul.f32 %v7007, %v3887
        %v7012 = vmul.f32 %v7007, %v3888
        %v7013 = vmul.f32 %v7007, %v3889
        %v7020 = vrot.slane %v7008, 1
        %v7021 = vrot.slane %v7010, 1
        %v7022 = vsel %vm3319, %v7020, %v7021
        %v7023 = vrot.slane %v7009, 1
        %v7024 = vrot.slane %v7011, 1
        %v7025 = vsel %vm3319, %v7023, %v7024
        %v7026 = vrot.slane %v7012, 1
        %v7027 = vsel %vm3319, %v7021, %v7026
        %v7028 = vrot.slane %v7013, 1
        %v7029 = vsel %vm3319, %v7024, %v7028
        %7030 = vrot.lane.b32.xlu0 %v7022, 101
        %v7031 = vpop.permute.xlu0 %7030
        %7032 = vrot.lane.b32.xlu0 %v7025, 101
        %v7033 = vpop.permute.xlu0 %7032
        %7034 = vrot.lane.b32.xlu0 %v7027, 101
        %v7035 = vpop.permute.xlu0 %7034
        %7036 = vrot.lane.b32.xlu0 %v7029, 101
        %v7037 = vpop.permute.xlu0 %7036
        %v7038 = vsel %vm2841, %v7031, %v7033
        %v7039 = vsel %vm2841, %v7035, %v7037
        %v7042 = vadd.f32 %v6890, %v7038
        %v7043 = vadd.f32 %v6891, %v7039
        %s7044 = sld [smem:[#allocation6 + $0xfb]]
        %v7045 = vstv %s7044
        %v7046 = vmul.f32 %v7045, %v3884
        %v7047 = vmul.f32 %v7045, %v3885
        %v7048 = vmul.f32 %v7045, %v3886
        %v7049 = vmul.f32 %v7045, %v3887
        %v7050 = vmul.f32 %v7045, %v3888
        %v7051 = vmul.f32 %v7045, %v3889
        %v7058 = vrot.slane %v7046, 1
        %v7059 = vrot.slane %v7048, 1
        %v7060 = vsel %vm3319, %v7058, %v7059
        %v7061 = vrot.slane %v7047, 1
        %v7062 = vrot.slane %v7049, 1
        %v7063 = vsel %vm3319, %v7061, %v7062
        %v7064 = vrot.slane %v7050, 1
        %v7065 = vsel %vm3319, %v7059, %v7064
        %v7066 = vrot.slane %v7051, 1
        %v7067 = vsel %vm3319, %v7062, %v7066
        %7068 = vrot.lane.b32.xlu0 %v7060, 101
        %v7069 = vpop.permute.xlu0 %7068
        %7070 = vrot.lane.b32.xlu0 %v7063, 101
        %v7071 = vpop.permute.xlu0 %7070
        %7072 = vrot.lane.b32.xlu0 %v7065, 101
        %v7073 = vpop.permute.xlu0 %7072
        %7074 = vrot.lane.b32.xlu0 %v7067, 101
        %v7075 = vpop.permute.xlu0 %7074
        %v7076 = vsel %vm2841, %v7069, %v7071
        %v7077 = vsel %vm2841, %v7073, %v7075
        %v7080 = vadd.f32 %v6928, %v7076
        %v7081 = vadd.f32 %v6929, %v7077
        %s7082 = sld [smem:[#allocation6 + $0x3c]]
        %v7083 = vstv %s7082
        %v7084 = vmul.f32 %v7083, %v3884
        %v7085 = vmul.f32 %v7083, %v3885
        %v7086 = vmul.f32 %v7083, %v3886
        %v7087 = vmul.f32 %v7083, %v3887
        %v7088 = vmul.f32 %v7083, %v3888
        %v7089 = vmul.f32 %v7083, %v3889
        %v7096 = vrot.slane %v7084, 1
        %v7097 = vrot.slane %v7086, 1
        %v7098 = vsel %vm3319, %v7096, %v7097
        %v7099 = vrot.slane %v7085, 1
        %v7100 = vrot.slane %v7087, 1
        %v7101 = vsel %vm3319, %v7099, %v7100
        %v7102 = vrot.slane %v7088, 1
        %v7103 = vsel %vm3319, %v7097, %v7102
        %v7104 = vrot.slane %v7089, 1
        %v7105 = vsel %vm3319, %v7100, %v7104
        %7106 = vrot.lane.b32.xlu0 %v7098, 100
        %v7107 = vpop.permute.xlu0 %7106
        %7108 = vrot.lane.b32.xlu0 %v7101, 100
        %v7109 = vpop.permute.xlu0 %7108
        %7110 = vrot.lane.b32.xlu0 %v7103, 100
        %v7111 = vpop.permute.xlu0 %7110
        %7112 = vrot.lane.b32.xlu0 %v7105, 100
        %v7113 = vpop.permute.xlu0 %7112
        %v7114 = vsel %vm2938, %v7107, %v7109
        %v7115 = vsel %vm2938, %v7111, %v7113
        %v7118 = vadd.f32 %v6966, %v7114
        %v7119 = vadd.f32 %v6967, %v7115
        %s7120 = sld [smem:[#allocation6 + $0x7c]]
        %v7121 = vstv %s7120
        %v7122 = vmul.f32 %v7121, %v3884
        %v7123 = vmul.f32 %v7121, %v3885
        %v7124 = vmul.f32 %v7121, %v3886
        %v7125 = vmul.f32 %v7121, %v3887
        %v7126 = vmul.f32 %v7121, %v3888
        %v7127 = vmul.f32 %v7121, %v3889
        %v7134 = vrot.slane %v7122, 1
        %v7135 = vrot.slane %v7124, 1
        %v7136 = vsel %vm3319, %v7134, %v7135
        %v7137 = vrot.slane %v7123, 1
        %v7138 = vrot.slane %v7125, 1
        %v7139 = vsel %vm3319, %v7137, %v7138
        %v7140 = vrot.slane %v7126, 1
        %v7141 = vsel %vm3319, %v7135, %v7140
        %v7142 = vrot.slane %v7127, 1
        %v7143 = vsel %vm3319, %v7138, %v7142
        %7144 = vrot.lane.b32.xlu0 %v7136, 100
        %v7145 = vpop.permute.xlu0 %7144
        %7146 = vrot.lane.b32.xlu0 %v7139, 100
        %v7147 = vpop.permute.xlu0 %7146
        %7148 = vrot.lane.b32.xlu0 %v7141, 100
        %v7149 = vpop.permute.xlu0 %7148
        %7150 = vrot.lane.b32.xlu0 %v7143, 100
        %v7151 = vpop.permute.xlu0 %7150
        %v7152 = vsel %vm2938, %v7145, %v7147
        %v7153 = vsel %vm2938, %v7149, %v7151
        %v7156 = vadd.f32 %v7004, %v7152
        %v7157 = vadd.f32 %v7005, %v7153
        %s7158 = sld [smem:[#allocation6 + $0xbc]]
        %v7159 = vstv %s7158
        %v7160 = vmul.f32 %v7159, %v3884
        %v7161 = vmul.f32 %v7159, %v3885
        %v7162 = vmul.f32 %v7159, %v3886
        %v7163 = vmul.f32 %v7159, %v3887
        %v7164 = vmul.f32 %v7159, %v3888
        %v7165 = vmul.f32 %v7159, %v3889
        %v7172 = vrot.slane %v7160, 1
        %v7173 = vrot.slane %v7162, 1
        %v7174 = vsel %vm3319, %v7172, %v7173
        %v7175 = vrot.slane %v7161, 1
        %v7176 = vrot.slane %v7163, 1
        %v7177 = vsel %vm3319, %v7175, %v7176
        %v7178 = vrot.slane %v7164, 1
        %v7179 = vsel %vm3319, %v7173, %v7178
        %v7180 = vrot.slane %v7165, 1
        %v7181 = vsel %vm3319, %v7176, %v7180
        %7182 = vrot.lane.b32.xlu0 %v7174, 100
        %v7183 = vpop.permute.xlu0 %7182
        %7184 = vrot.lane.b32.xlu0 %v7177, 100
        %v7185 = vpop.permute.xlu0 %7184
        %7186 = vrot.lane.b32.xlu0 %v7179, 100
        %v7187 = vpop.permute.xlu0 %7186
        %7188 = vrot.lane.b32.xlu0 %v7181, 100
        %v7189 = vpop.permute.xlu0 %7188
        %v7190 = vsel %vm2938, %v7183, %v7185
        %v7191 = vsel %vm2938, %v7187, %v7189
        %v7194 = vadd.f32 %v7042, %v7190
        %v7195 = vadd.f32 %v7043, %v7191
        %s7196 = sld [smem:[#allocation6 + $0xfc]]
        %v7197 = vstv %s7196
        %v7198 = vmul.f32 %v7197, %v3884
        %v7199 = vmul.f32 %v7197, %v3885
        %v7200 = vmul.f32 %v7197, %v3886
        %v7201 = vmul.f32 %v7197, %v3887
        %v7202 = vmul.f32 %v7197, %v3888
        %v7203 = vmul.f32 %v7197, %v3889
        %v7210 = vrot.slane %v7198, 1
        %v7211 = vrot.slane %v7200, 1
        %v7212 = vsel %vm3319, %v7210, %v7211
        %v7213 = vrot.slane %v7199, 1
        %v7214 = vrot.slane %v7201, 1
        %v7215 = vsel %vm3319, %v7213, %v7214
        %v7216 = vrot.slane %v7202, 1
        %v7217 = vsel %vm3319, %v7211, %v7216
        %v7218 = vrot.slane %v7203, 1
        %v7219 = vsel %vm3319, %v7214, %v7218
        %7220 = vrot.lane.b32.xlu0 %v7212, 100
        %v7221 = vpop.permute.xlu0 %7220
        %7222 = vrot.lane.b32.xlu0 %v7215, 100
        %v7223 = vpop.permute.xlu0 %7222
        %7224 = vrot.lane.b32.xlu0 %v7217, 100
        %v7225 = vpop.permute.xlu0 %7224
        %7226 = vrot.lane.b32.xlu0 %v7219, 100
        %v7227 = vpop.permute.xlu0 %7226
        %v7228 = vsel %vm2938, %v7221, %v7223
        %v7229 = vsel %vm2938, %v7225, %v7227
        %v7232 = vadd.f32 %v7080, %v7228
        %v7233 = vadd.f32 %v7081, %v7229
        %s7234 = sld [smem:[#allocation6 + $0x3d]]
        %v7235 = vstv %s7234
        %v7236 = vmul.f32 %v7235, %v3884
        %v7237 = vmul.f32 %v7235, %v3885
        %v7238 = vmul.f32 %v7235, %v3886
        %v7239 = vmul.f32 %v7235, %v3887
        %v7240 = vmul.f32 %v7235, %v3888
        %v7241 = vmul.f32 %v7235, %v3889
        %v7248 = vrot.slane %v7236, 1
        %v7249 = vrot.slane %v7238, 1
        %v7250 = vsel %vm3319, %v7248, %v7249
        %v7251 = vrot.slane %v7237, 1
        %v7252 = vrot.slane %v7239, 1
        %v7253 = vsel %vm3319, %v7251, %v7252
        %v7254 = vrot.slane %v7240, 1
        %v7255 = vsel %vm3319, %v7249, %v7254
        %v7256 = vrot.slane %v7241, 1
        %v7257 = vsel %vm3319, %v7252, %v7256
        %7258 = vrot.lane.b32.xlu0 %v7250, 99
        %v7259 = vpop.permute.xlu0 %7258
        %7260 = vrot.lane.b32.xlu0 %v7253, 99
        %v7261 = vpop.permute.xlu0 %7260
        %7262 = vrot.lane.b32.xlu0 %v7255, 99
        %v7263 = vpop.permute.xlu0 %7262
        %7264 = vrot.lane.b32.xlu0 %v7257, 99
        %v7265 = vpop.permute.xlu0 %7264
        %v7266 = vsel %vm3035, %v7259, %v7261
        %v7267 = vsel %vm3035, %v7263, %v7265
        %v7270 = vadd.f32 %v7118, %v7266
        %v7271 = vadd.f32 %v7119, %v7267
        %s7272 = sld [smem:[#allocation6 + $0x7d]]
        %v7273 = vstv %s7272
        %v7274 = vmul.f32 %v7273, %v3884
        %v7275 = vmul.f32 %v7273, %v3885
        %v7276 = vmul.f32 %v7273, %v3886
        %v7277 = vmul.f32 %v7273, %v3887
        %v7278 = vmul.f32 %v7273, %v3888
        %v7279 = vmul.f32 %v7273, %v3889
        %v7286 = vrot.slane %v7274, 1
        %v7287 = vrot.slane %v7276, 1
        %v7288 = vsel %vm3319, %v7286, %v7287
        %v7289 = vrot.slane %v7275, 1
        %v7290 = vrot.slane %v7277, 1
        %v7291 = vsel %vm3319, %v7289, %v7290
        %v7292 = vrot.slane %v7278, 1
        %v7293 = vsel %vm3319, %v7287, %v7292
        %v7294 = vrot.slane %v7279, 1
        %v7295 = vsel %vm3319, %v7290, %v7294
        %7296 = vrot.lane.b32.xlu0 %v7288, 99
        %v7297 = vpop.permute.xlu0 %7296
        %7298 = vrot.lane.b32.xlu0 %v7291, 99
        %v7299 = vpop.permute.xlu0 %7298
        %7300 = vrot.lane.b32.xlu0 %v7293, 99
        %v7301 = vpop.permute.xlu0 %7300
        %7302 = vrot.lane.b32.xlu0 %v7295, 99
        %v7303 = vpop.permute.xlu0 %7302
        %v7304 = vsel %vm3035, %v7297, %v7299
        %v7305 = vsel %vm3035, %v7301, %v7303
        %v7308 = vadd.f32 %v7156, %v7304
        %v7309 = vadd.f32 %v7157, %v7305
        %s7310 = sld [smem:[#allocation6 + $0xbd]]
        %v7311 = vstv %s7310
        %v7312 = vmul.f32 %v7311, %v3884
        %v7313 = vmul.f32 %v7311, %v3885
        %v7314 = vmul.f32 %v7311, %v3886
        %v7315 = vmul.f32 %v7311, %v3887
        %v7316 = vmul.f32 %v7311, %v3888
        %v7317 = vmul.f32 %v7311, %v3889
        %v7324 = vrot.slane %v7312, 1
        %v7325 = vrot.slane %v7314, 1
        %v7326 = vsel %vm3319, %v7324, %v7325
        %v7327 = vrot.slane %v7313, 1
        %v7328 = vrot.slane %v7315, 1
        %v7329 = vsel %vm3319, %v7327, %v7328
        %v7330 = vrot.slane %v7316, 1
        %v7331 = vsel %vm3319, %v7325, %v7330
        %v7332 = vrot.slane %v7317, 1
        %v7333 = vsel %vm3319, %v7328, %v7332
        %7334 = vrot.lane.b32.xlu0 %v7326, 99
        %v7335 = vpop.permute.xlu0 %7334
        %7336 = vrot.lane.b32.xlu0 %v7329, 99
        %v7337 = vpop.permute.xlu0 %7336
        %7338 = vrot.lane.b32.xlu0 %v7331, 99
        %v7339 = vpop.permute.xlu0 %7338
        %7340 = vrot.lane.b32.xlu0 %v7333, 99
        %v7341 = vpop.permute.xlu0 %7340
        %v7342 = vsel %vm3035, %v7335, %v7337
        %v7343 = vsel %vm3035, %v7339, %v7341
        %v7346 = vadd.f32 %v7194, %v7342
        %v7347 = vadd.f32 %v7195, %v7343
        %s7348 = sld [smem:[#allocation6 + $0xfd]]
        %v7349 = vstv %s7348
        %v7350 = vmul.f32 %v7349, %v3884
        %v7351 = vmul.f32 %v7349, %v3885
        %v7352 = vmul.f32 %v7349, %v3886
        %v7353 = vmul.f32 %v7349, %v3887
        %v7354 = vmul.f32 %v7349, %v3888
        %v7355 = vmul.f32 %v7349, %v3889
        %v7362 = vrot.slane %v7350, 1
        %v7363 = vrot.slane %v7352, 1
        %v7364 = vsel %vm3319, %v7362, %v7363
        %v7365 = vrot.slane %v7351, 1
        %v7366 = vrot.slane %v7353, 1
        %v7367 = vsel %vm3319, %v7365, %v7366
        %v7368 = vrot.slane %v7354, 1
        %v7369 = vsel %vm3319, %v7363, %v7368
        %v7370 = vrot.slane %v7355, 1
        %v7371 = vsel %vm3319, %v7366, %v7370
        %7372 = vrot.lane.b32.xlu0 %v7364, 99
        %v7373 = vpop.permute.xlu0 %7372
        %7374 = vrot.lane.b32.xlu0 %v7367, 99
        %v7375 = vpop.permute.xlu0 %7374
        %7376 = vrot.lane.b32.xlu0 %v7369, 99
        %v7377 = vpop.permute.xlu0 %7376
        %7378 = vrot.lane.b32.xlu0 %v7371, 99
        %v7379 = vpop.permute.xlu0 %7378
        %v7380 = vsel %vm3035, %v7373, %v7375
        %v7381 = vsel %vm3035, %v7377, %v7379
        %v7384 = vadd.f32 %v7232, %v7380
        %v7385 = vadd.f32 %v7233, %v7381
        %s7386 = sld [smem:[#allocation6 + $0x3e]]
        %v7387 = vstv %s7386
        %v7388 = vmul.f32 %v7387, %v3884
        %v7389 = vmul.f32 %v7387, %v3885
        %v7390 = vmul.f32 %v7387, %v3886
        %v7391 = vmul.f32 %v7387, %v3887
        %v7392 = vmul.f32 %v7387, %v3888
        %v7393 = vmul.f32 %v7387, %v3889
        %v7400 = vrot.slane %v7388, 1
        %v7401 = vrot.slane %v7390, 1
        %v7402 = vsel %vm3319, %v7400, %v7401
        %v7403 = vrot.slane %v7389, 1
        %v7404 = vrot.slane %v7391, 1
        %v7405 = vsel %vm3319, %v7403, %v7404
        %v7406 = vrot.slane %v7392, 1
        %v7407 = vsel %vm3319, %v7401, %v7406
        %v7408 = vrot.slane %v7393, 1
        %v7409 = vsel %vm3319, %v7404, %v7408
        %7410 = vrot.lane.b32.xlu0 %v7402, 98
        %v7411 = vpop.permute.xlu0 %7410
        %7412 = vrot.lane.b32.xlu0 %v7405, 98
        %v7413 = vpop.permute.xlu0 %7412
        %7414 = vrot.lane.b32.xlu0 %v7407, 98
        %v7415 = vpop.permute.xlu0 %7414
        %7416 = vrot.lane.b32.xlu0 %v7409, 98
        %v7417 = vpop.permute.xlu0 %7416
        %v7418 = vsel %vm3132, %v7411, %v7413
        %v7419 = vsel %vm3132, %v7415, %v7417
        %v7422 = vadd.f32 %v7270, %v7418
        %v7423 = vadd.f32 %v7271, %v7419
        %s7424 = sld [smem:[#allocation6 + $0x7e]]
        %v7425 = vstv %s7424
        %v7426 = vmul.f32 %v7425, %v3884
        %v7427 = vmul.f32 %v7425, %v3885
        %v7428 = vmul.f32 %v7425, %v3886
        %v7429 = vmul.f32 %v7425, %v3887
        %v7430 = vmul.f32 %v7425, %v3888
        %v7431 = vmul.f32 %v7425, %v3889
        %v7438 = vrot.slane %v7426, 1
        %v7439 = vrot.slane %v7428, 1
        %v7440 = vsel %vm3319, %v7438, %v7439
        %v7441 = vrot.slane %v7427, 1
        %v7442 = vrot.slane %v7429, 1
        %v7443 = vsel %vm3319, %v7441, %v7442
        %v7444 = vrot.slane %v7430, 1
        %v7445 = vsel %vm3319, %v7439, %v7444
        %v7446 = vrot.slane %v7431, 1
        %v7447 = vsel %vm3319, %v7442, %v7446
        %7448 = vrot.lane.b32.xlu0 %v7440, 98
        %v7449 = vpop.permute.xlu0 %7448
        %7450 = vrot.lane.b32.xlu0 %v7443, 98
        %v7451 = vpop.permute.xlu0 %7450
        %7452 = vrot.lane.b32.xlu0 %v7445, 98
        %v7453 = vpop.permute.xlu0 %7452
        %7454 = vrot.lane.b32.xlu0 %v7447, 98
        %v7455 = vpop.permute.xlu0 %7454
        %v7456 = vsel %vm3132, %v7449, %v7451
        %v7457 = vsel %vm3132, %v7453, %v7455
        %v7460 = vadd.f32 %v7308, %v7456
        %v7461 = vadd.f32 %v7309, %v7457
        %s7462 = sld [smem:[#allocation6 + $0xbe]]
        %v7463 = vstv %s7462
        %v7464 = vmul.f32 %v7463, %v3884
        %v7465 = vmul.f32 %v7463, %v3885
        %v7466 = vmul.f32 %v7463, %v3886
        %v7467 = vmul.f32 %v7463, %v3887
        %v7468 = vmul.f32 %v7463, %v3888
        %v7469 = vmul.f32 %v7463, %v3889
        %v7476 = vrot.slane %v7464, 1
        %v7477 = vrot.slane %v7466, 1
        %v7478 = vsel %vm3319, %v7476, %v7477
        %v7479 = vrot.slane %v7465, 1
        %v7480 = vrot.slane %v7467, 1
        %v7481 = vsel %vm3319, %v7479, %v7480
        %v7482 = vrot.slane %v7468, 1
        %v7483 = vsel %vm3319, %v7477, %v7482
        %v7484 = vrot.slane %v7469, 1
        %v7485 = vsel %vm3319, %v7480, %v7484
        %7486 = vrot.lane.b32.xlu0 %v7478, 98
        %v7487 = vpop.permute.xlu0 %7486
        %7488 = vrot.lane.b32.xlu0 %v7481, 98
        %v7489 = vpop.permute.xlu0 %7488
        %7490 = vrot.lane.b32.xlu0 %v7483, 98
        %v7491 = vpop.permute.xlu0 %7490
        %7492 = vrot.lane.b32.xlu0 %v7485, 98
        %v7493 = vpop.permute.xlu0 %7492
        %v7494 = vsel %vm3132, %v7487, %v7489
        %v7495 = vsel %vm3132, %v7491, %v7493
        %v7498 = vadd.f32 %v7346, %v7494
        %v7499 = vadd.f32 %v7347, %v7495
        %s7500 = sld [smem:[#allocation6 + $0xfe]]
        %v7501 = vstv %s7500
        %v7502 = vmul.f32 %v7501, %v3884
        %v7503 = vmul.f32 %v7501, %v3885
        %v7504 = vmul.f32 %v7501, %v3886
        %v7505 = vmul.f32 %v7501, %v3887
        %v7506 = vmul.f32 %v7501, %v3888
        %v7507 = vmul.f32 %v7501, %v3889
        %v7514 = vrot.slane %v7502, 1
        %v7515 = vrot.slane %v7504, 1
        %v7516 = vsel %vm3319, %v7514, %v7515
        %v7517 = vrot.slane %v7503, 1
        %v7518 = vrot.slane %v7505, 1
        %v7519 = vsel %vm3319, %v7517, %v7518
        %v7520 = vrot.slane %v7506, 1
        %v7521 = vsel %vm3319, %v7515, %v7520
        %v7522 = vrot.slane %v7507, 1
        %v7523 = vsel %vm3319, %v7518, %v7522
        %7524 = vrot.lane.b32.xlu0 %v7516, 98
        %v7525 = vpop.permute.xlu0 %7524
        %7526 = vrot.lane.b32.xlu0 %v7519, 98
        %v7527 = vpop.permute.xlu0 %7526
        %7528 = vrot.lane.b32.xlu0 %v7521, 98
        %v7529 = vpop.permute.xlu0 %7528
        %7530 = vrot.lane.b32.xlu0 %v7523, 98
        %v7531 = vpop.permute.xlu0 %7530
        %v7532 = vsel %vm3132, %v7525, %v7527
        %v7533 = vsel %vm3132, %v7529, %v7531
        %v7536 = vadd.f32 %v7384, %v7532
        %v7537 = vadd.f32 %v7385, %v7533
        %s7538 = sld [smem:[#allocation6 + $0x3f]]
        %v7539 = vstv %s7538
        %v7540 = vmul.f32 %v7539, %v3884
        %v7541 = vmul.f32 %v7539, %v3885
        %v7542 = vmul.f32 %v7539, %v3886
        %v7543 = vmul.f32 %v7539, %v3887
        %v7544 = vmul.f32 %v7539, %v3888
        %v7545 = vmul.f32 %v7539, %v3889
        %v7552 = vrot.slane %v7540, 1
        %v7553 = vrot.slane %v7542, 1
        %v7554 = vsel %vm3319, %v7552, %v7553
        %v7555 = vrot.slane %v7541, 1
        %v7556 = vrot.slane %v7543, 1
        %v7557 = vsel %vm3319, %v7555, %v7556
        %v7558 = vrot.slane %v7544, 1
        %v7559 = vsel %vm3319, %v7553, %v7558
        %v7560 = vrot.slane %v7545, 1
        %v7561 = vsel %vm3319, %v7556, %v7560
        %7562 = vrot.lane.b32.xlu0 %v7554, 97
        %v7563 = vpop.permute.xlu0 %7562
        %7564 = vrot.lane.b32.xlu0 %v7557, 97
        %v7565 = vpop.permute.xlu0 %7564
        %7566 = vrot.lane.b32.xlu0 %v7559, 97
        %v7567 = vpop.permute.xlu0 %7566
        %7568 = vrot.lane.b32.xlu0 %v7561, 97
        %v7569 = vpop.permute.xlu0 %7568
        %v7570 = vsel %vm3229, %v7563, %v7565
        %v7571 = vsel %vm3229, %v7567, %v7569
        %v7574 = vadd.f32 %v7422, %v7570
        %v7575 = vadd.f32 %v7423, %v7571
        %s7576 = sld [smem:[#allocation6 + $0x7f]]
        %v7577 = vstv %s7576
        %v7578 = vmul.f32 %v7577, %v3884
        %v7579 = vmul.f32 %v7577, %v3885
        %v7580 = vmul.f32 %v7577, %v3886
        %v7581 = vmul.f32 %v7577, %v3887
        %v7582 = vmul.f32 %v7577, %v3888
        %v7583 = vmul.f32 %v7577, %v3889
        %v7590 = vrot.slane %v7578, 1
        %v7591 = vrot.slane %v7580, 1
        %v7592 = vsel %vm3319, %v7590, %v7591
        %v7593 = vrot.slane %v7579, 1
        %v7594 = vrot.slane %v7581, 1
        %v7595 = vsel %vm3319, %v7593, %v7594
        %v7596 = vrot.slane %v7582, 1
        %v7597 = vsel %vm3319, %v7591, %v7596
        %v7598 = vrot.slane %v7583, 1
        %v7599 = vsel %vm3319, %v7594, %v7598
        %7600 = vrot.lane.b32.xlu0 %v7592, 97
        %v7601 = vpop.permute.xlu0 %7600
        %7602 = vrot.lane.b32.xlu0 %v7595, 97
        %v7603 = vpop.permute.xlu0 %7602
        %7604 = vrot.lane.b32.xlu0 %v7597, 97
        %v7605 = vpop.permute.xlu0 %7604
        %7606 = vrot.lane.b32.xlu0 %v7599, 97
        %v7607 = vpop.permute.xlu0 %7606
        %v7608 = vsel %vm3229, %v7601, %v7603
        %v7609 = vsel %vm3229, %v7605, %v7607
        %v7612 = vadd.f32 %v7460, %v7608
        %v7613 = vadd.f32 %v7461, %v7609
        %s7614 = sld [smem:[#allocation6 + $0xbf]]
        %v7615 = vstv %s7614
        %v7616 = vmul.f32 %v7615, %v3884
        %v7617 = vmul.f32 %v7615, %v3885
        %v7618 = vmul.f32 %v7615, %v3886
        %v7619 = vmul.f32 %v7615, %v3887
        %v7620 = vmul.f32 %v7615, %v3888
        %v7621 = vmul.f32 %v7615, %v3889
        %v7628 = vrot.slane %v7616, 1
        %v7629 = vrot.slane %v7618, 1
        %v7630 = vsel %vm3319, %v7628, %v7629
        %v7631 = vrot.slane %v7617, 1
        %v7632 = vrot.slane %v7619, 1
        %v7633 = vsel %vm3319, %v7631, %v7632
        %v7634 = vrot.slane %v7620, 1
        %v7635 = vsel %vm3319, %v7629, %v7634
        %v7636 = vrot.slane %v7621, 1
        %v7637 = vsel %vm3319, %v7632, %v7636
        %7638 = vrot.lane.b32.xlu0 %v7630, 97
        %v7639 = vpop.permute.xlu0 %7638
        %7640 = vrot.lane.b32.xlu0 %v7633, 97
        %v7641 = vpop.permute.xlu0 %7640
        %7642 = vrot.lane.b32.xlu0 %v7635, 97
        %v7643 = vpop.permute.xlu0 %7642
        %7644 = vrot.lane.b32.xlu0 %v7637, 97
        %v7645 = vpop.permute.xlu0 %7644
        %v7646 = vsel %vm3229, %v7639, %v7641
        %v7647 = vsel %vm3229, %v7643, %v7645
        %v7650 = vadd.f32 %v7498, %v7646
        %v7651 = vadd.f32 %v7499, %v7647
        %s7652 = sld [smem:[#allocation6 + $0xff]]
        %v7653 = vstv %s7652
        %v7654 = vmul.f32 %v7653, %v3884
        %v7655 = vmul.f32 %v7653, %v3885
        %v7656 = vmul.f32 %v7653, %v3886
        %v7657 = vmul.f32 %v7653, %v3887
        %v7658 = vmul.f32 %v7653, %v3888
        %v7659 = vmul.f32 %v7653, %v3889
        %v7666 = vrot.slane %v7654, 1
        %v7667 = vrot.slane %v7656, 1
        %v7668 = vsel %vm3319, %v7666, %v7667
        %v7669 = vrot.slane %v7655, 1
        %v7670 = vrot.slane %v7657, 1
        %v7671 = vsel %vm3319, %v7669, %v7670
        %v7672 = vrot.slane %v7658, 1
        %v7673 = vsel %vm3319, %v7667, %v7672
        %v7674 = vrot.slane %v7659, 1
        %v7675 = vsel %vm3319, %v7670, %v7674
        %7676 = vrot.lane.b32.xlu0 %v7668, 97
        %v7677 = vpop.permute.xlu0 %7676
        %7678 = vrot.lane.b32.xlu0 %v7671, 97
        %v7679 = vpop.permute.xlu0 %7678
        %7680 = vrot.lane.b32.xlu0 %v7673, 97
        %v7681 = vpop.permute.xlu0 %7680
        %7682 = vrot.lane.b32.xlu0 %v7675, 97
        %v7683 = vpop.permute.xlu0 %7682
        %v7684 = vsel %vm3229, %v7677, %v7679
        %v7685 = vsel %vm3229, %v7681, %v7683
        %v7688 = vadd.f32 %v7536, %v7684
        %v7689 = vadd.f32 %v7537, %v7685
        %vm7690 = vcmp.gt.f32.partialorder %v7574, 0.0
        %vm7691 = vcmp.gt.f32.partialorder %v7575, 0.0
        %v7692 = vmin.f32 %v7574, 0.0
        %v7693 = vmin.f32 %v7575, 0.0
        %v7694 = vmul.f32 %v7692, 1.442695
        %v7695 = vpow.pop %v7694
        %v7696 = vmul.f32 %v7693, 1.442695
        %v7697 = vpow.pop %v7696
        %v7698 = vsub.f32 %v7695, 1.0
        %v7699 = vsub.f32 %v7697, 1.0
        %v7700 = vsel %vm7690, %v7574, %v7698
        %v7701 = vsel %vm7691, %v7575, %v7699
        %s7702 = sld [smem:[#allocation9 + $0x4]]
        %v7703 = vstv %s7702
        %v7704 = vmul.f32 %v7700, %v7703
        %v7705 = vmul.f32 %v7701, %v7703
        %s7706 = sld [smem:[#allocation9 + $0x8]]
        %v7707 = vstv %s7706
        %v7708 = vadd.f32 %v7704, %v7707
        %v7709 = vadd.f32 %v7705, %v7707
        %v7711 = vrot.slane %v7708, 1
        %v7713 = vmax.f32 %v7708, %v7711
        %7715 = vrot.lane.b32.xlu0 %v7713, 127
        %v7716 = vpop.permute.xlu0 %7715
        %v7718 = vmax.f32 %v7713, %v7716
        %vm7719 = vcmask 983040
        %7720 = vst.msk [vmem:[#allocation3] sm:$0x1] %vm7719, %v7718
        %vm7721 = vcmask 987140
        %7722 = vst.msk [vmem:[#allocation3 - $0x3] sm:$0x10] %vm7721, %v7718
        %v7724 = vrot.slane %v7709, 1
        %v7726 = vmax.f32 %v7709, %v7724
        %7728 = vrot.lane.b32.xlu0 %v7726, 127
        %v7729 = vpop.permute.xlu0 %7728
        %v7731 = vmax.f32 %v7726, %v7729
        %7732 = vst.msk [vmem:[#allocation3 + $0x2] sm:$0x1] %vm7719, %v7731
        %7733 = vst.msk [vmem:[#allocation3 - $0x1] sm:$0x10] %vm7721, %v7731
        %vm7734 = vcmp.gt.f32.partialorder %v7612, 0.0
        %vm7735 = vcmp.gt.f32.partialorder %v7613, 0.0
        %v7736 = vmin.f32 %v7612, 0.0
        %v7737 = vmin.f32 %v7613, 0.0
        %v7738 = vmul.f32 %v7736, 1.442695
        %v7739 = vpow.pop %v7738
        %v7740 = vmul.f32 %v7737, 1.442695
        %v7741 = vpow.pop %v7740
        %v7742 = vsub.f32 %v7739, 1.0
        %v7743 = vsub.f32 %v7741, 1.0
        %v7744 = vsel %vm7734, %v7612, %v7742
        %v7745 = vsel %vm7735, %v7613, %v7743
        %s7746 = sld [smem:[#allocation9 + $0x5]]
        %v7747 = vstv %s7746
        %v7748 = vmul.f32 %v7744, %v7747
        %v7749 = vmul.f32 %v7745, %v7747
        %s7750 = sld [smem:[#allocation9 + $0x9]]
        %v7751 = vstv %s7750
        %v7752 = vadd.f32 %v7748, %v7751
        %v7753 = vadd.f32 %v7749, %v7751
        %v7755 = vrot.slane %v7752, 1
        %v7757 = vmax.f32 %v7752, %v7755
        %7759 = vrot.lane.b32.xlu0 %v7757, 127
        %v7760 = vpop.permute.xlu0 %7759
        %v7762 = vmax.f32 %v7757, %v7760
        %7763 = vst.msk [vmem:[#allocation3 + $0x4] sm:$0x1] %vm7719, %v7762
        %7764 = vst.msk [vmem:[#allocation3 + $0x1] sm:$0x10] %vm7721, %v7762
        %v7766 = vrot.slane %v7753, 1
        %v7768 = vmax.f32 %v7753, %v7766
        %7770 = vrot.lane.b32.xlu0 %v7768, 127
        %v7771 = vpop.permute.xlu0 %7770
        %v7773 = vmax.f32 %v7768, %v7771
        %7774 = vst.msk [vmem:[#allocation3 + $0x6] sm:$0x1] %vm7719, %v7773
        %7775 = vst.msk [vmem:[#allocation3 + $0x3] sm:$0x10] %vm7721, %v7773
        %vm7776 = vcmp.gt.f32.partialorder %v7650, 0.0
        %vm7777 = vcmp.gt.f32.partialorder %v7651, 0.0
        %v7778 = vmin.f32 %v7650, 0.0
        %v7779 = vmin.f32 %v7651, 0.0
        %v7780 = vmul.f32 %v7778, 1.442695
        %v7781 = vpow.pop %v7780
        %v7782 = vmul.f32 %v7779, 1.442695
        %v7783 = vpow.pop %v7782
        %v7784 = vsub.f32 %v7781, 1.0
        %v7785 = vsub.f32 %v7783, 1.0
        %v7786 = vsel %vm7776, %v7650, %v7784
        %v7787 = vsel %vm7777, %v7651, %v7785
        %s7788 = sld [smem:[#allocation9 + $0x6]]
        %v7789 = vstv %s7788
        %v7790 = vmul.f32 %v7786, %v7789
        %v7791 = vmul.f32 %v7787, %v7789
        %s7792 = sld [smem:[#allocation9 + $0xa]]
        %v7793 = vstv %s7792
        %v7794 = vadd.f32 %v7790, %v7793
        %v7795 = vadd.f32 %v7791, %v7793
        %v7797 = vrot.slane %v7794, 1
        %v7799 = vmax.f32 %v7794, %v7797
        %7801 = vrot.lane.b32.xlu0 %v7799, 127
        %v7802 = vpop.permute.xlu0 %7801
        %v7804 = vmax.f32 %v7799, %v7802
        %7805 = vst.msk [vmem:[#allocation3 + $0x8] sm:$0x1] %vm7719, %v7804
        %7806 = vst.msk [vmem:[#allocation3 + $0x5] sm:$0x10] %vm7721, %v7804
        %v7808 = vrot.slane %v7795, 1
        %v7810 = vmax.f32 %v7795, %v7808
        %7812 = vrot.lane.b32.xlu0 %v7810, 127
        %v7813 = vpop.permute.xlu0 %7812
        %v7815 = vmax.f32 %v7810, %v7813
        %7816 = vst.msk [vmem:[#allocation3 + $0xa] sm:$0x1] %vm7719, %v7815
        %7817 = vst.msk [vmem:[#allocation3 + $0x7] sm:$0x10] %vm7721, %v7815
        %vm7818 = vcmp.gt.f32.partialorder %v7688, 0.0
        %vm7819 = vcmp.gt.f32.partialorder %v7689, 0.0
        %v7820 = vmin.f32 %v7688, 0.0
        %v7821 = vmin.f32 %v7689, 0.0
        %v7822 = vmul.f32 %v7820, 1.442695
        %v7823 = vpow.pop %v7822
        %v7824 = vmul.f32 %v7821, 1.442695
        %v7825 = vpow.pop %v7824
        %v7826 = vsub.f32 %v7823, 1.0
        %v7827 = vsub.f32 %v7825, 1.0
        %v7828 = vsel %vm7818, %v7688, %v7826
        %v7829 = vsel %vm7819, %v7689, %v7827
        %s7830 = sld [smem:[#allocation9 + $0x7]]
        %v7831 = vstv %s7830
        %v7832 = vmul.f32 %v7828, %v7831
        %v7833 = vmul.f32 %v7829, %v7831
        %s7834 = sld [smem:[#allocation9 + $0xb]]
        %v7835 = vstv %s7834
        %v7836 = vadd.f32 %v7832, %v7835
        %v7837 = vadd.f32 %v7833, %v7835
        %v7839 = vrot.slane %v7836, 1
        %v7841 = vmax.f32 %v7836, %v7839
        %7843 = vrot.lane.b32.xlu0 %v7841, 127
        %v7844 = vpop.permute.xlu0 %7843
        %v7846 = vmax.f32 %v7841, %v7844
        %7847 = vst.msk [vmem:[#allocation3 + $0xc] sm:$0x1] %vm7719, %v7846
        %7848 = vst.msk [vmem:[#allocation3 + $0x9] sm:$0x10] %vm7721, %v7846
        %v7850 = vrot.slane %v7837, 1
        %v7852 = vmax.f32 %v7837, %v7850
        %7854 = vrot.lane.b32.xlu0 %v7852, 127
        %v7855 = vpop.permute.xlu0 %7854
        %v7857 = vmax.f32 %v7852, %v7855
        %7858 = vst.msk [vmem:[#allocation3 + $0xe] sm:$0x1] %vm7719, %v7857
        %7859 = vst.msk [vmem:[#allocation3 + $0xb] sm:$0x10] %vm7721, %v7857
        %v7860 = vld [vmem:[#allocation3] sm:$0xff]
        %v7861 = vld [vmem:[#allocation3 + $0x8] sm:$0xff]
        %v7862 = vld [vmem:[%s5] sm:$0xff]
        %v7863 = vld [vmem:[%s5 + $0x8] sm:$0xff]
        %v7864 = vld [vmem:[%s5 + $0x10] sm:$0xff]
        %v7865 = vld [vmem:[%s5 + $0x18] sm:$0xff]
        %v7866 = vld [vmem:[%s5 + $0x20] sm:$0xff]
        %v7867 = vld [vmem:[%s5 + $0x28] sm:$0xff]
        %v7868 = vld [vmem:[%s5 + $0x30] sm:$0xff]
        %v7869 = vld [vmem:[%s5 + $0x38] sm:$0xff]
        %v7870 = vld [vmem:[%s5 + $0x40] sm:$0xff]
        %v7871 = vld [vmem:[%s5 + $0x48] sm:$0xff]
        %v7872 = vld [vmem:[%s5 + $0x50] sm:$0xff]
        %v7873 = vld [vmem:[%s5 + $0x58] sm:$0xff]
        %v7874 = vld [vmem:[%s5 + $0x60] sm:$0xff]
        %v7875 = vld [vmem:[%s5 + $0x68] sm:$0xff]
        %v7876 = vld [vmem:[%s5 + $0x70] sm:$0xff]
        %v7877 = vld [vmem:[%s5 + $0x78] sm:$0x1]
        %v7879 = vsel %vm901, %v7860, 0
        %v7882 = vsel %vm901, %v7861, 0
        %vm7884 = vcmask 1040384
        %v7886 = vsel %vm7884, %v7877, 0
        %7888 = vmatpush.msra.mxu0 %v7886
        %7889 = vmatpush.msra.mxu0 %v7876
        %7890 = vmatpush.msra.mxu0 %v7875
        %7891 = vmatpush.msra.mxu0 %v7874
        %7892 = vmatpush.msra.mxu0 %v7873
        %7893 = vmatpush.msra.mxu0 %v7872
        %7894 = vmatpush.msra.mxu0 %v7871
        %7895 = vmatpush.msra.mxu0 %v7870
        %7896 = vmatpush.msra.mxu0 %v7869
        %7897 = vmatpush.msra.mxu0 %v7868
        %7898 = vmatpush.msra.mxu0 %v7867
        %7899 = vmatpush.msra.mxu0 %v7866
        %7900 = vmatpush.msra.mxu0 %v7865
        %7901 = vmatpush.msra.mxu0 %v7864
        %7902 = vmatpush.msra.mxu0 %v7863
        %7903 = vmatpush.msra.mxu0 %v7862
        %7904 = vmatmul.f32.gmra.mxu0 %v7879
        %v7905 = vpop.f32.mrf.mxu0
        %v7906 = vadd.f32 0.0, %v7905
        %7907 = vmatmul.f32.gmra.mxu0 %v7882
        %v7908 = vpop.f32.mrf.mxu0
        %v7909 = vadd.f32 0.0, %v7908
        %7910 = vdwg.mxu0
        %vm7911 = vcmask 277504
        %7912 = vst.msk [vmem:[#allocation4] sm:$0xff] %vm7911, 0.0
        %7913 = vst.msk [vmem:[#allocation4 + $0x8] sm:$0xff] %vm7911, 0.0
        %7916 = vrot.lane.b32.xlu0 %v7906, 2
        %v7917 = vpop.permute.xlu0 %7916
        %7918 = vrot.lane.b32.xlu0 %v7909, 2
        %v7919 = vpop.permute.xlu0 %7918
        %vm7922 = vcmask 269328
        %7923 = vst.msk [vmem:[#allocation4] sm:$0xff] %vm7922, %v7917
        %7924 = vst.msk [vmem:[#allocation4 + $0x8] sm:$0xff] %vm7922, %v7919
        %v7925 = vld [vmem:[%s7] sm:$0xf]
        %v7926 = vld [vmem:[#allocation11] sm:$0xf]
        %v7927 = vld [vmem:[#allocation4] sm:$0xff]
        %v7928 = vld [vmem:[#allocation4 + $0x8] sm:$0xff]
        %s7929 = scalar_lea.vmem [#allocation11], 4
        %v7930 = vld [vmem:[%s7929] sm:$0xf]
        %7933 = vrot.lane.b32.xlu0 %v7927, 127
        %v7934 = vpop.permute.xlu0 %7933
        %7935 = vrot.lane.b32.xlu0 %v7928, 127
        %v7936 = vpop.permute.xlu0 %7935
        %vm7939 = vcmask 130048
        %v7941 = vsel %vm7939, %v7930, 0
        %7943 = vmatpush.msra.mxu0 0.0
        %7944 = vmatpush.msra.mxu0 0.0
        %7945 = vmatpush.msra.mxu0 0.0
        %7946 = vmatpush.msra.mxu0 0.0
        %7947 = vmatpush.msra.mxu0 0.0
        %7948 = vmatpush.msra.mxu0 0.0
        %7949 = vmatpush.msra.mxu0 0.0
        %7950 = vmatpush.msra.mxu0 0.0
        %7951 = vmatpush.msra.mxu0 0.0
        %7952 = vmatpush.msra.mxu0 0.0
        %7953 = vmatpush.msra.mxu0 0.0
        %7954 = vmatpush.msra.mxu0 0.0
        %7955 = vmatpush.msra.mxu0 0.0
        %7956 = vmatpush.msra.mxu0 0.0
        %7957 = vmatpush.msra.mxu0 %v7936
        %7958 = vmatpush.msra.mxu0 %v7934
        %7959 = vmatmul.f32.gmra.mxu0 %v7941
        %v7960 = vpop.f32.mrf.mxu0
        %v7961 = vadd.f32 0.0, %v7960
        %7962 = vdwg.mxu0
        %v7964 = vsel %vm7939, %v7926, 0
        %7966 = vmatpush.msra.mxu0 0.0
        %7967 = vmatpush.msra.mxu0 0.0
        %7968 = vmatpush.msra.mxu0 0.0
        %7969 = vmatpush.msra.mxu0 0.0
        %7970 = vmatpush.msra.mxu0 0.0
        %7971 = vmatpush.msra.mxu0 0.0
        %7972 = vmatpush.msra.mxu0 0.0
        %7973 = vmatpush.msra.mxu0 0.0
        %7974 = vmatpush.msra.mxu0 0.0
        %7975 = vmatpush.msra.mxu0 0.0
        %7976 = vmatpush.msra.mxu0 0.0
        %7977 = vmatpush.msra.mxu0 0.0
        %7978 = vmatpush.msra.mxu0 0.0
        %7979 = vmatpush.msra.mxu0 0.0
        %7980 = vmatpush.msra.mxu0 %v7928
        %7981 = vmatpush.msra.mxu0 %v7927
        %7982 = vmatmul.f32.gmra.mxu0 %v7964
        %v7983 = vpop.f32.mrf.mxu0
        %v7984 = vadd.f32 %v7961, %v7983
        %7985 = vdwg.mxu0
        %s7986 = scalar_lea.vmem [#allocation11], 8
        %v7987 = vld [vmem:[%s7986] sm:$0xf]
        %7988 = vrot.lane.b32.xlu0 %v7927, 126
        %v7989 = vpop.permute.xlu0 %7988
        %7990 = vrot.lane.b32.xlu0 %v7928, 126
        %v7991 = vpop.permute.xlu0 %7990
        %v7995 = vsel %vm7939, %v7987, 0
        %7997 = vmatpush.msra.mxu0 0.0
        %7998 = vmatpush.msra.mxu0 0.0
        %7999 = vmatpush.msra.mxu0 0.0
        %8000 = vmatpush.msra.mxu0 0.0
        %8001 = vmatpush.msra.mxu0 0.0
        %8002 = vmatpush.msra.mxu0 0.0
        %8003 = vmatpush.msra.mxu0 0.0
        %8004 = vmatpush.msra.mxu0 0.0
        %8005 = vmatpush.msra.mxu0 0.0
        %8006 = vmatpush.msra.mxu0 0.0
        %8007 = vmatpush.msra.mxu0 0.0
        %8008 = vmatpush.msra.mxu0 0.0
        %8009 = vmatpush.msra.mxu0 0.0
        %8010 = vmatpush.msra.mxu0 0.0
        %8011 = vmatpush.msra.mxu0 %v7991
        %8012 = vmatpush.msra.mxu0 %v7989
        %8013 = vmatmul.f32.gmra.mxu0 %v7995
        %v8014 = vpop.f32.mrf.mxu0
        %v8015 = vadd.f32 0.0, %v8014
        %8016 = vdwg.mxu0
        %v8017 = vadd.f32 %v7984, %v8015
        %s8018 = scalar_lea.vmem [#allocation11], 12
        %v8019 = vld [vmem:[%s8018] sm:$0xf]
        %8020 = vrot.lane.b32.xlu0 %v7927, 125
        %v8021 = vpop.permute.xlu0 %8020
        %8022 = vrot.lane.b32.xlu0 %v7928, 125
        %v8023 = vpop.permute.xlu0 %8022
        %v8027 = vsel %vm7939, %v8019, 0
        %8029 = vmatpush.msra.mxu0 0.0
        %8030 = vmatpush.msra.mxu0 0.0
        %8031 = vmatpush.msra.mxu0 0.0
        %8032 = vmatpush.msra.mxu0 0.0
        %8033 = vmatpush.msra.mxu0 0.0
        %8034 = vmatpush.msra.mxu0 0.0
        %8035 = vmatpush.msra.mxu0 0.0
        %8036 = vmatpush.msra.mxu0 0.0
        %8037 = vmatpush.msra.mxu0 0.0
        %8038 = vmatpush.msra.mxu0 0.0
        %8039 = vmatpush.msra.mxu0 0.0
        %8040 = vmatpush.msra.mxu0 0.0
        %8041 = vmatpush.msra.mxu0 0.0
        %8042 = vmatpush.msra.mxu0 0.0
        %8043 = vmatpush.msra.mxu0 %v8023
        %8044 = vmatpush.msra.mxu0 %v8021
        %8045 = vmatmul.f32.gmra.mxu0 %v8027
        %v8046 = vpop.f32.mrf.mxu0
        %v8047 = vadd.f32 0.0, %v8046
        %8048 = vdwg.mxu0
        %v8049 = vadd.f32 %v8017, %v8047
        %8051 = vset.pattern.permute.xlu0 0
        %8052 = vperm.xlu0 %8051, %v7925
        %v8053 = vpop.permute.xlu0 %8052
        %v8055 = vadd.f32 %v8049, %v8053
        %vm8056 = vcmp.gt.f32.partialorder %v8055, 0.0
        %v8057 = vmin.f32 %v8055, 0.0
        %v8058 = vmul.f32 %v8057, 1.442695
        %v8059 = vpow.pop %v8058
        %v8060 = vsub.f32 %v8059, 1.0
        %v8061 = vsel %vm8056, %v8055, %v8060
        %8062 = vset.pattern.permute.xlu0 1
        %8063 = vperm.xlu0 %8062, %v7925
        %v8064 = vpop.permute.xlu0 %8063
        %v8066 = vmul.f32 %v8061, %v8064
        %8067 = vset.pattern.permute.xlu0 2
        %8068 = vperm.xlu0 %8067, %v7925
        %v8069 = vpop.permute.xlu0 %8068
        %v8071 = vadd.f32 %v8066, %v8069
        %s8072 = scalar_lea.vmem [#allocation11], 16
        %v8073 = vld [vmem:[%s8072] sm:$0xf]
        %s8074 = scalar_lea.vmem [#allocation11], 20
        %v8075 = vld [vmem:[%s8074] sm:$0xf]
        %v8077 = vsel %vm7939, %v8075, 0
        %8079 = vmatpush.msra.mxu0 0.0
        %8080 = vmatpush.msra.mxu0 0.0
        %8081 = vmatpush.msra.mxu0 0.0
        %8082 = vmatpush.msra.mxu0 0.0
        %8083 = vmatpush.msra.mxu0 0.0
        %8084 = vmatpush.msra.mxu0 0.0
        %8085 = vmatpush.msra.mxu0 0.0
        %8086 = vmatpush.msra.mxu0 0.0
        %8087 = vmatpush.msra.mxu0 0.0
        %8088 = vmatpush.msra.mxu0 0.0
        %8089 = vmatpush.msra.mxu0 0.0
        %8090 = vmatpush.msra.mxu0 0.0
        %8091 = vmatpush.msra.mxu0 0.0
        %8092 = vmatpush.msra.mxu0 0.0
        %8093 = vmatpush.msra.mxu0 %v7936
        %8094 = vmatpush.msra.mxu0 %v7934
        %8095 = vmatmul.f32.gmra.mxu0 %v8077
        %v8096 = vpop.f32.mrf.mxu0
        %v8097 = vadd.f32 0.0, %v8096
        %8098 = vdwg.mxu0
        %v8100 = vsel %vm7939, %v8073, 0
        %8102 = vmatpush.msra.mxu0 0.0
        %8103 = vmatpush.msra.mxu0 0.0
        %8104 = vmatpush.msra.mxu0 0.0
        %8105 = vmatpush.msra.mxu0 0.0
        %8106 = vmatpush.msra.mxu0 0.0
        %8107 = vmatpush.msra.mxu0 0.0
        %8108 = vmatpush.msra.mxu0 0.0
        %8109 = vmatpush.msra.mxu0 0.0
        %8110 = vmatpush.msra.mxu0 0.0
        %8111 = vmatpush.msra.mxu0 0.0
        %8112 = vmatpush.msra.mxu0 0.0
        %8113 = vmatpush.msra.mxu0 0.0
        %8114 = vmatpush.msra.mxu0 0.0
        %8115 = vmatpush.msra.mxu0 0.0
        %8116 = vmatpush.msra.mxu0 %v7928
        %8117 = vmatpush.msra.mxu0 %v7927
        %8118 = vmatmul.f32.gmra.mxu0 %v8100
        %v8119 = vpop.f32.mrf.mxu0
        %v8120 = vadd.f32 %v8097, %v8119
        %8121 = vdwg.mxu0
        %s8122 = scalar_lea.vmem [#allocation11], 24
        %v8123 = vld [vmem:[%s8122] sm:$0xf]
        %v8125 = vsel %vm7939, %v8123, 0
        %8127 = vmatpush.msra.mxu0 0.0
        %8128 = vmatpush.msra.mxu0 0.0
        %8129 = vmatpush.msra.mxu0 0.0
        %8130 = vmatpush.msra.mxu0 0.0
        %8131 = vmatpush.msra.mxu0 0.0
        %8132 = vmatpush.msra.mxu0 0.0
        %8133 = vmatpush.msra.mxu0 0.0
        %8134 = vmatpush.msra.mxu0 0.0
        %8135 = vmatpush.msra.mxu0 0.0
        %8136 = vmatpush.msra.mxu0 0.0
        %8137 = vmatpush.msra.mxu0 0.0
        %8138 = vmatpush.msra.mxu0 0.0
        %8139 = vmatpush.msra.mxu0 0.0
        %8140 = vmatpush.msra.mxu0 0.0
        %8141 = vmatpush.msra.mxu0 %v7991
        %8142 = vmatpush.msra.mxu0 %v7989
        %8143 = vmatmul.f32.gmra.mxu0 %v8125
        %v8144 = vpop.f32.mrf.mxu0
        %v8145 = vadd.f32 0.0, %v8144
        %8146 = vdwg.mxu0
        %v8147 = vadd.f32 %v8120, %v8145
        %s8148 = scalar_lea.vmem [#allocation11], 28
        %v8149 = vld [vmem:[%s8148] sm:$0xf]
        %v8151 = vsel %vm7939, %v8149, 0
        %8153 = vmatpush.msra.mxu0 0.0
        %8154 = vmatpush.msra.mxu0 0.0
        %8155 = vmatpush.msra.mxu0 0.0
        %8156 = vmatpush.msra.mxu0 0.0
        %8157 = vmatpush.msra.mxu0 0.0
        %8158 = vmatpush.msra.mxu0 0.0
        %8159 = vmatpush.msra.mxu0 0.0
        %8160 = vmatpush.msra.mxu0 0.0
        %8161 = vmatpush.msra.mxu0 0.0
        %8162 = vmatpush.msra.mxu0 0.0
        %8163 = vmatpush.msra.mxu0 0.0
        %8164 = vmatpush.msra.mxu0 0.0
        %8165 = vmatpush.msra.mxu0 0.0
        %8166 = vmatpush.msra.mxu0 0.0
        %8167 = vmatpush.msra.mxu0 %v8023
        %8168 = vmatpush.msra.mxu0 %v8021
        %8169 = vmatmul.f32.gmra.mxu0 %v8151
        %v8170 = vpop.f32.mrf.mxu0
        %v8171 = vadd.f32 0.0, %v8170
        %8172 = vdwg.mxu0
        %v8173 = vadd.f32 %v8147, %v8171
        %v8174 = vadd.f32 %v8173, %v8053
        %vm8175 = vcmp.gt.f32.partialorder %v8174, 0.0
        %v8176 = vmin.f32 %v8174, 0.0
        %v8177 = vmul.f32 %v8176, 1.442695
        %v8178 = vpow.pop %v8177
        %v8179 = vsub.f32 %v8178, 1.0
        %v8180 = vsel %vm8175, %v8174, %v8179
        %v8181 = vmul.f32 %v8180, %v8064
        %v8182 = vadd.f32 %v8181, %v8069
        %s8183 = scalar_lea.vmem [#allocation11], 32
        %v8184 = vld [vmem:[%s8183] sm:$0xf]
        %s8185 = scalar_lea.vmem [#allocation11], 36
        %v8186 = vld [vmem:[%s8185] sm:$0xf]
        %v8188 = vsel %vm7939, %v8186, 0
        %8190 = vmatpush.msra.mxu0 0.0
        %8191 = vmatpush.msra.mxu0 0.0
        %8192 = vmatpush.msra.mxu0 0.0
        %8193 = vmatpush.msra.mxu0 0.0
        %8194 = vmatpush.msra.mxu0 0.0
        %8195 = vmatpush.msra.mxu0 0.0
        %8196 = vmatpush.msra.mxu0 0.0
        %8197 = vmatpush.msra.mxu0 0.0
        %8198 = vmatpush.msra.mxu0 0.0
        %8199 = vmatpush.msra.mxu0 0.0
        %8200 = vmatpush.msra.mxu0 0.0
        %8201 = vmatpush.msra.mxu0 0.0
        %8202 = vmatpush.msra.mxu0 0.0
        %8203 = vmatpush.msra.mxu0 0.0
        %8204 = vmatpush.msra.mxu0 %v7936
        %8205 = vmatpush.msra.mxu0 %v7934
        %8206 = vmatmul.f32.gmra.mxu0 %v8188
        %v8207 = vpop.f32.mrf.mxu0
        %v8208 = vadd.f32 0.0, %v8207
        %8209 = vdwg.mxu0
        %v8211 = vsel %vm7939, %v8184, 0
        %8213 = vmatpush.msra.mxu0 0.0
        %8214 = vmatpush.msra.mxu0 0.0
        %8215 = vmatpush.msra.mxu0 0.0
        %8216 = vmatpush.msra.mxu0 0.0
        %8217 = vmatpush.msra.mxu0 0.0
        %8218 = vmatpush.msra.mxu0 0.0
        %8219 = vmatpush.msra.mxu0 0.0
        %8220 = vmatpush.msra.mxu0 0.0
        %8221 = vmatpush.msra.mxu0 0.0
        %8222 = vmatpush.msra.mxu0 0.0
        %8223 = vmatpush.msra.mxu0 0.0
        %8224 = vmatpush.msra.mxu0 0.0
        %8225 = vmatpush.msra.mxu0 0.0
        %8226 = vmatpush.msra.mxu0 0.0
        %8227 = vmatpush.msra.mxu0 %v7928
        %8228 = vmatpush.msra.mxu0 %v7927
        %8229 = vmatmul.f32.gmra.mxu0 %v8211
        %v8230 = vpop.f32.mrf.mxu0
        %v8231 = vadd.f32 %v8208, %v8230
        %8232 = vdwg.mxu0
        %s8233 = scalar_lea.vmem [#allocation11], 40
        %v8234 = vld [vmem:[%s8233] sm:$0xf]
        %v8236 = vsel %vm7939, %v8234, 0
        %8238 = vmatpush.msra.mxu0 0.0
        %8239 = vmatpush.msra.mxu0 0.0
        %8240 = vmatpush.msra.mxu0 0.0
        %8241 = vmatpush.msra.mxu0 0.0
        %8242 = vmatpush.msra.mxu0 0.0
        %8243 = vmatpush.msra.mxu0 0.0
        %8244 = vmatpush.msra.mxu0 0.0
        %8245 = vmatpush.msra.mxu0 0.0
        %8246 = vmatpush.msra.mxu0 0.0
        %8247 = vmatpush.msra.mxu0 0.0
        %8248 = vmatpush.msra.mxu0 0.0
        %8249 = vmatpush.msra.mxu0 0.0
        %8250 = vmatpush.msra.mxu0 0.0
        %8251 = vmatpush.msra.mxu0 0.0
        %8252 = vmatpush.msra.mxu0 %v7991
        %8253 = vmatpush.msra.mxu0 %v7989
        %8254 = vmatmul.f32.gmra.mxu0 %v8236
        %v8255 = vpop.f32.mrf.mxu0
        %v8256 = vadd.f32 0.0, %v8255
        %8257 = vdwg.mxu0
        %v8258 = vadd.f32 %v8231, %v8256
        %s8259 = scalar_lea.vmem [#allocation11], 44
        %v8260 = vld [vmem:[%s8259] sm:$0xf]
        %v8262 = vsel %vm7939, %v8260, 0
        %8264 = vmatpush.msra.mxu0 0.0
        %8265 = vmatpush.msra.mxu0 0.0
        %8266 = vmatpush.msra.mxu0 0.0
        %8267 = vmatpush.msra.mxu0 0.0
        %8268 = vmatpush.msra.mxu0 0.0
        %8269 = vmatpush.msra.mxu0 0.0
        %8270 = vmatpush.msra.mxu0 0.0
        %8271 = vmatpush.msra.mxu0 0.0
        %8272 = vmatpush.msra.mxu0 0.0
        %8273 = vmatpush.msra.mxu0 0.0
        %8274 = vmatpush.msra.mxu0 0.0
        %8275 = vmatpush.msra.mxu0 0.0
        %8276 = vmatpush.msra.mxu0 0.0
        %8277 = vmatpush.msra.mxu0 0.0
        %8278 = vmatpush.msra.mxu0 %v8023
        %8279 = vmatpush.msra.mxu0 %v8021
        %8280 = vmatmul.f32.gmra.mxu0 %v8262
        %v8281 = vpop.f32.mrf.mxu0
        %v8282 = vadd.f32 0.0, %v8281
        %8283 = vdwg.mxu0
        %v8284 = vadd.f32 %v8258, %v8282
        %v8285 = vadd.f32 %v8284, %v8053
        %vm8286 = vcmp.gt.f32.partialorder %v8285, 0.0
        %v8287 = vmin.f32 %v8285, 0.0
        %v8288 = vmul.f32 %v8287, 1.442695
        %v8289 = vpow.pop %v8288
        %v8290 = vsub.f32 %v8289, 1.0
        %v8291 = vsel %vm8286, %v8285, %v8290
        %v8292 = vmul.f32 %v8291, %v8064
        %v8293 = vadd.f32 %v8292, %v8069
        %s8294 = scalar_lea.vmem [#allocation11], 48
        %v8295 = vld [vmem:[%s8294] sm:$0xf]
        %s8296 = scalar_lea.vmem [#allocation11], 52
        %v8297 = vld [vmem:[%s8296] sm:$0xf]
        %v8299 = vsel %vm7939, %v8297, 0
        %8301 = vmatpush.msra.mxu0 0.0
        %8302 = vmatpush.msra.mxu0 0.0
        %8303 = vmatpush.msra.mxu0 0.0
        %8304 = vmatpush.msra.mxu0 0.0
        %8305 = vmatpush.msra.mxu0 0.0
        %8306 = vmatpush.msra.mxu0 0.0
        %8307 = vmatpush.msra.mxu0 0.0
        %8308 = vmatpush.msra.mxu0 0.0
        %8309 = vmatpush.msra.mxu0 0.0
        %8310 = vmatpush.msra.mxu0 0.0
        %8311 = vmatpush.msra.mxu0 0.0
        %8312 = vmatpush.msra.mxu0 0.0
        %8313 = vmatpush.msra.mxu0 0.0
        %8314 = vmatpush.msra.mxu0 0.0
        %8315 = vmatpush.msra.mxu0 %v7936
        %8316 = vmatpush.msra.mxu0 %v7934
        %8317 = vmatmul.f32.gmra.mxu0 %v8299
        %v8318 = vpop.f32.mrf.mxu0
        %v8319 = vadd.f32 0.0, %v8318
        %8320 = vdwg.mxu0
        %v8322 = vsel %vm7939, %v8295, 0
        %8324 = vmatpush.msra.mxu0 0.0
        %8325 = vmatpush.msra.mxu0 0.0
        %8326 = vmatpush.msra.mxu0 0.0
        %8327 = vmatpush.msra.mxu0 0.0
        %8328 = vmatpush.msra.mxu0 0.0
        %8329 = vmatpush.msra.mxu0 0.0
        %8330 = vmatpush.msra.mxu0 0.0
        %8331 = vmatpush.msra.mxu0 0.0
        %8332 = vmatpush.msra.mxu0 0.0
        %8333 = vmatpush.msra.mxu0 0.0
        %8334 = vmatpush.msra.mxu0 0.0
        %8335 = vmatpush.msra.mxu0 0.0
        %8336 = vmatpush.msra.mxu0 0.0
        %8337 = vmatpush.msra.mxu0 0.0
        %8338 = vmatpush.msra.mxu0 %v7928
        %8339 = vmatpush.msra.mxu0 %v7927
        %8340 = vmatmul.f32.gmra.mxu0 %v8322
        %v8341 = vpop.f32.mrf.mxu0
        %v8342 = vadd.f32 %v8319, %v8341
        %8343 = vdwg.mxu0
        %s8344 = scalar_lea.vmem [#allocation11], 56
        %v8345 = vld [vmem:[%s8344] sm:$0xf]
        %v8347 = vsel %vm7939, %v8345, 0
        %8349 = vmatpush.msra.mxu0 0.0
        %8350 = vmatpush.msra.mxu0 0.0
        %8351 = vmatpush.msra.mxu0 0.0
        %8352 = vmatpush.msra.mxu0 0.0
        %8353 = vmatpush.msra.mxu0 0.0
        %8354 = vmatpush.msra.mxu0 0.0
        %8355 = vmatpush.msra.mxu0 0.0
        %8356 = vmatpush.msra.mxu0 0.0
        %8357 = vmatpush.msra.mxu0 0.0
        %8358 = vmatpush.msra.mxu0 0.0
        %8359 = vmatpush.msra.mxu0 0.0
        %8360 = vmatpush.msra.mxu0 0.0
        %8361 = vmatpush.msra.mxu0 0.0
        %8362 = vmatpush.msra.mxu0 0.0
        %8363 = vmatpush.msra.mxu0 %v7991
        %8364 = vmatpush.msra.mxu0 %v7989
        %8365 = vmatmul.f32.gmra.mxu0 %v8347
        %v8366 = vpop.f32.mrf.mxu0
        %v8367 = vadd.f32 0.0, %v8366
        %8368 = vdwg.mxu0
        %v8369 = vadd.f32 %v8342, %v8367
        %s8370 = scalar_lea.vmem [#allocation11], 60
        %v8371 = vld [vmem:[%s8370] sm:$0xf]
        %v8373 = vsel %vm7939, %v8371, 0
        %8375 = vmatpush.msra.mxu0 0.0
        %8376 = vmatpush.msra.mxu0 0.0
        %8377 = vmatpush.msra.mxu0 0.0
        %8378 = vmatpush.msra.mxu0 0.0
        %8379 = vmatpush.msra.mxu0 0.0
        %8380 = vmatpush.msra.mxu0 0.0
        %8381 = vmatpush.msra.mxu0 0.0
        %8382 = vmatpush.msra.mxu0 0.0
        %8383 = vmatpush.msra.mxu0 0.0
        %8384 = vmatpush.msra.mxu0 0.0
        %8385 = vmatpush.msra.mxu0 0.0
        %8386 = vmatpush.msra.mxu0 0.0
        %8387 = vmatpush.msra.mxu0 0.0
        %8388 = vmatpush.msra.mxu0 0.0
        %8389 = vmatpush.msra.mxu0 %v8023
        %8390 = vmatpush.msra.mxu0 %v8021
        %8391 = vmatmul.f32.gmra.mxu0 %v8373
        %v8392 = vpop.f32.mrf.mxu0
        %v8393 = vadd.f32 0.0, %v8392
        %8394 = vdwg.mxu0
        %v8395 = vadd.f32 %v8369, %v8393
        %v8396 = vadd.f32 %v8395, %v8053
        %vm8397 = vcmp.gt.f32.partialorder %v8396, 0.0
        %v8398 = vmin.f32 %v8396, 0.0
        %v8399 = vmul.f32 %v8398, 1.442695
        %v8400 = vpow.pop %v8399
        %v8401 = vsub.f32 %v8400, 1.0
        %v8402 = vsel %vm8397, %v8396, %v8401
        %v8403 = vmul.f32 %v8402, %v8064
        %v8404 = vadd.f32 %v8403, %v8069
        %s8405 = sld [smem:[#allocation5]]
        %v8406 = vmax.f32 %v8071, %v8182
        %8408 = vrot.lane.b32.xlu0 %v8406, 127
        %v8409 = vpop.permute.xlu0 %8408
        %v8411 = vmax.f32 %v8406, %v8409
        %8413 = vrot.lane.b32.xlu0 %v8411, 126
        %v8414 = vpop.permute.xlu0 %8413
        %v8416 = vmax.f32 %v8411, %v8414
        %v8417 = vld [vmem:[%s8] sm:$0xf]
        %v8418 = vmul.f32 %v8417, %v8416
        %vm8419 = vcmask 224256
        %v8420 = vsel %vm8419, %v8418, 0.0
        %8421 = vadd.xlane.f32.xlu0 %v8420
        %v8422 = vpop.xlane.xlu0 %8421
        %v8423 = vrot.slane %v8422, 4
        %v8424 = vadd.f32 %v8422, %v8423
        %v8425 = vrot.slane %v8424, 2
        %v8426 = vadd.f32 %v8424, %v8425
        %v8427 = vrot.slane %v8426, 1
        %v8428 = vadd.f32 %v8426, %v8427
        %s8429 = vtos %v8428
        %s8430 = sadd.f32 %s8405, %s8429
        %v8431 = vmax.f32 %v8293, %v8404
        %8433 = vrot.lane.b32.xlu0 %v8431, 127
        %v8434 = vpop.permute.xlu0 %8433
        %v8436 = vmax.f32 %v8431, %v8434
        %8438 = vrot.lane.b32.xlu0 %v8436, 126
        %v8439 = vpop.permute.xlu0 %8438
        %v8441 = vmax.f32 %v8436, %v8439
        %s8442 = scalar_lea.vmem %s8, 4
        %v8443 = vld [vmem:[%s8442] sm:$0xf]
        %v8444 = vmul.f32 %v8443, %v8441
        %v8445 = vsel %vm8419, %v8444, 0.0
        %8446 = vadd.xlane.f32.xlu0 %v8445
        %v8447 = vpop.xlane.xlu0 %8446
        %v8448 = vrot.slane %v8447, 4
        %v8449 = vadd.f32 %v8447, %v8448
        %v8450 = vrot.slane %v8449, 2
        %v8451 = vadd.f32 %v8449, %v8450
        %v8452 = vrot.slane %v8451, 1
        %v8453 = vadd.f32 %v8451, %v8452
        %s8454 = vtos %v8453
        %s8455 = sadd.f32 %s8430, %s8454
        %s8456 = ssub.f32 0.0, %s8455
        %v8457 = vstv %s8456
        %v8458 = vmul.f32 %v8457, 1.442695
        %v8459 = vpow.pop %v8458
        %s8460 = vtos %v8459
        %s8461 = sadd.f32 %s8460, 1.0
        %v8462 = vstv %s8461
        %v8463 = vrcp.pop %v8462
        %v8464 = vmul.f32 %v8462, %v8463
        %v8465 = vsub.f32 1.0, %v8464
        %v8466 = vmul.f32 %v8463, %v8465
        %v8467 = vadd.f32 %v8463, %v8466
        %vm8468 = vweird.f32 %v8462
        %vm8469 = vweird.f32 %v8463
        %vm8470 = vmor %vm8468, %vm8469
        %v8471 = vsel %vm8470, %v8463, %v8467
        %v8472 = vand.u32 2147483647, %v8462
        %vm8473 = vcmp.eq.f32.partialorder %v8472, 8.507059e+37
        %v8474 = vand.u32 %v8462, 2147483648
        %v8475 = vor.u32 1.1754944e-38, %v8474
        %v8476 = vsel %vm8473, %v8475, %v8471
        %s8477 = vtos %v8476
        %v8478 = vstv %s8477
        %8479 = vst [vmem:[%s402] sm:$0xff] %v8478
        %p8480 = scmp.lt.s32.totalorder %s25, 1
        %s8481 = scalar_select %p8480, %s25, 1
        %s8482 = smul.addr %s8481, 8
        %s8483 = scalar_lea.vmem %s10, %s8482
        // Predicated region
        $region73: #{eegnet_forward.1} parent=59 // pred_check
          %p8484 = pneg %p258
        $region74: #{eegnet_forward.1} parent=59 // pred_check_branch
          %8486 = sbr.rel (%p8484) target = $region76
        $region75: #{eegnet_forward.1} parent=59 // pred_region
          _
        $region76: #{eegnet_forward.1} parent=59 // pred_fallthru
          _
      $region60: #{eegnet_forward.1} parent=5 // pred_fallthru
        _
      %p8487 = scmp.le.s32.totalorder 2, %s20
      // Predicated region
      $region77: #{eegnet_forward.1} parent=5 // pred_check
        %p8488 = pneg %p8487
      $region78: #{eegnet_forward.1} parent=5 // pred_check_branch
        %8490 = sbr.rel (%p8488) target = $region80
      $region79: #{eegnet_forward.1} parent=5 // pred_region
        %s8491 = ssub.s32 %s20, 2
        // Predicated region
        $region81: #{eegnet_forward.1} parent=79 // pred_check
          %p8492 = pneg %p264
        $region82: #{eegnet_forward.1} parent=79 // pred_check_branch
          %8494 = sbr.rel (%p8492) target = $region84
        $region83: #{eegnet_forward.1} parent=79 // pred_region
          %p8495 = scmp.lt.s32.totalorder %s26, 1
          %s8496 = scalar_select %p8495, %s26, 1
          %s8497 = smul.addr %s8496, 8
          %s8498 = scalar_lea.vmem %s10, %s8497
        $region84: #{eegnet_forward.1} parent=79 // pred_fallthru
          _
      $region80: #{eegnet_forward.1} parent=5 // pred_fallthru
        _
    $region6: #{eegnet_forward.1} parent=1 // loop_footer
      %s24 = sadd.s32 1, %s20
    $region7: #{eegnet_forward.1} parent=1 // loop_footer_branch
      %19 = sbr.rel target = $region3
    $region8: #{eegnet_forward.1} parent=1 // loop_exit
      _
    %8499 = vsyncpa [#allocation7], 1
    %s8500 = scalar_lea.sflag [#allocation7], 1
    %8501 = vsyncpa %s8500, 1
    %8502 = vsyncpa [#allocation8], 1
    %s8503 = scalar_lea.sflag [#allocation8], 1
    %8504 = vsyncpa %s8503, 1
    %8505 = vsyncpa [#allocation10], 1

</llo_original>
